<compile_context>
chip_gen: v7x
topology: tpu7x:2x2x1
jax: 0.10.0
libtpu: 0.0.40
codegen_flags: <defaults>
</compile_context>

<pallas_src>
import functools

import jax
import jax.numpy as jnp
from jax.experimental import pallas as pl
from jax.experimental.pallas import tpu as pltpu


def _round_up(a: int, m: int) -> int:
    return (a + m - 1) // m * m


# ----------------------------- Pallas kernel -----------------------------

def _l2norm_linear_kernel(x_ref, v_ref, o_ref, acc_ref, ssq_ref, scale_ref, *,
                          eps_sq, mxu_dtype, precision):
    """Grid (i, j, k) = (M tiles, N tiles, K tiles), k innermost.

    x_ref:     (tm, tk) raw input rows (K chunk), input dtype
    v_ref:     (tn, tk) pre-normalized weight rows (K chunk), mxu_dtype
    o_ref:     (tm, tn) output tile (written at the last K step)
    acc_ref:   (tm, tn) f32 matmul accumulator              [VMEM scratch]
    ssq_ref:   (tm, 1)  f32 running sum(x^2) per row        [VMEM scratch]
    scale_ref: (tm, 1)  f32 cached 1/max(||x||, eps), reused across j
    """
    j = pl.program_id(1)
    k = pl.program_id(2)
    nk = pl.num_programs(2)

    @pl.when(k == 0)
    def _():
        acc_ref[...] = jnp.zeros_like(acc_ref)

    @pl.when((j == 0) & (k == 0))
    def _():
        ssq_ref[...] = jnp.zeros_like(ssq_ref)

    x = x_ref[...]                                        # (tm, tk)

    # MXU: contract the K chunks of both operands directly (no transpose /
    # XLU traffic), native operand width, f32 accumulation.
    acc_ref[...] += jax.lax.dot_general(
        x.astype(mxu_dtype), v_ref[...],
        (((1,), (1,)), ((), ())),
        preferred_element_type=jnp.float32,
        precision=precision)

    # Row sum-of-squares of x: only on the first N tile; cached scale is
    # reused for all j > 0 instead of re-reducing the row N//tn times.
    @pl.when(j == 0)
    def _():
        xf = x.astype(jnp.float32)
        ssq_ref[...] += jnp.sum(xf * xf, axis=-1, keepdims=True)

    @pl.when((j == 0) & (k == nk - 1))
    def _():
        # 1 / max(||x||, eps) == rsqrt(max(sum(x^2), eps^2)) — one EUP rsqrt,
        # no sqrt + divide on the VPU.
        scale_ref[...] = jax.lax.rsqrt(jnp.maximum(ssq_ref[...], eps_sq))

    @pl.when(k == nk - 1)
    def _():
        o_ref[...] = (acc_ref[...] * scale_ref[...]).astype(o_ref.dtype)


# ----------------------------- wrapper -----------------------------

def l2norm_linear(x, v_weight, *, mxu_dtype=None, precision=None):
    """x: (..., in_dim); v_weight: (out_dim, in_dim) weight_norm direction
    (parametrizations.weight.original1); magnitude original0 == 1, no bias.
    Returns (..., out_dim) in x.dtype."""
    # eps exactly as in the PyTorch forward (dtype-static at trace time).
    eps = 1e-6 if x.dtype == jnp.float16 else 1e-12

    *lead, K = x.shape
    N, K2 = v_weight.shape
    assert K == K2, (K, K2)

    # MXU operand dtype / precision knob:
    #  * bf16 inputs -> bf16 operands (full MXU rate), f32 accumulation.
    #  * f32 / f16 inputs -> f32 operands at HIGHEST precision (matches the
    #    PyTorch f32 semantics). Pass precision=... to trade accuracy for speed.
    if mxu_dtype is None:
        mxu_dtype = jnp.bfloat16 if x.dtype == jnp.bfloat16 else jnp.float32
    if precision is None and mxu_dtype == jnp.float32:
        precision = jax.lax.Precision.HIGHEST

    # Normalize the weight rows ONCE (weight_norm, g == 1): one fused O(N*K)
    # pass, then feed the MXU-width v_hat to the kernel.
    v32 = v_weight.astype(jnp.float32)
    v_hat = (v32 * jax.lax.rsqrt(jnp.sum(v32 * v32, axis=-1, keepdims=True))
             ).astype(mxu_dtype)

    x2d = x.reshape(-1, K)
    M = x2d.shape[0]

    # MXU-sized, (16,128)-aligned tiles; K tiled so per-step VMEM is bounded
    # (~4 MiB with double-buffering) regardless of in_dim.
    tm = 256 if M >= 256 else _round_up(M, 16)
    tn = 256 if N >= 256 else _round_up(N, 128)
    tk = 512 if K >= 512 else _round_up(K, 128)

    Mp, Np, Kp = _round_up(M, tm), _round_up(N, tn), _round_up(K, tk)
    if (Mp, Kp) != (M, K):
        x2d = jnp.pad(x2d, ((0, Mp - M), (0, Kp - K)))
    if (Np, Kp) != (N, K):
        v_hat = jnp.pad(v_hat, ((0, Np - N), (0, Kp - K)))  # pad AFTER normalizing

    grid = (Mp // tm, Np // tn, Kp // tk)

    kernel = functools.partial(
        _l2norm_linear_kernel,
        eps_sq=float(eps) ** 2, mxu_dtype=mxu_dtype, precision=precision)

    out2d = pl.pallas_call(
        kernel,
        out_shape=jax.ShapeDtypeStruct((Mp, Np), x.dtype),
        grid=grid,
        in_specs=[
            pl.BlockSpec((tm, tk), lambda i, j, k: (i, k)),  # x rows / K chunk
            # (If a trace shows exposed weight DMA at small tiles, add
            #  pipeline_mode=pl.Buffered(3) on this spec.)
            pl.BlockSpec((tn, tk), lambda i, j, k: (j, k)),  # normalized weight rows
        ],
        out_specs=pl.BlockSpec((tm, tn), lambda i, j, k: (i, j)),
        scratch_shapes=[
            pltpu.VMEM((tm, tn), jnp.float32),   # f32 matmul accumulator
            pltpu.VMEM((tm, 1), jnp.float32),    # running sum(x^2)
            pltpu.VMEM((tm, 1), jnp.float32),    # cached 1/max(||x||, eps)
        ],
        compiler_params=pltpu.CompilerParams(
            # j carries the cached row scale, k carries the accumulator ->
            # "arbitrary"; i is stateless -> "parallel" (2-TC split on v7x).
            dimension_semantics=("parallel", "arbitrary", "arbitrary"),
            vmem_limit_bytes=32 * 1024 * 1024),
    )(x2d, v_hat)

    return out2d[:M, :N].reshape(*lead, N)


# ----------------------------- reference (plain JAX) -----------------------------

def l2norm_linear_ref(x, v_weight):
    eps = 1e-6 if x.dtype == jnp.float16 else 1e-12
    x32 = x.astype(jnp.float32)
    xn = x32 / jnp.maximum(jnp.linalg.norm(x32, axis=-1, keepdims=True), eps)
    w32 = v_weight.astype(jnp.float32)
    w = w32 / jnp.linalg.norm(w32, axis=-1, keepdims=True)
    return jnp.einsum("...k,nk->...n", xn, w, precision=jax.lax.Precision.HIGHEST)


# ----------------------------- demo -----------------------------

if __name__ == "__main__":
    B, S = 2, 128                   # 256 rows total -> one 256-row M tile
    in_dim, out_dim = 1024, 384     # exercises K tiling (tk=512) and N padding

    key = jax.random.PRNGKey(0)
    kx, kv = jax.random.split(key)
    x = jax.random.normal(kx, (B, S, in_dim), jnp.float32)
    # weight_norm direction tensor V (nn.Linear-style init scale for the demo)
    v_weight = jax.random.normal(kv, (out_dim, in_dim), jnp.float32) * (in_dim ** -0.5)

    fwd = jax.jit(l2norm_linear)
    out = jax.block_until_ready(fwd(x, v_weight))
    assert out.shape == (B, S, out_dim), out.shape
    assert bool(jnp.all(jnp.isfinite(out)))

    ref = l2norm_linear_ref(x, v_weight)
    max_err = float(jnp.max(jnp.abs(out - ref)))
    assert bool(jnp.allclose(out, ref, rtol=1e-4, atol=1e-5)), max_err

    # bf16 path: operands are fed to the MXU at native bf16 width.
    out_b = jax.block_until_ready(
        jax.jit(l2norm_linear)(x.astype(jnp.bfloat16), v_weight.astype(jnp.bfloat16)))
    ref_b = l2norm_linear_ref(x.astype(jnp.bfloat16), v_weight.astype(jnp.bfloat16))
    assert out_b.dtype == jnp.bfloat16
    assert bool(jnp.allclose(out_b.astype(jnp.float32), ref_b, rtol=5e-2, atol=5e-3))

    print("KERNEL_OK")
</pallas_src>

<mosaic_0001>
module attributes {stable_mosaic.version = 11 : i64} {
  func.func @_l2norm_linear_kernel(%arg0: i32, %arg1: i32, %arg2: i32, %arg3: memref<256x512xf32, #tpu.memory_space<vmem>>, %arg4: memref<256x512xf32, #tpu.memory_space<vmem>>, %arg5: memref<256x256xf32, #tpu.memory_space<vmem>>, %arg6: memref<256x256xf32, #tpu.memory_space<vmem>>, %arg7: memref<256x1xf32, #tpu.memory_space<vmem>>, %arg8: memref<256x1xf32, #tpu.memory_space<vmem>>) attributes {dimension_semantics = [#tpu.dimension_semantics<parallel>, #tpu.dimension_semantics<arbitrary>, #tpu.dimension_semantics<arbitrary>], iteration_bounds = array<i64: 1, 2, 2>, scalar_prefetch = 0 : i64, scratch_operands = 3 : i64, tpu.core_type = #tpu.core_type<tc>, window_params = [{transform_indices = @transform_0, window_bounds = array<i64: 256, 512>}, {transform_indices = @transform_1, window_bounds = array<i64: 256, 512>}, {transform_indices = @transform_2, window_bounds = array<i64: 256, 256>}]} {
    %c0_i32 = arith.constant 0 : i32
    %0 = arith.cmpi eq, %arg2, %c0_i32 : i32
    %1 = arith.extui %0 : i1 to i32
    %c0_i32_0 = arith.constant 0 : i32
    %2 = arith.cmpi ne, %1, %c0_i32_0 : i32
    scf.if %2 {
      %cst_17 = arith.constant 0.000000e+00 : f32
      %25 = vector.broadcast %cst_17 : f32 to vector<256x256xf32>
      %c0_18 = arith.constant 0 : index
      %c0_19 = arith.constant 0 : index
      %26 = vector.load %arg6[%c0_18, %c0_19] : memref<256x256xf32, #tpu.memory_space<vmem>>, vector<256x256xf32>
      tpu.vector_store %arg6[%c0_18, %c0_19], %25 {strides = array<i32>} : memref<256x256xf32, #tpu.memory_space<vmem>>, vector<256x256xf32>,
    } else {
    }
    %c0_i32_1 = arith.constant 0 : i32
    %3 = arith.cmpi eq, %arg1, %c0_i32_1 : i32
    %c0_i32_2 = arith.constant 0 : i32
    %4 = arith.cmpi eq, %arg2, %c0_i32_2 : i32
    %5 = arith.andi %3, %4 : i1
    %6 = arith.extui %5 : i1 to i32
    %c0_i32_3 = arith.constant 0 : i32
    %7 = arith.cmpi ne, %6, %c0_i32_3 : i32
    scf.if %7 {
      %cst_17 = arith.constant 0.000000e+00 : f32
      %25 = vector.broadcast %cst_17 : f32 to vector<256x1xf32>
      %c0_18 = arith.constant 0 : index
      %c0_19 = arith.constant 0 : index
      %26 = vector.load %arg7[%c0_18, %c0_19] : memref<256x1xf32, #tpu.memory_space<vmem>>, vector<256x1xf32>
      tpu.vector_store %arg7[%c0_18, %c0_19], %25 {strides = array<i32>} : memref<256x1xf32, #tpu.memory_space<vmem>>, vector<256x1xf32>,
    } else {
    }
    %c0 = arith.constant 0 : index
    %c0_4 = arith.constant 0 : index
    %8 = vector.load %arg3[%c0, %c0_4] : memref<256x512xf32, #tpu.memory_space<vmem>>, vector<256x512xf32>
    %c0_5 = arith.constant 0 : index
    %c0_6 = arith.constant 0 : index
    %9 = vector.load %arg6[%c0_5, %c0_6] : memref<256x256xf32, #tpu.memory_space<vmem>>, vector<256x256xf32>
    %c0_7 = arith.constant 0 : index
    %c0_8 = arith.constant 0 : index
    %10 = vector.load %arg4[%c0_7, %c0_8] : memref<256x512xf32, #tpu.memory_space<vmem>>, vector<256x512xf32>
    %cst = arith.constant dense<0.000000e+00> : vector<256x256xf32>
    %11 = tpu.matmul %8, %10, %cst {dimension_numbers = #tpu.dot_dimension_numbers<[1], [1], [0], [0], [0, 0, 1, 0], [], []>, precision = #tpu.contract_precision<fp32>} : vector<256x512xf32>, vector<256x512xf32>, vector<256x256xf32> -> vector<256x256xf32>
    %12 = arith.addf %9, %11 : vector<256x256xf32>
    %c0_9 = arith.constant 0 : index
    %c0_10 = arith.constant 0 : index
    %13 = vector.load %arg6[%c0_9, %c0_10] : memref<256x256xf32, #tpu.memory_space<vmem>>, vector<256x256xf32>
    tpu.vector_store %arg6[%c0_9, %c0_10], %12 {strides = array<i32>} : memref<256x256xf32, #tpu.memory_space<vmem>>, vector<256x256xf32>,
    %c0_i32_11 = arith.constant 0 : i32
    %14 = arith.cmpi eq, %arg1, %c0_i32_11 : i32
    %15 = arith.extui %14 : i1 to i32
    %c0_i32_12 = arith.constant 0 : i32
    %16 = arith.cmpi ne, %15, %c0_i32_12 : i32
    scf.if %16 {
      %c0_17 = arith.constant 0 : index
      %c0_18 = arith.constant 0 : index
      %25 = vector.load %arg7[%c0_17, %c0_18] : memref<256x1xf32, #tpu.memory_space<vmem>>, vector<256x1xf32>
      %26 = arith.mulf %8, %8 : vector<256x512xf32>
      %cst_19 = arith.constant dense<0.000000e+00> : vector<256xf32>
      %27 = vector.multi_reduction <add>, %26, %cst_19 [1] : vector<256x512xf32> to vector<256xf32>
      %28 = vector.shape_cast %27 : vector<256xf32> to vector<256x1xf32>
      %29 = arith.addf %25, %28 : vector<256x1xf32>
      %c0_20 = arith.constant 0 : index
      %c0_21 = arith.constant 0 : index
      %30 = vector.load %arg7[%c0_20, %c0_21] : memref<256x1xf32, #tpu.memory_space<vmem>>, vector<256x1xf32>
      tpu.vector_store %arg7[%c0_20, %c0_21], %29 {strides = array<i32>} : memref<256x1xf32, #tpu.memory_space<vmem>>, vector<256x1xf32>,
    } else {
    }
    %c0_i32_13 = arith.constant 0 : i32
    %17 = arith.cmpi eq, %arg1, %c0_i32_13 : i32
    %c1_i32 = arith.constant 1 : i32
    %18 = arith.cmpi eq, %arg2, %c1_i32 : i32
    %19 = arith.andi %17, %18 : i1
    %20 = arith.extui %19 : i1 to i32
    %c0_i32_14 = arith.constant 0 : i32
    %21 = arith.cmpi ne, %20, %c0_i32_14 : i32
    scf.if %21 {
      %c0_17 = arith.constant 0 : index
      %c0_18 = arith.constant 0 : index
      %25 = vector.load %arg7[%c0_17, %c0_18] : memref<256x1xf32, #tpu.memory_space<vmem>>, vector<256x1xf32>
      %cst_19 = arith.constant 1.000000e-24 : f32
      %26 = vector.broadcast %cst_19 : f32 to vector<256x1xf32>
      %27 = arith.maximumf %25, %26 : vector<256x1xf32>
      %28 = math.rsqrt %27 : vector<256x1xf32>
      %c0_20 = arith.constant 0 : index
      %c0_21 = arith.constant 0 : index
      %29 = vector.load %arg8[%c0_20, %c0_21] : memref<256x1xf32, #tpu.memory_space<vmem>>, vector<256x1xf32>
      tpu.vector_store %arg8[%c0_20, %c0_21], %28 {strides = array<i32>} : memref<256x1xf32, #tpu.memory_space<vmem>>, vector<256x1xf32>,
    } else {
    }
    %c1_i32_15 = arith.constant 1 : i32
    %22 = arith.cmpi eq, %arg2, %c1_i32_15 : i32
    %23 = arith.extui %22 : i1 to i32
    %c0_i32_16 = arith.constant 0 : i32
    %24 = arith.cmpi ne, %23, %c0_i32_16 : i32
    scf.if %24 {
      %c0_17 = arith.constant 0 : index
      %c0_18 = arith.constant 0 : index
      %25 = vector.load %arg6[%c0_17, %c0_18] : memref<256x256xf32, #tpu.memory_space<vmem>>, vector<256x256xf32>
      %c0_19 = arith.constant 0 : index
      %c0_20 = arith.constant 0 : index
      %26 = vector.load %arg8[%c0_19, %c0_20] : memref<256x1xf32, #tpu.memory_space<vmem>>, vector<256x1xf32>
      %27 = vector.broadcast %26 : vector<256x1xf32> to vector<256x256xf32>
      %28 = arith.mulf %25, %27 : vector<256x256xf32>
      %c0_21 = arith.constant 0 : index
      %c0_22 = arith.constant 0 : index
      %29 = vector.load %arg5[%c0_21, %c0_22] : memref<256x256xf32, #tpu.memory_space<vmem>>, vector<256x256xf32>
      tpu.vector_store %arg5[%c0_21, %c0_22], %28 {strides = array<i32>} : memref<256x256xf32, #tpu.memory_space<vmem>>, vector<256x256xf32>,
    } else {
    }
    return
  }
  func.func @transform_0(%arg0: i32, %arg1: i32, %arg2: i32) -> (i32, i32) {
    %c0_i32 = arith.constant 0 : i32
    return %arg0, %arg2 : i32, i32
  }
  func.func @transform_1(%arg0: i32, %arg1: i32, %arg2: i32) -> (i32, i32) {
    %c0_i32 = arith.constant 0 : i32
    return %arg1, %arg2 : i32, i32
  }
  func.func @transform_2(%arg0: i32, %arg1: i32, %arg2: i32) -> (i32, i32) {
    %c0_i32 = arith.constant 0 : i32
    return %arg0, %arg1 : i32, i32
  }
}

</mosaic_0001>

<llo_original>
// kernel: l2norm_linear.1
$region0: #{l2norm_linear.1}
  #allocation0 [shape = 'u32[]', space=smem, size = 0x4, offset = 0x4, fixed_abs, tag = 'smem constant byte address 0x4 - core index']
  #allocation1 [shape = 'u32[144,128]{1,0:T(1,128)}', space=vmem, size = 0x12000, scoped, tag = 'internal scratch']
  #allocation2 [shape = 'f32[256,256]{1,0:T(8,128)}', space=vmem, size = 0x40000, scoped, tag = 'scratch operand']
  #allocation3 [shape = 'f32[256,1]{1,0:T(8,128)}', space=vmem, size = 0x20000, scoped, tag = 'scratch operand']
  #allocation4 [shape = 'f32[256,1]{1,0:T(8,128)}', space=vmem, size = 0x20000, scoped, tag = 'scratch operand']
  %s0 = inlined_call_operand.vmem [shape: f32[256,1024], index: 0, kind: input, shape index: {}]
  %s1 = inlined_call_operand.vmem [shape: f32[512,1024], index: 1, kind: input, shape index: {}]
  %s2 = inlined_call_operand.vmem [shape: f32[256,512], index: 2, kind: output, shape index: {}]
  %s3 = sld [smem:[#allocation0]]
  $region126: #{l2norm_linear.1} parent=0
    _
  %s5 = ssub.s32 1, %s3
  %s6 = scalar_select 0, %s5, %s3
  $region1: #{l2norm_linear.1} parent=0
    #allocation5 [shape = 'u8[1048576]{0}', space=vmem, size = 0x100000, scoped, tag = 'input window, operand 0']
    #allocation6 [shape = 'u8[1048576]{0}', space=vmem, size = 0x100000, scoped, tag = 'input window, operand 1']
    #allocation7 [shape = 'u8[524288]{0}', space=vmem, size = 0x80000, scoped, tag = 'output window, operand 0']
    loop: start=0, step=1, limit=6
    $region2: #{l2norm_linear.1} parent=1 // loop_pre_header
      _
    $region3: #{l2norm_linear.1} parent=1 // loop_header
      %s8 = sphi 0, %s12
      %p9 = scmp.ge.s32.totalorder %s8, 6
      %s15 = sphi 0, %s34
      %s16 = sphi 0, %s30
      %s17 = sphi 0, %s26
      %s18 = sphi 0, %s15
      %s19 = sphi 0, %s16
      %s20 = sphi 0, %s17
      %s21 = sphi 0, %s18
      %s22 = sphi 0, %s19
      %s23 = sphi 0, %s20
      %s39 = sphi 0, %s41
      %s42 = sphi 0, %s39
      %s43 = sphi 0, %s42
      %s59 = sphi 0, %s43
      %s67 = sphi 0, %s69
      %s70 = sphi 0, %s67
      %s71 = sphi 0, %s70
      %s87 = sphi 0, %s71
      %s95 = sphi 0, %s97
      %s98 = sphi 0, %s95
      %s99 = sphi 0, %s98
      %s115 = sphi 0, %s99
    $region4: #{l2norm_linear.1} parent=1 // loop_header_branch
      %11 = sbr.rel (%p9) target = $region8
    $region5: #{l2norm_linear.1} parent=1 // loop_body
      %s13 = ssub.s32 %s8, 1
      %s14 = ssub.s32 %s8, 2
      %s24 = sadd.s32 1, %s17
      %p25 = scmp.ge.s32.totalorder %s24, 2
      %s26 = scalar_select %p25, 0, %s24
      %s27 = sadd.s32 1, %s16
      %s28 = scalar_select %p25, %s27, %s16
      %p29 = scmp.ge.s32.totalorder %s28, 2
      %s30 = scalar_select %p29, 0, %s28
      %s31 = sadd.s32 1, %s15
      %s32 = scalar_select %p29, %s31, %s15
      %p33 = scmp.ge.s32.totalorder %s32, 1
      %s34 = scalar_select %p33, 0, %s32
      %s35 = ssub.s32 %s15, %s34
      %s36 = ssub.s32 %s17, %s26
      %s37 = sor.u32 %s35, %s36
      %p38 = scmp.eq.s32.totalorder %s37, 0
      %s40 = sadd.s32 %s39, 1
      %s41 = scalar_select %p38, %s39, %s40
      %p44 = pneg %p38
      %p45 = scmp.eq.s32.totalorder %s8, 3
      %p46 = por %p44, %p45
      %p47 = scmp.ne.s32.totalorder %s39, %s42
      %p48 = scmp.eq.s32.totalorder %s8, 0
      %p49 = por %p47, %p48
      %p50 = scmp.ne.s32.totalorder %s39, %s42
      %p51 = scmp.eq.s32.totalorder %s13, 3
      %p52 = por %p50, %p51
      %p53 = scmp.ne.s32.totalorder %s42, %s43
      %p54 = scmp.eq.s32.totalorder %s13, 0
      %p55 = por %p53, %p54
      %p56 = scmp.ne.s32.totalorder %s42, %s43
      %p57 = scmp.eq.s32.totalorder %s14, 3
      %p58 = por %p56, %p57
      %p60 = scmp.ne.s32.totalorder %s43, %s59
      %p61 = scmp.eq.s32.totalorder %s14, 0
      %p62 = por %p60, %p61
      %s63 = ssub.s32 %s16, %s30
      %s64 = ssub.s32 %s17, %s26
      %s65 = sor.u32 %s63, %s64
      %p66 = scmp.eq.s32.totalorder %s65, 0
      %s68 = sadd.s32 %s67, 1
      %s69 = scalar_select %p66, %s67, %s68
      %p72 = pneg %p66
      %p73 = scmp.eq.s32.totalorder %s8, 3
      %p74 = por %p72, %p73
      %p75 = scmp.ne.s32.totalorder %s67, %s70
      %p76 = scmp.eq.s32.totalorder %s8, 0
      %p77 = por %p75, %p76
      %p78 = scmp.ne.s32.totalorder %s67, %s70
      %p79 = scmp.eq.s32.totalorder %s13, 3
      %p80 = por %p78, %p79
      %p81 = scmp.ne.s32.totalorder %s70, %s71
      %p82 = scmp.eq.s32.totalorder %s13, 0
      %p83 = por %p81, %p82
      %p84 = scmp.ne.s32.totalorder %s70, %s71
      %p85 = scmp.eq.s32.totalorder %s14, 3
      %p86 = por %p84, %p85
      %p88 = scmp.ne.s32.totalorder %s71, %s87
      %p89 = scmp.eq.s32.totalorder %s14, 0
      %p90 = por %p88, %p89
      %s91 = ssub.s32 %s15, %s34
      %s92 = ssub.s32 %s16, %s30
      %s93 = sor.u32 %s91, %s92
      %p94 = scmp.eq.s32.totalorder %s93, 0
      %s96 = sadd.s32 %s95, 1
      %s97 = scalar_select %p94, %s95, %s96
      %p100 = pneg %p94
      %p101 = scmp.eq.s32.totalorder %s8, 3
      %p102 = por %p100, %p101
      %p103 = scmp.ne.s32.totalorder %s95, %s98
      %p104 = scmp.eq.s32.totalorder %s8, 0
      %p105 = por %p103, %p104
      %p106 = scmp.ne.s32.totalorder %s95, %s98
      %p107 = scmp.eq.s32.totalorder %s13, 3
      %p108 = por %p106, %p107
      %p109 = scmp.ne.s32.totalorder %s98, %s99
      %p110 = scmp.eq.s32.totalorder %s13, 0
      %p111 = por %p109, %p110
      %p112 = scmp.ne.s32.totalorder %s98, %s99
      %p113 = scmp.eq.s32.totalorder %s14, 3
      %p114 = por %p112, %p113
      %p116 = scmp.ne.s32.totalorder %s99, %s115
      %p117 = scmp.eq.s32.totalorder %s14, 0
      %p118 = por %p116, %p117
      %p119 = scmp.le.s32.totalorder 1, %s8
      %p120 = scmp.lt.s32.totalorder %s8, 5
      %p121 = pnand %p119, %p120
      %p122 = pneg %p121
      // Predicated region
      $region9: #{l2norm_linear.1} parent=5 // pred_check
        _
      $region10: #{l2norm_linear.1} parent=5 // pred_check_branch
        %124 = sbr.rel (%p121) target = $region12
      $region11: #{l2norm_linear.1} parent=5 // pred_region
        %s125 = ssub.s32 %s8, 1
      $region12: #{l2norm_linear.1} parent=5 // pred_fallthru
        _
      %p126 = scmp.lt.s32.totalorder %s8, 4
      // Predicated region
      $region13: #{l2norm_linear.1} parent=5 // pred_check
        %p127 = pneg %p126
      $region14: #{l2norm_linear.1} parent=5 // pred_check_branch
        %129 = sbr.rel (%p127) target = $region16
      $region15: #{l2norm_linear.1} parent=5 // pred_region
        // Predicated region
        $region17: #{l2norm_linear.1} parent=15 // pred_check
          %p130 = pneg %p49
        $region18: #{l2norm_linear.1} parent=15 // pred_check_branch
          %132 = sbr.rel (%p130) target = $region20
        $region19: #{l2norm_linear.1} parent=15 // pred_region
          %s133 = sand.u32 %s39, 1
          %s134 = sand.u32 %s39, 1
          %s135 = smul.addr %s134, 1024
          %s136 = scalar_lea.vmem [#allocation5], %s135
          %s137 = smul.u32 32, %s15
          %s138 = smul.u32 4, %s17
          %s139 = smul.addr %s137, 8
          %s140 = sadd.s32 %s138, %s139
          %s141 = smul.addr %s140, 8
          %s142 = scalar_lea.vmem %s0, %s141
          // Predicated region
          $region21: #{l2norm_linear.1} parent=19 // pred_check
            _
          $region22: #{l2norm_linear.1} parent=19 // pred_check_branch
            %144 = sbr.rel (0) target = $region24
          $region23: #{l2norm_linear.1} parent=19 // pred_region
            // Predicated region
            $region25: #{l2norm_linear.1} parent=23 // pred_check
              _
            $region26: #{l2norm_linear.1} parent=23 // pred_check_branch
              %146 = sbr.rel (0) target = $region28
            $region27: #{l2norm_linear.1} parent=23 // pred_region
              loop: start=0, step=1, limit=1
              $region29: #{l2norm_linear.1} parent=27 // loop_pre_header
                _
              $region30: #{l2norm_linear.1} parent=27 // loop_header
                %s148 = sphi 0, %s152
                %p149 = scmp.ge.s32.totalorder %s148, 1
                %s153 = sphi %s142, %s142
                %s154 = sphi %s136, %s136
              $region31: #{l2norm_linear.1} parent=27 // loop_header_branch
                %151 = sbr.rel (%p149) target = $region35
              $region32: #{l2norm_linear.1} parent=27 // loop_body
                %v155 = vld [vmem:[%s153] sm:$0xff]
                %156 = vst [vmem:[%s154] sm:$0xff] %v155
                %v157 = vld [vmem:[%s153 + $0x8] sm:$0xff]
                %158 = vst [vmem:[%s154 + $0x8] sm:$0xff] %v157
                %v159 = vld [vmem:[%s153 + $0x10] sm:$0xff]
                %160 = vst [vmem:[%s154 + $0x10] sm:$0xff] %v159
                %v161 = vld [vmem:[%s153 + $0x18] sm:$0xff]
                %162 = vst [vmem:[%s154 + $0x18] sm:$0xff] %v161
                %v163 = vld [vmem:[%s153 + $0x40] sm:$0xff]
                %164 = vst [vmem:[%s154 + $0x20] sm:$0xff] %v163
                %v165 = vld [vmem:[%s153 + $0x48] sm:$0xff]
                %166 = vst [vmem:[%s154 + $0x28] sm:$0xff] %v165
                %v167 = vld [vmem:[%s153 + $0x50] sm:$0xff]
                %168 = vst [vmem:[%s154 + $0x30] sm:$0xff] %v167
                %v169 = vld [vmem:[%s153 + $0x58] sm:$0xff]
                %170 = vst [vmem:[%s154 + $0x38] sm:$0xff] %v169
                %v171 = vld [vmem:[%s153 + $0x80] sm:$0xff]
                %172 = vst [vmem:[%s154 + $0x40] sm:$0xff] %v171
                %v173 = vld [vmem:[%s153 + $0x88] sm:$0xff]
                %174 = vst [vmem:[%s154 + $0x48] sm:$0xff] %v173
                %v175 = vld [vmem:[%s153 + $0x90] sm:$0xff]
                %176 = vst [vmem:[%s154 + $0x50] sm:$0xff] %v175
                %v177 = vld [vmem:[%s153 + $0x98] sm:$0xff]
                %178 = vst [vmem:[%s154 + $0x58] sm:$0xff] %v177
                %v179 = vld [vmem:[%s153 + $0xc0] sm:$0xff]
                %180 = vst [vmem:[%s154 + $0x60] sm:$0xff] %v179
                %v181 = vld [vmem:[%s153 + $0xc8] sm:$0xff]
                %182 = vst [vmem:[%s154 + $0x68] sm:$0xff] %v181
                %v183 = vld [vmem:[%s153 + $0xd0] sm:$0xff]
                %184 = vst [vmem:[%s154 + $0x70] sm:$0xff] %v183
                %v185 = vld [vmem:[%s153 + $0xd8] sm:$0xff]
                %186 = vst [vmem:[%s154 + $0x78] sm:$0xff] %v185
                %v187 = vld [vmem:[%s153 + $0x100] sm:$0xff]
                %188 = vst [vmem:[%s154 + $0x80] sm:$0xff] %v187
                %v189 = vld [vmem:[%s153 + $0x108] sm:$0xff]
                %190 = vst [vmem:[%s154 + $0x88] sm:$0xff] %v189
                %v191 = vld [vmem:[%s153 + $0x110] sm:$0xff]
                %192 = vst [vmem:[%s154 + $0x90] sm:$0xff] %v191
                %v193 = vld [vmem:[%s153 + $0x118] sm:$0xff]
                %194 = vst [vmem:[%s154 + $0x98] sm:$0xff] %v193
                %v195 = vld [vmem:[%s153 + $0x140] sm:$0xff]
                %196 = vst [vmem:[%s154 + $0xa0] sm:$0xff] %v195
                %v197 = vld [vmem:[%s153 + $0x148] sm:$0xff]
                %198 = vst [vmem:[%s154 + $0xa8] sm:$0xff] %v197
                %v199 = vld [vmem:[%s153 + $0x150] sm:$0xff]
                %200 = vst [vmem:[%s154 + $0xb0] sm:$0xff] %v199
                %v201 = vld [vmem:[%s153 + $0x158] sm:$0xff]
                %202 = vst [vmem:[%s154 + $0xb8] sm:$0xff] %v201
                %v203 = vld [vmem:[%s153 + $0x180] sm:$0xff]
                %204 = vst [vmem:[%s154 + $0xc0] sm:$0xff] %v203
                %v205 = vld [vmem:[%s153 + $0x188] sm:$0xff]
                %206 = vst [vmem:[%s154 + $0xc8] sm:$0xff] %v205
                %v207 = vld [vmem:[%s153 + $0x190] sm:$0xff]
                %208 = vst [vmem:[%s154 + $0xd0] sm:$0xff] %v207
                %v209 = vld [vmem:[%s153 + $0x198] sm:$0xff]
                %210 = vst [vmem:[%s154 + $0xd8] sm:$0xff] %v209
                %v211 = vld [vmem:[%s153 + $0x1c0] sm:$0xff]
                %212 = vst [vmem:[%s154 + $0xe0] sm:$0xff] %v211
                %v213 = vld [vmem:[%s153 + $0x1c8] sm:$0xff]
                %214 = vst [vmem:[%s154 + $0xe8] sm:$0xff] %v213
                %v215 = vld [vmem:[%s153 + $0x1d0] sm:$0xff]
                %216 = vst [vmem:[%s154 + $0xf0] sm:$0xff] %v215
                %v217 = vld [vmem:[%s153 + $0x1d8] sm:$0xff]
                %218 = vst [vmem:[%s154 + $0xf8] sm:$0xff] %v217
                %v219 = vld [vmem:[%s153 + $0x200] sm:$0xff]
                %220 = vst [vmem:[%s154 + $0x100] sm:$0xff] %v219
                %v221 = vld [vmem:[%s153 + $0x208] sm:$0xff]
                %222 = vst [vmem:[%s154 + $0x108] sm:$0xff] %v221
                %v223 = vld [vmem:[%s153 + $0x210] sm:$0xff]
                %224 = vst [vmem:[%s154 + $0x110] sm:$0xff] %v223
                %v225 = vld [vmem:[%s153 + $0x218] sm:$0xff]
                %226 = vst [vmem:[%s154 + $0x118] sm:$0xff] %v225
                %v227 = vld [vmem:[%s153 + $0x240] sm:$0xff]
                %228 = vst [vmem:[%s154 + $0x120] sm:$0xff] %v227
                %v229 = vld [vmem:[%s153 + $0x248] sm:$0xff]
                %230 = vst [vmem:[%s154 + $0x128] sm:$0xff] %v229
                %v231 = vld [vmem:[%s153 + $0x250] sm:$0xff]
                %232 = vst [vmem:[%s154 + $0x130] sm:$0xff] %v231
                %v233 = vld [vmem:[%s153 + $0x258] sm:$0xff]
                %234 = vst [vmem:[%s154 + $0x138] sm:$0xff] %v233
                %v235 = vld [vmem:[%s153 + $0x280] sm:$0xff]
                %236 = vst [vmem:[%s154 + $0x140] sm:$0xff] %v235
                %v237 = vld [vmem:[%s153 + $0x288] sm:$0xff]
                %238 = vst [vmem:[%s154 + $0x148] sm:$0xff] %v237
                %v239 = vld [vmem:[%s153 + $0x290] sm:$0xff]
                %240 = vst [vmem:[%s154 + $0x150] sm:$0xff] %v239
                %v241 = vld [vmem:[%s153 + $0x298] sm:$0xff]
                %242 = vst [vmem:[%s154 + $0x158] sm:$0xff] %v241
                %v243 = vld [vmem:[%s153 + $0x2c0] sm:$0xff]
                %244 = vst [vmem:[%s154 + $0x160] sm:$0xff] %v243
                %v245 = vld [vmem:[%s153 + $0x2c8] sm:$0xff]
                %246 = vst [vmem:[%s154 + $0x168] sm:$0xff] %v245
                %v247 = vld [vmem:[%s153 + $0x2d0] sm:$0xff]
                %248 = vst [vmem:[%s154 + $0x170] sm:$0xff] %v247
                %v249 = vld [vmem:[%s153 + $0x2d8] sm:$0xff]
                %250 = vst [vmem:[%s154 + $0x178] sm:$0xff] %v249
                %v251 = vld [vmem:[%s153 + $0x300] sm:$0xff]
                %252 = vst [vmem:[%s154 + $0x180] sm:$0xff] %v251
                %v253 = vld [vmem:[%s153 + $0x308] sm:$0xff]
                %254 = vst [vmem:[%s154 + $0x188] sm:$0xff] %v253
                %v255 = vld [vmem:[%s153 + $0x310] sm:$0xff]
                %256 = vst [vmem:[%s154 + $0x190] sm:$0xff] %v255
                %v257 = vld [vmem:[%s153 + $0x318] sm:$0xff]
                %258 = vst [vmem:[%s154 + $0x198] sm:$0xff] %v257
                %v259 = vld [vmem:[%s153 + $0x340] sm:$0xff]
                %260 = vst [vmem:[%s154 + $0x1a0] sm:$0xff] %v259
                %v261 = vld [vmem:[%s153 + $0x348] sm:$0xff]
                %262 = vst [vmem:[%s154 + $0x1a8] sm:$0xff] %v261
                %v263 = vld [vmem:[%s153 + $0x350] sm:$0xff]
                %264 = vst [vmem:[%s154 + $0x1b0] sm:$0xff] %v263
                %v265 = vld [vmem:[%s153 + $0x358] sm:$0xff]
                %266 = vst [vmem:[%s154 + $0x1b8] sm:$0xff] %v265
                %v267 = vld [vmem:[%s153 + $0x380] sm:$0xff]
                %268 = vst [vmem:[%s154 + $0x1c0] sm:$0xff] %v267
                %v269 = vld [vmem:[%s153 + $0x388] sm:$0xff]
                %270 = vst [vmem:[%s154 + $0x1c8] sm:$0xff] %v269
                %v271 = vld [vmem:[%s153 + $0x390] sm:$0xff]
                %272 = vst [vmem:[%s154 + $0x1d0] sm:$0xff] %v271
                %v273 = vld [vmem:[%s153 + $0x398] sm:$0xff]
                %274 = vst [vmem:[%s154 + $0x1d8] sm:$0xff] %v273
                %v275 = vld [vmem:[%s153 + $0x3c0] sm:$0xff]
                %276 = vst [vmem:[%s154 + $0x1e0] sm:$0xff] %v275
                %v277 = vld [vmem:[%s153 + $0x3c8] sm:$0xff]
                %278 = vst [vmem:[%s154 + $0x1e8] sm:$0xff] %v277
                %v279 = vld [vmem:[%s153 + $0x3d0] sm:$0xff]
                %280 = vst [vmem:[%s154 + $0x1f0] sm:$0xff] %v279
                %v281 = vld [vmem:[%s153 + $0x3d8] sm:$0xff]
                %282 = vst [vmem:[%s154 + $0x1f8] sm:$0xff] %v281
                %v283 = vld [vmem:[%s153 + $0x400] sm:$0xff]
                %284 = vst [vmem:[%s154 + $0x200] sm:$0xff] %v283
                %v285 = vld [vmem:[%s153 + $0x408] sm:$0xff]
                %286 = vst [vmem:[%s154 + $0x208] sm:$0xff] %v285
                %v287 = vld [vmem:[%s153 + $0x410] sm:$0xff]
                %288 = vst [vmem:[%s154 + $0x210] sm:$0xff] %v287
                %v289 = vld [vmem:[%s153 + $0x418] sm:$0xff]
                %290 = vst [vmem:[%s154 + $0x218] sm:$0xff] %v289
                %v291 = vld [vmem:[%s153 + $0x440] sm:$0xff]
                %292 = vst [vmem:[%s154 + $0x220] sm:$0xff] %v291
                %v293 = vld [vmem:[%s153 + $0x448] sm:$0xff]
                %294 = vst [vmem:[%s154 + $0x228] sm:$0xff] %v293
                %v295 = vld [vmem:[%s153 + $0x450] sm:$0xff]
                %296 = vst [vmem:[%s154 + $0x230] sm:$0xff] %v295
                %v297 = vld [vmem:[%s153 + $0x458] sm:$0xff]
                %298 = vst [vmem:[%s154 + $0x238] sm:$0xff] %v297
                %v299 = vld [vmem:[%s153 + $0x480] sm:$0xff]
                %300 = vst [vmem:[%s154 + $0x240] sm:$0xff] %v299
                %v301 = vld [vmem:[%s153 + $0x488] sm:$0xff]
                %302 = vst [vmem:[%s154 + $0x248] sm:$0xff] %v301
                %v303 = vld [vmem:[%s153 + $0x490] sm:$0xff]
                %304 = vst [vmem:[%s154 + $0x250] sm:$0xff] %v303
                %v305 = vld [vmem:[%s153 + $0x498] sm:$0xff]
                %306 = vst [vmem:[%s154 + $0x258] sm:$0xff] %v305
                %v307 = vld [vmem:[%s153 + $0x4c0] sm:$0xff]
                %308 = vst [vmem:[%s154 + $0x260] sm:$0xff] %v307
                %v309 = vld [vmem:[%s153 + $0x4c8] sm:$0xff]
                %310 = vst [vmem:[%s154 + $0x268] sm:$0xff] %v309
                %v311 = vld [vmem:[%s153 + $0x4d0] sm:$0xff]
                %312 = vst [vmem:[%s154 + $0x270] sm:$0xff] %v311
                %v313 = vld [vmem:[%s153 + $0x4d8] sm:$0xff]
                %314 = vst [vmem:[%s154 + $0x278] sm:$0xff] %v313
                %v315 = vld [vmem:[%s153 + $0x500] sm:$0xff]
                %316 = vst [vmem:[%s154 + $0x280] sm:$0xff] %v315
                %v317 = vld [vmem:[%s153 + $0x508] sm:$0xff]
                %318 = vst [vmem:[%s154 + $0x288] sm:$0xff] %v317
                %v319 = vld [vmem:[%s153 + $0x510] sm:$0xff]
                %320 = vst [vmem:[%s154 + $0x290] sm:$0xff] %v319
                %v321 = vld [vmem:[%s153 + $0x518] sm:$0xff]
                %322 = vst [vmem:[%s154 + $0x298] sm:$0xff] %v321
                %v323 = vld [vmem:[%s153 + $0x540] sm:$0xff]
                %324 = vst [vmem:[%s154 + $0x2a0] sm:$0xff] %v323
                %v325 = vld [vmem:[%s153 + $0x548] sm:$0xff]
                %326 = vst [vmem:[%s154 + $0x2a8] sm:$0xff] %v325
                %v327 = vld [vmem:[%s153 + $0x550] sm:$0xff]
                %328 = vst [vmem:[%s154 + $0x2b0] sm:$0xff] %v327
                %v329 = vld [vmem:[%s153 + $0x558] sm:$0xff]
                %330 = vst [vmem:[%s154 + $0x2b8] sm:$0xff] %v329
                %v331 = vld [vmem:[%s153 + $0x580] sm:$0xff]
                %332 = vst [vmem:[%s154 + $0x2c0] sm:$0xff] %v331
                %v333 = vld [vmem:[%s153 + $0x588] sm:$0xff]
                %334 = vst [vmem:[%s154 + $0x2c8] sm:$0xff] %v333
                %v335 = vld [vmem:[%s153 + $0x590] sm:$0xff]
                %336 = vst [vmem:[%s154 + $0x2d0] sm:$0xff] %v335
                %v337 = vld [vmem:[%s153 + $0x598] sm:$0xff]
                %338 = vst [vmem:[%s154 + $0x2d8] sm:$0xff] %v337
                %v339 = vld [vmem:[%s153 + $0x5c0] sm:$0xff]
                %340 = vst [vmem:[%s154 + $0x2e0] sm:$0xff] %v339
                %v341 = vld [vmem:[%s153 + $0x5c8] sm:$0xff]
                %342 = vst [vmem:[%s154 + $0x2e8] sm:$0xff] %v341
                %v343 = vld [vmem:[%s153 + $0x5d0] sm:$0xff]
                %344 = vst [vmem:[%s154 + $0x2f0] sm:$0xff] %v343
                %v345 = vld [vmem:[%s153 + $0x5d8] sm:$0xff]
                %346 = vst [vmem:[%s154 + $0x2f8] sm:$0xff] %v345
                %v347 = vld [vmem:[%s153 + $0x600] sm:$0xff]
                %348 = vst [vmem:[%s154 + $0x300] sm:$0xff] %v347
                %v349 = vld [vmem:[%s153 + $0x608] sm:$0xff]
                %350 = vst [vmem:[%s154 + $0x308] sm:$0xff] %v349
                %v351 = vld [vmem:[%s153 + $0x610] sm:$0xff]
                %352 = vst [vmem:[%s154 + $0x310] sm:$0xff] %v351
                %v353 = vld [vmem:[%s153 + $0x618] sm:$0xff]
                %354 = vst [vmem:[%s154 + $0x318] sm:$0xff] %v353
                %v355 = vld [vmem:[%s153 + $0x640] sm:$0xff]
                %356 = vst [vmem:[%s154 + $0x320] sm:$0xff] %v355
                %v357 = vld [vmem:[%s153 + $0x648] sm:$0xff]
                %358 = vst [vmem:[%s154 + $0x328] sm:$0xff] %v357
                %v359 = vld [vmem:[%s153 + $0x650] sm:$0xff]
                %360 = vst [vmem:[%s154 + $0x330] sm:$0xff] %v359
                %v361 = vld [vmem:[%s153 + $0x658] sm:$0xff]
                %362 = vst [vmem:[%s154 + $0x338] sm:$0xff] %v361
                %v363 = vld [vmem:[%s153 + $0x680] sm:$0xff]
                %364 = vst [vmem:[%s154 + $0x340] sm:$0xff] %v363
                %v365 = vld [vmem:[%s153 + $0x688] sm:$0xff]
                %366 = vst [vmem:[%s154 + $0x348] sm:$0xff] %v365
                %v367 = vld [vmem:[%s153 + $0x690] sm:$0xff]
                %368 = vst [vmem:[%s154 + $0x350] sm:$0xff] %v367
                %v369 = vld [vmem:[%s153 + $0x698] sm:$0xff]
                %370 = vst [vmem:[%s154 + $0x358] sm:$0xff] %v369
                %v371 = vld [vmem:[%s153 + $0x6c0] sm:$0xff]
                %372 = vst [vmem:[%s154 + $0x360] sm:$0xff] %v371
                %v373 = vld [vmem:[%s153 + $0x6c8] sm:$0xff]
                %374 = vst [vmem:[%s154 + $0x368] sm:$0xff] %v373
                %v375 = vld [vmem:[%s153 + $0x6d0] sm:$0xff]
                %376 = vst [vmem:[%s154 + $0x370] sm:$0xff] %v375
                %v377 = vld [vmem:[%s153 + $0x6d8] sm:$0xff]
                %378 = vst [vmem:[%s154 + $0x378] sm:$0xff] %v377
                %v379 = vld [vmem:[%s153 + $0x700] sm:$0xff]
                %380 = vst [vmem:[%s154 + $0x380] sm:$0xff] %v379
                %v381 = vld [vmem:[%s153 + $0x708] sm:$0xff]
                %382 = vst [vmem:[%s154 + $0x388] sm:$0xff] %v381
                %v383 = vld [vmem:[%s153 + $0x710] sm:$0xff]
                %384 = vst [vmem:[%s154 + $0x390] sm:$0xff] %v383
                %v385 = vld [vmem:[%s153 + $0x718] sm:$0xff]
                %386 = vst [vmem:[%s154 + $0x398] sm:$0xff] %v385
                %v387 = vld [vmem:[%s153 + $0x740] sm:$0xff]
                %388 = vst [vmem:[%s154 + $0x3a0] sm:$0xff] %v387
                %v389 = vld [vmem:[%s153 + $0x748] sm:$0xff]
                %390 = vst [vmem:[%s154 + $0x3a8] sm:$0xff] %v389
                %v391 = vld [vmem:[%s153 + $0x750] sm:$0xff]
                %392 = vst [vmem:[%s154 + $0x3b0] sm:$0xff] %v391
                %v393 = vld [vmem:[%s153 + $0x758] sm:$0xff]
                %394 = vst [vmem:[%s154 + $0x3b8] sm:$0xff] %v393
                %v395 = vld [vmem:[%s153 + $0x780] sm:$0xff]
                %396 = vst [vmem:[%s154 + $0x3c0] sm:$0xff] %v395
                %v397 = vld [vmem:[%s153 + $0x788] sm:$0xff]
                %398 = vst [vmem:[%s154 + $0x3c8] sm:$0xff] %v397
                %v399 = vld [vmem:[%s153 + $0x790] sm:$0xff]
                %400 = vst [vmem:[%s154 + $0x3d0] sm:$0xff] %v399
                %v401 = vld [vmem:[%s153 + $0x798] sm:$0xff]
                %402 = vst [vmem:[%s154 + $0x3d8] sm:$0xff] %v401
                %v403 = vld [vmem:[%s153 + $0x7c0] sm:$0xff]
                %404 = vst [vmem:[%s154 + $0x3e0] sm:$0xff] %v403
                %v405 = vld [vmem:[%s153 + $0x7c8] sm:$0xff]
                %406 = vst [vmem:[%s154 + $0x3e8] sm:$0xff] %v405
                %v407 = vld [vmem:[%s153 + $0x7d0] sm:$0xff]
                %408 = vst [vmem:[%s154 + $0x3f0] sm:$0xff] %v407
                %v409 = vld [vmem:[%s153 + $0x7d8] sm:$0xff]
                %410 = vst [vmem:[%s154 + $0x3f8] sm:$0xff] %v409
              $region33: #{l2norm_linear.1} parent=27 // loop_footer
                %s152 = sadd.s32 1, %s148
              $region34: #{l2norm_linear.1} parent=27 // loop_footer_branch
                %147 = sbr.rel target = $region30
              $region35: #{l2norm_linear.1} parent=27 // loop_exit
                _
            $region28: #{l2norm_linear.1} parent=23 // pred_fallthru
              _
            // Predicated region
            $region36: #{l2norm_linear.1} parent=23 // pred_check
              _
            $region37: #{l2norm_linear.1} parent=23 // pred_check_branch
              %412 = sbr.rel target = $region39
            $region38: #{l2norm_linear.1} parent=23 // pred_region
              _
            $region39: #{l2norm_linear.1} parent=23 // pred_fallthru
              _
          $region24: #{l2norm_linear.1} parent=19 // pred_fallthru
            _
          %413 = vnop
        $region20: #{l2norm_linear.1} parent=15 // pred_fallthru
          _
        // Predicated region
        $region40: #{l2norm_linear.1} parent=15 // pred_check
          %p414 = pneg %p77
        $region41: #{l2norm_linear.1} parent=15 // pred_check_branch
          %416 = sbr.rel (%p414) target = $region43
        $region42: #{l2norm_linear.1} parent=15 // pred_region
          %s417 = sand.u32 %s67, 1
          %s418 = sand.u32 %s67, 1
          %s419 = smul.addr %s418, 1024
          %s420 = scalar_lea.vmem [#allocation6], %s419
          %s421 = smul.u32 32, %s16
          %s422 = smul.u32 4, %s17
          %s423 = smul.addr %s421, 8
          %s424 = sadd.s32 %s422, %s423
          %s425 = smul.addr %s424, 8
          %s426 = scalar_lea.vmem %s1, %s425
          // Predicated region
          $region44: #{l2norm_linear.1} parent=42 // pred_check
            _
          $region45: #{l2norm_linear.1} parent=42 // pred_check_branch
            %428 = sbr.rel (0) target = $region47
          $region46: #{l2norm_linear.1} parent=42 // pred_region
            // Predicated region
            $region48: #{l2norm_linear.1} parent=46 // pred_check
              _
            $region49: #{l2norm_linear.1} parent=46 // pred_check_branch
              %430 = sbr.rel (0) target = $region51
            $region50: #{l2norm_linear.1} parent=46 // pred_region
              loop: start=0, step=1, limit=1
              $region52: #{l2norm_linear.1} parent=50 // loop_pre_header
                _
              $region53: #{l2norm_linear.1} parent=50 // loop_header
                %s432 = sphi 0, %s436
                %p433 = scmp.ge.s32.totalorder %s432, 1
                %s437 = sphi %s426, %s426
                %s438 = sphi %s420, %s420
              $region54: #{l2norm_linear.1} parent=50 // loop_header_branch
                %435 = sbr.rel (%p433) target = $region58
              $region55: #{l2norm_linear.1} parent=50 // loop_body
                %v439 = vld [vmem:[%s437] sm:$0xff]
                %440 = vst [vmem:[%s438] sm:$0xff] %v439
                %v441 = vld [vmem:[%s437 + $0x8] sm:$0xff]
                %442 = vst [vmem:[%s438 + $0x8] sm:$0xff] %v441
                %v443 = vld [vmem:[%s437 + $0x10] sm:$0xff]
                %444 = vst [vmem:[%s438 + $0x10] sm:$0xff] %v443
                %v445 = vld [vmem:[%s437 + $0x18] sm:$0xff]
                %446 = vst [vmem:[%s438 + $0x18] sm:$0xff] %v445
                %v447 = vld [vmem:[%s437 + $0x40] sm:$0xff]
                %448 = vst [vmem:[%s438 + $0x20] sm:$0xff] %v447
                %v449 = vld [vmem:[%s437 + $0x48] sm:$0xff]
                %450 = vst [vmem:[%s438 + $0x28] sm:$0xff] %v449
                %v451 = vld [vmem:[%s437 + $0x50] sm:$0xff]
                %452 = vst [vmem:[%s438 + $0x30] sm:$0xff] %v451
                %v453 = vld [vmem:[%s437 + $0x58] sm:$0xff]
                %454 = vst [vmem:[%s438 + $0x38] sm:$0xff] %v453
                %v455 = vld [vmem:[%s437 + $0x80] sm:$0xff]
                %456 = vst [vmem:[%s438 + $0x40] sm:$0xff] %v455
                %v457 = vld [vmem:[%s437 + $0x88] sm:$0xff]
                %458 = vst [vmem:[%s438 + $0x48] sm:$0xff] %v457
                %v459 = vld [vmem:[%s437 + $0x90] sm:$0xff]
                %460 = vst [vmem:[%s438 + $0x50] sm:$0xff] %v459
                %v461 = vld [vmem:[%s437 + $0x98] sm:$0xff]
                %462 = vst [vmem:[%s438 + $0x58] sm:$0xff] %v461
                %v463 = vld [vmem:[%s437 + $0xc0] sm:$0xff]
                %464 = vst [vmem:[%s438 + $0x60] sm:$0xff] %v463
                %v465 = vld [vmem:[%s437 + $0xc8] sm:$0xff]
                %466 = vst [vmem:[%s438 + $0x68] sm:$0xff] %v465
                %v467 = vld [vmem:[%s437 + $0xd0] sm:$0xff]
                %468 = vst [vmem:[%s438 + $0x70] sm:$0xff] %v467
                %v469 = vld [vmem:[%s437 + $0xd8] sm:$0xff]
                %470 = vst [vmem:[%s438 + $0x78] sm:$0xff] %v469
                %v471 = vld [vmem:[%s437 + $0x100] sm:$0xff]
                %472 = vst [vmem:[%s438 + $0x80] sm:$0xff] %v471
                %v473 = vld [vmem:[%s437 + $0x108] sm:$0xff]
                %474 = vst [vmem:[%s438 + $0x88] sm:$0xff] %v473
                %v475 = vld [vmem:[%s437 + $0x110] sm:$0xff]
                %476 = vst [vmem:[%s438 + $0x90] sm:$0xff] %v475
                %v477 = vld [vmem:[%s437 + $0x118] sm:$0xff]
                %478 = vst [vmem:[%s438 + $0x98] sm:$0xff] %v477
                %v479 = vld [vmem:[%s437 + $0x140] sm:$0xff]
                %480 = vst [vmem:[%s438 + $0xa0] sm:$0xff] %v479
                %v481 = vld [vmem:[%s437 + $0x148] sm:$0xff]
                %482 = vst [vmem:[%s438 + $0xa8] sm:$0xff] %v481
                %v483 = vld [vmem:[%s437 + $0x150] sm:$0xff]
                %484 = vst [vmem:[%s438 + $0xb0] sm:$0xff] %v483
                %v485 = vld [vmem:[%s437 + $0x158] sm:$0xff]
                %486 = vst [vmem:[%s438 + $0xb8] sm:$0xff] %v485
                %v487 = vld [vmem:[%s437 + $0x180] sm:$0xff]
                %488 = vst [vmem:[%s438 + $0xc0] sm:$0xff] %v487
                %v489 = vld [vmem:[%s437 + $0x188] sm:$0xff]
                %490 = vst [vmem:[%s438 + $0xc8] sm:$0xff] %v489
                %v491 = vld [vmem:[%s437 + $0x190] sm:$0xff]
                %492 = vst [vmem:[%s438 + $0xd0] sm:$0xff] %v491
                %v493 = vld [vmem:[%s437 + $0x198] sm:$0xff]
                %494 = vst [vmem:[%s438 + $0xd8] sm:$0xff] %v493
                %v495 = vld [vmem:[%s437 + $0x1c0] sm:$0xff]
                %496 = vst [vmem:[%s438 + $0xe0] sm:$0xff] %v495
                %v497 = vld [vmem:[%s437 + $0x1c8] sm:$0xff]
                %498 = vst [vmem:[%s438 + $0xe8] sm:$0xff] %v497
                %v499 = vld [vmem:[%s437 + $0x1d0] sm:$0xff]
                %500 = vst [vmem:[%s438 + $0xf0] sm:$0xff] %v499
                %v501 = vld [vmem:[%s437 + $0x1d8] sm:$0xff]
                %502 = vst [vmem:[%s438 + $0xf8] sm:$0xff] %v501
                %v503 = vld [vmem:[%s437 + $0x200] sm:$0xff]
                %504 = vst [vmem:[%s438 + $0x100] sm:$0xff] %v503
                %v505 = vld [vmem:[%s437 + $0x208] sm:$0xff]
                %506 = vst [vmem:[%s438 + $0x108] sm:$0xff] %v505
                %v507 = vld [vmem:[%s437 + $0x210] sm:$0xff]
                %508 = vst [vmem:[%s438 + $0x110] sm:$0xff] %v507
                %v509 = vld [vmem:[%s437 + $0x218] sm:$0xff]
                %510 = vst [vmem:[%s438 + $0x118] sm:$0xff] %v509
                %v511 = vld [vmem:[%s437 + $0x240] sm:$0xff]
                %512 = vst [vmem:[%s438 + $0x120] sm:$0xff] %v511
                %v513 = vld [vmem:[%s437 + $0x248] sm:$0xff]
                %514 = vst [vmem:[%s438 + $0x128] sm:$0xff] %v513
                %v515 = vld [vmem:[%s437 + $0x250] sm:$0xff]
                %516 = vst [vmem:[%s438 + $0x130] sm:$0xff] %v515
                %v517 = vld [vmem:[%s437 + $0x258] sm:$0xff]
                %518 = vst [vmem:[%s438 + $0x138] sm:$0xff] %v517
                %v519 = vld [vmem:[%s437 + $0x280] sm:$0xff]
                %520 = vst [vmem:[%s438 + $0x140] sm:$0xff] %v519
                %v521 = vld [vmem:[%s437 + $0x288] sm:$0xff]
                %522 = vst [vmem:[%s438 + $0x148] sm:$0xff] %v521
                %v523 = vld [vmem:[%s437 + $0x290] sm:$0xff]
                %524 = vst [vmem:[%s438 + $0x150] sm:$0xff] %v523
                %v525 = vld [vmem:[%s437 + $0x298] sm:$0xff]
                %526 = vst [vmem:[%s438 + $0x158] sm:$0xff] %v525
                %v527 = vld [vmem:[%s437 + $0x2c0] sm:$0xff]
                %528 = vst [vmem:[%s438 + $0x160] sm:$0xff] %v527
                %v529 = vld [vmem:[%s437 + $0x2c8] sm:$0xff]
                %530 = vst [vmem:[%s438 + $0x168] sm:$0xff] %v529
                %v531 = vld [vmem:[%s437 + $0x2d0] sm:$0xff]
                %532 = vst [vmem:[%s438 + $0x170] sm:$0xff] %v531
                %v533 = vld [vmem:[%s437 + $0x2d8] sm:$0xff]
                %534 = vst [vmem:[%s438 + $0x178] sm:$0xff] %v533
                %v535 = vld [vmem:[%s437 + $0x300] sm:$0xff]
                %536 = vst [vmem:[%s438 + $0x180] sm:$0xff] %v535
                %v537 = vld [vmem:[%s437 + $0x308] sm:$0xff]
                %538 = vst [vmem:[%s438 + $0x188] sm:$0xff] %v537
                %v539 = vld [vmem:[%s437 + $0x310] sm:$0xff]
                %540 = vst [vmem:[%s438 + $0x190] sm:$0xff] %v539
                %v541 = vld [vmem:[%s437 + $0x318] sm:$0xff]
                %542 = vst [vmem:[%s438 + $0x198] sm:$0xff] %v541
                %v543 = vld [vmem:[%s437 + $0x340] sm:$0xff]
                %544 = vst [vmem:[%s438 + $0x1a0] sm:$0xff] %v543
                %v545 = vld [vmem:[%s437 + $0x348] sm:$0xff]
                %546 = vst [vmem:[%s438 + $0x1a8] sm:$0xff] %v545
                %v547 = vld [vmem:[%s437 + $0x350] sm:$0xff]
                %548 = vst [vmem:[%s438 + $0x1b0] sm:$0xff] %v547
                %v549 = vld [vmem:[%s437 + $0x358] sm:$0xff]
                %550 = vst [vmem:[%s438 + $0x1b8] sm:$0xff] %v549
                %v551 = vld [vmem:[%s437 + $0x380] sm:$0xff]
                %552 = vst [vmem:[%s438 + $0x1c0] sm:$0xff] %v551
                %v553 = vld [vmem:[%s437 + $0x388] sm:$0xff]
                %554 = vst [vmem:[%s438 + $0x1c8] sm:$0xff] %v553
                %v555 = vld [vmem:[%s437 + $0x390] sm:$0xff]
                %556 = vst [vmem:[%s438 + $0x1d0] sm:$0xff] %v555
                %v557 = vld [vmem:[%s437 + $0x398] sm:$0xff]
                %558 = vst [vmem:[%s438 + $0x1d8] sm:$0xff] %v557
                %v559 = vld [vmem:[%s437 + $0x3c0] sm:$0xff]
                %560 = vst [vmem:[%s438 + $0x1e0] sm:$0xff] %v559
                %v561 = vld [vmem:[%s437 + $0x3c8] sm:$0xff]
                %562 = vst [vmem:[%s438 + $0x1e8] sm:$0xff] %v561
                %v563 = vld [vmem:[%s437 + $0x3d0] sm:$0xff]
                %564 = vst [vmem:[%s438 + $0x1f0] sm:$0xff] %v563
                %v565 = vld [vmem:[%s437 + $0x3d8] sm:$0xff]
                %566 = vst [vmem:[%s438 + $0x1f8] sm:$0xff] %v565
                %v567 = vld [vmem:[%s437 + $0x400] sm:$0xff]
                %568 = vst [vmem:[%s438 + $0x200] sm:$0xff] %v567
                %v569 = vld [vmem:[%s437 + $0x408] sm:$0xff]
                %570 = vst [vmem:[%s438 + $0x208] sm:$0xff] %v569
                %v571 = vld [vmem:[%s437 + $0x410] sm:$0xff]
                %572 = vst [vmem:[%s438 + $0x210] sm:$0xff] %v571
                %v573 = vld [vmem:[%s437 + $0x418] sm:$0xff]
                %574 = vst [vmem:[%s438 + $0x218] sm:$0xff] %v573
                %v575 = vld [vmem:[%s437 + $0x440] sm:$0xff]
                %576 = vst [vmem:[%s438 + $0x220] sm:$0xff] %v575
                %v577 = vld [vmem:[%s437 + $0x448] sm:$0xff]
                %578 = vst [vmem:[%s438 + $0x228] sm:$0xff] %v577
                %v579 = vld [vmem:[%s437 + $0x450] sm:$0xff]
                %580 = vst [vmem:[%s438 + $0x230] sm:$0xff] %v579
                %v581 = vld [vmem:[%s437 + $0x458] sm:$0xff]
                %582 = vst [vmem:[%s438 + $0x238] sm:$0xff] %v581
                %v583 = vld [vmem:[%s437 + $0x480] sm:$0xff]
                %584 = vst [vmem:[%s438 + $0x240] sm:$0xff] %v583
                %v585 = vld [vmem:[%s437 + $0x488] sm:$0xff]
                %586 = vst [vmem:[%s438 + $0x248] sm:$0xff] %v585
                %v587 = vld [vmem:[%s437 + $0x490] sm:$0xff]
                %588 = vst [vmem:[%s438 + $0x250] sm:$0xff] %v587
                %v589 = vld [vmem:[%s437 + $0x498] sm:$0xff]
                %590 = vst [vmem:[%s438 + $0x258] sm:$0xff] %v589
                %v591 = vld [vmem:[%s437 + $0x4c0] sm:$0xff]
                %592 = vst [vmem:[%s438 + $0x260] sm:$0xff] %v591
                %v593 = vld [vmem:[%s437 + $0x4c8] sm:$0xff]
                %594 = vst [vmem:[%s438 + $0x268] sm:$0xff] %v593
                %v595 = vld [vmem:[%s437 + $0x4d0] sm:$0xff]
                %596 = vst [vmem:[%s438 + $0x270] sm:$0xff] %v595
                %v597 = vld [vmem:[%s437 + $0x4d8] sm:$0xff]
                %598 = vst [vmem:[%s438 + $0x278] sm:$0xff] %v597
                %v599 = vld [vmem:[%s437 + $0x500] sm:$0xff]
                %600 = vst [vmem:[%s438 + $0x280] sm:$0xff] %v599
                %v601 = vld [vmem:[%s437 + $0x508] sm:$0xff]
                %602 = vst [vmem:[%s438 + $0x288] sm:$0xff] %v601
                %v603 = vld [vmem:[%s437 + $0x510] sm:$0xff]
                %604 = vst [vmem:[%s438 + $0x290] sm:$0xff] %v603
                %v605 = vld [vmem:[%s437 + $0x518] sm:$0xff]
                %606 = vst [vmem:[%s438 + $0x298] sm:$0xff] %v605
                %v607 = vld [vmem:[%s437 + $0x540] sm:$0xff]
                %608 = vst [vmem:[%s438 + $0x2a0] sm:$0xff] %v607
                %v609 = vld [vmem:[%s437 + $0x548] sm:$0xff]
                %610 = vst [vmem:[%s438 + $0x2a8] sm:$0xff] %v609
                %v611 = vld [vmem:[%s437 + $0x550] sm:$0xff]
                %612 = vst [vmem:[%s438 + $0x2b0] sm:$0xff] %v611
                %v613 = vld [vmem:[%s437 + $0x558] sm:$0xff]
                %614 = vst [vmem:[%s438 + $0x2b8] sm:$0xff] %v613
                %v615 = vld [vmem:[%s437 + $0x580] sm:$0xff]
                %616 = vst [vmem:[%s438 + $0x2c0] sm:$0xff] %v615
                %v617 = vld [vmem:[%s437 + $0x588] sm:$0xff]
                %618 = vst [vmem:[%s438 + $0x2c8] sm:$0xff] %v617
                %v619 = vld [vmem:[%s437 + $0x590] sm:$0xff]
                %620 = vst [vmem:[%s438 + $0x2d0] sm:$0xff] %v619
                %v621 = vld [vmem:[%s437 + $0x598] sm:$0xff]
                %622 = vst [vmem:[%s438 + $0x2d8] sm:$0xff] %v621
                %v623 = vld [vmem:[%s437 + $0x5c0] sm:$0xff]
                %624 = vst [vmem:[%s438 + $0x2e0] sm:$0xff] %v623
                %v625 = vld [vmem:[%s437 + $0x5c8] sm:$0xff]
                %626 = vst [vmem:[%s438 + $0x2e8] sm:$0xff] %v625
                %v627 = vld [vmem:[%s437 + $0x5d0] sm:$0xff]
                %628 = vst [vmem:[%s438 + $0x2f0] sm:$0xff] %v627
                %v629 = vld [vmem:[%s437 + $0x5d8] sm:$0xff]
                %630 = vst [vmem:[%s438 + $0x2f8] sm:$0xff] %v629
                %v631 = vld [vmem:[%s437 + $0x600] sm:$0xff]
                %632 = vst [vmem:[%s438 + $0x300] sm:$0xff] %v631
                %v633 = vld [vmem:[%s437 + $0x608] sm:$0xff]
                %634 = vst [vmem:[%s438 + $0x308] sm:$0xff] %v633
                %v635 = vld [vmem:[%s437 + $0x610] sm:$0xff]
                %636 = vst [vmem:[%s438 + $0x310] sm:$0xff] %v635
                %v637 = vld [vmem:[%s437 + $0x618] sm:$0xff]
                %638 = vst [vmem:[%s438 + $0x318] sm:$0xff] %v637
                %v639 = vld [vmem:[%s437 + $0x640] sm:$0xff]
                %640 = vst [vmem:[%s438 + $0x320] sm:$0xff] %v639
                %v641 = vld [vmem:[%s437 + $0x648] sm:$0xff]
                %642 = vst [vmem:[%s438 + $0x328] sm:$0xff] %v641
                %v643 = vld [vmem:[%s437 + $0x650] sm:$0xff]
                %644 = vst [vmem:[%s438 + $0x330] sm:$0xff] %v643
                %v645 = vld [vmem:[%s437 + $0x658] sm:$0xff]
                %646 = vst [vmem:[%s438 + $0x338] sm:$0xff] %v645
                %v647 = vld [vmem:[%s437 + $0x680] sm:$0xff]
                %648 = vst [vmem:[%s438 + $0x340] sm:$0xff] %v647
                %v649 = vld [vmem:[%s437 + $0x688] sm:$0xff]
                %650 = vst [vmem:[%s438 + $0x348] sm:$0xff] %v649
                %v651 = vld [vmem:[%s437 + $0x690] sm:$0xff]
                %652 = vst [vmem:[%s438 + $0x350] sm:$0xff] %v651
                %v653 = vld [vmem:[%s437 + $0x698] sm:$0xff]
                %654 = vst [vmem:[%s438 + $0x358] sm:$0xff] %v653
                %v655 = vld [vmem:[%s437 + $0x6c0] sm:$0xff]
                %656 = vst [vmem:[%s438 + $0x360] sm:$0xff] %v655
                %v657 = vld [vmem:[%s437 + $0x6c8] sm:$0xff]
                %658 = vst [vmem:[%s438 + $0x368] sm:$0xff] %v657
                %v659 = vld [vmem:[%s437 + $0x6d0] sm:$0xff]
                %660 = vst [vmem:[%s438 + $0x370] sm:$0xff] %v659
                %v661 = vld [vmem:[%s437 + $0x6d8] sm:$0xff]
                %662 = vst [vmem:[%s438 + $0x378] sm:$0xff] %v661
                %v663 = vld [vmem:[%s437 + $0x700] sm:$0xff]
                %664 = vst [vmem:[%s438 + $0x380] sm:$0xff] %v663
                %v665 = vld [vmem:[%s437 + $0x708] sm:$0xff]
                %666 = vst [vmem:[%s438 + $0x388] sm:$0xff] %v665
                %v667 = vld [vmem:[%s437 + $0x710] sm:$0xff]
                %668 = vst [vmem:[%s438 + $0x390] sm:$0xff] %v667
                %v669 = vld [vmem:[%s437 + $0x718] sm:$0xff]
                %670 = vst [vmem:[%s438 + $0x398] sm:$0xff] %v669
                %v671 = vld [vmem:[%s437 + $0x740] sm:$0xff]
                %672 = vst [vmem:[%s438 + $0x3a0] sm:$0xff] %v671
                %v673 = vld [vmem:[%s437 + $0x748] sm:$0xff]
                %674 = vst [vmem:[%s438 + $0x3a8] sm:$0xff] %v673
                %v675 = vld [vmem:[%s437 + $0x750] sm:$0xff]
                %676 = vst [vmem:[%s438 + $0x3b0] sm:$0xff] %v675
                %v677 = vld [vmem:[%s437 + $0x758] sm:$0xff]
                %678 = vst [vmem:[%s438 + $0x3b8] sm:$0xff] %v677
                %v679 = vld [vmem:[%s437 + $0x780] sm:$0xff]
                %680 = vst [vmem:[%s438 + $0x3c0] sm:$0xff] %v679
                %v681 = vld [vmem:[%s437 + $0x788] sm:$0xff]
                %682 = vst [vmem:[%s438 + $0x3c8] sm:$0xff] %v681
                %v683 = vld [vmem:[%s437 + $0x790] sm:$0xff]
                %684 = vst [vmem:[%s438 + $0x3d0] sm:$0xff] %v683
                %v685 = vld [vmem:[%s437 + $0x798] sm:$0xff]
                %686 = vst [vmem:[%s438 + $0x3d8] sm:$0xff] %v685
                %v687 = vld [vmem:[%s437 + $0x7c0] sm:$0xff]
                %688 = vst [vmem:[%s438 + $0x3e0] sm:$0xff] %v687
                %v689 = vld [vmem:[%s437 + $0x7c8] sm:$0xff]
                %690 = vst [vmem:[%s438 + $0x3e8] sm:$0xff] %v689
                %v691 = vld [vmem:[%s437 + $0x7d0] sm:$0xff]
                %692 = vst [vmem:[%s438 + $0x3f0] sm:$0xff] %v691
                %v693 = vld [vmem:[%s437 + $0x7d8] sm:$0xff]
                %694 = vst [vmem:[%s438 + $0x3f8] sm:$0xff] %v693
              $region56: #{l2norm_linear.1} parent=50 // loop_footer
                %s436 = sadd.s32 1, %s432
              $region57: #{l2norm_linear.1} parent=50 // loop_footer_branch
                %431 = sbr.rel target = $region53
              $region58: #{l2norm_linear.1} parent=50 // loop_exit
                _
            $region51: #{l2norm_linear.1} parent=46 // pred_fallthru
              _
            // Predicated region
            $region59: #{l2norm_linear.1} parent=46 // pred_check
              _
            $region60: #{l2norm_linear.1} parent=46 // pred_check_branch
              %696 = sbr.rel target = $region62
            $region61: #{l2norm_linear.1} parent=46 // pred_region
              _
            $region62: #{l2norm_linear.1} parent=46 // pred_fallthru
              _
          $region47: #{l2norm_linear.1} parent=42 // pred_fallthru
            _
          %697 = vnop
        $region43: #{l2norm_linear.1} parent=15 // pred_fallthru
          _
      $region16: #{l2norm_linear.1} parent=5 // pred_fallthru
        _
      %p698 = scmp.le.s32.totalorder 1, %s8
      %p699 = scmp.lt.s32.totalorder %s8, 5
      %p700 = pnand %p698, %p699
      %p701 = pneg %p700
      // Predicated region
      $region63: #{l2norm_linear.1} parent=5 // pred_check
        _
      $region64: #{l2norm_linear.1} parent=5 // pred_check_branch
        %703 = sbr.rel (%p700) target = $region66
      $region65: #{l2norm_linear.1} parent=5 // pred_region
        %s704 = ssub.s32 %s8, 1
        %s705 = sand.u32 %s42, 1
        %s706 = sand.u32 %s42, 1
        %s707 = smul.addr %s706, 1024
        %s708 = scalar_lea.vmem [#allocation5], %s707
        // Predicated region
        $region67: #{l2norm_linear.1} parent=65 // pred_check
          %p709 = pneg %p55
        $region68: #{l2norm_linear.1} parent=65 // pred_check_branch
          %711 = sbr.rel (%p709) target = $region70
        $region69: #{l2norm_linear.1} parent=65 // pred_region
          _
        $region70: #{l2norm_linear.1} parent=65 // pred_fallthru
          _
        %s712 = sand.u32 %s70, 1
        %s713 = sand.u32 %s70, 1
        %s714 = smul.addr %s713, 1024
        %s715 = scalar_lea.vmem [#allocation6], %s714
        // Predicated region
        $region71: #{l2norm_linear.1} parent=65 // pred_check
          %p716 = pneg %p83
        $region72: #{l2norm_linear.1} parent=65 // pred_check_branch
          %718 = sbr.rel (%p716) target = $region74
        $region73: #{l2norm_linear.1} parent=65 // pred_region
          _
        $region74: #{l2norm_linear.1} parent=65 // pred_fallthru
          _
        %s719 = sand.u32 %s42, 1
        %s720 = sand.u32 %s42, 1
        %s721 = smul.addr %s720, 1024
        %s722 = scalar_lea.vmem [#allocation5], %s721
        %p723 = pneg %p55
        %p724 = pneg %p52
        %s725 = sand.u32 %s70, 1
        %s726 = sand.u32 %s70, 1
        %s727 = smul.addr %s726, 1024
        %s728 = scalar_lea.vmem [#allocation6], %s727
        %p729 = pneg %p83
        %p730 = pneg %p80
        %p731 = pneg %p111
        %p732 = pneg %p108
        %s733 = sand.u32 %s98, 1
        %s734 = sand.u32 %s98, 1
        %s735 = smul.addr %s734, 512
        %s736 = scalar_lea.vmem [#allocation7], %s735
        %s737 = smul.u32 32, %s18
        %s738 = smul.u32 4, %s20
        %s739 = smul.u32 32, %s19
        %s740 = smul.u32 4, %s20
        %s741 = smul.u32 32, %s18
        %s742 = smul.u32 2, %s19
        %p743 = scmp.eq.s32.totalorder %s20, 0
        // Predicated region
        $region75: #{l2norm_linear.1} parent=65 // pred_check
          %p744 = pneg %p743
        $region76: #{l2norm_linear.1} parent=65 // pred_check_branch
          %746 = sbr.rel (%p744) target = $region78
        $region77: #{l2norm_linear.1} parent=65 // pred_region
          %747 = vst [vmem:[#allocation2] sm:$0xff] 0.0
          %748 = vst [vmem:[#allocation2 + $0x8] sm:$0xff] 0.0
          %749 = vst [vmem:[#allocation2 + $0x10] sm:$0xff] 0.0
          %750 = vst [vmem:[#allocation2 + $0x18] sm:$0xff] 0.0
          %751 = vst [vmem:[#allocation2 + $0x20] sm:$0xff] 0.0
          %752 = vst [vmem:[#allocation2 + $0x28] sm:$0xff] 0.0
          %753 = vst [vmem:[#allocation2 + $0x30] sm:$0xff] 0.0
          %754 = vst [vmem:[#allocation2 + $0x38] sm:$0xff] 0.0
          %755 = vst [vmem:[#allocation2 + $0x40] sm:$0xff] 0.0
          %756 = vst [vmem:[#allocation2 + $0x48] sm:$0xff] 0.0
          %757 = vst [vmem:[#allocation2 + $0x50] sm:$0xff] 0.0
          %758 = vst [vmem:[#allocation2 + $0x58] sm:$0xff] 0.0
          %759 = vst [vmem:[#allocation2 + $0x60] sm:$0xff] 0.0
          %760 = vst [vmem:[#allocation2 + $0x68] sm:$0xff] 0.0
          %761 = vst [vmem:[#allocation2 + $0x70] sm:$0xff] 0.0
          %762 = vst [vmem:[#allocation2 + $0x78] sm:$0xff] 0.0
          %763 = vst [vmem:[#allocation2 + $0x80] sm:$0xff] 0.0
          %764 = vst [vmem:[#allocation2 + $0x88] sm:$0xff] 0.0
          %765 = vst [vmem:[#allocation2 + $0x90] sm:$0xff] 0.0
          %766 = vst [vmem:[#allocation2 + $0x98] sm:$0xff] 0.0
          %767 = vst [vmem:[#allocation2 + $0xa0] sm:$0xff] 0.0
          %768 = vst [vmem:[#allocation2 + $0xa8] sm:$0xff] 0.0
          %769 = vst [vmem:[#allocation2 + $0xb0] sm:$0xff] 0.0
          %770 = vst [vmem:[#allocation2 + $0xb8] sm:$0xff] 0.0
          %771 = vst [vmem:[#allocation2 + $0xc0] sm:$0xff] 0.0
          %772 = vst [vmem:[#allocation2 + $0xc8] sm:$0xff] 0.0
          %773 = vst [vmem:[#allocation2 + $0xd0] sm:$0xff] 0.0
          %774 = vst [vmem:[#allocation2 + $0xd8] sm:$0xff] 0.0
          %775 = vst [vmem:[#allocation2 + $0xe0] sm:$0xff] 0.0
          %776 = vst [vmem:[#allocation2 + $0xe8] sm:$0xff] 0.0
          %777 = vst [vmem:[#allocation2 + $0xf0] sm:$0xff] 0.0
          %778 = vst [vmem:[#allocation2 + $0xf8] sm:$0xff] 0.0
          %779 = vst [vmem:[#allocation2 + $0x100] sm:$0xff] 0.0
          %780 = vst [vmem:[#allocation2 + $0x108] sm:$0xff] 0.0
          %781 = vst [vmem:[#allocation2 + $0x110] sm:$0xff] 0.0
          %782 = vst [vmem:[#allocation2 + $0x118] sm:$0xff] 0.0
          %783 = vst [vmem:[#allocation2 + $0x120] sm:$0xff] 0.0
          %784 = vst [vmem:[#allocation2 + $0x128] sm:$0xff] 0.0
          %785 = vst [vmem:[#allocation2 + $0x130] sm:$0xff] 0.0
          %786 = vst [vmem:[#allocation2 + $0x138] sm:$0xff] 0.0
          %787 = vst [vmem:[#allocation2 + $0x140] sm:$0xff] 0.0
          %788 = vst [vmem:[#allocation2 + $0x148] sm:$0xff] 0.0
          %789 = vst [vmem:[#allocation2 + $0x150] sm:$0xff] 0.0
          %790 = vst [vmem:[#allocation2 + $0x158] sm:$0xff] 0.0
          %791 = vst [vmem:[#allocation2 + $0x160] sm:$0xff] 0.0
          %792 = vst [vmem:[#allocation2 + $0x168] sm:$0xff] 0.0
          %793 = vst [vmem:[#allocation2 + $0x170] sm:$0xff] 0.0
          %794 = vst [vmem:[#allocation2 + $0x178] sm:$0xff] 0.0
          %795 = vst [vmem:[#allocation2 + $0x180] sm:$0xff] 0.0
          %796 = vst [vmem:[#allocation2 + $0x188] sm:$0xff] 0.0
          %797 = vst [vmem:[#allocation2 + $0x190] sm:$0xff] 0.0
          %798 = vst [vmem:[#allocation2 + $0x198] sm:$0xff] 0.0
          %799 = vst [vmem:[#allocation2 + $0x1a0] sm:$0xff] 0.0
          %800 = vst [vmem:[#allocation2 + $0x1a8] sm:$0xff] 0.0
          %801 = vst [vmem:[#allocation2 + $0x1b0] sm:$0xff] 0.0
          %802 = vst [vmem:[#allocation2 + $0x1b8] sm:$0xff] 0.0
          %803 = vst [vmem:[#allocation2 + $0x1c0] sm:$0xff] 0.0
          %804 = vst [vmem:[#allocation2 + $0x1c8] sm:$0xff] 0.0
          %805 = vst [vmem:[#allocation2 + $0x1d0] sm:$0xff] 0.0
          %806 = vst [vmem:[#allocation2 + $0x1d8] sm:$0xff] 0.0
          %807 = vst [vmem:[#allocation2 + $0x1e0] sm:$0xff] 0.0
          %808 = vst [vmem:[#allocation2 + $0x1e8] sm:$0xff] 0.0
          %809 = vst [vmem:[#allocation2 + $0x1f0] sm:$0xff] 0.0
          %810 = vst [vmem:[#allocation2 + $0x1f8] sm:$0xff] 0.0
        $region78: #{l2norm_linear.1} parent=65 // pred_fallthru
          _
        %p811 = scmp.eq.s32.totalorder %s19, 0
        %p812 = pnand %p811, %p743
        %p813 = pneg %p812
        // Predicated region
        $region79: #{l2norm_linear.1} parent=65 // pred_check
          _
        $region80: #{l2norm_linear.1} parent=65 // pred_check_branch
          %815 = sbr.rel (%p812) target = $region82
        $region81: #{l2norm_linear.1} parent=65 // pred_region
          %vm816 = vcmask 7168
          %817 = vst.msk [vmem:[#allocation3] sm:$0xff] %vm816, 0.0
          %818 = vst.msk [vmem:[#allocation3 + $0x8] sm:$0xff] %vm816, 0.0
          %819 = vst.msk [vmem:[#allocation3 + $0x10] sm:$0xff] %vm816, 0.0
          %820 = vst.msk [vmem:[#allocation3 + $0x18] sm:$0xff] %vm816, 0.0
          %821 = vst.msk [vmem:[#allocation3 + $0x20] sm:$0xff] %vm816, 0.0
          %822 = vst.msk [vmem:[#allocation3 + $0x28] sm:$0xff] %vm816, 0.0
          %823 = vst.msk [vmem:[#allocation3 + $0x30] sm:$0xff] %vm816, 0.0
          %824 = vst.msk [vmem:[#allocation3 + $0x38] sm:$0xff] %vm816, 0.0
          %825 = vst.msk [vmem:[#allocation3 + $0x40] sm:$0xff] %vm816, 0.0
          %826 = vst.msk [vmem:[#allocation3 + $0x48] sm:$0xff] %vm816, 0.0
          %827 = vst.msk [vmem:[#allocation3 + $0x50] sm:$0xff] %vm816, 0.0
          %828 = vst.msk [vmem:[#allocation3 + $0x58] sm:$0xff] %vm816, 0.0
          %829 = vst.msk [vmem:[#allocation3 + $0x60] sm:$0xff] %vm816, 0.0
          %830 = vst.msk [vmem:[#allocation3 + $0x68] sm:$0xff] %vm816, 0.0
          %831 = vst.msk [vmem:[#allocation3 + $0x70] sm:$0xff] %vm816, 0.0
          %832 = vst.msk [vmem:[#allocation3 + $0x78] sm:$0xff] %vm816, 0.0
          %833 = vst.msk [vmem:[#allocation3 + $0x80] sm:$0xff] %vm816, 0.0
          %834 = vst.msk [vmem:[#allocation3 + $0x88] sm:$0xff] %vm816, 0.0
          %835 = vst.msk [vmem:[#allocation3 + $0x90] sm:$0xff] %vm816, 0.0
          %836 = vst.msk [vmem:[#allocation3 + $0x98] sm:$0xff] %vm816, 0.0
          %837 = vst.msk [vmem:[#allocation3 + $0xa0] sm:$0xff] %vm816, 0.0
          %838 = vst.msk [vmem:[#allocation3 + $0xa8] sm:$0xff] %vm816, 0.0
          %839 = vst.msk [vmem:[#allocation3 + $0xb0] sm:$0xff] %vm816, 0.0
          %840 = vst.msk [vmem:[#allocation3 + $0xb8] sm:$0xff] %vm816, 0.0
          %841 = vst.msk [vmem:[#allocation3 + $0xc0] sm:$0xff] %vm816, 0.0
          %842 = vst.msk [vmem:[#allocation3 + $0xc8] sm:$0xff] %vm816, 0.0
          %843 = vst.msk [vmem:[#allocation3 + $0xd0] sm:$0xff] %vm816, 0.0
          %844 = vst.msk [vmem:[#allocation3 + $0xd8] sm:$0xff] %vm816, 0.0
          %845 = vst.msk [vmem:[#allocation3 + $0xe0] sm:$0xff] %vm816, 0.0
          %846 = vst.msk [vmem:[#allocation3 + $0xe8] sm:$0xff] %vm816, 0.0
          %847 = vst.msk [vmem:[#allocation3 + $0xf0] sm:$0xff] %vm816, 0.0
          %848 = vst.msk [vmem:[#allocation3 + $0xf8] sm:$0xff] %vm816, 0.0
        $region82: #{l2norm_linear.1} parent=65 // pred_fallthru
          _
        %v849 = vld [vmem:[%s708] sm:$0xff]
        %v850 = vld [vmem:[%s708 + $0x8] sm:$0xff]
        %v851 = vld [vmem:[%s708 + $0x10] sm:$0xff]
        %v852 = vld [vmem:[%s708 + $0x18] sm:$0xff]
        %v853 = vld [vmem:[%s708 + $0x20] sm:$0xff]
        %v854 = vld [vmem:[%s708 + $0x28] sm:$0xff]
        %v855 = vld [vmem:[%s708 + $0x30] sm:$0xff]
        %v856 = vld [vmem:[%s708 + $0x38] sm:$0xff]
        %v857 = vld [vmem:[%s708 + $0x40] sm:$0xff]
        %v858 = vld [vmem:[%s708 + $0x48] sm:$0xff]
        %v859 = vld [vmem:[%s708 + $0x50] sm:$0xff]
        %v860 = vld [vmem:[%s708 + $0x58] sm:$0xff]
        %v861 = vld [vmem:[%s708 + $0x60] sm:$0xff]
        %v862 = vld [vmem:[%s708 + $0x68] sm:$0xff]
        %v863 = vld [vmem:[%s708 + $0x70] sm:$0xff]
        %v864 = vld [vmem:[%s708 + $0x78] sm:$0xff]
        %v865 = vld [vmem:[%s708 + $0x80] sm:$0xff]
        %v866 = vld [vmem:[%s708 + $0x88] sm:$0xff]
        %v867 = vld [vmem:[%s708 + $0x90] sm:$0xff]
        %v868 = vld [vmem:[%s708 + $0x98] sm:$0xff]
        %v869 = vld [vmem:[%s708 + $0xa0] sm:$0xff]
        %v870 = vld [vmem:[%s708 + $0xa8] sm:$0xff]
        %v871 = vld [vmem:[%s708 + $0xb0] sm:$0xff]
        %v872 = vld [vmem:[%s708 + $0xb8] sm:$0xff]
        %v873 = vld [vmem:[%s708 + $0xc0] sm:$0xff]
        %v874 = vld [vmem:[%s708 + $0xc8] sm:$0xff]
        %v875 = vld [vmem:[%s708 + $0xd0] sm:$0xff]
        %v876 = vld [vmem:[%s708 + $0xd8] sm:$0xff]
        %v877 = vld [vmem:[%s708 + $0xe0] sm:$0xff]
        %v878 = vld [vmem:[%s708 + $0xe8] sm:$0xff]
        %v879 = vld [vmem:[%s708 + $0xf0] sm:$0xff]
        %v880 = vld [vmem:[%s708 + $0xf8] sm:$0xff]
        %v881 = vld [vmem:[%s708 + $0x100] sm:$0xff]
        %v882 = vld [vmem:[%s708 + $0x108] sm:$0xff]
        %v883 = vld [vmem:[%s708 + $0x110] sm:$0xff]
        %v884 = vld [vmem:[%s708 + $0x118] sm:$0xff]
        %v885 = vld [vmem:[%s708 + $0x120] sm:$0xff]
        %v886 = vld [vmem:[%s708 + $0x128] sm:$0xff]
        %v887 = vld [vmem:[%s708 + $0x130] sm:$0xff]
        %v888 = vld [vmem:[%s708 + $0x138] sm:$0xff]
        %v889 = vld [vmem:[%s708 + $0x140] sm:$0xff]
        %v890 = vld [vmem:[%s708 + $0x148] sm:$0xff]
        %v891 = vld [vmem:[%s708 + $0x150] sm:$0xff]
        %v892 = vld [vmem:[%s708 + $0x158] sm:$0xff]
        %v893 = vld [vmem:[%s708 + $0x160] sm:$0xff]
        %v894 = vld [vmem:[%s708 + $0x168] sm:$0xff]
        %v895 = vld [vmem:[%s708 + $0x170] sm:$0xff]
        %v896 = vld [vmem:[%s708 + $0x178] sm:$0xff]
        %v897 = vld [vmem:[%s708 + $0x180] sm:$0xff]
        %v898 = vld [vmem:[%s708 + $0x188] sm:$0xff]
        %v899 = vld [vmem:[%s708 + $0x190] sm:$0xff]
        %v900 = vld [vmem:[%s708 + $0x198] sm:$0xff]
        %v901 = vld [vmem:[%s708 + $0x1a0] sm:$0xff]
        %v902 = vld [vmem:[%s708 + $0x1a8] sm:$0xff]
        %v903 = vld [vmem:[%s708 + $0x1b0] sm:$0xff]
        %v904 = vld [vmem:[%s708 + $0x1b8] sm:$0xff]
        %v905 = vld [vmem:[%s708 + $0x1c0] sm:$0xff]
        %v906 = vld [vmem:[%s708 + $0x1c8] sm:$0xff]
        %v907 = vld [vmem:[%s708 + $0x1d0] sm:$0xff]
        %v908 = vld [vmem:[%s708 + $0x1d8] sm:$0xff]
        %v909 = vld [vmem:[%s708 + $0x1e0] sm:$0xff]
        %v910 = vld [vmem:[%s708 + $0x1e8] sm:$0xff]
        %v911 = vld [vmem:[%s708 + $0x1f0] sm:$0xff]
        %v912 = vld [vmem:[%s708 + $0x1f8] sm:$0xff]
        %v913 = vld [vmem:[%s708 + $0x200] sm:$0xff]
        %v914 = vld [vmem:[%s708 + $0x208] sm:$0xff]
        %v915 = vld [vmem:[%s708 + $0x210] sm:$0xff]
        %v916 = vld [vmem:[%s708 + $0x218] sm:$0xff]
        %v917 = vld [vmem:[%s708 + $0x220] sm:$0xff]
        %v918 = vld [vmem:[%s708 + $0x228] sm:$0xff]
        %v919 = vld [vmem:[%s708 + $0x230] sm:$0xff]
        %v920 = vld [vmem:[%s708 + $0x238] sm:$0xff]
        %v921 = vld [vmem:[%s708 + $0x240] sm:$0xff]
        %v922 = vld [vmem:[%s708 + $0x248] sm:$0xff]
        %v923 = vld [vmem:[%s708 + $0x250] sm:$0xff]
        %v924 = vld [vmem:[%s708 + $0x258] sm:$0xff]
        %v925 = vld [vmem:[%s708 + $0x260] sm:$0xff]
        %v926 = vld [vmem:[%s708 + $0x268] sm:$0xff]
        %v927 = vld [vmem:[%s708 + $0x270] sm:$0xff]
        %v928 = vld [vmem:[%s708 + $0x278] sm:$0xff]
        %v929 = vld [vmem:[%s708 + $0x280] sm:$0xff]
        %v930 = vld [vmem:[%s708 + $0x288] sm:$0xff]
        %v931 = vld [vmem:[%s708 + $0x290] sm:$0xff]
        %v932 = vld [vmem:[%s708 + $0x298] sm:$0xff]
        %v933 = vld [vmem:[%s708 + $0x2a0] sm:$0xff]
        %v934 = vld [vmem:[%s708 + $0x2a8] sm:$0xff]
        %v935 = vld [vmem:[%s708 + $0x2b0] sm:$0xff]
        %v936 = vld [vmem:[%s708 + $0x2b8] sm:$0xff]
        %v937 = vld [vmem:[%s708 + $0x2c0] sm:$0xff]
        %v938 = vld [vmem:[%s708 + $0x2c8] sm:$0xff]
        %v939 = vld [vmem:[%s708 + $0x2d0] sm:$0xff]
        %v940 = vld [vmem:[%s708 + $0x2d8] sm:$0xff]
        %v941 = vld [vmem:[%s708 + $0x2e0] sm:$0xff]
        %v942 = vld [vmem:[%s708 + $0x2e8] sm:$0xff]
        %v943 = vld [vmem:[%s708 + $0x2f0] sm:$0xff]
        %v944 = vld [vmem:[%s708 + $0x2f8] sm:$0xff]
        %v945 = vld [vmem:[%s708 + $0x300] sm:$0xff]
        %v946 = vld [vmem:[%s708 + $0x308] sm:$0xff]
        %v947 = vld [vmem:[%s708 + $0x310] sm:$0xff]
        %v948 = vld [vmem:[%s708 + $0x318] sm:$0xff]
        %v949 = vld [vmem:[%s708 + $0x320] sm:$0xff]
        %v950 = vld [vmem:[%s708 + $0x328] sm:$0xff]
        %v951 = vld [vmem:[%s708 + $0x330] sm:$0xff]
        %v952 = vld [vmem:[%s708 + $0x338] sm:$0xff]
        %v953 = vld [vmem:[%s708 + $0x340] sm:$0xff]
        %v954 = vld [vmem:[%s708 + $0x348] sm:$0xff]
        %v955 = vld [vmem:[%s708 + $0x350] sm:$0xff]
        %v956 = vld [vmem:[%s708 + $0x358] sm:$0xff]
        %v957 = vld [vmem:[%s708 + $0x360] sm:$0xff]
        %v958 = vld [vmem:[%s708 + $0x368] sm:$0xff]
        %v959 = vld [vmem:[%s708 + $0x370] sm:$0xff]
        %v960 = vld [vmem:[%s708 + $0x378] sm:$0xff]
        %v961 = vld [vmem:[%s708 + $0x380] sm:$0xff]
        %v962 = vld [vmem:[%s708 + $0x388] sm:$0xff]
        %v963 = vld [vmem:[%s708 + $0x390] sm:$0xff]
        %v964 = vld [vmem:[%s708 + $0x398] sm:$0xff]
        %v965 = vld [vmem:[%s708 + $0x3a0] sm:$0xff]
        %v966 = vld [vmem:[%s708 + $0x3a8] sm:$0xff]
        %v967 = vld [vmem:[%s708 + $0x3b0] sm:$0xff]
        %v968 = vld [vmem:[%s708 + $0x3b8] sm:$0xff]
        %v969 = vld [vmem:[%s708 + $0x3c0] sm:$0xff]
        %v970 = vld [vmem:[%s708 + $0x3c8] sm:$0xff]
        %v971 = vld [vmem:[%s708 + $0x3d0] sm:$0xff]
        %v972 = vld [vmem:[%s708 + $0x3d8] sm:$0xff]
        %v973 = vld [vmem:[%s708 + $0x3e0] sm:$0xff]
        %v974 = vld [vmem:[%s708 + $0x3e8] sm:$0xff]
        %v975 = vld [vmem:[%s708 + $0x3f0] sm:$0xff]
        %v976 = vld [vmem:[%s708 + $0x3f8] sm:$0xff]
        %v977 = vld [vmem:[#allocation2] sm:$0xff]
        %v978 = vld [vmem:[#allocation2 + $0x8] sm:$0xff]
        %v979 = vld [vmem:[#allocation2 + $0x10] sm:$0xff]
        %v980 = vld [vmem:[#allocation2 + $0x18] sm:$0xff]
        %v981 = vld [vmem:[#allocation2 + $0x20] sm:$0xff]
        %v982 = vld [vmem:[#allocation2 + $0x28] sm:$0xff]
        %v983 = vld [vmem:[#allocation2 + $0x30] sm:$0xff]
        %v984 = vld [vmem:[#allocation2 + $0x38] sm:$0xff]
        %v985 = vld [vmem:[#allocation2 + $0x40] sm:$0xff]
        %v986 = vld [vmem:[#allocation2 + $0x48] sm:$0xff]
        %v987 = vld [vmem:[#allocation2 + $0x50] sm:$0xff]
        %v988 = vld [vmem:[#allocation2 + $0x58] sm:$0xff]
        %v989 = vld [vmem:[#allocation2 + $0x60] sm:$0xff]
        %v990 = vld [vmem:[#allocation2 + $0x68] sm:$0xff]
        %v991 = vld [vmem:[#allocation2 + $0x70] sm:$0xff]
        %v992 = vld [vmem:[#allocation2 + $0x78] sm:$0xff]
        %v993 = vld [vmem:[#allocation2 + $0x80] sm:$0xff]
        %v994 = vld [vmem:[#allocation2 + $0x88] sm:$0xff]
        %v995 = vld [vmem:[#allocation2 + $0x90] sm:$0xff]
        %v996 = vld [vmem:[#allocation2 + $0x98] sm:$0xff]
        %v997 = vld [vmem:[#allocation2 + $0xa0] sm:$0xff]
        %v998 = vld [vmem:[#allocation2 + $0xa8] sm:$0xff]
        %v999 = vld [vmem:[#allocation2 + $0xb0] sm:$0xff]
        %v1000 = vld [vmem:[#allocation2 + $0xb8] sm:$0xff]
        %v1001 = vld [vmem:[#allocation2 + $0xc0] sm:$0xff]
        %v1002 = vld [vmem:[#allocation2 + $0xc8] sm:$0xff]
        %v1003 = vld [vmem:[#allocation2 + $0xd0] sm:$0xff]
        %v1004 = vld [vmem:[#allocation2 + $0xd8] sm:$0xff]
        %v1005 = vld [vmem:[#allocation2 + $0xe0] sm:$0xff]
        %v1006 = vld [vmem:[#allocation2 + $0xe8] sm:$0xff]
        %v1007 = vld [vmem:[#allocation2 + $0xf0] sm:$0xff]
        %v1008 = vld [vmem:[#allocation2 + $0xf8] sm:$0xff]
        %v1009 = vld [vmem:[#allocation2 + $0x100] sm:$0xff]
        %v1010 = vld [vmem:[#allocation2 + $0x108] sm:$0xff]
        %v1011 = vld [vmem:[#allocation2 + $0x110] sm:$0xff]
        %v1012 = vld [vmem:[#allocation2 + $0x118] sm:$0xff]
        %v1013 = vld [vmem:[#allocation2 + $0x120] sm:$0xff]
        %v1014 = vld [vmem:[#allocation2 + $0x128] sm:$0xff]
        %v1015 = vld [vmem:[#allocation2 + $0x130] sm:$0xff]
        %v1016 = vld [vmem:[#allocation2 + $0x138] sm:$0xff]
        %v1017 = vld [vmem:[#allocation2 + $0x140] sm:$0xff]
        %v1018 = vld [vmem:[#allocation2 + $0x148] sm:$0xff]
        %v1019 = vld [vmem:[#allocation2 + $0x150] sm:$0xff]
        %v1020 = vld [vmem:[#allocation2 + $0x158] sm:$0xff]
        %v1021 = vld [vmem:[#allocation2 + $0x160] sm:$0xff]
        %v1022 = vld [vmem:[#allocation2 + $0x168] sm:$0xff]
        %v1023 = vld [vmem:[#allocation2 + $0x170] sm:$0xff]
        %v1024 = vld [vmem:[#allocation2 + $0x178] sm:$0xff]
        %v1025 = vld [vmem:[#allocation2 + $0x180] sm:$0xff]
        %v1026 = vld [vmem:[#allocation2 + $0x188] sm:$0xff]
        %v1027 = vld [vmem:[#allocation2 + $0x190] sm:$0xff]
        %v1028 = vld [vmem:[#allocation2 + $0x198] sm:$0xff]
        %v1029 = vld [vmem:[#allocation2 + $0x1a0] sm:$0xff]
        %v1030 = vld [vmem:[#allocation2 + $0x1a8] sm:$0xff]
        %v1031 = vld [vmem:[#allocation2 + $0x1b0] sm:$0xff]
        %v1032 = vld [vmem:[#allocation2 + $0x1b8] sm:$0xff]
        %v1033 = vld [vmem:[#allocation2 + $0x1c0] sm:$0xff]
        %v1034 = vld [vmem:[#allocation2 + $0x1c8] sm:$0xff]
        %v1035 = vld [vmem:[#allocation2 + $0x1d0] sm:$0xff]
        %v1036 = vld [vmem:[#allocation2 + $0x1d8] sm:$0xff]
        %v1037 = vld [vmem:[#allocation2 + $0x1e0] sm:$0xff]
        %v1038 = vld [vmem:[#allocation2 + $0x1e8] sm:$0xff]
        %v1039 = vld [vmem:[#allocation2 + $0x1f0] sm:$0xff]
        %v1040 = vld [vmem:[#allocation2 + $0x1f8] sm:$0xff]
        %v1041 = vld [vmem:[%s715] sm:$0xff]
        %v1042 = vld [vmem:[%s715 + $0x8] sm:$0xff]
        %v1043 = vld [vmem:[%s715 + $0x10] sm:$0xff]
        %v1044 = vld [vmem:[%s715 + $0x18] sm:$0xff]
        %v1045 = vld [vmem:[%s715 + $0x20] sm:$0xff]
        %v1046 = vld [vmem:[%s715 + $0x28] sm:$0xff]
        %v1047 = vld [vmem:[%s715 + $0x30] sm:$0xff]
        %v1048 = vld [vmem:[%s715 + $0x38] sm:$0xff]
        %v1049 = vld [vmem:[%s715 + $0x40] sm:$0xff]
        %v1050 = vld [vmem:[%s715 + $0x48] sm:$0xff]
        %v1051 = vld [vmem:[%s715 + $0x50] sm:$0xff]
        %v1052 = vld [vmem:[%s715 + $0x58] sm:$0xff]
        %v1053 = vld [vmem:[%s715 + $0x60] sm:$0xff]
        %v1054 = vld [vmem:[%s715 + $0x68] sm:$0xff]
        %v1055 = vld [vmem:[%s715 + $0x70] sm:$0xff]
        %v1056 = vld [vmem:[%s715 + $0x78] sm:$0xff]
        %v1057 = vld [vmem:[%s715 + $0x80] sm:$0xff]
        %v1058 = vld [vmem:[%s715 + $0x88] sm:$0xff]
        %v1059 = vld [vmem:[%s715 + $0x90] sm:$0xff]
        %v1060 = vld [vmem:[%s715 + $0x98] sm:$0xff]
        %v1061 = vld [vmem:[%s715 + $0xa0] sm:$0xff]
        %v1062 = vld [vmem:[%s715 + $0xa8] sm:$0xff]
        %v1063 = vld [vmem:[%s715 + $0xb0] sm:$0xff]
        %v1064 = vld [vmem:[%s715 + $0xb8] sm:$0xff]
        %v1065 = vld [vmem:[%s715 + $0xc0] sm:$0xff]
        %v1066 = vld [vmem:[%s715 + $0xc8] sm:$0xff]
        %v1067 = vld [vmem:[%s715 + $0xd0] sm:$0xff]
        %v1068 = vld [vmem:[%s715 + $0xd8] sm:$0xff]
        %v1069 = vld [vmem:[%s715 + $0xe0] sm:$0xff]
        %v1070 = vld [vmem:[%s715 + $0xe8] sm:$0xff]
        %v1071 = vld [vmem:[%s715 + $0xf0] sm:$0xff]
        %v1072 = vld [vmem:[%s715 + $0xf8] sm:$0xff]
        %v1073 = vld [vmem:[%s715 + $0x100] sm:$0xff]
        %v1074 = vld [vmem:[%s715 + $0x108] sm:$0xff]
        %v1075 = vld [vmem:[%s715 + $0x110] sm:$0xff]
        %v1076 = vld [vmem:[%s715 + $0x118] sm:$0xff]
        %v1077 = vld [vmem:[%s715 + $0x120] sm:$0xff]
        %v1078 = vld [vmem:[%s715 + $0x128] sm:$0xff]
        %v1079 = vld [vmem:[%s715 + $0x130] sm:$0xff]
        %v1080 = vld [vmem:[%s715 + $0x138] sm:$0xff]
        %v1081 = vld [vmem:[%s715 + $0x140] sm:$0xff]
        %v1082 = vld [vmem:[%s715 + $0x148] sm:$0xff]
        %v1083 = vld [vmem:[%s715 + $0x150] sm:$0xff]
        %v1084 = vld [vmem:[%s715 + $0x158] sm:$0xff]
        %v1085 = vld [vmem:[%s715 + $0x160] sm:$0xff]
        %v1086 = vld [vmem:[%s715 + $0x168] sm:$0xff]
        %v1087 = vld [vmem:[%s715 + $0x170] sm:$0xff]
        %v1088 = vld [vmem:[%s715 + $0x178] sm:$0xff]
        %v1089 = vld [vmem:[%s715 + $0x180] sm:$0xff]
        %v1090 = vld [vmem:[%s715 + $0x188] sm:$0xff]
        %v1091 = vld [vmem:[%s715 + $0x190] sm:$0xff]
        %v1092 = vld [vmem:[%s715 + $0x198] sm:$0xff]
        %v1093 = vld [vmem:[%s715 + $0x1a0] sm:$0xff]
        %v1094 = vld [vmem:[%s715 + $0x1a8] sm:$0xff]
        %v1095 = vld [vmem:[%s715 + $0x1b0] sm:$0xff]
        %v1096 = vld [vmem:[%s715 + $0x1b8] sm:$0xff]
        %v1097 = vld [vmem:[%s715 + $0x1c0] sm:$0xff]
        %v1098 = vld [vmem:[%s715 + $0x1c8] sm:$0xff]
        %v1099 = vld [vmem:[%s715 + $0x1d0] sm:$0xff]
        %v1100 = vld [vmem:[%s715 + $0x1d8] sm:$0xff]
        %v1101 = vld [vmem:[%s715 + $0x1e0] sm:$0xff]
        %v1102 = vld [vmem:[%s715 + $0x1e8] sm:$0xff]
        %v1103 = vld [vmem:[%s715 + $0x1f0] sm:$0xff]
        %v1104 = vld [vmem:[%s715 + $0x1f8] sm:$0xff]
        %v1105 = vld [vmem:[%s715 + $0x200] sm:$0xff]
        %v1106 = vld [vmem:[%s715 + $0x208] sm:$0xff]
        %v1107 = vld [vmem:[%s715 + $0x210] sm:$0xff]
        %v1108 = vld [vmem:[%s715 + $0x218] sm:$0xff]
        %v1109 = vld [vmem:[%s715 + $0x220] sm:$0xff]
        %v1110 = vld [vmem:[%s715 + $0x228] sm:$0xff]
        %v1111 = vld [vmem:[%s715 + $0x230] sm:$0xff]
        %v1112 = vld [vmem:[%s715 + $0x238] sm:$0xff]
        %v1113 = vld [vmem:[%s715 + $0x240] sm:$0xff]
        %v1114 = vld [vmem:[%s715 + $0x248] sm:$0xff]
        %v1115 = vld [vmem:[%s715 + $0x250] sm:$0xff]
        %v1116 = vld [vmem:[%s715 + $0x258] sm:$0xff]
        %v1117 = vld [vmem:[%s715 + $0x260] sm:$0xff]
        %v1118 = vld [vmem:[%s715 + $0x268] sm:$0xff]
        %v1119 = vld [vmem:[%s715 + $0x270] sm:$0xff]
        %v1120 = vld [vmem:[%s715 + $0x278] sm:$0xff]
        %v1121 = vld [vmem:[%s715 + $0x280] sm:$0xff]
        %v1122 = vld [vmem:[%s715 + $0x288] sm:$0xff]
        %v1123 = vld [vmem:[%s715 + $0x290] sm:$0xff]
        %v1124 = vld [vmem:[%s715 + $0x298] sm:$0xff]
        %v1125 = vld [vmem:[%s715 + $0x2a0] sm:$0xff]
        %v1126 = vld [vmem:[%s715 + $0x2a8] sm:$0xff]
        %v1127 = vld [vmem:[%s715 + $0x2b0] sm:$0xff]
        %v1128 = vld [vmem:[%s715 + $0x2b8] sm:$0xff]
        %v1129 = vld [vmem:[%s715 + $0x2c0] sm:$0xff]
        %v1130 = vld [vmem:[%s715 + $0x2c8] sm:$0xff]
        %v1131 = vld [vmem:[%s715 + $0x2d0] sm:$0xff]
        %v1132 = vld [vmem:[%s715 + $0x2d8] sm:$0xff]
        %v1133 = vld [vmem:[%s715 + $0x2e0] sm:$0xff]
        %v1134 = vld [vmem:[%s715 + $0x2e8] sm:$0xff]
        %v1135 = vld [vmem:[%s715 + $0x2f0] sm:$0xff]
        %v1136 = vld [vmem:[%s715 + $0x2f8] sm:$0xff]
        %v1137 = vld [vmem:[%s715 + $0x300] sm:$0xff]
        %v1138 = vld [vmem:[%s715 + $0x308] sm:$0xff]
        %v1139 = vld [vmem:[%s715 + $0x310] sm:$0xff]
        %v1140 = vld [vmem:[%s715 + $0x318] sm:$0xff]
        %v1141 = vld [vmem:[%s715 + $0x320] sm:$0xff]
        %v1142 = vld [vmem:[%s715 + $0x328] sm:$0xff]
        %v1143 = vld [vmem:[%s715 + $0x330] sm:$0xff]
        %v1144 = vld [vmem:[%s715 + $0x338] sm:$0xff]
        %v1145 = vld [vmem:[%s715 + $0x340] sm:$0xff]
        %v1146 = vld [vmem:[%s715 + $0x348] sm:$0xff]
        %v1147 = vld [vmem:[%s715 + $0x350] sm:$0xff]
        %v1148 = vld [vmem:[%s715 + $0x358] sm:$0xff]
        %v1149 = vld [vmem:[%s715 + $0x360] sm:$0xff]
        %v1150 = vld [vmem:[%s715 + $0x368] sm:$0xff]
        %v1151 = vld [vmem:[%s715 + $0x370] sm:$0xff]
        %v1152 = vld [vmem:[%s715 + $0x378] sm:$0xff]
        %v1153 = vld [vmem:[%s715 + $0x380] sm:$0xff]
        %v1154 = vld [vmem:[%s715 + $0x388] sm:$0xff]
        %v1155 = vld [vmem:[%s715 + $0x390] sm:$0xff]
        %v1156 = vld [vmem:[%s715 + $0x398] sm:$0xff]
        %v1157 = vld [vmem:[%s715 + $0x3a0] sm:$0xff]
        %v1158 = vld [vmem:[%s715 + $0x3a8] sm:$0xff]
        %v1159 = vld [vmem:[%s715 + $0x3b0] sm:$0xff]
        %v1160 = vld [vmem:[%s715 + $0x3b8] sm:$0xff]
        %v1161 = vld [vmem:[%s715 + $0x3c0] sm:$0xff]
        %v1162 = vld [vmem:[%s715 + $0x3c8] sm:$0xff]
        %v1163 = vld [vmem:[%s715 + $0x3d0] sm:$0xff]
        %v1164 = vld [vmem:[%s715 + $0x3d8] sm:$0xff]
        %v1165 = vld [vmem:[%s715 + $0x3e0] sm:$0xff]
        %v1166 = vld [vmem:[%s715 + $0x3e8] sm:$0xff]
        %v1167 = vld [vmem:[%s715 + $0x3f0] sm:$0xff]
        %v1168 = vld [vmem:[%s715 + $0x3f8] sm:$0xff]
        %v1169 = vand.u32 %v1042, 4294901760
        %1170 = vmatprep.subr.mxu0 %v1169
        %v1171 = vand.u32 %v1041, 4294901760
        %1172 = vmatpush1.xpose.msra.mxu0 %v1171
        %v1173 = vand.u32 %v1046, 4294901760
        %1174 = vmatprep.subr.mxu0 %v1173
        %v1175 = vand.u32 %v1045, 4294901760
        %1176 = vmatpush1.xpose.msra.mxu0 %v1175
        %v1177 = vand.u32 %v1050, 4294901760
        %1178 = vmatprep.subr.mxu0 %v1177
        %v1179 = vand.u32 %v1049, 4294901760
        %1180 = vmatpush1.xpose.msra.mxu0 %v1179
        %v1181 = vand.u32 %v1054, 4294901760
        %1182 = vmatprep.subr.mxu0 %v1181
        %v1183 = vand.u32 %v1053, 4294901760
        %1184 = vmatpush1.xpose.msra.mxu0 %v1183
        %v1185 = vand.u32 %v1058, 4294901760
        %1186 = vmatprep.subr.mxu0 %v1185
        %v1187 = vand.u32 %v1057, 4294901760
        %1188 = vmatpush1.xpose.msra.mxu0 %v1187
        %v1189 = vand.u32 %v1062, 4294901760
        %1190 = vmatprep.subr.mxu0 %v1189
        %v1191 = vand.u32 %v1061, 4294901760
        %1192 = vmatpush1.xpose.msra.mxu0 %v1191
        %v1193 = vand.u32 %v1066, 4294901760
        %1194 = vmatprep.subr.mxu0 %v1193
        %v1195 = vand.u32 %v1065, 4294901760
        %1196 = vmatpush1.xpose.msra.mxu0 %v1195
        %v1197 = vand.u32 %v1070, 4294901760
        %1198 = vmatprep.subr.mxu0 %v1197
        %v1199 = vand.u32 %v1069, 4294901760
        %1200 = vmatpush1.xpose.msra.mxu0 %v1199
        %v1201 = vand.u32 %v1074, 4294901760
        %1202 = vmatprep.subr.mxu0 %v1201
        %v1203 = vand.u32 %v1073, 4294901760
        %1204 = vmatpush1.xpose.msra.mxu0 %v1203
        %v1205 = vand.u32 %v1078, 4294901760
        %1206 = vmatprep.subr.mxu0 %v1205
        %v1207 = vand.u32 %v1077, 4294901760
        %1208 = vmatpush1.xpose.msra.mxu0 %v1207
        %v1209 = vand.u32 %v1082, 4294901760
        %1210 = vmatprep.subr.mxu0 %v1209
        %v1211 = vand.u32 %v1081, 4294901760
        %1212 = vmatpush1.xpose.msra.mxu0 %v1211
        %v1213 = vand.u32 %v1086, 4294901760
        %1214 = vmatprep.subr.mxu0 %v1213
        %v1215 = vand.u32 %v1085, 4294901760
        %1216 = vmatpush1.xpose.msra.mxu0 %v1215
        %v1217 = vand.u32 %v1090, 4294901760
        %1218 = vmatprep.subr.mxu0 %v1217
        %v1219 = vand.u32 %v1089, 4294901760
        %1220 = vmatpush1.xpose.msra.mxu0 %v1219
        %v1221 = vand.u32 %v1094, 4294901760
        %1222 = vmatprep.subr.mxu0 %v1221
        %v1223 = vand.u32 %v1093, 4294901760
        %1224 = vmatpush1.xpose.msra.mxu0 %v1223
        %v1225 = vand.u32 %v1098, 4294901760
        %1226 = vmatprep.subr.mxu0 %v1225
        %v1227 = vand.u32 %v1097, 4294901760
        %1228 = vmatpush1.xpose.msra.mxu0 %v1227
        %v1229 = vand.u32 %v1102, 4294901760
        %1230 = vmatprep.subr.mxu0 %v1229
        %v1231 = vand.u32 %v1101, 4294901760
        %1232 = vmatpush1.xpose.msra.mxu0 %v1231
        %v1233 = vand.u32 %v1106, 4294901760
        %1234 = vmatprep.subr.mxu0 %v1233
        %v1235 = vand.u32 %v1105, 4294901760
        %1236 = vmatpush1.xpose.msra.mxu0 %v1235
        %v1237 = vand.u32 %v1110, 4294901760
        %1238 = vmatprep.subr.mxu0 %v1237
        %v1239 = vand.u32 %v1109, 4294901760
        %1240 = vmatpush1.xpose.msra.mxu0 %v1239
        %v1241 = vand.u32 %v1114, 4294901760
        %1242 = vmatprep.subr.mxu0 %v1241
        %v1243 = vand.u32 %v1113, 4294901760
        %1244 = vmatpush1.xpose.msra.mxu0 %v1243
        %v1245 = vand.u32 %v1118, 4294901760
        %1246 = vmatprep.subr.mxu0 %v1245
        %v1247 = vand.u32 %v1117, 4294901760
        %1248 = vmatpush1.xpose.msra.mxu0 %v1247
        %v1249 = vand.u32 %v1122, 4294901760
        %1250 = vmatprep.subr.mxu0 %v1249
        %v1251 = vand.u32 %v1121, 4294901760
        %1252 = vmatpush1.xpose.msra.mxu0 %v1251
        %v1253 = vand.u32 %v1126, 4294901760
        %1254 = vmatprep.subr.mxu0 %v1253
        %v1255 = vand.u32 %v1125, 4294901760
        %1256 = vmatpush1.xpose.msra.mxu0 %v1255
        %v1257 = vand.u32 %v1130, 4294901760
        %1258 = vmatprep.subr.mxu0 %v1257
        %v1259 = vand.u32 %v1129, 4294901760
        %1260 = vmatpush1.xpose.msra.mxu0 %v1259
        %v1261 = vand.u32 %v1134, 4294901760
        %1262 = vmatprep.subr.mxu0 %v1261
        %v1263 = vand.u32 %v1133, 4294901760
        %1264 = vmatpush1.xpose.msra.mxu0 %v1263
        %v1265 = vand.u32 %v1138, 4294901760
        %1266 = vmatprep.subr.mxu0 %v1265
        %v1267 = vand.u32 %v1137, 4294901760
        %1268 = vmatpush1.xpose.msra.mxu0 %v1267
        %v1269 = vand.u32 %v1142, 4294901760
        %1270 = vmatprep.subr.mxu0 %v1269
        %v1271 = vand.u32 %v1141, 4294901760
        %1272 = vmatpush1.xpose.msra.mxu0 %v1271
        %v1273 = vand.u32 %v1146, 4294901760
        %1274 = vmatprep.subr.mxu0 %v1273
        %v1275 = vand.u32 %v1145, 4294901760
        %1276 = vmatpush1.xpose.msra.mxu0 %v1275
        %v1277 = vand.u32 %v1150, 4294901760
        %1278 = vmatprep.subr.mxu0 %v1277
        %v1279 = vand.u32 %v1149, 4294901760
        %1280 = vmatpush1.xpose.msra.mxu0 %v1279
        %v1281 = vand.u32 %v1154, 4294901760
        %1282 = vmatprep.subr.mxu0 %v1281
        %v1283 = vand.u32 %v1153, 4294901760
        %1284 = vmatpush1.xpose.msra.mxu0 %v1283
        %v1285 = vand.u32 %v1158, 4294901760
        %1286 = vmatprep.subr.mxu0 %v1285
        %v1287 = vand.u32 %v1157, 4294901760
        %1288 = vmatpush1.xpose.msra.mxu0 %v1287
        %v1289 = vand.u32 %v1162, 4294901760
        %1290 = vmatprep.subr.mxu0 %v1289
        %v1291 = vand.u32 %v1161, 4294901760
        %1292 = vmatpush1.xpose.msra.mxu0 %v1291
        %v1293 = vand.u32 %v1166, 4294901760
        %1294 = vmatprep.subr.mxu0 %v1293
        %v1295 = vand.u32 %v1165, 4294901760
        %1296 = vmatpush1.xpose.msra.mxu0 %v1295
        %v1297 = vand.u32 %v850, 4294901760
        %v1298 = vsub.f32 %v850, %v1297
        %v1299 = vand.u32 %v1298, 4294901760
        %v1300 = vsub.f32 %v1298, %v1299
        %v1301 = vand.u32 %v1300, 4294901760
        %1302 = vmatprep.mubr.f32.mxu0 %v1301
        %v1303 = vand.u32 %v849, 4294901760
        %v1304 = vsub.f32 %v849, %v1303
        %v1305 = vand.u32 %v1304, 4294901760
        %v1306 = vsub.f32 %v1304, %v1305
        %v1307 = vand.u32 %v1306, 4294901760
        %1308 = vmatmul.mubr.f32.gmra.mrb[0].mxu0 %v1307
        %v1309 = vpop.f32.mrb[0].mxu0
        %v1310 = vadd.f32 0.0, %v1309
        %v1311 = vpop.f32.mrb[0].mxu0
        %v1312 = vadd.f32 0.0, %v1311
        %v1313 = vand.u32 %v854, 4294901760
        %v1314 = vsub.f32 %v854, %v1313
        %v1315 = vand.u32 %v1314, 4294901760
        %v1316 = vsub.f32 %v1314, %v1315
        %v1317 = vand.u32 %v1316, 4294901760
        %1318 = vmatprep.mubr.f32.mxu0 %v1317
        %v1319 = vand.u32 %v853, 4294901760
        %v1320 = vsub.f32 %v853, %v1319
        %v1321 = vand.u32 %v1320, 4294901760
        %v1322 = vsub.f32 %v1320, %v1321
        %v1323 = vand.u32 %v1322, 4294901760
        %1324 = vmatmul.mubr.f32.gmra.mrb[0].mxu0 %v1323
        %v1325 = vpop.f32.mrb[0].mxu0
        %v1326 = vadd.f32 0.0, %v1325
        %v1327 = vpop.f32.mrb[0].mxu0
        %v1328 = vadd.f32 0.0, %v1327
        %v1329 = vand.u32 %v858, 4294901760
        %v1330 = vsub.f32 %v858, %v1329
        %v1331 = vand.u32 %v1330, 4294901760
        %v1332 = vsub.f32 %v1330, %v1331
        %v1333 = vand.u32 %v1332, 4294901760
        %1334 = vmatprep.mubr.f32.mxu0 %v1333
        %v1335 = vand.u32 %v857, 4294901760
        %v1336 = vsub.f32 %v857, %v1335
        %v1337 = vand.u32 %v1336, 4294901760
        %v1338 = vsub.f32 %v1336, %v1337
        %v1339 = vand.u32 %v1338, 4294901760
        %1340 = vmatmul.mubr.f32.gmra.mrb[0].mxu0 %v1339
        %v1341 = vpop.f32.mrb[0].mxu0
        %v1342 = vadd.f32 0.0, %v1341
        %v1343 = vpop.f32.mrb[0].mxu0
        %v1344 = vadd.f32 0.0, %v1343
        %v1345 = vand.u32 %v862, 4294901760
        %v1346 = vsub.f32 %v862, %v1345
        %v1347 = vand.u32 %v1346, 4294901760
        %v1348 = vsub.f32 %v1346, %v1347
        %v1349 = vand.u32 %v1348, 4294901760
        %1350 = vmatprep.mubr.f32.mxu0 %v1349
        %v1351 = vand.u32 %v861, 4294901760
        %v1352 = vsub.f32 %v861, %v1351
        %v1353 = vand.u32 %v1352, 4294901760
        %v1354 = vsub.f32 %v1352, %v1353
        %v1355 = vand.u32 %v1354, 4294901760
        %1356 = vmatmul.mubr.f32.gmra.mrb[0].mxu0 %v1355
        %v1357 = vpop.f32.mrb[0].mxu0
        %v1358 = vadd.f32 0.0, %v1357
        %v1359 = vpop.f32.mrb[0].mxu0
        %v1360 = vadd.f32 0.0, %v1359
        %v1361 = vand.u32 %v866, 4294901760
        %v1362 = vsub.f32 %v866, %v1361
        %v1363 = vand.u32 %v1362, 4294901760
        %v1364 = vsub.f32 %v1362, %v1363
        %v1365 = vand.u32 %v1364, 4294901760
        %1366 = vmatprep.mubr.f32.mxu0 %v1365
        %v1367 = vand.u32 %v865, 4294901760
        %v1368 = vsub.f32 %v865, %v1367
        %v1369 = vand.u32 %v1368, 4294901760
        %v1370 = vsub.f32 %v1368, %v1369
        %v1371 = vand.u32 %v1370, 4294901760
        %1372 = vmatmul.mubr.f32.gmra.mrb[0].mxu0 %v1371
        %v1373 = vpop.f32.mrb[0].mxu0
        %v1374 = vadd.f32 0.0, %v1373
        %v1375 = vpop.f32.mrb[0].mxu0
        %v1376 = vadd.f32 0.0, %v1375
        %v1377 = vand.u32 %v870, 4294901760
        %v1378 = vsub.f32 %v870, %v1377
        %v1379 = vand.u32 %v1378, 4294901760
        %v1380 = vsub.f32 %v1378, %v1379
        %v1381 = vand.u32 %v1380, 4294901760
        %1382 = vmatprep.mubr.f32.mxu0 %v1381
        %v1383 = vand.u32 %v869, 4294901760
        %v1384 = vsub.f32 %v869, %v1383
        %v1385 = vand.u32 %v1384, 4294901760
        %v1386 = vsub.f32 %v1384, %v1385
        %v1387 = vand.u32 %v1386, 4294901760
        %1388 = vmatmul.mubr.f32.gmra.mrb[0].mxu0 %v1387
        %v1389 = vpop.f32.mrb[0].mxu0
        %v1390 = vadd.f32 0.0, %v1389
        %v1391 = vpop.f32.mrb[0].mxu0
        %v1392 = vadd.f32 0.0, %v1391
        %v1393 = vand.u32 %v874, 4294901760
        %v1394 = vsub.f32 %v874, %v1393
        %v1395 = vand.u32 %v1394, 4294901760
        %v1396 = vsub.f32 %v1394, %v1395
        %v1397 = vand.u32 %v1396, 4294901760
        %1398 = vmatprep.mubr.f32.mxu0 %v1397
        %v1399 = vand.u32 %v873, 4294901760
        %v1400 = vsub.f32 %v873, %v1399
        %v1401 = vand.u32 %v1400, 4294901760
        %v1402 = vsub.f32 %v1400, %v1401
        %v1403 = vand.u32 %v1402, 4294901760
        %1404 = vmatmul.mubr.f32.gmra.mrb[0].mxu0 %v1403
        %v1405 = vpop.f32.mrb[0].mxu0
        %v1406 = vadd.f32 0.0, %v1405
        %v1407 = vpop.f32.mrb[0].mxu0
        %v1408 = vadd.f32 0.0, %v1407
        %v1409 = vand.u32 %v878, 4294901760
        %v1410 = vsub.f32 %v878, %v1409
        %v1411 = vand.u32 %v1410, 4294901760
        %v1412 = vsub.f32 %v1410, %v1411
        %v1413 = vand.u32 %v1412, 4294901760
        %1414 = vmatprep.mubr.f32.mxu0 %v1413
        %v1415 = vand.u32 %v877, 4294901760
        %v1416 = vsub.f32 %v877, %v1415
        %v1417 = vand.u32 %v1416, 4294901760
        %v1418 = vsub.f32 %v1416, %v1417
        %v1419 = vand.u32 %v1418, 4294901760
        %1420 = vmatmul.mubr.f32.gmra.mrb[0].mxu0 %v1419
        %v1421 = vpop.f32.mrb[0].mxu0
        %v1422 = vadd.f32 0.0, %v1421
        %v1423 = vpop.f32.mrb[0].mxu0
        %v1424 = vadd.f32 0.0, %v1423
        %v1425 = vand.u32 %v882, 4294901760
        %v1426 = vsub.f32 %v882, %v1425
        %v1427 = vand.u32 %v1426, 4294901760
        %v1428 = vsub.f32 %v1426, %v1427
        %v1429 = vand.u32 %v1428, 4294901760
        %1430 = vmatprep.mubr.f32.mxu0 %v1429
        %v1431 = vand.u32 %v881, 4294901760
        %v1432 = vsub.f32 %v881, %v1431
        %v1433 = vand.u32 %v1432, 4294901760
        %v1434 = vsub.f32 %v1432, %v1433
        %v1435 = vand.u32 %v1434, 4294901760
        %1436 = vmatmul.mubr.f32.gmra.mrb[0].mxu0 %v1435
        %v1437 = vpop.f32.mrb[0].mxu0
        %v1438 = vadd.f32 0.0, %v1437
        %v1439 = vpop.f32.mrb[0].mxu0
        %v1440 = vadd.f32 0.0, %v1439
        %v1441 = vand.u32 %v886, 4294901760
        %v1442 = vsub.f32 %v886, %v1441
        %v1443 = vand.u32 %v1442, 4294901760
        %v1444 = vsub.f32 %v1442, %v1443
        %v1445 = vand.u32 %v1444, 4294901760
        %1446 = vmatprep.mubr.f32.mxu0 %v1445
        %v1447 = vand.u32 %v885, 4294901760
        %v1448 = vsub.f32 %v885, %v1447
        %v1449 = vand.u32 %v1448, 4294901760
        %v1450 = vsub.f32 %v1448, %v1449
        %v1451 = vand.u32 %v1450, 4294901760
        %1452 = vmatmul.mubr.f32.gmra.mrb[0].mxu0 %v1451
        %v1453 = vpop.f32.mrb[0].mxu0
        %v1454 = vadd.f32 0.0, %v1453
        %v1455 = vpop.f32.mrb[0].mxu0
        %v1456 = vadd.f32 0.0, %v1455
        %v1457 = vand.u32 %v890, 4294901760
        %v1458 = vsub.f32 %v890, %v1457
        %v1459 = vand.u32 %v1458, 4294901760
        %v1460 = vsub.f32 %v1458, %v1459
        %v1461 = vand.u32 %v1460, 4294901760
        %1462 = vmatprep.mubr.f32.mxu0 %v1461
        %v1463 = vand.u32 %v889, 4294901760
        %v1464 = vsub.f32 %v889, %v1463
        %v1465 = vand.u32 %v1464, 4294901760
        %v1466 = vsub.f32 %v1464, %v1465
        %v1467 = vand.u32 %v1466, 4294901760
        %1468 = vmatmul.mubr.f32.gmra.mrb[0].mxu0 %v1467
        %v1469 = vpop.f32.mrb[0].mxu0
        %v1470 = vadd.f32 0.0, %v1469
        %v1471 = vpop.f32.mrb[0].mxu0
        %v1472 = vadd.f32 0.0, %v1471
        %v1473 = vand.u32 %v894, 4294901760
        %v1474 = vsub.f32 %v894, %v1473
        %v1475 = vand.u32 %v1474, 4294901760
        %v1476 = vsub.f32 %v1474, %v1475
        %v1477 = vand.u32 %v1476, 4294901760
        %1478 = vmatprep.mubr.f32.mxu0 %v1477
        %v1479 = vand.u32 %v893, 4294901760
        %v1480 = vsub.f32 %v893, %v1479
        %v1481 = vand.u32 %v1480, 4294901760
        %v1482 = vsub.f32 %v1480, %v1481
        %v1483 = vand.u32 %v1482, 4294901760
        %1484 = vmatmul.mubr.f32.gmra.mrb[0].mxu0 %v1483
        %v1485 = vpop.f32.mrb[0].mxu0
        %v1486 = vadd.f32 0.0, %v1485
        %v1487 = vpop.f32.mrb[0].mxu0
        %v1488 = vadd.f32 0.0, %v1487
        %v1489 = vand.u32 %v898, 4294901760
        %v1490 = vsub.f32 %v898, %v1489
        %v1491 = vand.u32 %v1490, 4294901760
        %v1492 = vsub.f32 %v1490, %v1491
        %v1493 = vand.u32 %v1492, 4294901760
        %1494 = vmatprep.mubr.f32.mxu0 %v1493
        %v1495 = vand.u32 %v897, 4294901760
        %v1496 = vsub.f32 %v897, %v1495
        %v1497 = vand.u32 %v1496, 4294901760
        %v1498 = vsub.f32 %v1496, %v1497
        %v1499 = vand.u32 %v1498, 4294901760
        %1500 = vmatmul.mubr.f32.gmra.mrb[0].mxu0 %v1499
        %v1501 = vpop.f32.mrb[0].mxu0
        %v1502 = vadd.f32 0.0, %v1501
        %v1503 = vpop.f32.mrb[0].mxu0
        %v1504 = vadd.f32 0.0, %v1503
        %v1505 = vand.u32 %v902, 4294901760
        %v1506 = vsub.f32 %v902, %v1505
        %v1507 = vand.u32 %v1506, 4294901760
        %v1508 = vsub.f32 %v1506, %v1507
        %v1509 = vand.u32 %v1508, 4294901760
        %1510 = vmatprep.mubr.f32.mxu0 %v1509
        %v1511 = vand.u32 %v901, 4294901760
        %v1512 = vsub.f32 %v901, %v1511
        %v1513 = vand.u32 %v1512, 4294901760
        %v1514 = vsub.f32 %v1512, %v1513
        %v1515 = vand.u32 %v1514, 4294901760
        %1516 = vmatmul.mubr.f32.gmra.mrb[0].mxu0 %v1515
        %v1517 = vpop.f32.mrb[0].mxu0
        %v1518 = vadd.f32 0.0, %v1517
        %v1519 = vpop.f32.mrb[0].mxu0
        %v1520 = vadd.f32 0.0, %v1519
        %v1521 = vand.u32 %v906, 4294901760
        %v1522 = vsub.f32 %v906, %v1521
        %v1523 = vand.u32 %v1522, 4294901760
        %v1524 = vsub.f32 %v1522, %v1523
        %v1525 = vand.u32 %v1524, 4294901760
        %1526 = vmatprep.mubr.f32.mxu0 %v1525
        %v1527 = vand.u32 %v905, 4294901760
        %v1528 = vsub.f32 %v905, %v1527
        %v1529 = vand.u32 %v1528, 4294901760
        %v1530 = vsub.f32 %v1528, %v1529
        %v1531 = vand.u32 %v1530, 4294901760
        %1532 = vmatmul.mubr.f32.gmra.mrb[0].mxu0 %v1531
        %v1533 = vpop.f32.mrb[0].mxu0
        %v1534 = vadd.f32 0.0, %v1533
        %v1535 = vpop.f32.mrb[0].mxu0
        %v1536 = vadd.f32 0.0, %v1535
        %v1537 = vand.u32 %v910, 4294901760
        %v1538 = vsub.f32 %v910, %v1537
        %v1539 = vand.u32 %v1538, 4294901760
        %v1540 = vsub.f32 %v1538, %v1539
        %v1541 = vand.u32 %v1540, 4294901760
        %1542 = vmatprep.mubr.f32.mxu0 %v1541
        %v1543 = vand.u32 %v909, 4294901760
        %v1544 = vsub.f32 %v909, %v1543
        %v1545 = vand.u32 %v1544, 4294901760
        %v1546 = vsub.f32 %v1544, %v1545
        %v1547 = vand.u32 %v1546, 4294901760
        %1548 = vmatmul.mubr.f32.gmra.mrb[0].mxu0 %v1547
        %v1549 = vpop.f32.mrb[0].mxu0
        %v1550 = vadd.f32 0.0, %v1549
        %v1551 = vpop.f32.mrb[0].mxu0
        %v1552 = vadd.f32 0.0, %v1551
        %v1553 = vand.u32 %v914, 4294901760
        %v1554 = vsub.f32 %v914, %v1553
        %v1555 = vand.u32 %v1554, 4294901760
        %v1556 = vsub.f32 %v1554, %v1555
        %v1557 = vand.u32 %v1556, 4294901760
        %1558 = vmatprep.mubr.f32.mxu0 %v1557
        %v1559 = vand.u32 %v913, 4294901760
        %v1560 = vsub.f32 %v913, %v1559
        %v1561 = vand.u32 %v1560, 4294901760
        %v1562 = vsub.f32 %v1560, %v1561
        %v1563 = vand.u32 %v1562, 4294901760
        %1564 = vmatmul.mubr.f32.gmra.mrb[0].mxu0 %v1563
        %v1565 = vpop.f32.mrb[0].mxu0
        %v1566 = vadd.f32 0.0, %v1565
        %v1567 = vpop.f32.mrb[0].mxu0
        %v1568 = vadd.f32 0.0, %v1567
        %v1569 = vand.u32 %v918, 4294901760
        %v1570 = vsub.f32 %v918, %v1569
        %v1571 = vand.u32 %v1570, 4294901760
        %v1572 = vsub.f32 %v1570, %v1571
        %v1573 = vand.u32 %v1572, 4294901760
        %1574 = vmatprep.mubr.f32.mxu0 %v1573
        %v1575 = vand.u32 %v917, 4294901760
        %v1576 = vsub.f32 %v917, %v1575
        %v1577 = vand.u32 %v1576, 4294901760
        %v1578 = vsub.f32 %v1576, %v1577
        %v1579 = vand.u32 %v1578, 4294901760
        %1580 = vmatmul.mubr.f32.gmra.mrb[0].mxu0 %v1579
        %v1581 = vpop.f32.mrb[0].mxu0
        %v1582 = vadd.f32 0.0, %v1581
        %v1583 = vpop.f32.mrb[0].mxu0
        %v1584 = vadd.f32 0.0, %v1583
        %v1585 = vand.u32 %v922, 4294901760
        %v1586 = vsub.f32 %v922, %v1585
        %v1587 = vand.u32 %v1586, 4294901760
        %v1588 = vsub.f32 %v1586, %v1587
        %v1589 = vand.u32 %v1588, 4294901760
        %1590 = vmatprep.mubr.f32.mxu0 %v1589
        %v1591 = vand.u32 %v921, 4294901760
        %v1592 = vsub.f32 %v921, %v1591
        %v1593 = vand.u32 %v1592, 4294901760
        %v1594 = vsub.f32 %v1592, %v1593
        %v1595 = vand.u32 %v1594, 4294901760
        %1596 = vmatmul.mubr.f32.gmra.mrb[0].mxu0 %v1595
        %v1597 = vpop.f32.mrb[0].mxu0
        %v1598 = vadd.f32 0.0, %v1597
        %v1599 = vpop.f32.mrb[0].mxu0
        %v1600 = vadd.f32 0.0, %v1599
        %v1601 = vand.u32 %v926, 4294901760
        %v1602 = vsub.f32 %v926, %v1601
        %v1603 = vand.u32 %v1602, 4294901760
        %v1604 = vsub.f32 %v1602, %v1603
        %v1605 = vand.u32 %v1604, 4294901760
        %1606 = vmatprep.mubr.f32.mxu0 %v1605
        %v1607 = vand.u32 %v925, 4294901760
        %v1608 = vsub.f32 %v925, %v1607
        %v1609 = vand.u32 %v1608, 4294901760
        %v1610 = vsub.f32 %v1608, %v1609
        %v1611 = vand.u32 %v1610, 4294901760
        %1612 = vmatmul.mubr.f32.gmra.mrb[0].mxu0 %v1611
        %v1613 = vpop.f32.mrb[0].mxu0
        %v1614 = vadd.f32 0.0, %v1613
        %v1615 = vpop.f32.mrb[0].mxu0
        %v1616 = vadd.f32 0.0, %v1615
        %v1617 = vand.u32 %v930, 4294901760
        %v1618 = vsub.f32 %v930, %v1617
        %v1619 = vand.u32 %v1618, 4294901760
        %v1620 = vsub.f32 %v1618, %v1619
        %v1621 = vand.u32 %v1620, 4294901760
        %1622 = vmatprep.mubr.f32.mxu0 %v1621
        %v1623 = vand.u32 %v929, 4294901760
        %v1624 = vsub.f32 %v929, %v1623
        %v1625 = vand.u32 %v1624, 4294901760
        %v1626 = vsub.f32 %v1624, %v1625
        %v1627 = vand.u32 %v1626, 4294901760
        %1628 = vmatmul.mubr.f32.gmra.mrb[0].mxu0 %v1627
        %v1629 = vpop.f32.mrb[0].mxu0
        %v1630 = vadd.f32 0.0, %v1629
        %v1631 = vpop.f32.mrb[0].mxu0
        %v1632 = vadd.f32 0.0, %v1631
        %v1633 = vand.u32 %v934, 4294901760
        %v1634 = vsub.f32 %v934, %v1633
        %v1635 = vand.u32 %v1634, 4294901760
        %v1636 = vsub.f32 %v1634, %v1635
        %v1637 = vand.u32 %v1636, 4294901760
        %1638 = vmatprep.mubr.f32.mxu0 %v1637
        %v1639 = vand.u32 %v933, 4294901760
        %v1640 = vsub.f32 %v933, %v1639
        %v1641 = vand.u32 %v1640, 4294901760
        %v1642 = vsub.f32 %v1640, %v1641
        %v1643 = vand.u32 %v1642, 4294901760
        %1644 = vmatmul.mubr.f32.gmra.mrb[0].mxu0 %v1643
        %v1645 = vpop.f32.mrb[0].mxu0
        %v1646 = vadd.f32 0.0, %v1645
        %v1647 = vpop.f32.mrb[0].mxu0
        %v1648 = vadd.f32 0.0, %v1647
        %v1649 = vand.u32 %v938, 4294901760
        %v1650 = vsub.f32 %v938, %v1649
        %v1651 = vand.u32 %v1650, 4294901760
        %v1652 = vsub.f32 %v1650, %v1651
        %v1653 = vand.u32 %v1652, 4294901760
        %1654 = vmatprep.mubr.f32.mxu0 %v1653
        %v1655 = vand.u32 %v937, 4294901760
        %v1656 = vsub.f32 %v937, %v1655
        %v1657 = vand.u32 %v1656, 4294901760
        %v1658 = vsub.f32 %v1656, %v1657
        %v1659 = vand.u32 %v1658, 4294901760
        %1660 = vmatmul.mubr.f32.gmra.mrb[0].mxu0 %v1659
        %v1661 = vpop.f32.mrb[0].mxu0
        %v1662 = vadd.f32 0.0, %v1661
        %v1663 = vpop.f32.mrb[0].mxu0
        %v1664 = vadd.f32 0.0, %v1663
        %v1665 = vand.u32 %v942, 4294901760
        %v1666 = vsub.f32 %v942, %v1665
        %v1667 = vand.u32 %v1666, 4294901760
        %v1668 = vsub.f32 %v1666, %v1667
        %v1669 = vand.u32 %v1668, 4294901760
        %1670 = vmatprep.mubr.f32.mxu0 %v1669
        %v1671 = vand.u32 %v941, 4294901760
        %v1672 = vsub.f32 %v941, %v1671
        %v1673 = vand.u32 %v1672, 4294901760
        %v1674 = vsub.f32 %v1672, %v1673
        %v1675 = vand.u32 %v1674, 4294901760
        %1676 = vmatmul.mubr.f32.gmra.mrb[0].mxu0 %v1675
        %v1677 = vpop.f32.mrb[0].mxu0
        %v1678 = vadd.f32 0.0, %v1677
        %v1679 = vpop.f32.mrb[0].mxu0
        %v1680 = vadd.f32 0.0, %v1679
        %v1681 = vand.u32 %v946, 4294901760
        %v1682 = vsub.f32 %v946, %v1681
        %v1683 = vand.u32 %v1682, 4294901760
        %v1684 = vsub.f32 %v1682, %v1683
        %v1685 = vand.u32 %v1684, 4294901760
        %1686 = vmatprep.mubr.f32.mxu0 %v1685
        %v1687 = vand.u32 %v945, 4294901760
        %v1688 = vsub.f32 %v945, %v1687
        %v1689 = vand.u32 %v1688, 4294901760
        %v1690 = vsub.f32 %v1688, %v1689
        %v1691 = vand.u32 %v1690, 4294901760
        %1692 = vmatmul.mubr.f32.gmra.mrb[0].mxu0 %v1691
        %v1693 = vpop.f32.mrb[0].mxu0
        %v1694 = vadd.f32 0.0, %v1693
        %v1695 = vpop.f32.mrb[0].mxu0
        %v1696 = vadd.f32 0.0, %v1695
        %v1697 = vand.u32 %v950, 4294901760
        %v1698 = vsub.f32 %v950, %v1697
        %v1699 = vand.u32 %v1698, 4294901760
        %v1700 = vsub.f32 %v1698, %v1699
        %v1701 = vand.u32 %v1700, 4294901760
        %1702 = vmatprep.mubr.f32.mxu0 %v1701
        %v1703 = vand.u32 %v949, 4294901760
        %v1704 = vsub.f32 %v949, %v1703
        %v1705 = vand.u32 %v1704, 4294901760
        %v1706 = vsub.f32 %v1704, %v1705
        %v1707 = vand.u32 %v1706, 4294901760
        %1708 = vmatmul.mubr.f32.gmra.mrb[0].mxu0 %v1707
        %v1709 = vpop.f32.mrb[0].mxu0
        %v1710 = vadd.f32 0.0, %v1709
        %v1711 = vpop.f32.mrb[0].mxu0
        %v1712 = vadd.f32 0.0, %v1711
        %v1713 = vand.u32 %v954, 4294901760
        %v1714 = vsub.f32 %v954, %v1713
        %v1715 = vand.u32 %v1714, 4294901760
        %v1716 = vsub.f32 %v1714, %v1715
        %v1717 = vand.u32 %v1716, 4294901760
        %1718 = vmatprep.mubr.f32.mxu0 %v1717
        %v1719 = vand.u32 %v953, 4294901760
        %v1720 = vsub.f32 %v953, %v1719
        %v1721 = vand.u32 %v1720, 4294901760
        %v1722 = vsub.f32 %v1720, %v1721
        %v1723 = vand.u32 %v1722, 4294901760
        %1724 = vmatmul.mubr.f32.gmra.mrb[0].mxu0 %v1723
        %v1725 = vpop.f32.mrb[0].mxu0
        %v1726 = vadd.f32 0.0, %v1725
        %v1727 = vpop.f32.mrb[0].mxu0
        %v1728 = vadd.f32 0.0, %v1727
        %v1729 = vand.u32 %v958, 4294901760
        %v1730 = vsub.f32 %v958, %v1729
        %v1731 = vand.u32 %v1730, 4294901760
        %v1732 = vsub.f32 %v1730, %v1731
        %v1733 = vand.u32 %v1732, 4294901760
        %1734 = vmatprep.mubr.f32.mxu0 %v1733
        %v1735 = vand.u32 %v957, 4294901760
        %v1736 = vsub.f32 %v957, %v1735
        %v1737 = vand.u32 %v1736, 4294901760
        %v1738 = vsub.f32 %v1736, %v1737
        %v1739 = vand.u32 %v1738, 4294901760
        %1740 = vmatmul.mubr.f32.gmra.mrb[0].mxu0 %v1739
        %v1741 = vpop.f32.mrb[0].mxu0
        %v1742 = vadd.f32 0.0, %v1741
        %v1743 = vpop.f32.mrb[0].mxu0
        %v1744 = vadd.f32 0.0, %v1743
        %v1745 = vand.u32 %v962, 4294901760
        %v1746 = vsub.f32 %v962, %v1745
        %v1747 = vand.u32 %v1746, 4294901760
        %v1748 = vsub.f32 %v1746, %v1747
        %v1749 = vand.u32 %v1748, 4294901760
        %1750 = vmatprep.mubr.f32.mxu0 %v1749
        %v1751 = vand.u32 %v961, 4294901760
        %v1752 = vsub.f32 %v961, %v1751
        %v1753 = vand.u32 %v1752, 4294901760
        %v1754 = vsub.f32 %v1752, %v1753
        %v1755 = vand.u32 %v1754, 4294901760
        %1756 = vmatmul.mubr.f32.gmra.mrb[0].mxu0 %v1755
        %v1757 = vpop.f32.mrb[0].mxu0
        %v1758 = vadd.f32 0.0, %v1757
        %v1759 = vpop.f32.mrb[0].mxu0
        %v1760 = vadd.f32 0.0, %v1759
        %v1761 = vand.u32 %v966, 4294901760
        %v1762 = vsub.f32 %v966, %v1761
        %v1763 = vand.u32 %v1762, 4294901760
        %v1764 = vsub.f32 %v1762, %v1763
        %v1765 = vand.u32 %v1764, 4294901760
        %1766 = vmatprep.mubr.f32.mxu0 %v1765
        %v1767 = vand.u32 %v965, 4294901760
        %v1768 = vsub.f32 %v965, %v1767
        %v1769 = vand.u32 %v1768, 4294901760
        %v1770 = vsub.f32 %v1768, %v1769
        %v1771 = vand.u32 %v1770, 4294901760
        %1772 = vmatmul.mubr.f32.gmra.mrb[0].mxu0 %v1771
        %v1773 = vpop.f32.mrb[0].mxu0
        %v1774 = vadd.f32 0.0, %v1773
        %v1775 = vpop.f32.mrb[0].mxu0
        %v1776 = vadd.f32 0.0, %v1775
        %v1777 = vand.u32 %v970, 4294901760
        %v1778 = vsub.f32 %v970, %v1777
        %v1779 = vand.u32 %v1778, 4294901760
        %v1780 = vsub.f32 %v1778, %v1779
        %v1781 = vand.u32 %v1780, 4294901760
        %1782 = vmatprep.mubr.f32.mxu0 %v1781
        %v1783 = vand.u32 %v969, 4294901760
        %v1784 = vsub.f32 %v969, %v1783
        %v1785 = vand.u32 %v1784, 4294901760
        %v1786 = vsub.f32 %v1784, %v1785
        %v1787 = vand.u32 %v1786, 4294901760
        %1788 = vmatmul.mubr.f32.gmra.mrb[0].mxu0 %v1787
        %v1789 = vpop.f32.mrb[0].mxu0
        %v1790 = vadd.f32 0.0, %v1789
        %v1791 = vpop.f32.mrb[0].mxu0
        %v1792 = vadd.f32 0.0, %v1791
        %v1793 = vand.u32 %v974, 4294901760
        %v1794 = vsub.f32 %v974, %v1793
        %v1795 = vand.u32 %v1794, 4294901760
        %v1796 = vsub.f32 %v1794, %v1795
        %v1797 = vand.u32 %v1796, 4294901760
        %1798 = vmatprep.mubr.f32.mxu0 %v1797
        %v1799 = vand.u32 %v973, 4294901760
        %v1800 = vsub.f32 %v973, %v1799
        %v1801 = vand.u32 %v1800, 4294901760
        %v1802 = vsub.f32 %v1800, %v1801
        %v1803 = vand.u32 %v1802, 4294901760
        %1804 = vmatmul.mubr.f32.gmra.mrb[0].mxu0 %v1803
        %v1805 = vpop.f32.mrb[0].mxu0
        %v1806 = vadd.f32 0.0, %v1805
        %v1807 = vpop.f32.mrb[0].mxu0
        %v1808 = vadd.f32 0.0, %v1807
        %1809 = vdwg.mxu0
        %v1810 = vand.u32 %v1042, 4294901760
        %v1811 = vsub.f32 %v1042, %v1810
        %v1812 = vand.u32 %v1811, 4294901760
        %v1813 = vsub.f32 %v1811, %v1812
        %v1814 = vand.u32 %v1813, 4294901760
        %1815 = vmatprep.subr.mxu0 %v1814
        %v1816 = vand.u32 %v1041, 4294901760
        %v1817 = vsub.f32 %v1041, %v1816
        %v1818 = vand.u32 %v1817, 4294901760
        %v1819 = vsub.f32 %v1817, %v1818
        %v1820 = vand.u32 %v1819, 4294901760
        %1821 = vmatpush1.xpose.msra.mxu0 %v1820
        %v1822 = vand.u32 %v1046, 4294901760
        %v1823 = vsub.f32 %v1046, %v1822
        %v1824 = vand.u32 %v1823, 4294901760
        %v1825 = vsub.f32 %v1823, %v1824
        %v1826 = vand.u32 %v1825, 4294901760
        %1827 = vmatprep.subr.mxu0 %v1826
        %v1828 = vand.u32 %v1045, 4294901760
        %v1829 = vsub.f32 %v1045, %v1828
        %v1830 = vand.u32 %v1829, 4294901760
        %v1831 = vsub.f32 %v1829, %v1830
        %v1832 = vand.u32 %v1831, 4294901760
        %1833 = vmatpush1.xpose.msra.mxu0 %v1832
        %v1834 = vand.u32 %v1050, 4294901760
        %v1835 = vsub.f32 %v1050, %v1834
        %v1836 = vand.u32 %v1835, 4294901760
        %v1837 = vsub.f32 %v1835, %v1836
        %v1838 = vand.u32 %v1837, 4294901760
        %1839 = vmatprep.subr.mxu0 %v1838
        %v1840 = vand.u32 %v1049, 4294901760
        %v1841 = vsub.f32 %v1049, %v1840
        %v1842 = vand.u32 %v1841, 4294901760
        %v1843 = vsub.f32 %v1841, %v1842
        %v1844 = vand.u32 %v1843, 4294901760
        %1845 = vmatpush1.xpose.msra.mxu0 %v1844
        %v1846 = vand.u32 %v1054, 4294901760
        %v1847 = vsub.f32 %v1054, %v1846
        %v1848 = vand.u32 %v1847, 4294901760
        %v1849 = vsub.f32 %v1847, %v1848
        %v1850 = vand.u32 %v1849, 4294901760
        %1851 = vmatprep.subr.mxu0 %v1850
        %v1852 = vand.u32 %v1053, 4294901760
        %v1853 = vsub.f32 %v1053, %v1852
        %v1854 = vand.u32 %v1853, 4294901760
        %v1855 = vsub.f32 %v1853, %v1854
        %v1856 = vand.u32 %v1855, 4294901760
        %1857 = vmatpush1.xpose.msra.mxu0 %v1856
        %v1858 = vand.u32 %v1058, 4294901760
        %v1859 = vsub.f32 %v1058, %v1858
        %v1860 = vand.u32 %v1859, 4294901760
        %v1861 = vsub.f32 %v1859, %v1860
        %v1862 = vand.u32 %v1861, 4294901760
        %1863 = vmatprep.subr.mxu0 %v1862
        %v1864 = vand.u32 %v1057, 4294901760
        %v1865 = vsub.f32 %v1057, %v1864
        %v1866 = vand.u32 %v1865, 4294901760
        %v1867 = vsub.f32 %v1865, %v1866
        %v1868 = vand.u32 %v1867, 4294901760
        %1869 = vmatpush1.xpose.msra.mxu0 %v1868
        %v1870 = vand.u32 %v1062, 4294901760
        %v1871 = vsub.f32 %v1062, %v1870
        %v1872 = vand.u32 %v1871, 4294901760
        %v1873 = vsub.f32 %v1871, %v1872
        %v1874 = vand.u32 %v1873, 4294901760
        %1875 = vmatprep.subr.mxu0 %v1874
        %v1876 = vand.u32 %v1061, 4294901760
        %v1877 = vsub.f32 %v1061, %v1876
        %v1878 = vand.u32 %v1877, 4294901760
        %v1879 = vsub.f32 %v1877, %v1878
        %v1880 = vand.u32 %v1879, 4294901760
        %1881 = vmatpush1.xpose.msra.mxu0 %v1880
        %v1882 = vand.u32 %v1066, 4294901760
        %v1883 = vsub.f32 %v1066, %v1882
        %v1884 = vand.u32 %v1883, 4294901760
        %v1885 = vsub.f32 %v1883, %v1884
        %v1886 = vand.u32 %v1885, 4294901760
        %1887 = vmatprep.subr.mxu0 %v1886
        %v1888 = vand.u32 %v1065, 4294901760
        %v1889 = vsub.f32 %v1065, %v1888
        %v1890 = vand.u32 %v1889, 4294901760
        %v1891 = vsub.f32 %v1889, %v1890
        %v1892 = vand.u32 %v1891, 4294901760
        %1893 = vmatpush1.xpose.msra.mxu0 %v1892
        %v1894 = vand.u32 %v1070, 4294901760
        %v1895 = vsub.f32 %v1070, %v1894
        %v1896 = vand.u32 %v1895, 4294901760
        %v1897 = vsub.f32 %v1895, %v1896
        %v1898 = vand.u32 %v1897, 4294901760
        %1899 = vmatprep.subr.mxu0 %v1898
        %v1900 = vand.u32 %v1069, 4294901760
        %v1901 = vsub.f32 %v1069, %v1900
        %v1902 = vand.u32 %v1901, 4294901760
        %v1903 = vsub.f32 %v1901, %v1902
        %v1904 = vand.u32 %v1903, 4294901760
        %1905 = vmatpush1.xpose.msra.mxu0 %v1904
        %v1906 = vand.u32 %v1074, 4294901760
        %v1907 = vsub.f32 %v1074, %v1906
        %v1908 = vand.u32 %v1907, 4294901760
        %v1909 = vsub.f32 %v1907, %v1908
        %v1910 = vand.u32 %v1909, 4294901760
        %1911 = vmatprep.subr.mxu0 %v1910
        %v1912 = vand.u32 %v1073, 4294901760
        %v1913 = vsub.f32 %v1073, %v1912
        %v1914 = vand.u32 %v1913, 4294901760
        %v1915 = vsub.f32 %v1913, %v1914
        %v1916 = vand.u32 %v1915, 4294901760
        %1917 = vmatpush1.xpose.msra.mxu0 %v1916
        %v1918 = vand.u32 %v1078, 4294901760
        %v1919 = vsub.f32 %v1078, %v1918
        %v1920 = vand.u32 %v1919, 4294901760
        %v1921 = vsub.f32 %v1919, %v1920
        %v1922 = vand.u32 %v1921, 4294901760
        %1923 = vmatprep.subr.mxu0 %v1922
        %v1924 = vand.u32 %v1077, 4294901760
        %v1925 = vsub.f32 %v1077, %v1924
        %v1926 = vand.u32 %v1925, 4294901760
        %v1927 = vsub.f32 %v1925, %v1926
        %v1928 = vand.u32 %v1927, 4294901760
        %1929 = vmatpush1.xpose.msra.mxu0 %v1928
        %v1930 = vand.u32 %v1082, 4294901760
        %v1931 = vsub.f32 %v1082, %v1930
        %v1932 = vand.u32 %v1931, 4294901760
        %v1933 = vsub.f32 %v1931, %v1932
        %v1934 = vand.u32 %v1933, 4294901760
        %1935 = vmatprep.subr.mxu0 %v1934
        %v1936 = vand.u32 %v1081, 4294901760
        %v1937 = vsub.f32 %v1081, %v1936
        %v1938 = vand.u32 %v1937, 4294901760
        %v1939 = vsub.f32 %v1937, %v1938
        %v1940 = vand.u32 %v1939, 4294901760
        %1941 = vmatpush1.xpose.msra.mxu0 %v1940
        %v1942 = vand.u32 %v1086, 4294901760
        %v1943 = vsub.f32 %v1086, %v1942
        %v1944 = vand.u32 %v1943, 4294901760
        %v1945 = vsub.f32 %v1943, %v1944
        %v1946 = vand.u32 %v1945, 4294901760
        %1947 = vmatprep.subr.mxu0 %v1946
        %v1948 = vand.u32 %v1085, 4294901760
        %v1949 = vsub.f32 %v1085, %v1948
        %v1950 = vand.u32 %v1949, 4294901760
        %v1951 = vsub.f32 %v1949, %v1950
        %v1952 = vand.u32 %v1951, 4294901760
        %1953 = vmatpush1.xpose.msra.mxu0 %v1952
        %v1954 = vand.u32 %v1090, 4294901760
        %v1955 = vsub.f32 %v1090, %v1954
        %v1956 = vand.u32 %v1955, 4294901760
        %v1957 = vsub.f32 %v1955, %v1956
        %v1958 = vand.u32 %v1957, 4294901760
        %1959 = vmatprep.subr.mxu0 %v1958
        %v1960 = vand.u32 %v1089, 4294901760
        %v1961 = vsub.f32 %v1089, %v1960
        %v1962 = vand.u32 %v1961, 4294901760
        %v1963 = vsub.f32 %v1961, %v1962
        %v1964 = vand.u32 %v1963, 4294901760
        %1965 = vmatpush1.xpose.msra.mxu0 %v1964
        %v1966 = vand.u32 %v1094, 4294901760
        %v1967 = vsub.f32 %v1094, %v1966
        %v1968 = vand.u32 %v1967, 4294901760
        %v1969 = vsub.f32 %v1967, %v1968
        %v1970 = vand.u32 %v1969, 4294901760
        %1971 = vmatprep.subr.mxu0 %v1970
        %v1972 = vand.u32 %v1093, 4294901760
        %v1973 = vsub.f32 %v1093, %v1972
        %v1974 = vand.u32 %v1973, 4294901760
        %v1975 = vsub.f32 %v1973, %v1974
        %v1976 = vand.u32 %v1975, 4294901760
        %1977 = vmatpush1.xpose.msra.mxu0 %v1976
        %v1978 = vand.u32 %v1098, 4294901760
        %v1979 = vsub.f32 %v1098, %v1978
        %v1980 = vand.u32 %v1979, 4294901760
        %v1981 = vsub.f32 %v1979, %v1980
        %v1982 = vand.u32 %v1981, 4294901760
        %1983 = vmatprep.subr.mxu0 %v1982
        %v1984 = vand.u32 %v1097, 4294901760
        %v1985 = vsub.f32 %v1097, %v1984
        %v1986 = vand.u32 %v1985, 4294901760
        %v1987 = vsub.f32 %v1985, %v1986
        %v1988 = vand.u32 %v1987, 4294901760
        %1989 = vmatpush1.xpose.msra.mxu0 %v1988
        %v1990 = vand.u32 %v1102, 4294901760
        %v1991 = vsub.f32 %v1102, %v1990
        %v1992 = vand.u32 %v1991, 4294901760
        %v1993 = vsub.f32 %v1991, %v1992
        %v1994 = vand.u32 %v1993, 4294901760
        %1995 = vmatprep.subr.mxu0 %v1994
        %v1996 = vand.u32 %v1101, 4294901760
        %v1997 = vsub.f32 %v1101, %v1996
        %v1998 = vand.u32 %v1997, 4294901760
        %v1999 = vsub.f32 %v1997, %v1998
        %v2000 = vand.u32 %v1999, 4294901760
        %2001 = vmatpush1.xpose.msra.mxu0 %v2000
        %v2002 = vand.u32 %v1106, 4294901760
        %v2003 = vsub.f32 %v1106, %v2002
        %v2004 = vand.u32 %v2003, 4294901760
        %v2005 = vsub.f32 %v2003, %v2004
        %v2006 = vand.u32 %v2005, 4294901760
        %2007 = vmatprep.subr.mxu0 %v2006
        %v2008 = vand.u32 %v1105, 4294901760
        %v2009 = vsub.f32 %v1105, %v2008
        %v2010 = vand.u32 %v2009, 4294901760
        %v2011 = vsub.f32 %v2009, %v2010
        %v2012 = vand.u32 %v2011, 4294901760
        %2013 = vmatpush1.xpose.msra.mxu0 %v2012
        %v2014 = vand.u32 %v1110, 4294901760
        %v2015 = vsub.f32 %v1110, %v2014
        %v2016 = vand.u32 %v2015, 4294901760
        %v2017 = vsub.f32 %v2015, %v2016
        %v2018 = vand.u32 %v2017, 4294901760
        %2019 = vmatprep.subr.mxu0 %v2018
        %v2020 = vand.u32 %v1109, 4294901760
        %v2021 = vsub.f32 %v1109, %v2020
        %v2022 = vand.u32 %v2021, 4294901760
        %v2023 = vsub.f32 %v2021, %v2022
        %v2024 = vand.u32 %v2023, 4294901760
        %2025 = vmatpush1.xpose.msra.mxu0 %v2024
        %v2026 = vand.u32 %v1114, 4294901760
        %v2027 = vsub.f32 %v1114, %v2026
        %v2028 = vand.u32 %v2027, 4294901760
        %v2029 = vsub.f32 %v2027, %v2028
        %v2030 = vand.u32 %v2029, 4294901760
        %2031 = vmatprep.subr.mxu0 %v2030
        %v2032 = vand.u32 %v1113, 4294901760
        %v2033 = vsub.f32 %v1113, %v2032
        %v2034 = vand.u32 %v2033, 4294901760
        %v2035 = vsub.f32 %v2033, %v2034
        %v2036 = vand.u32 %v2035, 4294901760
        %2037 = vmatpush1.xpose.msra.mxu0 %v2036
        %v2038 = vand.u32 %v1118, 4294901760
        %v2039 = vsub.f32 %v1118, %v2038
        %v2040 = vand.u32 %v2039, 4294901760
        %v2041 = vsub.f32 %v2039, %v2040
        %v2042 = vand.u32 %v2041, 4294901760
        %2043 = vmatprep.subr.mxu0 %v2042
        %v2044 = vand.u32 %v1117, 4294901760
        %v2045 = vsub.f32 %v1117, %v2044
        %v2046 = vand.u32 %v2045, 4294901760
        %v2047 = vsub.f32 %v2045, %v2046
        %v2048 = vand.u32 %v2047, 4294901760
        %2049 = vmatpush1.xpose.msra.mxu0 %v2048
        %v2050 = vand.u32 %v1122, 4294901760
        %v2051 = vsub.f32 %v1122, %v2050
        %v2052 = vand.u32 %v2051, 4294901760
        %v2053 = vsub.f32 %v2051, %v2052
        %v2054 = vand.u32 %v2053, 4294901760
        %2055 = vmatprep.subr.mxu0 %v2054
        %v2056 = vand.u32 %v1121, 4294901760
        %v2057 = vsub.f32 %v1121, %v2056
        %v2058 = vand.u32 %v2057, 4294901760
        %v2059 = vsub.f32 %v2057, %v2058
        %v2060 = vand.u32 %v2059, 4294901760
        %2061 = vmatpush1.xpose.msra.mxu0 %v2060
        %v2062 = vand.u32 %v1126, 4294901760
        %v2063 = vsub.f32 %v1126, %v2062
        %v2064 = vand.u32 %v2063, 4294901760
        %v2065 = vsub.f32 %v2063, %v2064
        %v2066 = vand.u32 %v2065, 4294901760
        %2067 = vmatprep.subr.mxu0 %v2066
        %v2068 = vand.u32 %v1125, 4294901760
        %v2069 = vsub.f32 %v1125, %v2068
        %v2070 = vand.u32 %v2069, 4294901760
        %v2071 = vsub.f32 %v2069, %v2070
        %v2072 = vand.u32 %v2071, 4294901760
        %2073 = vmatpush1.xpose.msra.mxu0 %v2072
        %v2074 = vand.u32 %v1130, 4294901760
        %v2075 = vsub.f32 %v1130, %v2074
        %v2076 = vand.u32 %v2075, 4294901760
        %v2077 = vsub.f32 %v2075, %v2076
        %v2078 = vand.u32 %v2077, 4294901760
        %2079 = vmatprep.subr.mxu0 %v2078
        %v2080 = vand.u32 %v1129, 4294901760
        %v2081 = vsub.f32 %v1129, %v2080
        %v2082 = vand.u32 %v2081, 4294901760
        %v2083 = vsub.f32 %v2081, %v2082
        %v2084 = vand.u32 %v2083, 4294901760
        %2085 = vmatpush1.xpose.msra.mxu0 %v2084
        %v2086 = vand.u32 %v1134, 4294901760
        %v2087 = vsub.f32 %v1134, %v2086
        %v2088 = vand.u32 %v2087, 4294901760
        %v2089 = vsub.f32 %v2087, %v2088
        %v2090 = vand.u32 %v2089, 4294901760
        %2091 = vmatprep.subr.mxu0 %v2090
        %v2092 = vand.u32 %v1133, 4294901760
        %v2093 = vsub.f32 %v1133, %v2092
        %v2094 = vand.u32 %v2093, 4294901760
        %v2095 = vsub.f32 %v2093, %v2094
        %v2096 = vand.u32 %v2095, 4294901760
        %2097 = vmatpush1.xpose.msra.mxu0 %v2096
        %v2098 = vand.u32 %v1138, 4294901760
        %v2099 = vsub.f32 %v1138, %v2098
        %v2100 = vand.u32 %v2099, 4294901760
        %v2101 = vsub.f32 %v2099, %v2100
        %v2102 = vand.u32 %v2101, 4294901760
        %2103 = vmatprep.subr.mxu0 %v2102
        %v2104 = vand.u32 %v1137, 4294901760
        %v2105 = vsub.f32 %v1137, %v2104
        %v2106 = vand.u32 %v2105, 4294901760
        %v2107 = vsub.f32 %v2105, %v2106
        %v2108 = vand.u32 %v2107, 4294901760
        %2109 = vmatpush1.xpose.msra.mxu0 %v2108
        %v2110 = vand.u32 %v1142, 4294901760
        %v2111 = vsub.f32 %v1142, %v2110
        %v2112 = vand.u32 %v2111, 4294901760
        %v2113 = vsub.f32 %v2111, %v2112
        %v2114 = vand.u32 %v2113, 4294901760
        %2115 = vmatprep.subr.mxu0 %v2114
        %v2116 = vand.u32 %v1141, 4294901760
        %v2117 = vsub.f32 %v1141, %v2116
        %v2118 = vand.u32 %v2117, 4294901760
        %v2119 = vsub.f32 %v2117, %v2118
        %v2120 = vand.u32 %v2119, 4294901760
        %2121 = vmatpush1.xpose.msra.mxu0 %v2120
        %v2122 = vand.u32 %v1146, 4294901760
        %v2123 = vsub.f32 %v1146, %v2122
        %v2124 = vand.u32 %v2123, 4294901760
        %v2125 = vsub.f32 %v2123, %v2124
        %v2126 = vand.u32 %v2125, 4294901760
        %2127 = vmatprep.subr.mxu0 %v2126
        %v2128 = vand.u32 %v1145, 4294901760
        %v2129 = vsub.f32 %v1145, %v2128
        %v2130 = vand.u32 %v2129, 4294901760
        %v2131 = vsub.f32 %v2129, %v2130
        %v2132 = vand.u32 %v2131, 4294901760
        %2133 = vmatpush1.xpose.msra.mxu0 %v2132
        %v2134 = vand.u32 %v1150, 4294901760
        %v2135 = vsub.f32 %v1150, %v2134
        %v2136 = vand.u32 %v2135, 4294901760
        %v2137 = vsub.f32 %v2135, %v2136
        %v2138 = vand.u32 %v2137, 4294901760
        %2139 = vmatprep.subr.mxu0 %v2138
        %v2140 = vand.u32 %v1149, 4294901760
        %v2141 = vsub.f32 %v1149, %v2140
        %v2142 = vand.u32 %v2141, 4294901760
        %v2143 = vsub.f32 %v2141, %v2142
        %v2144 = vand.u32 %v2143, 4294901760
        %2145 = vmatpush1.xpose.msra.mxu0 %v2144
        %v2146 = vand.u32 %v1154, 4294901760
        %v2147 = vsub.f32 %v1154, %v2146
        %v2148 = vand.u32 %v2147, 4294901760
        %v2149 = vsub.f32 %v2147, %v2148
        %v2150 = vand.u32 %v2149, 4294901760
        %2151 = vmatprep.subr.mxu0 %v2150
        %v2152 = vand.u32 %v1153, 4294901760
        %v2153 = vsub.f32 %v1153, %v2152
        %v2154 = vand.u32 %v2153, 4294901760
        %v2155 = vsub.f32 %v2153, %v2154
        %v2156 = vand.u32 %v2155, 4294901760
        %2157 = vmatpush1.xpose.msra.mxu0 %v2156
        %v2158 = vand.u32 %v1158, 4294901760
        %v2159 = vsub.f32 %v1158, %v2158
        %v2160 = vand.u32 %v2159, 4294901760
        %v2161 = vsub.f32 %v2159, %v2160
        %v2162 = vand.u32 %v2161, 4294901760
        %2163 = vmatprep.subr.mxu0 %v2162
        %v2164 = vand.u32 %v1157, 4294901760
        %v2165 = vsub.f32 %v1157, %v2164
        %v2166 = vand.u32 %v2165, 4294901760
        %v2167 = vsub.f32 %v2165, %v2166
        %v2168 = vand.u32 %v2167, 4294901760
        %2169 = vmatpush1.xpose.msra.mxu0 %v2168
        %v2170 = vand.u32 %v1162, 4294901760
        %v2171 = vsub.f32 %v1162, %v2170
        %v2172 = vand.u32 %v2171, 4294901760
        %v2173 = vsub.f32 %v2171, %v2172
        %v2174 = vand.u32 %v2173, 4294901760
        %2175 = vmatprep.subr.mxu0 %v2174
        %v2176 = vand.u32 %v1161, 4294901760
        %v2177 = vsub.f32 %v1161, %v2176
        %v2178 = vand.u32 %v2177, 4294901760
        %v2179 = vsub.f32 %v2177, %v2178
        %v2180 = vand.u32 %v2179, 4294901760
        %2181 = vmatpush1.xpose.msra.mxu0 %v2180
        %v2182 = vand.u32 %v1166, 4294901760
        %v2183 = vsub.f32 %v1166, %v2182
        %v2184 = vand.u32 %v2183, 4294901760
        %v2185 = vsub.f32 %v2183, %v2184
        %v2186 = vand.u32 %v2185, 4294901760
        %2187 = vmatprep.subr.mxu0 %v2186
        %v2188 = vand.u32 %v1165, 4294901760
        %v2189 = vsub.f32 %v1165, %v2188
        %v2190 = vand.u32 %v2189, 4294901760
        %v2191 = vsub.f32 %v2189, %v2190
        %v2192 = vand.u32 %v2191, 4294901760
        %2193 = vmatpush1.xpose.msra.mxu0 %v2192
        %v2194 = vand.u32 %v850, 4294901760
        %2195 = vmatprep.mubr.f32.mxu0 %v2194
        %v2196 = vand.u32 %v849, 4294901760
        %2197 = vmatmul.mubr.f32.gmra.mrb[0].mxu0 %v2196
        %v2198 = vpop.f32.mrb[0].mxu0
        %v2199 = vadd.f32 %v1310, %v2198
        %v2200 = vpop.f32.mrb[0].mxu0
        %v2201 = vadd.f32 %v1312, %v2200
        %v2202 = vand.u32 %v854, 4294901760
        %2203 = vmatprep.mubr.f32.mxu0 %v2202
        %v2204 = vand.u32 %v853, 4294901760
        %2205 = vmatmul.mubr.f32.gmra.mrb[0].mxu0 %v2204
        %v2206 = vpop.f32.mrb[0].mxu0
        %v2207 = vadd.f32 %v1326, %v2206
        %v2208 = vpop.f32.mrb[0].mxu0
        %v2209 = vadd.f32 %v1328, %v2208
        %v2210 = vand.u32 %v858, 4294901760
        %2211 = vmatprep.mubr.f32.mxu0 %v2210
        %v2212 = vand.u32 %v857, 4294901760
        %2213 = vmatmul.mubr.f32.gmra.mrb[0].mxu0 %v2212
        %v2214 = vpop.f32.mrb[0].mxu0
        %v2215 = vadd.f32 %v1342, %v2214
        %v2216 = vpop.f32.mrb[0].mxu0
        %v2217 = vadd.f32 %v1344, %v2216
        %v2218 = vand.u32 %v862, 4294901760
        %2219 = vmatprep.mubr.f32.mxu0 %v2218
        %v2220 = vand.u32 %v861, 4294901760
        %2221 = vmatmul.mubr.f32.gmra.mrb[0].mxu0 %v2220
        %v2222 = vpop.f32.mrb[0].mxu0
        %v2223 = vadd.f32 %v1358, %v2222
        %v2224 = vpop.f32.mrb[0].mxu0
        %v2225 = vadd.f32 %v1360, %v2224
        %v2226 = vand.u32 %v866, 4294901760
        %2227 = vmatprep.mubr.f32.mxu0 %v2226
        %v2228 = vand.u32 %v865, 4294901760
        %2229 = vmatmul.mubr.f32.gmra.mrb[0].mxu0 %v2228
        %v2230 = vpop.f32.mrb[0].mxu0
        %v2231 = vadd.f32 %v1374, %v2230
        %v2232 = vpop.f32.mrb[0].mxu0
        %v2233 = vadd.f32 %v1376, %v2232
        %v2234 = vand.u32 %v870, 4294901760
        %2235 = vmatprep.mubr.f32.mxu0 %v2234
        %v2236 = vand.u32 %v869, 4294901760
        %2237 = vmatmul.mubr.f32.gmra.mrb[0].mxu0 %v2236
        %v2238 = vpop.f32.mrb[0].mxu0
        %v2239 = vadd.f32 %v1390, %v2238
        %v2240 = vpop.f32.mrb[0].mxu0
        %v2241 = vadd.f32 %v1392, %v2240
        %v2242 = vand.u32 %v874, 4294901760
        %2243 = vmatprep.mubr.f32.mxu0 %v2242
        %v2244 = vand.u32 %v873, 4294901760
        %2245 = vmatmul.mubr.f32.gmra.mrb[0].mxu0 %v2244
        %v2246 = vpop.f32.mrb[0].mxu0
        %v2247 = vadd.f32 %v1406, %v2246
        %v2248 = vpop.f32.mrb[0].mxu0
        %v2249 = vadd.f32 %v1408, %v2248
        %v2250 = vand.u32 %v878, 4294901760
        %2251 = vmatprep.mubr.f32.mxu0 %v2250
        %v2252 = vand.u32 %v877, 4294901760
        %2253 = vmatmul.mubr.f32.gmra.mrb[0].mxu0 %v2252
        %v2254 = vpop.f32.mrb[0].mxu0
        %v2255 = vadd.f32 %v1422, %v2254
        %v2256 = vpop.f32.mrb[0].mxu0
        %v2257 = vadd.f32 %v1424, %v2256
        %v2258 = vand.u32 %v882, 4294901760
        %2259 = vmatprep.mubr.f32.mxu0 %v2258
        %v2260 = vand.u32 %v881, 4294901760
        %2261 = vmatmul.mubr.f32.gmra.mrb[0].mxu0 %v2260
        %v2262 = vpop.f32.mrb[0].mxu0
        %v2263 = vadd.f32 %v1438, %v2262
        %v2264 = vpop.f32.mrb[0].mxu0
        %v2265 = vadd.f32 %v1440, %v2264
        %v2266 = vand.u32 %v886, 4294901760
        %2267 = vmatprep.mubr.f32.mxu0 %v2266
        %v2268 = vand.u32 %v885, 4294901760
        %2269 = vmatmul.mubr.f32.gmra.mrb[0].mxu0 %v2268
        %v2270 = vpop.f32.mrb[0].mxu0
        %v2271 = vadd.f32 %v1454, %v2270
        %v2272 = vpop.f32.mrb[0].mxu0
        %v2273 = vadd.f32 %v1456, %v2272
        %v2274 = vand.u32 %v890, 4294901760
        %2275 = vmatprep.mubr.f32.mxu0 %v2274
        %v2276 = vand.u32 %v889, 4294901760
        %2277 = vmatmul.mubr.f32.gmra.mrb[0].mxu0 %v2276
        %v2278 = vpop.f32.mrb[0].mxu0
        %v2279 = vadd.f32 %v1470, %v2278
        %v2280 = vpop.f32.mrb[0].mxu0
        %v2281 = vadd.f32 %v1472, %v2280
        %v2282 = vand.u32 %v894, 4294901760
        %2283 = vmatprep.mubr.f32.mxu0 %v2282
        %v2284 = vand.u32 %v893, 4294901760
        %2285 = vmatmul.mubr.f32.gmra.mrb[0].mxu0 %v2284
        %v2286 = vpop.f32.mrb[0].mxu0
        %v2287 = vadd.f32 %v1486, %v2286
        %v2288 = vpop.f32.mrb[0].mxu0
        %v2289 = vadd.f32 %v1488, %v2288
        %v2290 = vand.u32 %v898, 4294901760
        %2291 = vmatprep.mubr.f32.mxu0 %v2290
        %v2292 = vand.u32 %v897, 4294901760
        %2293 = vmatmul.mubr.f32.gmra.mrb[0].mxu0 %v2292
        %v2294 = vpop.f32.mrb[0].mxu0
        %v2295 = vadd.f32 %v1502, %v2294
        %v2296 = vpop.f32.mrb[0].mxu0
        %v2297 = vadd.f32 %v1504, %v2296
        %v2298 = vand.u32 %v902, 4294901760
        %2299 = vmatprep.mubr.f32.mxu0 %v2298
        %v2300 = vand.u32 %v901, 4294901760
        %2301 = vmatmul.mubr.f32.gmra.mrb[0].mxu0 %v2300
        %v2302 = vpop.f32.mrb[0].mxu0
        %v2303 = vadd.f32 %v1518, %v2302
        %v2304 = vpop.f32.mrb[0].mxu0
        %v2305 = vadd.f32 %v1520, %v2304
        %v2306 = vand.u32 %v906, 4294901760
        %2307 = vmatprep.mubr.f32.mxu0 %v2306
        %v2308 = vand.u32 %v905, 4294901760
        %2309 = vmatmul.mubr.f32.gmra.mrb[0].mxu0 %v2308
        %v2310 = vpop.f32.mrb[0].mxu0
        %v2311 = vadd.f32 %v1534, %v2310
        %v2312 = vpop.f32.mrb[0].mxu0
        %v2313 = vadd.f32 %v1536, %v2312
        %v2314 = vand.u32 %v910, 4294901760
        %2315 = vmatprep.mubr.f32.mxu0 %v2314
        %v2316 = vand.u32 %v909, 4294901760
        %2317 = vmatmul.mubr.f32.gmra.mrb[0].mxu0 %v2316
        %v2318 = vpop.f32.mrb[0].mxu0
        %v2319 = vadd.f32 %v1550, %v2318
        %v2320 = vpop.f32.mrb[0].mxu0
        %v2321 = vadd.f32 %v1552, %v2320
        %v2322 = vand.u32 %v914, 4294901760
        %2323 = vmatprep.mubr.f32.mxu0 %v2322
        %v2324 = vand.u32 %v913, 4294901760
        %2325 = vmatmul.mubr.f32.gmra.mrb[0].mxu0 %v2324
        %v2326 = vpop.f32.mrb[0].mxu0
        %v2327 = vadd.f32 %v1566, %v2326
        %v2328 = vpop.f32.mrb[0].mxu0
        %v2329 = vadd.f32 %v1568, %v2328
        %v2330 = vand.u32 %v918, 4294901760
        %2331 = vmatprep.mubr.f32.mxu0 %v2330
        %v2332 = vand.u32 %v917, 4294901760
        %2333 = vmatmul.mubr.f32.gmra.mrb[0].mxu0 %v2332
        %v2334 = vpop.f32.mrb[0].mxu0
        %v2335 = vadd.f32 %v1582, %v2334
        %v2336 = vpop.f32.mrb[0].mxu0
        %v2337 = vadd.f32 %v1584, %v2336
        %v2338 = vand.u32 %v922, 4294901760
        %2339 = vmatprep.mubr.f32.mxu0 %v2338
        %v2340 = vand.u32 %v921, 4294901760
        %2341 = vmatmul.mubr.f32.gmra.mrb[0].mxu0 %v2340
        %v2342 = vpop.f32.mrb[0].mxu0
        %v2343 = vadd.f32 %v1598, %v2342
        %v2344 = vpop.f32.mrb[0].mxu0
        %v2345 = vadd.f32 %v1600, %v2344
        %v2346 = vand.u32 %v926, 4294901760
        %2347 = vmatprep.mubr.f32.mxu0 %v2346
        %v2348 = vand.u32 %v925, 4294901760
        %2349 = vmatmul.mubr.f32.gmra.mrb[0].mxu0 %v2348
        %v2350 = vpop.f32.mrb[0].mxu0
        %v2351 = vadd.f32 %v1614, %v2350
        %v2352 = vpop.f32.mrb[0].mxu0
        %v2353 = vadd.f32 %v1616, %v2352
        %v2354 = vand.u32 %v930, 4294901760
        %2355 = vmatprep.mubr.f32.mxu0 %v2354
        %v2356 = vand.u32 %v929, 4294901760
        %2357 = vmatmul.mubr.f32.gmra.mrb[0].mxu0 %v2356
        %v2358 = vpop.f32.mrb[0].mxu0
        %v2359 = vadd.f32 %v1630, %v2358
        %v2360 = vpop.f32.mrb[0].mxu0
        %v2361 = vadd.f32 %v1632, %v2360
        %v2362 = vand.u32 %v934, 4294901760
        %2363 = vmatprep.mubr.f32.mxu0 %v2362
        %v2364 = vand.u32 %v933, 4294901760
        %2365 = vmatmul.mubr.f32.gmra.mrb[0].mxu0 %v2364
        %v2366 = vpop.f32.mrb[0].mxu0
        %v2367 = vadd.f32 %v1646, %v2366
        %v2368 = vpop.f32.mrb[0].mxu0
        %v2369 = vadd.f32 %v1648, %v2368
        %v2370 = vand.u32 %v938, 4294901760
        %2371 = vmatprep.mubr.f32.mxu0 %v2370
        %v2372 = vand.u32 %v937, 4294901760
        %2373 = vmatmul.mubr.f32.gmra.mrb[0].mxu0 %v2372
        %v2374 = vpop.f32.mrb[0].mxu0
        %v2375 = vadd.f32 %v1662, %v2374
        %v2376 = vpop.f32.mrb[0].mxu0
        %v2377 = vadd.f32 %v1664, %v2376
        %v2378 = vand.u32 %v942, 4294901760
        %2379 = vmatprep.mubr.f32.mxu0 %v2378
        %v2380 = vand.u32 %v941, 4294901760
        %2381 = vmatmul.mubr.f32.gmra.mrb[0].mxu0 %v2380
        %v2382 = vpop.f32.mrb[0].mxu0
        %v2383 = vadd.f32 %v1678, %v2382
        %v2384 = vpop.f32.mrb[0].mxu0
        %v2385 = vadd.f32 %v1680, %v2384
        %v2386 = vand.u32 %v946, 4294901760
        %2387 = vmatprep.mubr.f32.mxu0 %v2386
        %v2388 = vand.u32 %v945, 4294901760
        %2389 = vmatmul.mubr.f32.gmra.mrb[0].mxu0 %v2388
        %v2390 = vpop.f32.mrb[0].mxu0
        %v2391 = vadd.f32 %v1694, %v2390
        %v2392 = vpop.f32.mrb[0].mxu0
        %v2393 = vadd.f32 %v1696, %v2392
        %v2394 = vand.u32 %v950, 4294901760
        %2395 = vmatprep.mubr.f32.mxu0 %v2394
        %v2396 = vand.u32 %v949, 4294901760
        %2397 = vmatmul.mubr.f32.gmra.mrb[0].mxu0 %v2396
        %v2398 = vpop.f32.mrb[0].mxu0
        %v2399 = vadd.f32 %v1710, %v2398
        %v2400 = vpop.f32.mrb[0].mxu0
        %v2401 = vadd.f32 %v1712, %v2400
        %v2402 = vand.u32 %v954, 4294901760
        %2403 = vmatprep.mubr.f32.mxu0 %v2402
        %v2404 = vand.u32 %v953, 4294901760
        %2405 = vmatmul.mubr.f32.gmra.mrb[0].mxu0 %v2404
        %v2406 = vpop.f32.mrb[0].mxu0
        %v2407 = vadd.f32 %v1726, %v2406
        %v2408 = vpop.f32.mrb[0].mxu0
        %v2409 = vadd.f32 %v1728, %v2408
        %v2410 = vand.u32 %v958, 4294901760
        %2411 = vmatprep.mubr.f32.mxu0 %v2410
        %v2412 = vand.u32 %v957, 4294901760
        %2413 = vmatmul.mubr.f32.gmra.mrb[0].mxu0 %v2412
        %v2414 = vpop.f32.mrb[0].mxu0
        %v2415 = vadd.f32 %v1742, %v2414
        %v2416 = vpop.f32.mrb[0].mxu0
        %v2417 = vadd.f32 %v1744, %v2416
        %v2418 = vand.u32 %v962, 4294901760
        %2419 = vmatprep.mubr.f32.mxu0 %v2418
        %v2420 = vand.u32 %v961, 4294901760
        %2421 = vmatmul.mubr.f32.gmra.mrb[0].mxu0 %v2420
        %v2422 = vpop.f32.mrb[0].mxu0
        %v2423 = vadd.f32 %v1758, %v2422
        %v2424 = vpop.f32.mrb[0].mxu0
        %v2425 = vadd.f32 %v1760, %v2424
        %v2426 = vand.u32 %v966, 4294901760
        %2427 = vmatprep.mubr.f32.mxu0 %v2426
        %v2428 = vand.u32 %v965, 4294901760
        %2429 = vmatmul.mubr.f32.gmra.mrb[0].mxu0 %v2428
        %v2430 = vpop.f32.mrb[0].mxu0
        %v2431 = vadd.f32 %v1774, %v2430
        %v2432 = vpop.f32.mrb[0].mxu0
        %v2433 = vadd.f32 %v1776, %v2432
        %v2434 = vand.u32 %v970, 4294901760
        %2435 = vmatprep.mubr.f32.mxu0 %v2434
        %v2436 = vand.u32 %v969, 4294901760
        %2437 = vmatmul.mubr.f32.gmra.mrb[0].mxu0 %v2436
        %v2438 = vpop.f32.mrb[0].mxu0
        %v2439 = vadd.f32 %v1790, %v2438
        %v2440 = vpop.f32.mrb[0].mxu0
        %v2441 = vadd.f32 %v1792, %v2440
        %v2442 = vand.u32 %v974, 4294901760
        %2443 = vmatprep.mubr.f32.mxu0 %v2442
        %v2444 = vand.u32 %v973, 4294901760
        %2445 = vmatmul.mubr.f32.gmra.mrb[0].mxu0 %v2444
        %v2446 = vpop.f32.mrb[0].mxu0
        %v2447 = vadd.f32 %v1806, %v2446
        %v2448 = vpop.f32.mrb[0].mxu0
        %v2449 = vadd.f32 %v1808, %v2448
        %2450 = vdwg.mxu0
        %v2451 = vand.u32 %v1042, 4294901760
        %v2452 = vsub.f32 %v1042, %v2451
        %2453 = vmatprep.subr.mxu0 %v2452
        %v2454 = vand.u32 %v1041, 4294901760
        %v2455 = vsub.f32 %v1041, %v2454
        %2456 = vmatpush1.xpose.msra.mxu0 %v2455
        %v2457 = vand.u32 %v1046, 4294901760
        %v2458 = vsub.f32 %v1046, %v2457
        %2459 = vmatprep.subr.mxu0 %v2458
        %v2460 = vand.u32 %v1045, 4294901760
        %v2461 = vsub.f32 %v1045, %v2460
        %2462 = vmatpush1.xpose.msra.mxu0 %v2461
        %v2463 = vand.u32 %v1050, 4294901760
        %v2464 = vsub.f32 %v1050, %v2463
        %2465 = vmatprep.subr.mxu0 %v2464
        %v2466 = vand.u32 %v1049, 4294901760
        %v2467 = vsub.f32 %v1049, %v2466
        %2468 = vmatpush1.xpose.msra.mxu0 %v2467
        %v2469 = vand.u32 %v1054, 4294901760
        %v2470 = vsub.f32 %v1054, %v2469
        %2471 = vmatprep.subr.mxu0 %v2470
        %v2472 = vand.u32 %v1053, 4294901760
        %v2473 = vsub.f32 %v1053, %v2472
        %2474 = vmatpush1.xpose.msra.mxu0 %v2473
        %v2475 = vand.u32 %v1058, 4294901760
        %v2476 = vsub.f32 %v1058, %v2475
        %2477 = vmatprep.subr.mxu0 %v2476
        %v2478 = vand.u32 %v1057, 4294901760
        %v2479 = vsub.f32 %v1057, %v2478
        %2480 = vmatpush1.xpose.msra.mxu0 %v2479
        %v2481 = vand.u32 %v1062, 4294901760
        %v2482 = vsub.f32 %v1062, %v2481
        %2483 = vmatprep.subr.mxu0 %v2482
        %v2484 = vand.u32 %v1061, 4294901760
        %v2485 = vsub.f32 %v1061, %v2484
        %2486 = vmatpush1.xpose.msra.mxu0 %v2485
        %v2487 = vand.u32 %v1066, 4294901760
        %v2488 = vsub.f32 %v1066, %v2487
        %2489 = vmatprep.subr.mxu0 %v2488
        %v2490 = vand.u32 %v1065, 4294901760
        %v2491 = vsub.f32 %v1065, %v2490
        %2492 = vmatpush1.xpose.msra.mxu0 %v2491
        %v2493 = vand.u32 %v1070, 4294901760
        %v2494 = vsub.f32 %v1070, %v2493
        %2495 = vmatprep.subr.mxu0 %v2494
        %v2496 = vand.u32 %v1069, 4294901760
        %v2497 = vsub.f32 %v1069, %v2496
        %2498 = vmatpush1.xpose.msra.mxu0 %v2497
        %v2499 = vand.u32 %v1074, 4294901760
        %v2500 = vsub.f32 %v1074, %v2499
        %2501 = vmatprep.subr.mxu0 %v2500
        %v2502 = vand.u32 %v1073, 4294901760
        %v2503 = vsub.f32 %v1073, %v2502
        %2504 = vmatpush1.xpose.msra.mxu0 %v2503
        %v2505 = vand.u32 %v1078, 4294901760
        %v2506 = vsub.f32 %v1078, %v2505
        %2507 = vmatprep.subr.mxu0 %v2506
        %v2508 = vand.u32 %v1077, 4294901760
        %v2509 = vsub.f32 %v1077, %v2508
        %2510 = vmatpush1.xpose.msra.mxu0 %v2509
        %v2511 = vand.u32 %v1082, 4294901760
        %v2512 = vsub.f32 %v1082, %v2511
        %2513 = vmatprep.subr.mxu0 %v2512
        %v2514 = vand.u32 %v1081, 4294901760
        %v2515 = vsub.f32 %v1081, %v2514
        %2516 = vmatpush1.xpose.msra.mxu0 %v2515
        %v2517 = vand.u32 %v1086, 4294901760
        %v2518 = vsub.f32 %v1086, %v2517
        %2519 = vmatprep.subr.mxu0 %v2518
        %v2520 = vand.u32 %v1085, 4294901760
        %v2521 = vsub.f32 %v1085, %v2520
        %2522 = vmatpush1.xpose.msra.mxu0 %v2521
        %v2523 = vand.u32 %v1090, 4294901760
        %v2524 = vsub.f32 %v1090, %v2523
        %2525 = vmatprep.subr.mxu0 %v2524
        %v2526 = vand.u32 %v1089, 4294901760
        %v2527 = vsub.f32 %v1089, %v2526
        %2528 = vmatpush1.xpose.msra.mxu0 %v2527
        %v2529 = vand.u32 %v1094, 4294901760
        %v2530 = vsub.f32 %v1094, %v2529
        %2531 = vmatprep.subr.mxu0 %v2530
        %v2532 = vand.u32 %v1093, 4294901760
        %v2533 = vsub.f32 %v1093, %v2532
        %2534 = vmatpush1.xpose.msra.mxu0 %v2533
        %v2535 = vand.u32 %v1098, 4294901760
        %v2536 = vsub.f32 %v1098, %v2535
        %2537 = vmatprep.subr.mxu0 %v2536
        %v2538 = vand.u32 %v1097, 4294901760
        %v2539 = vsub.f32 %v1097, %v2538
        %2540 = vmatpush1.xpose.msra.mxu0 %v2539
        %v2541 = vand.u32 %v1102, 4294901760
        %v2542 = vsub.f32 %v1102, %v2541
        %2543 = vmatprep.subr.mxu0 %v2542
        %v2544 = vand.u32 %v1101, 4294901760
        %v2545 = vsub.f32 %v1101, %v2544
        %2546 = vmatpush1.xpose.msra.mxu0 %v2545
        %v2547 = vand.u32 %v1106, 4294901760
        %v2548 = vsub.f32 %v1106, %v2547
        %2549 = vmatprep.subr.mxu0 %v2548
        %v2550 = vand.u32 %v1105, 4294901760
        %v2551 = vsub.f32 %v1105, %v2550
        %2552 = vmatpush1.xpose.msra.mxu0 %v2551
        %v2553 = vand.u32 %v1110, 4294901760
        %v2554 = vsub.f32 %v1110, %v2553
        %2555 = vmatprep.subr.mxu0 %v2554
        %v2556 = vand.u32 %v1109, 4294901760
        %v2557 = vsub.f32 %v1109, %v2556
        %2558 = vmatpush1.xpose.msra.mxu0 %v2557
        %v2559 = vand.u32 %v1114, 4294901760
        %v2560 = vsub.f32 %v1114, %v2559
        %2561 = vmatprep.subr.mxu0 %v2560
        %v2562 = vand.u32 %v1113, 4294901760
        %v2563 = vsub.f32 %v1113, %v2562
        %2564 = vmatpush1.xpose.msra.mxu0 %v2563
        %v2565 = vand.u32 %v1118, 4294901760
        %v2566 = vsub.f32 %v1118, %v2565
        %2567 = vmatprep.subr.mxu0 %v2566
        %v2568 = vand.u32 %v1117, 4294901760
        %v2569 = vsub.f32 %v1117, %v2568
        %2570 = vmatpush1.xpose.msra.mxu0 %v2569
        %v2571 = vand.u32 %v1122, 4294901760
        %v2572 = vsub.f32 %v1122, %v2571
        %2573 = vmatprep.subr.mxu0 %v2572
        %v2574 = vand.u32 %v1121, 4294901760
        %v2575 = vsub.f32 %v1121, %v2574
        %2576 = vmatpush1.xpose.msra.mxu0 %v2575
        %v2577 = vand.u32 %v1126, 4294901760
        %v2578 = vsub.f32 %v1126, %v2577
        %2579 = vmatprep.subr.mxu0 %v2578
        %v2580 = vand.u32 %v1125, 4294901760
        %v2581 = vsub.f32 %v1125, %v2580
        %2582 = vmatpush1.xpose.msra.mxu0 %v2581
        %v2583 = vand.u32 %v1130, 4294901760
        %v2584 = vsub.f32 %v1130, %v2583
        %2585 = vmatprep.subr.mxu0 %v2584
        %v2586 = vand.u32 %v1129, 4294901760
        %v2587 = vsub.f32 %v1129, %v2586
        %2588 = vmatpush1.xpose.msra.mxu0 %v2587
        %v2589 = vand.u32 %v1134, 4294901760
        %v2590 = vsub.f32 %v1134, %v2589
        %2591 = vmatprep.subr.mxu0 %v2590
        %v2592 = vand.u32 %v1133, 4294901760
        %v2593 = vsub.f32 %v1133, %v2592
        %2594 = vmatpush1.xpose.msra.mxu0 %v2593
        %v2595 = vand.u32 %v1138, 4294901760
        %v2596 = vsub.f32 %v1138, %v2595
        %2597 = vmatprep.subr.mxu0 %v2596
        %v2598 = vand.u32 %v1137, 4294901760
        %v2599 = vsub.f32 %v1137, %v2598
        %2600 = vmatpush1.xpose.msra.mxu0 %v2599
        %v2601 = vand.u32 %v1142, 4294901760
        %v2602 = vsub.f32 %v1142, %v2601
        %2603 = vmatprep.subr.mxu0 %v2602
        %v2604 = vand.u32 %v1141, 4294901760
        %v2605 = vsub.f32 %v1141, %v2604
        %2606 = vmatpush1.xpose.msra.mxu0 %v2605
        %v2607 = vand.u32 %v1146, 4294901760
        %v2608 = vsub.f32 %v1146, %v2607
        %2609 = vmatprep.subr.mxu0 %v2608
        %v2610 = vand.u32 %v1145, 4294901760
        %v2611 = vsub.f32 %v1145, %v2610
        %2612 = vmatpush1.xpose.msra.mxu0 %v2611
        %v2613 = vand.u32 %v1150, 4294901760
        %v2614 = vsub.f32 %v1150, %v2613
        %2615 = vmatprep.subr.mxu0 %v2614
        %v2616 = vand.u32 %v1149, 4294901760
        %v2617 = vsub.f32 %v1149, %v2616
        %2618 = vmatpush1.xpose.msra.mxu0 %v2617
        %v2619 = vand.u32 %v1154, 4294901760
        %v2620 = vsub.f32 %v1154, %v2619
        %2621 = vmatprep.subr.mxu0 %v2620
        %v2622 = vand.u32 %v1153, 4294901760
        %v2623 = vsub.f32 %v1153, %v2622
        %2624 = vmatpush1.xpose.msra.mxu0 %v2623
        %v2625 = vand.u32 %v1158, 4294901760
        %v2626 = vsub.f32 %v1158, %v2625
        %2627 = vmatprep.subr.mxu0 %v2626
        %v2628 = vand.u32 %v1157, 4294901760
        %v2629 = vsub.f32 %v1157, %v2628
        %2630 = vmatpush1.xpose.msra.mxu0 %v2629
        %v2631 = vand.u32 %v1162, 4294901760
        %v2632 = vsub.f32 %v1162, %v2631
        %2633 = vmatprep.subr.mxu0 %v2632
        %v2634 = vand.u32 %v1161, 4294901760
        %v2635 = vsub.f32 %v1161, %v2634
        %2636 = vmatpush1.xpose.msra.mxu0 %v2635
        %v2637 = vand.u32 %v1166, 4294901760
        %v2638 = vsub.f32 %v1166, %v2637
        %2639 = vmatprep.subr.mxu0 %v2638
        %v2640 = vand.u32 %v1165, 4294901760
        %v2641 = vsub.f32 %v1165, %v2640
        %2642 = vmatpush1.xpose.msra.mxu0 %v2641
        %v2643 = vand.u32 %v850, 4294901760
        %v2644 = vsub.f32 %v850, %v2643
        %2645 = vmatprep.mubr.f32.mxu0 %v2644
        %v2646 = vand.u32 %v849, 4294901760
        %v2647 = vsub.f32 %v849, %v2646
        %2648 = vmatmul.mubr.f32.gmra.mrb[0].mxu0 %v2647
        %v2649 = vpop.f32.mrb[0].mxu0
        %v2650 = vadd.f32 %v2199, %v2649
        %v2651 = vpop.f32.mrb[0].mxu0
        %v2652 = vadd.f32 %v2201, %v2651
        %v2653 = vand.u32 %v854, 4294901760
        %v2654 = vsub.f32 %v854, %v2653
        %2655 = vmatprep.mubr.f32.mxu0 %v2654
        %v2656 = vand.u32 %v853, 4294901760
        %v2657 = vsub.f32 %v853, %v2656
        %2658 = vmatmul.mubr.f32.gmra.mrb[0].mxu0 %v2657
        %v2659 = vpop.f32.mrb[0].mxu0
        %v2660 = vadd.f32 %v2207, %v2659
        %v2661 = vpop.f32.mrb[0].mxu0
        %v2662 = vadd.f32 %v2209, %v2661
        %v2663 = vand.u32 %v858, 4294901760
        %v2664 = vsub.f32 %v858, %v2663
        %2665 = vmatprep.mubr.f32.mxu0 %v2664
        %v2666 = vand.u32 %v857, 4294901760
        %v2667 = vsub.f32 %v857, %v2666
        %2668 = vmatmul.mubr.f32.gmra.mrb[0].mxu0 %v2667
        %v2669 = vpop.f32.mrb[0].mxu0
        %v2670 = vadd.f32 %v2215, %v2669
        %v2671 = vpop.f32.mrb[0].mxu0
        %v2672 = vadd.f32 %v2217, %v2671
        %v2673 = vand.u32 %v862, 4294901760
        %v2674 = vsub.f32 %v862, %v2673
        %2675 = vmatprep.mubr.f32.mxu0 %v2674
        %v2676 = vand.u32 %v861, 4294901760
        %v2677 = vsub.f32 %v861, %v2676
        %2678 = vmatmul.mubr.f32.gmra.mrb[0].mxu0 %v2677
        %v2679 = vpop.f32.mrb[0].mxu0
        %v2680 = vadd.f32 %v2223, %v2679
        %v2681 = vpop.f32.mrb[0].mxu0
        %v2682 = vadd.f32 %v2225, %v2681
        %v2683 = vand.u32 %v866, 4294901760
        %v2684 = vsub.f32 %v866, %v2683
        %2685 = vmatprep.mubr.f32.mxu0 %v2684
        %v2686 = vand.u32 %v865, 4294901760
        %v2687 = vsub.f32 %v865, %v2686
        %2688 = vmatmul.mubr.f32.gmra.mrb[0].mxu0 %v2687
        %v2689 = vpop.f32.mrb[0].mxu0
        %v2690 = vadd.f32 %v2231, %v2689
        %v2691 = vpop.f32.mrb[0].mxu0
        %v2692 = vadd.f32 %v2233, %v2691
        %v2693 = vand.u32 %v870, 4294901760
        %v2694 = vsub.f32 %v870, %v2693
        %2695 = vmatprep.mubr.f32.mxu0 %v2694
        %v2696 = vand.u32 %v869, 4294901760
        %v2697 = vsub.f32 %v869, %v2696
        %2698 = vmatmul.mubr.f32.gmra.mrb[0].mxu0 %v2697
        %v2699 = vpop.f32.mrb[0].mxu0
        %v2700 = vadd.f32 %v2239, %v2699
        %v2701 = vpop.f32.mrb[0].mxu0
        %v2702 = vadd.f32 %v2241, %v2701
        %v2703 = vand.u32 %v874, 4294901760
        %v2704 = vsub.f32 %v874, %v2703
        %2705 = vmatprep.mubr.f32.mxu0 %v2704
        %v2706 = vand.u32 %v873, 4294901760
        %v2707 = vsub.f32 %v873, %v2706
        %2708 = vmatmul.mubr.f32.gmra.mrb[0].mxu0 %v2707
        %v2709 = vpop.f32.mrb[0].mxu0
        %v2710 = vadd.f32 %v2247, %v2709
        %v2711 = vpop.f32.mrb[0].mxu0
        %v2712 = vadd.f32 %v2249, %v2711
        %v2713 = vand.u32 %v878, 4294901760
        %v2714 = vsub.f32 %v878, %v2713
        %2715 = vmatprep.mubr.f32.mxu0 %v2714
        %v2716 = vand.u32 %v877, 4294901760
        %v2717 = vsub.f32 %v877, %v2716
        %2718 = vmatmul.mubr.f32.gmra.mrb[0].mxu0 %v2717
        %v2719 = vpop.f32.mrb[0].mxu0
        %v2720 = vadd.f32 %v2255, %v2719
        %v2721 = vpop.f32.mrb[0].mxu0
        %v2722 = vadd.f32 %v2257, %v2721
        %v2723 = vand.u32 %v882, 4294901760
        %v2724 = vsub.f32 %v882, %v2723
        %2725 = vmatprep.mubr.f32.mxu0 %v2724
        %v2726 = vand.u32 %v881, 4294901760
        %v2727 = vsub.f32 %v881, %v2726
        %2728 = vmatmul.mubr.f32.gmra.mrb[0].mxu0 %v2727
        %v2729 = vpop.f32.mrb[0].mxu0
        %v2730 = vadd.f32 %v2263, %v2729
        %v2731 = vpop.f32.mrb[0].mxu0
        %v2732 = vadd.f32 %v2265, %v2731
        %v2733 = vand.u32 %v886, 4294901760
        %v2734 = vsub.f32 %v886, %v2733
        %2735 = vmatprep.mubr.f32.mxu0 %v2734
        %v2736 = vand.u32 %v885, 4294901760
        %v2737 = vsub.f32 %v885, %v2736
        %2738 = vmatmul.mubr.f32.gmra.mrb[0].mxu0 %v2737
        %v2739 = vpop.f32.mrb[0].mxu0
        %v2740 = vadd.f32 %v2271, %v2739
        %v2741 = vpop.f32.mrb[0].mxu0
        %v2742 = vadd.f32 %v2273, %v2741
        %v2743 = vand.u32 %v890, 4294901760
        %v2744 = vsub.f32 %v890, %v2743
        %2745 = vmatprep.mubr.f32.mxu0 %v2744
        %v2746 = vand.u32 %v889, 4294901760
        %v2747 = vsub.f32 %v889, %v2746
        %2748 = vmatmul.mubr.f32.gmra.mrb[0].mxu0 %v2747
        %v2749 = vpop.f32.mrb[0].mxu0
        %v2750 = vadd.f32 %v2279, %v2749
        %v2751 = vpop.f32.mrb[0].mxu0
        %v2752 = vadd.f32 %v2281, %v2751
        %v2753 = vand.u32 %v894, 4294901760
        %v2754 = vsub.f32 %v894, %v2753
        %2755 = vmatprep.mubr.f32.mxu0 %v2754
        %v2756 = vand.u32 %v893, 4294901760
        %v2757 = vsub.f32 %v893, %v2756
        %2758 = vmatmul.mubr.f32.gmra.mrb[0].mxu0 %v2757
        %v2759 = vpop.f32.mrb[0].mxu0
        %v2760 = vadd.f32 %v2287, %v2759
        %v2761 = vpop.f32.mrb[0].mxu0
        %v2762 = vadd.f32 %v2289, %v2761
        %v2763 = vand.u32 %v898, 4294901760
        %v2764 = vsub.f32 %v898, %v2763
        %2765 = vmatprep.mubr.f32.mxu0 %v2764
        %v2766 = vand.u32 %v897, 4294901760
        %v2767 = vsub.f32 %v897, %v2766
        %2768 = vmatmul.mubr.f32.gmra.mrb[0].mxu0 %v2767
        %v2769 = vpop.f32.mrb[0].mxu0
        %v2770 = vadd.f32 %v2295, %v2769
        %v2771 = vpop.f32.mrb[0].mxu0
        %v2772 = vadd.f32 %v2297, %v2771
        %v2773 = vand.u32 %v902, 4294901760
        %v2774 = vsub.f32 %v902, %v2773
        %2775 = vmatprep.mubr.f32.mxu0 %v2774
        %v2776 = vand.u32 %v901, 4294901760
        %v2777 = vsub.f32 %v901, %v2776
        %2778 = vmatmul.mubr.f32.gmra.mrb[0].mxu0 %v2777
        %v2779 = vpop.f32.mrb[0].mxu0
        %v2780 = vadd.f32 %v2303, %v2779
        %v2781 = vpop.f32.mrb[0].mxu0
        %v2782 = vadd.f32 %v2305, %v2781
        %v2783 = vand.u32 %v906, 4294901760
        %v2784 = vsub.f32 %v906, %v2783
        %2785 = vmatprep.mubr.f32.mxu0 %v2784
        %v2786 = vand.u32 %v905, 4294901760
        %v2787 = vsub.f32 %v905, %v2786
        %2788 = vmatmul.mubr.f32.gmra.mrb[0].mxu0 %v2787
        %v2789 = vpop.f32.mrb[0].mxu0
        %v2790 = vadd.f32 %v2311, %v2789
        %v2791 = vpop.f32.mrb[0].mxu0
        %v2792 = vadd.f32 %v2313, %v2791
        %v2793 = vand.u32 %v910, 4294901760
        %v2794 = vsub.f32 %v910, %v2793
        %2795 = vmatprep.mubr.f32.mxu0 %v2794
        %v2796 = vand.u32 %v909, 4294901760
        %v2797 = vsub.f32 %v909, %v2796
        %2798 = vmatmul.mubr.f32.gmra.mrb[0].mxu0 %v2797
        %v2799 = vpop.f32.mrb[0].mxu0
        %v2800 = vadd.f32 %v2319, %v2799
        %v2801 = vpop.f32.mrb[0].mxu0
        %v2802 = vadd.f32 %v2321, %v2801
        %v2803 = vand.u32 %v914, 4294901760
        %v2804 = vsub.f32 %v914, %v2803
        %2805 = vmatprep.mubr.f32.mxu0 %v2804
        %v2806 = vand.u32 %v913, 4294901760
        %v2807 = vsub.f32 %v913, %v2806
        %2808 = vmatmul.mubr.f32.gmra.mrb[0].mxu0 %v2807
        %v2809 = vpop.f32.mrb[0].mxu0
        %v2810 = vadd.f32 %v2327, %v2809
        %v2811 = vpop.f32.mrb[0].mxu0
        %v2812 = vadd.f32 %v2329, %v2811
        %v2813 = vand.u32 %v918, 4294901760
        %v2814 = vsub.f32 %v918, %v2813
        %2815 = vmatprep.mubr.f32.mxu0 %v2814
        %v2816 = vand.u32 %v917, 4294901760
        %v2817 = vsub.f32 %v917, %v2816
        %2818 = vmatmul.mubr.f32.gmra.mrb[0].mxu0 %v2817
        %v2819 = vpop.f32.mrb[0].mxu0
        %v2820 = vadd.f32 %v2335, %v2819
        %v2821 = vpop.f32.mrb[0].mxu0
        %v2822 = vadd.f32 %v2337, %v2821
        %v2823 = vand.u32 %v922, 4294901760
        %v2824 = vsub.f32 %v922, %v2823
        %2825 = vmatprep.mubr.f32.mxu0 %v2824
        %v2826 = vand.u32 %v921, 4294901760
        %v2827 = vsub.f32 %v921, %v2826
        %2828 = vmatmul.mubr.f32.gmra.mrb[0].mxu0 %v2827
        %v2829 = vpop.f32.mrb[0].mxu0
        %v2830 = vadd.f32 %v2343, %v2829
        %v2831 = vpop.f32.mrb[0].mxu0
        %v2832 = vadd.f32 %v2345, %v2831
        %v2833 = vand.u32 %v926, 4294901760
        %v2834 = vsub.f32 %v926, %v2833
        %2835 = vmatprep.mubr.f32.mxu0 %v2834
        %v2836 = vand.u32 %v925, 4294901760
        %v2837 = vsub.f32 %v925, %v2836
        %2838 = vmatmul.mubr.f32.gmra.mrb[0].mxu0 %v2837
        %v2839 = vpop.f32.mrb[0].mxu0
        %v2840 = vadd.f32 %v2351, %v2839
        %v2841 = vpop.f32.mrb[0].mxu0
        %v2842 = vadd.f32 %v2353, %v2841
        %v2843 = vand.u32 %v930, 4294901760
        %v2844 = vsub.f32 %v930, %v2843
        %2845 = vmatprep.mubr.f32.mxu0 %v2844
        %v2846 = vand.u32 %v929, 4294901760
        %v2847 = vsub.f32 %v929, %v2846
        %2848 = vmatmul.mubr.f32.gmra.mrb[0].mxu0 %v2847
        %v2849 = vpop.f32.mrb[0].mxu0
        %v2850 = vadd.f32 %v2359, %v2849
        %v2851 = vpop.f32.mrb[0].mxu0
        %v2852 = vadd.f32 %v2361, %v2851
        %v2853 = vand.u32 %v934, 4294901760
        %v2854 = vsub.f32 %v934, %v2853
        %2855 = vmatprep.mubr.f32.mxu0 %v2854
        %v2856 = vand.u32 %v933, 4294901760
        %v2857 = vsub.f32 %v933, %v2856
        %2858 = vmatmul.mubr.f32.gmra.mrb[0].mxu0 %v2857
        %v2859 = vpop.f32.mrb[0].mxu0
        %v2860 = vadd.f32 %v2367, %v2859
        %v2861 = vpop.f32.mrb[0].mxu0
        %v2862 = vadd.f32 %v2369, %v2861
        %v2863 = vand.u32 %v938, 4294901760
        %v2864 = vsub.f32 %v938, %v2863
        %2865 = vmatprep.mubr.f32.mxu0 %v2864
        %v2866 = vand.u32 %v937, 4294901760
        %v2867 = vsub.f32 %v937, %v2866
        %2868 = vmatmul.mubr.f32.gmra.mrb[0].mxu0 %v2867
        %v2869 = vpop.f32.mrb[0].mxu0
        %v2870 = vadd.f32 %v2375, %v2869
        %v2871 = vpop.f32.mrb[0].mxu0
        %v2872 = vadd.f32 %v2377, %v2871
        %v2873 = vand.u32 %v942, 4294901760
        %v2874 = vsub.f32 %v942, %v2873
        %2875 = vmatprep.mubr.f32.mxu0 %v2874
        %v2876 = vand.u32 %v941, 4294901760
        %v2877 = vsub.f32 %v941, %v2876
        %2878 = vmatmul.mubr.f32.gmra.mrb[0].mxu0 %v2877
        %v2879 = vpop.f32.mrb[0].mxu0
        %v2880 = vadd.f32 %v2383, %v2879
        %v2881 = vpop.f32.mrb[0].mxu0
        %v2882 = vadd.f32 %v2385, %v2881
        %v2883 = vand.u32 %v946, 4294901760
        %v2884 = vsub.f32 %v946, %v2883
        %2885 = vmatprep.mubr.f32.mxu0 %v2884
        %v2886 = vand.u32 %v945, 4294901760
        %v2887 = vsub.f32 %v945, %v2886
        %2888 = vmatmul.mubr.f32.gmra.mrb[0].mxu0 %v2887
        %v2889 = vpop.f32.mrb[0].mxu0
        %v2890 = vadd.f32 %v2391, %v2889
        %v2891 = vpop.f32.mrb[0].mxu0
        %v2892 = vadd.f32 %v2393, %v2891
        %v2893 = vand.u32 %v950, 4294901760
        %v2894 = vsub.f32 %v950, %v2893
        %2895 = vmatprep.mubr.f32.mxu0 %v2894
        %v2896 = vand.u32 %v949, 4294901760
        %v2897 = vsub.f32 %v949, %v2896
        %2898 = vmatmul.mubr.f32.gmra.mrb[0].mxu0 %v2897
        %v2899 = vpop.f32.mrb[0].mxu0
        %v2900 = vadd.f32 %v2399, %v2899
        %v2901 = vpop.f32.mrb[0].mxu0
        %v2902 = vadd.f32 %v2401, %v2901
        %v2903 = vand.u32 %v954, 4294901760
        %v2904 = vsub.f32 %v954, %v2903
        %2905 = vmatprep.mubr.f32.mxu0 %v2904
        %v2906 = vand.u32 %v953, 4294901760
        %v2907 = vsub.f32 %v953, %v2906
        %2908 = vmatmul.mubr.f32.gmra.mrb[0].mxu0 %v2907
        %v2909 = vpop.f32.mrb[0].mxu0
        %v2910 = vadd.f32 %v2407, %v2909
        %v2911 = vpop.f32.mrb[0].mxu0
        %v2912 = vadd.f32 %v2409, %v2911
        %v2913 = vand.u32 %v958, 4294901760
        %v2914 = vsub.f32 %v958, %v2913
        %2915 = vmatprep.mubr.f32.mxu0 %v2914
        %v2916 = vand.u32 %v957, 4294901760
        %v2917 = vsub.f32 %v957, %v2916
        %2918 = vmatmul.mubr.f32.gmra.mrb[0].mxu0 %v2917
        %v2919 = vpop.f32.mrb[0].mxu0
        %v2920 = vadd.f32 %v2415, %v2919
        %v2921 = vpop.f32.mrb[0].mxu0
        %v2922 = vadd.f32 %v2417, %v2921
        %v2923 = vand.u32 %v962, 4294901760
        %v2924 = vsub.f32 %v962, %v2923
        %2925 = vmatprep.mubr.f32.mxu0 %v2924
        %v2926 = vand.u32 %v961, 4294901760
        %v2927 = vsub.f32 %v961, %v2926
        %2928 = vmatmul.mubr.f32.gmra.mrb[0].mxu0 %v2927
        %v2929 = vpop.f32.mrb[0].mxu0
        %v2930 = vadd.f32 %v2423, %v2929
        %v2931 = vpop.f32.mrb[0].mxu0
        %v2932 = vadd.f32 %v2425, %v2931
        %v2933 = vand.u32 %v966, 4294901760
        %v2934 = vsub.f32 %v966, %v2933
        %2935 = vmatprep.mubr.f32.mxu0 %v2934
        %v2936 = vand.u32 %v965, 4294901760
        %v2937 = vsub.f32 %v965, %v2936
        %2938 = vmatmul.mubr.f32.gmra.mrb[0].mxu0 %v2937
        %v2939 = vpop.f32.mrb[0].mxu0
        %v2940 = vadd.f32 %v2431, %v2939
        %v2941 = vpop.f32.mrb[0].mxu0
        %v2942 = vadd.f32 %v2433, %v2941
        %v2943 = vand.u32 %v970, 4294901760
        %v2944 = vsub.f32 %v970, %v2943
        %2945 = vmatprep.mubr.f32.mxu0 %v2944
        %v2946 = vand.u32 %v969, 4294901760
        %v2947 = vsub.f32 %v969, %v2946
        %2948 = vmatmul.mubr.f32.gmra.mrb[0].mxu0 %v2947
        %v2949 = vpop.f32.mrb[0].mxu0
        %v2950 = vadd.f32 %v2439, %v2949
        %v2951 = vpop.f32.mrb[0].mxu0
        %v2952 = vadd.f32 %v2441, %v2951
        %v2953 = vand.u32 %v974, 4294901760
        %v2954 = vsub.f32 %v974, %v2953
        %2955 = vmatprep.mubr.f32.mxu0 %v2954
        %v2956 = vand.u32 %v973, 4294901760
        %v2957 = vsub.f32 %v973, %v2956
        %2958 = vmatmul.mubr.f32.gmra.mrb[0].mxu0 %v2957
        %v2959 = vpop.f32.mrb[0].mxu0
        %v2960 = vadd.f32 %v2447, %v2959
        %v2961 = vpop.f32.mrb[0].mxu0
        %v2962 = vadd.f32 %v2449, %v2961
        %2963 = vdwg.mxu0
        %v2964 = vand.u32 %v1042, 4294901760
        %2965 = vmatprep.subr.mxu0 %v2964
        %v2966 = vand.u32 %v1041, 4294901760
        %2967 = vmatpush1.xpose.msra.mxu0 %v2966
        %v2968 = vand.u32 %v1046, 4294901760
        %2969 = vmatprep.subr.mxu0 %v2968
        %v2970 = vand.u32 %v1045, 4294901760
        %2971 = vmatpush1.xpose.msra.mxu0 %v2970
        %v2972 = vand.u32 %v1050, 4294901760
        %2973 = vmatprep.subr.mxu0 %v2972
        %v2974 = vand.u32 %v1049, 4294901760
        %2975 = vmatpush1.xpose.msra.mxu0 %v2974
        %v2976 = vand.u32 %v1054, 4294901760
        %2977 = vmatprep.subr.mxu0 %v2976
        %v2978 = vand.u32 %v1053, 4294901760
        %2979 = vmatpush1.xpose.msra.mxu0 %v2978
        %v2980 = vand.u32 %v1058, 4294901760
        %2981 = vmatprep.subr.mxu0 %v2980
        %v2982 = vand.u32 %v1057, 4294901760
        %2983 = vmatpush1.xpose.msra.mxu0 %v2982
        %v2984 = vand.u32 %v1062, 4294901760
        %2985 = vmatprep.subr.mxu0 %v2984
        %v2986 = vand.u32 %v1061, 4294901760
        %2987 = vmatpush1.xpose.msra.mxu0 %v2986
        %v2988 = vand.u32 %v1066, 4294901760
        %2989 = vmatprep.subr.mxu0 %v2988
        %v2990 = vand.u32 %v1065, 4294901760
        %2991 = vmatpush1.xpose.msra.mxu0 %v2990
        %v2992 = vand.u32 %v1070, 4294901760
        %2993 = vmatprep.subr.mxu0 %v2992
        %v2994 = vand.u32 %v1069, 4294901760
        %2995 = vmatpush1.xpose.msra.mxu0 %v2994
        %v2996 = vand.u32 %v1074, 4294901760
        %2997 = vmatprep.subr.mxu0 %v2996
        %v2998 = vand.u32 %v1073, 4294901760
        %2999 = vmatpush1.xpose.msra.mxu0 %v2998
        %v3000 = vand.u32 %v1078, 4294901760
        %3001 = vmatprep.subr.mxu0 %v3000
        %v3002 = vand.u32 %v1077, 4294901760
        %3003 = vmatpush1.xpose.msra.mxu0 %v3002
        %v3004 = vand.u32 %v1082, 4294901760
        %3005 = vmatprep.subr.mxu0 %v3004
        %v3006 = vand.u32 %v1081, 4294901760
        %3007 = vmatpush1.xpose.msra.mxu0 %v3006
        %v3008 = vand.u32 %v1086, 4294901760
        %3009 = vmatprep.subr.mxu0 %v3008
        %v3010 = vand.u32 %v1085, 4294901760
        %3011 = vmatpush1.xpose.msra.mxu0 %v3010
        %v3012 = vand.u32 %v1090, 4294901760
        %3013 = vmatprep.subr.mxu0 %v3012
        %v3014 = vand.u32 %v1089, 4294901760
        %3015 = vmatpush1.xpose.msra.mxu0 %v3014
        %v3016 = vand.u32 %v1094, 4294901760
        %3017 = vmatprep.subr.mxu0 %v3016
        %v3018 = vand.u32 %v1093, 4294901760
        %3019 = vmatpush1.xpose.msra.mxu0 %v3018
        %v3020 = vand.u32 %v1098, 4294901760
        %3021 = vmatprep.subr.mxu0 %v3020
        %v3022 = vand.u32 %v1097, 4294901760
        %3023 = vmatpush1.xpose.msra.mxu0 %v3022
        %v3024 = vand.u32 %v1102, 4294901760
        %3025 = vmatprep.subr.mxu0 %v3024
        %v3026 = vand.u32 %v1101, 4294901760
        %3027 = vmatpush1.xpose.msra.mxu0 %v3026
        %v3028 = vand.u32 %v1106, 4294901760
        %3029 = vmatprep.subr.mxu0 %v3028
        %v3030 = vand.u32 %v1105, 4294901760
        %3031 = vmatpush1.xpose.msra.mxu0 %v3030
        %v3032 = vand.u32 %v1110, 4294901760
        %3033 = vmatprep.subr.mxu0 %v3032
        %v3034 = vand.u32 %v1109, 4294901760
        %3035 = vmatpush1.xpose.msra.mxu0 %v3034
        %v3036 = vand.u32 %v1114, 4294901760
        %3037 = vmatprep.subr.mxu0 %v3036
        %v3038 = vand.u32 %v1113, 4294901760
        %3039 = vmatpush1.xpose.msra.mxu0 %v3038
        %v3040 = vand.u32 %v1118, 4294901760
        %3041 = vmatprep.subr.mxu0 %v3040
        %v3042 = vand.u32 %v1117, 4294901760
        %3043 = vmatpush1.xpose.msra.mxu0 %v3042
        %v3044 = vand.u32 %v1122, 4294901760
        %3045 = vmatprep.subr.mxu0 %v3044
        %v3046 = vand.u32 %v1121, 4294901760
        %3047 = vmatpush1.xpose.msra.mxu0 %v3046
        %v3048 = vand.u32 %v1126, 4294901760
        %3049 = vmatprep.subr.mxu0 %v3048
        %v3050 = vand.u32 %v1125, 4294901760
        %3051 = vmatpush1.xpose.msra.mxu0 %v3050
        %v3052 = vand.u32 %v1130, 4294901760
        %3053 = vmatprep.subr.mxu0 %v3052
        %v3054 = vand.u32 %v1129, 4294901760
        %3055 = vmatpush1.xpose.msra.mxu0 %v3054
        %v3056 = vand.u32 %v1134, 4294901760
        %3057 = vmatprep.subr.mxu0 %v3056
        %v3058 = vand.u32 %v1133, 4294901760
        %3059 = vmatpush1.xpose.msra.mxu0 %v3058
        %v3060 = vand.u32 %v1138, 4294901760
        %3061 = vmatprep.subr.mxu0 %v3060
        %v3062 = vand.u32 %v1137, 4294901760
        %3063 = vmatpush1.xpose.msra.mxu0 %v3062
        %v3064 = vand.u32 %v1142, 4294901760
        %3065 = vmatprep.subr.mxu0 %v3064
        %v3066 = vand.u32 %v1141, 4294901760
        %3067 = vmatpush1.xpose.msra.mxu0 %v3066
        %v3068 = vand.u32 %v1146, 4294901760
        %3069 = vmatprep.subr.mxu0 %v3068
        %v3070 = vand.u32 %v1145, 4294901760
        %3071 = vmatpush1.xpose.msra.mxu0 %v3070
        %v3072 = vand.u32 %v1150, 4294901760
        %3073 = vmatprep.subr.mxu0 %v3072
        %v3074 = vand.u32 %v1149, 4294901760
        %3075 = vmatpush1.xpose.msra.mxu0 %v3074
        %v3076 = vand.u32 %v1154, 4294901760
        %3077 = vmatprep.subr.mxu0 %v3076
        %v3078 = vand.u32 %v1153, 4294901760
        %3079 = vmatpush1.xpose.msra.mxu0 %v3078
        %v3080 = vand.u32 %v1158, 4294901760
        %3081 = vmatprep.subr.mxu0 %v3080
        %v3082 = vand.u32 %v1157, 4294901760
        %3083 = vmatpush1.xpose.msra.mxu0 %v3082
        %v3084 = vand.u32 %v1162, 4294901760
        %3085 = vmatprep.subr.mxu0 %v3084
        %v3086 = vand.u32 %v1161, 4294901760
        %3087 = vmatpush1.xpose.msra.mxu0 %v3086
        %v3088 = vand.u32 %v1166, 4294901760
        %3089 = vmatprep.subr.mxu0 %v3088
        %v3090 = vand.u32 %v1165, 4294901760
        %3091 = vmatpush1.xpose.msra.mxu0 %v3090
        %v3092 = vand.u32 %v850, 4294901760
        %v3093 = vsub.f32 %v850, %v3092
        %v3094 = vand.u32 %v3093, 4294901760
        %3095 = vmatprep.mubr.f32.mxu0 %v3094
        %v3096 = vand.u32 %v849, 4294901760
        %v3097 = vsub.f32 %v849, %v3096
        %v3098 = vand.u32 %v3097, 4294901760
        %3099 = vmatmul.mubr.f32.gmra.mrb[0].mxu0 %v3098
        %v3100 = vpop.f32.mrb[0].mxu0
        %v3101 = vadd.f32 %v2650, %v3100
        %v3102 = vpop.f32.mrb[0].mxu0
        %v3103 = vadd.f32 %v2652, %v3102
        %v3104 = vand.u32 %v854, 4294901760
        %v3105 = vsub.f32 %v854, %v3104
        %v3106 = vand.u32 %v3105, 4294901760
        %3107 = vmatprep.mubr.f32.mxu0 %v3106
        %v3108 = vand.u32 %v853, 4294901760
        %v3109 = vsub.f32 %v853, %v3108
        %v3110 = vand.u32 %v3109, 4294901760
        %3111 = vmatmul.mubr.f32.gmra.mrb[0].mxu0 %v3110
        %v3112 = vpop.f32.mrb[0].mxu0
        %v3113 = vadd.f32 %v2660, %v3112
        %v3114 = vpop.f32.mrb[0].mxu0
        %v3115 = vadd.f32 %v2662, %v3114
        %v3116 = vand.u32 %v858, 4294901760
        %v3117 = vsub.f32 %v858, %v3116
        %v3118 = vand.u32 %v3117, 4294901760
        %3119 = vmatprep.mubr.f32.mxu0 %v3118
        %v3120 = vand.u32 %v857, 4294901760
        %v3121 = vsub.f32 %v857, %v3120
        %v3122 = vand.u32 %v3121, 4294901760
        %3123 = vmatmul.mubr.f32.gmra.mrb[0].mxu0 %v3122
        %v3124 = vpop.f32.mrb[0].mxu0
        %v3125 = vadd.f32 %v2670, %v3124
        %v3126 = vpop.f32.mrb[0].mxu0
        %v3127 = vadd.f32 %v2672, %v3126
        %v3128 = vand.u32 %v862, 4294901760
        %v3129 = vsub.f32 %v862, %v3128
        %v3130 = vand.u32 %v3129, 4294901760
        %3131 = vmatprep.mubr.f32.mxu0 %v3130
        %v3132 = vand.u32 %v861, 4294901760
        %v3133 = vsub.f32 %v861, %v3132
        %v3134 = vand.u32 %v3133, 4294901760
        %3135 = vmatmul.mubr.f32.gmra.mrb[0].mxu0 %v3134
        %v3136 = vpop.f32.mrb[0].mxu0
        %v3137 = vadd.f32 %v2680, %v3136
        %v3138 = vpop.f32.mrb[0].mxu0
        %v3139 = vadd.f32 %v2682, %v3138
        %v3140 = vand.u32 %v866, 4294901760
        %v3141 = vsub.f32 %v866, %v3140
        %v3142 = vand.u32 %v3141, 4294901760
        %3143 = vmatprep.mubr.f32.mxu0 %v3142
        %v3144 = vand.u32 %v865, 4294901760
        %v3145 = vsub.f32 %v865, %v3144
        %v3146 = vand.u32 %v3145, 4294901760
        %3147 = vmatmul.mubr.f32.gmra.mrb[0].mxu0 %v3146
        %v3148 = vpop.f32.mrb[0].mxu0
        %v3149 = vadd.f32 %v2690, %v3148
        %v3150 = vpop.f32.mrb[0].mxu0
        %v3151 = vadd.f32 %v2692, %v3150
        %v3152 = vand.u32 %v870, 4294901760
        %v3153 = vsub.f32 %v870, %v3152
        %v3154 = vand.u32 %v3153, 4294901760
        %3155 = vmatprep.mubr.f32.mxu0 %v3154
        %v3156 = vand.u32 %v869, 4294901760
        %v3157 = vsub.f32 %v869, %v3156
        %v3158 = vand.u32 %v3157, 4294901760
        %3159 = vmatmul.mubr.f32.gmra.mrb[0].mxu0 %v3158
        %v3160 = vpop.f32.mrb[0].mxu0
        %v3161 = vadd.f32 %v2700, %v3160
        %v3162 = vpop.f32.mrb[0].mxu0
        %v3163 = vadd.f32 %v2702, %v3162
        %v3164 = vand.u32 %v874, 4294901760
        %v3165 = vsub.f32 %v874, %v3164
        %v3166 = vand.u32 %v3165, 4294901760
        %3167 = vmatprep.mubr.f32.mxu0 %v3166
        %v3168 = vand.u32 %v873, 4294901760
        %v3169 = vsub.f32 %v873, %v3168
        %v3170 = vand.u32 %v3169, 4294901760
        %3171 = vmatmul.mubr.f32.gmra.mrb[0].mxu0 %v3170
        %v3172 = vpop.f32.mrb[0].mxu0
        %v3173 = vadd.f32 %v2710, %v3172
        %v3174 = vpop.f32.mrb[0].mxu0
        %v3175 = vadd.f32 %v2712, %v3174
        %v3176 = vand.u32 %v878, 4294901760
        %v3177 = vsub.f32 %v878, %v3176
        %v3178 = vand.u32 %v3177, 4294901760
        %3179 = vmatprep.mubr.f32.mxu0 %v3178
        %v3180 = vand.u32 %v877, 4294901760
        %v3181 = vsub.f32 %v877, %v3180
        %v3182 = vand.u32 %v3181, 4294901760
        %3183 = vmatmul.mubr.f32.gmra.mrb[0].mxu0 %v3182
        %v3184 = vpop.f32.mrb[0].mxu0
        %v3185 = vadd.f32 %v2720, %v3184
        %v3186 = vpop.f32.mrb[0].mxu0
        %v3187 = vadd.f32 %v2722, %v3186
        %v3188 = vand.u32 %v882, 4294901760
        %v3189 = vsub.f32 %v882, %v3188
        %v3190 = vand.u32 %v3189, 4294901760
        %3191 = vmatprep.mubr.f32.mxu0 %v3190
        %v3192 = vand.u32 %v881, 4294901760
        %v3193 = vsub.f32 %v881, %v3192
        %v3194 = vand.u32 %v3193, 4294901760
        %3195 = vmatmul.mubr.f32.gmra.mrb[0].mxu0 %v3194
        %v3196 = vpop.f32.mrb[0].mxu0
        %v3197 = vadd.f32 %v2730, %v3196
        %v3198 = vpop.f32.mrb[0].mxu0
        %v3199 = vadd.f32 %v2732, %v3198
        %v3200 = vand.u32 %v886, 4294901760
        %v3201 = vsub.f32 %v886, %v3200
        %v3202 = vand.u32 %v3201, 4294901760
        %3203 = vmatprep.mubr.f32.mxu0 %v3202
        %v3204 = vand.u32 %v885, 4294901760
        %v3205 = vsub.f32 %v885, %v3204
        %v3206 = vand.u32 %v3205, 4294901760
        %3207 = vmatmul.mubr.f32.gmra.mrb[0].mxu0 %v3206
        %v3208 = vpop.f32.mrb[0].mxu0
        %v3209 = vadd.f32 %v2740, %v3208
        %v3210 = vpop.f32.mrb[0].mxu0
        %v3211 = vadd.f32 %v2742, %v3210
        %v3212 = vand.u32 %v890, 4294901760
        %v3213 = vsub.f32 %v890, %v3212
        %v3214 = vand.u32 %v3213, 4294901760
        %3215 = vmatprep.mubr.f32.mxu0 %v3214
        %v3216 = vand.u32 %v889, 4294901760
        %v3217 = vsub.f32 %v889, %v3216
        %v3218 = vand.u32 %v3217, 4294901760
        %3219 = vmatmul.mubr.f32.gmra.mrb[0].mxu0 %v3218
        %v3220 = vpop.f32.mrb[0].mxu0
        %v3221 = vadd.f32 %v2750, %v3220
        %v3222 = vpop.f32.mrb[0].mxu0
        %v3223 = vadd.f32 %v2752, %v3222
        %v3224 = vand.u32 %v894, 4294901760
        %v3225 = vsub.f32 %v894, %v3224
        %v3226 = vand.u32 %v3225, 4294901760
        %3227 = vmatprep.mubr.f32.mxu0 %v3226
        %v3228 = vand.u32 %v893, 4294901760
        %v3229 = vsub.f32 %v893, %v3228
        %v3230 = vand.u32 %v3229, 4294901760
        %3231 = vmatmul.mubr.f32.gmra.mrb[0].mxu0 %v3230
        %v3232 = vpop.f32.mrb[0].mxu0
        %v3233 = vadd.f32 %v2760, %v3232
        %v3234 = vpop.f32.mrb[0].mxu0
        %v3235 = vadd.f32 %v2762, %v3234
        %v3236 = vand.u32 %v898, 4294901760
        %v3237 = vsub.f32 %v898, %v3236
        %v3238 = vand.u32 %v3237, 4294901760
        %3239 = vmatprep.mubr.f32.mxu0 %v3238
        %v3240 = vand.u32 %v897, 4294901760
        %v3241 = vsub.f32 %v897, %v3240
        %v3242 = vand.u32 %v3241, 4294901760
        %3243 = vmatmul.mubr.f32.gmra.mrb[0].mxu0 %v3242
        %v3244 = vpop.f32.mrb[0].mxu0
        %v3245 = vadd.f32 %v2770, %v3244
        %v3246 = vpop.f32.mrb[0].mxu0
        %v3247 = vadd.f32 %v2772, %v3246
        %v3248 = vand.u32 %v902, 4294901760
        %v3249 = vsub.f32 %v902, %v3248
        %v3250 = vand.u32 %v3249, 4294901760
        %3251 = vmatprep.mubr.f32.mxu0 %v3250
        %v3252 = vand.u32 %v901, 4294901760
        %v3253 = vsub.f32 %v901, %v3252
        %v3254 = vand.u32 %v3253, 4294901760
        %3255 = vmatmul.mubr.f32.gmra.mrb[0].mxu0 %v3254
        %v3256 = vpop.f32.mrb[0].mxu0
        %v3257 = vadd.f32 %v2780, %v3256
        %v3258 = vpop.f32.mrb[0].mxu0
        %v3259 = vadd.f32 %v2782, %v3258
        %v3260 = vand.u32 %v906, 4294901760
        %v3261 = vsub.f32 %v906, %v3260
        %v3262 = vand.u32 %v3261, 4294901760
        %3263 = vmatprep.mubr.f32.mxu0 %v3262
        %v3264 = vand.u32 %v905, 4294901760
        %v3265 = vsub.f32 %v905, %v3264
        %v3266 = vand.u32 %v3265, 4294901760
        %3267 = vmatmul.mubr.f32.gmra.mrb[0].mxu0 %v3266
        %v3268 = vpop.f32.mrb[0].mxu0
        %v3269 = vadd.f32 %v2790, %v3268
        %v3270 = vpop.f32.mrb[0].mxu0
        %v3271 = vadd.f32 %v2792, %v3270
        %v3272 = vand.u32 %v910, 4294901760
        %v3273 = vsub.f32 %v910, %v3272
        %v3274 = vand.u32 %v3273, 4294901760
        %3275 = vmatprep.mubr.f32.mxu0 %v3274
        %v3276 = vand.u32 %v909, 4294901760
        %v3277 = vsub.f32 %v909, %v3276
        %v3278 = vand.u32 %v3277, 4294901760
        %3279 = vmatmul.mubr.f32.gmra.mrb[0].mxu0 %v3278
        %v3280 = vpop.f32.mrb[0].mxu0
        %v3281 = vadd.f32 %v2800, %v3280
        %v3282 = vpop.f32.mrb[0].mxu0
        %v3283 = vadd.f32 %v2802, %v3282
        %v3284 = vand.u32 %v914, 4294901760
        %v3285 = vsub.f32 %v914, %v3284
        %v3286 = vand.u32 %v3285, 4294901760
        %3287 = vmatprep.mubr.f32.mxu0 %v3286
        %v3288 = vand.u32 %v913, 4294901760
        %v3289 = vsub.f32 %v913, %v3288
        %v3290 = vand.u32 %v3289, 4294901760
        %3291 = vmatmul.mubr.f32.gmra.mrb[0].mxu0 %v3290
        %v3292 = vpop.f32.mrb[0].mxu0
        %v3293 = vadd.f32 %v2810, %v3292
        %v3294 = vpop.f32.mrb[0].mxu0
        %v3295 = vadd.f32 %v2812, %v3294
        %v3296 = vand.u32 %v918, 4294901760
        %v3297 = vsub.f32 %v918, %v3296
        %v3298 = vand.u32 %v3297, 4294901760
        %3299 = vmatprep.mubr.f32.mxu0 %v3298
        %v3300 = vand.u32 %v917, 4294901760
        %v3301 = vsub.f32 %v917, %v3300
        %v3302 = vand.u32 %v3301, 4294901760
        %3303 = vmatmul.mubr.f32.gmra.mrb[0].mxu0 %v3302
        %v3304 = vpop.f32.mrb[0].mxu0
        %v3305 = vadd.f32 %v2820, %v3304
        %v3306 = vpop.f32.mrb[0].mxu0
        %v3307 = vadd.f32 %v2822, %v3306
        %v3308 = vand.u32 %v922, 4294901760
        %v3309 = vsub.f32 %v922, %v3308
        %v3310 = vand.u32 %v3309, 4294901760
        %3311 = vmatprep.mubr.f32.mxu0 %v3310
        %v3312 = vand.u32 %v921, 4294901760
        %v3313 = vsub.f32 %v921, %v3312
        %v3314 = vand.u32 %v3313, 4294901760
        %3315 = vmatmul.mubr.f32.gmra.mrb[0].mxu0 %v3314
        %v3316 = vpop.f32.mrb[0].mxu0
        %v3317 = vadd.f32 %v2830, %v3316
        %v3318 = vpop.f32.mrb[0].mxu0
        %v3319 = vadd.f32 %v2832, %v3318
        %v3320 = vand.u32 %v926, 4294901760
        %v3321 = vsub.f32 %v926, %v3320
        %v3322 = vand.u32 %v3321, 4294901760
        %3323 = vmatprep.mubr.f32.mxu0 %v3322
        %v3324 = vand.u32 %v925, 4294901760
        %v3325 = vsub.f32 %v925, %v3324
        %v3326 = vand.u32 %v3325, 4294901760
        %3327 = vmatmul.mubr.f32.gmra.mrb[0].mxu0 %v3326
        %v3328 = vpop.f32.mrb[0].mxu0
        %v3329 = vadd.f32 %v2840, %v3328
        %v3330 = vpop.f32.mrb[0].mxu0
        %v3331 = vadd.f32 %v2842, %v3330
        %v3332 = vand.u32 %v930, 4294901760
        %v3333 = vsub.f32 %v930, %v3332
        %v3334 = vand.u32 %v3333, 4294901760
        %3335 = vmatprep.mubr.f32.mxu0 %v3334
        %v3336 = vand.u32 %v929, 4294901760
        %v3337 = vsub.f32 %v929, %v3336
        %v3338 = vand.u32 %v3337, 4294901760
        %3339 = vmatmul.mubr.f32.gmra.mrb[0].mxu0 %v3338
        %v3340 = vpop.f32.mrb[0].mxu0
        %v3341 = vadd.f32 %v2850, %v3340
        %v3342 = vpop.f32.mrb[0].mxu0
        %v3343 = vadd.f32 %v2852, %v3342
        %v3344 = vand.u32 %v934, 4294901760
        %v3345 = vsub.f32 %v934, %v3344
        %v3346 = vand.u32 %v3345, 4294901760
        %3347 = vmatprep.mubr.f32.mxu0 %v3346
        %v3348 = vand.u32 %v933, 4294901760
        %v3349 = vsub.f32 %v933, %v3348
        %v3350 = vand.u32 %v3349, 4294901760
        %3351 = vmatmul.mubr.f32.gmra.mrb[0].mxu0 %v3350
        %v3352 = vpop.f32.mrb[0].mxu0
        %v3353 = vadd.f32 %v2860, %v3352
        %v3354 = vpop.f32.mrb[0].mxu0
        %v3355 = vadd.f32 %v2862, %v3354
        %v3356 = vand.u32 %v938, 4294901760
        %v3357 = vsub.f32 %v938, %v3356
        %v3358 = vand.u32 %v3357, 4294901760
        %3359 = vmatprep.mubr.f32.mxu0 %v3358
        %v3360 = vand.u32 %v937, 4294901760
        %v3361 = vsub.f32 %v937, %v3360
        %v3362 = vand.u32 %v3361, 4294901760
        %3363 = vmatmul.mubr.f32.gmra.mrb[0].mxu0 %v3362
        %v3364 = vpop.f32.mrb[0].mxu0
        %v3365 = vadd.f32 %v2870, %v3364
        %v3366 = vpop.f32.mrb[0].mxu0
        %v3367 = vadd.f32 %v2872, %v3366
        %v3368 = vand.u32 %v942, 4294901760
        %v3369 = vsub.f32 %v942, %v3368
        %v3370 = vand.u32 %v3369, 4294901760
        %3371 = vmatprep.mubr.f32.mxu0 %v3370
        %v3372 = vand.u32 %v941, 4294901760
        %v3373 = vsub.f32 %v941, %v3372
        %v3374 = vand.u32 %v3373, 4294901760
        %3375 = vmatmul.mubr.f32.gmra.mrb[0].mxu0 %v3374
        %v3376 = vpop.f32.mrb[0].mxu0
        %v3377 = vadd.f32 %v2880, %v3376
        %v3378 = vpop.f32.mrb[0].mxu0
        %v3379 = vadd.f32 %v2882, %v3378
        %v3380 = vand.u32 %v946, 4294901760
        %v3381 = vsub.f32 %v946, %v3380
        %v3382 = vand.u32 %v3381, 4294901760
        %3383 = vmatprep.mubr.f32.mxu0 %v3382
        %v3384 = vand.u32 %v945, 4294901760
        %v3385 = vsub.f32 %v945, %v3384
        %v3386 = vand.u32 %v3385, 4294901760
        %3387 = vmatmul.mubr.f32.gmra.mrb[0].mxu0 %v3386
        %v3388 = vpop.f32.mrb[0].mxu0
        %v3389 = vadd.f32 %v2890, %v3388
        %v3390 = vpop.f32.mrb[0].mxu0
        %v3391 = vadd.f32 %v2892, %v3390
        %v3392 = vand.u32 %v950, 4294901760
        %v3393 = vsub.f32 %v950, %v3392
        %v3394 = vand.u32 %v3393, 4294901760
        %3395 = vmatprep.mubr.f32.mxu0 %v3394
        %v3396 = vand.u32 %v949, 4294901760
        %v3397 = vsub.f32 %v949, %v3396
        %v3398 = vand.u32 %v3397, 4294901760
        %3399 = vmatmul.mubr.f32.gmra.mrb[0].mxu0 %v3398
        %v3400 = vpop.f32.mrb[0].mxu0
        %v3401 = vadd.f32 %v2900, %v3400
        %v3402 = vpop.f32.mrb[0].mxu0
        %v3403 = vadd.f32 %v2902, %v3402
        %v3404 = vand.u32 %v954, 4294901760
        %v3405 = vsub.f32 %v954, %v3404
        %v3406 = vand.u32 %v3405, 4294901760
        %3407 = vmatprep.mubr.f32.mxu0 %v3406
        %v3408 = vand.u32 %v953, 4294901760
        %v3409 = vsub.f32 %v953, %v3408
        %v3410 = vand.u32 %v3409, 4294901760
        %3411 = vmatmul.mubr.f32.gmra.mrb[0].mxu0 %v3410
        %v3412 = vpop.f32.mrb[0].mxu0
        %v3413 = vadd.f32 %v2910, %v3412
        %v3414 = vpop.f32.mrb[0].mxu0
        %v3415 = vadd.f32 %v2912, %v3414
        %v3416 = vand.u32 %v958, 4294901760
        %v3417 = vsub.f32 %v958, %v3416
        %v3418 = vand.u32 %v3417, 4294901760
        %3419 = vmatprep.mubr.f32.mxu0 %v3418
        %v3420 = vand.u32 %v957, 4294901760
        %v3421 = vsub.f32 %v957, %v3420
        %v3422 = vand.u32 %v3421, 4294901760
        %3423 = vmatmul.mubr.f32.gmra.mrb[0].mxu0 %v3422
        %v3424 = vpop.f32.mrb[0].mxu0
        %v3425 = vadd.f32 %v2920, %v3424
        %v3426 = vpop.f32.mrb[0].mxu0
        %v3427 = vadd.f32 %v2922, %v3426
        %v3428 = vand.u32 %v962, 4294901760
        %v3429 = vsub.f32 %v962, %v3428
        %v3430 = vand.u32 %v3429, 4294901760
        %3431 = vmatprep.mubr.f32.mxu0 %v3430
        %v3432 = vand.u32 %v961, 4294901760
        %v3433 = vsub.f32 %v961, %v3432
        %v3434 = vand.u32 %v3433, 4294901760
        %3435 = vmatmul.mubr.f32.gmra.mrb[0].mxu0 %v3434
        %v3436 = vpop.f32.mrb[0].mxu0
        %v3437 = vadd.f32 %v2930, %v3436
        %v3438 = vpop.f32.mrb[0].mxu0
        %v3439 = vadd.f32 %v2932, %v3438
        %v3440 = vand.u32 %v966, 4294901760
        %v3441 = vsub.f32 %v966, %v3440
        %v3442 = vand.u32 %v3441, 4294901760
        %3443 = vmatprep.mubr.f32.mxu0 %v3442
        %v3444 = vand.u32 %v965, 4294901760
        %v3445 = vsub.f32 %v965, %v3444
        %v3446 = vand.u32 %v3445, 4294901760
        %3447 = vmatmul.mubr.f32.gmra.mrb[0].mxu0 %v3446
        %v3448 = vpop.f32.mrb[0].mxu0
        %v3449 = vadd.f32 %v2940, %v3448
        %v3450 = vpop.f32.mrb[0].mxu0
        %v3451 = vadd.f32 %v2942, %v3450
        %v3452 = vand.u32 %v970, 4294901760
        %v3453 = vsub.f32 %v970, %v3452
        %v3454 = vand.u32 %v3453, 4294901760
        %3455 = vmatprep.mubr.f32.mxu0 %v3454
        %v3456 = vand.u32 %v969, 4294901760
        %v3457 = vsub.f32 %v969, %v3456
        %v3458 = vand.u32 %v3457, 4294901760
        %3459 = vmatmul.mubr.f32.gmra.mrb[0].mxu0 %v3458
        %v3460 = vpop.f32.mrb[0].mxu0
        %v3461 = vadd.f32 %v2950, %v3460
        %v3462 = vpop.f32.mrb[0].mxu0
        %v3463 = vadd.f32 %v2952, %v3462
        %v3464 = vand.u32 %v974, 4294901760
        %v3465 = vsub.f32 %v974, %v3464
        %v3466 = vand.u32 %v3465, 4294901760
        %3467 = vmatprep.mubr.f32.mxu0 %v3466
        %v3468 = vand.u32 %v973, 4294901760
        %v3469 = vsub.f32 %v973, %v3468
        %v3470 = vand.u32 %v3469, 4294901760
        %3471 = vmatmul.mubr.f32.gmra.mrb[0].mxu0 %v3470
        %v3472 = vpop.f32.mrb[0].mxu0
        %v3473 = vadd.f32 %v2960, %v3472
        %v3474 = vpop.f32.mrb[0].mxu0
        %v3475 = vadd.f32 %v2962, %v3474
        %3476 = vdwg.mxu0
        %v3477 = vand.u32 %v1042, 4294901760
        %v3478 = vsub.f32 %v1042, %v3477
        %v3479 = vand.u32 %v3478, 4294901760
        %3480 = vmatprep.subr.mxu0 %v3479
        %v3481 = vand.u32 %v1041, 4294901760
        %v3482 = vsub.f32 %v1041, %v3481
        %v3483 = vand.u32 %v3482, 4294901760
        %3484 = vmatpush1.xpose.msra.mxu0 %v3483
        %v3485 = vand.u32 %v1046, 4294901760
        %v3486 = vsub.f32 %v1046, %v3485
        %v3487 = vand.u32 %v3486, 4294901760
        %3488 = vmatprep.subr.mxu0 %v3487
        %v3489 = vand.u32 %v1045, 4294901760
        %v3490 = vsub.f32 %v1045, %v3489
        %v3491 = vand.u32 %v3490, 4294901760
        %3492 = vmatpush1.xpose.msra.mxu0 %v3491
        %v3493 = vand.u32 %v1050, 4294901760
        %v3494 = vsub.f32 %v1050, %v3493
        %v3495 = vand.u32 %v3494, 4294901760
        %3496 = vmatprep.subr.mxu0 %v3495
        %v3497 = vand.u32 %v1049, 4294901760
        %v3498 = vsub.f32 %v1049, %v3497
        %v3499 = vand.u32 %v3498, 4294901760
        %3500 = vmatpush1.xpose.msra.mxu0 %v3499
        %v3501 = vand.u32 %v1054, 4294901760
        %v3502 = vsub.f32 %v1054, %v3501
        %v3503 = vand.u32 %v3502, 4294901760
        %3504 = vmatprep.subr.mxu0 %v3503
        %v3505 = vand.u32 %v1053, 4294901760
        %v3506 = vsub.f32 %v1053, %v3505
        %v3507 = vand.u32 %v3506, 4294901760
        %3508 = vmatpush1.xpose.msra.mxu0 %v3507
        %v3509 = vand.u32 %v1058, 4294901760
        %v3510 = vsub.f32 %v1058, %v3509
        %v3511 = vand.u32 %v3510, 4294901760
        %3512 = vmatprep.subr.mxu0 %v3511
        %v3513 = vand.u32 %v1057, 4294901760
        %v3514 = vsub.f32 %v1057, %v3513
        %v3515 = vand.u32 %v3514, 4294901760
        %3516 = vmatpush1.xpose.msra.mxu0 %v3515
        %v3517 = vand.u32 %v1062, 4294901760
        %v3518 = vsub.f32 %v1062, %v3517
        %v3519 = vand.u32 %v3518, 4294901760
        %3520 = vmatprep.subr.mxu0 %v3519
        %v3521 = vand.u32 %v1061, 4294901760
        %v3522 = vsub.f32 %v1061, %v3521
        %v3523 = vand.u32 %v3522, 4294901760
        %3524 = vmatpush1.xpose.msra.mxu0 %v3523
        %v3525 = vand.u32 %v1066, 4294901760
        %v3526 = vsub.f32 %v1066, %v3525
        %v3527 = vand.u32 %v3526, 4294901760
        %3528 = vmatprep.subr.mxu0 %v3527
        %v3529 = vand.u32 %v1065, 4294901760
        %v3530 = vsub.f32 %v1065, %v3529
        %v3531 = vand.u32 %v3530, 4294901760
        %3532 = vmatpush1.xpose.msra.mxu0 %v3531
        %v3533 = vand.u32 %v1070, 4294901760
        %v3534 = vsub.f32 %v1070, %v3533
        %v3535 = vand.u32 %v3534, 4294901760
        %3536 = vmatprep.subr.mxu0 %v3535
        %v3537 = vand.u32 %v1069, 4294901760
        %v3538 = vsub.f32 %v1069, %v3537
        %v3539 = vand.u32 %v3538, 4294901760
        %3540 = vmatpush1.xpose.msra.mxu0 %v3539
        %v3541 = vand.u32 %v1074, 4294901760
        %v3542 = vsub.f32 %v1074, %v3541
        %v3543 = vand.u32 %v3542, 4294901760
        %3544 = vmatprep.subr.mxu0 %v3543
        %v3545 = vand.u32 %v1073, 4294901760
        %v3546 = vsub.f32 %v1073, %v3545
        %v3547 = vand.u32 %v3546, 4294901760
        %3548 = vmatpush1.xpose.msra.mxu0 %v3547
        %v3549 = vand.u32 %v1078, 4294901760
        %v3550 = vsub.f32 %v1078, %v3549
        %v3551 = vand.u32 %v3550, 4294901760
        %3552 = vmatprep.subr.mxu0 %v3551
        %v3553 = vand.u32 %v1077, 4294901760
        %v3554 = vsub.f32 %v1077, %v3553
        %v3555 = vand.u32 %v3554, 4294901760
        %3556 = vmatpush1.xpose.msra.mxu0 %v3555
        %v3557 = vand.u32 %v1082, 4294901760
        %v3558 = vsub.f32 %v1082, %v3557
        %v3559 = vand.u32 %v3558, 4294901760
        %3560 = vmatprep.subr.mxu0 %v3559
        %v3561 = vand.u32 %v1081, 4294901760
        %v3562 = vsub.f32 %v1081, %v3561
        %v3563 = vand.u32 %v3562, 4294901760
        %3564 = vmatpush1.xpose.msra.mxu0 %v3563
        %v3565 = vand.u32 %v1086, 4294901760
        %v3566 = vsub.f32 %v1086, %v3565
        %v3567 = vand.u32 %v3566, 4294901760
        %3568 = vmatprep.subr.mxu0 %v3567
        %v3569 = vand.u32 %v1085, 4294901760
        %v3570 = vsub.f32 %v1085, %v3569
        %v3571 = vand.u32 %v3570, 4294901760
        %3572 = vmatpush1.xpose.msra.mxu0 %v3571
        %v3573 = vand.u32 %v1090, 4294901760
        %v3574 = vsub.f32 %v1090, %v3573
        %v3575 = vand.u32 %v3574, 4294901760
        %3576 = vmatprep.subr.mxu0 %v3575
        %v3577 = vand.u32 %v1089, 4294901760
        %v3578 = vsub.f32 %v1089, %v3577
        %v3579 = vand.u32 %v3578, 4294901760
        %3580 = vmatpush1.xpose.msra.mxu0 %v3579
        %v3581 = vand.u32 %v1094, 4294901760
        %v3582 = vsub.f32 %v1094, %v3581
        %v3583 = vand.u32 %v3582, 4294901760
        %3584 = vmatprep.subr.mxu0 %v3583
        %v3585 = vand.u32 %v1093, 4294901760
        %v3586 = vsub.f32 %v1093, %v3585
        %v3587 = vand.u32 %v3586, 4294901760
        %3588 = vmatpush1.xpose.msra.mxu0 %v3587
        %v3589 = vand.u32 %v1098, 4294901760
        %v3590 = vsub.f32 %v1098, %v3589
        %v3591 = vand.u32 %v3590, 4294901760
        %3592 = vmatprep.subr.mxu0 %v3591
        %v3593 = vand.u32 %v1097, 4294901760
        %v3594 = vsub.f32 %v1097, %v3593
        %v3595 = vand.u32 %v3594, 4294901760
        %3596 = vmatpush1.xpose.msra.mxu0 %v3595
        %v3597 = vand.u32 %v1102, 4294901760
        %v3598 = vsub.f32 %v1102, %v3597
        %v3599 = vand.u32 %v3598, 4294901760
        %3600 = vmatprep.subr.mxu0 %v3599
        %v3601 = vand.u32 %v1101, 4294901760
        %v3602 = vsub.f32 %v1101, %v3601
        %v3603 = vand.u32 %v3602, 4294901760
        %3604 = vmatpush1.xpose.msra.mxu0 %v3603
        %v3605 = vand.u32 %v1106, 4294901760
        %v3606 = vsub.f32 %v1106, %v3605
        %v3607 = vand.u32 %v3606, 4294901760
        %3608 = vmatprep.subr.mxu0 %v3607
        %v3609 = vand.u32 %v1105, 4294901760
        %v3610 = vsub.f32 %v1105, %v3609
        %v3611 = vand.u32 %v3610, 4294901760
        %3612 = vmatpush1.xpose.msra.mxu0 %v3611
        %v3613 = vand.u32 %v1110, 4294901760
        %v3614 = vsub.f32 %v1110, %v3613
        %v3615 = vand.u32 %v3614, 4294901760
        %3616 = vmatprep.subr.mxu0 %v3615
        %v3617 = vand.u32 %v1109, 4294901760
        %v3618 = vsub.f32 %v1109, %v3617
        %v3619 = vand.u32 %v3618, 4294901760
        %3620 = vmatpush1.xpose.msra.mxu0 %v3619
        %v3621 = vand.u32 %v1114, 4294901760
        %v3622 = vsub.f32 %v1114, %v3621
        %v3623 = vand.u32 %v3622, 4294901760
        %3624 = vmatprep.subr.mxu0 %v3623
        %v3625 = vand.u32 %v1113, 4294901760
        %v3626 = vsub.f32 %v1113, %v3625
        %v3627 = vand.u32 %v3626, 4294901760
        %3628 = vmatpush1.xpose.msra.mxu0 %v3627
        %v3629 = vand.u32 %v1118, 4294901760
        %v3630 = vsub.f32 %v1118, %v3629
        %v3631 = vand.u32 %v3630, 4294901760
        %3632 = vmatprep.subr.mxu0 %v3631
        %v3633 = vand.u32 %v1117, 4294901760
        %v3634 = vsub.f32 %v1117, %v3633
        %v3635 = vand.u32 %v3634, 4294901760
        %3636 = vmatpush1.xpose.msra.mxu0 %v3635
        %v3637 = vand.u32 %v1122, 4294901760
        %v3638 = vsub.f32 %v1122, %v3637
        %v3639 = vand.u32 %v3638, 4294901760
        %3640 = vmatprep.subr.mxu0 %v3639
        %v3641 = vand.u32 %v1121, 4294901760
        %v3642 = vsub.f32 %v1121, %v3641
        %v3643 = vand.u32 %v3642, 4294901760
        %3644 = vmatpush1.xpose.msra.mxu0 %v3643
        %v3645 = vand.u32 %v1126, 4294901760
        %v3646 = vsub.f32 %v1126, %v3645
        %v3647 = vand.u32 %v3646, 4294901760
        %3648 = vmatprep.subr.mxu0 %v3647
        %v3649 = vand.u32 %v1125, 4294901760
        %v3650 = vsub.f32 %v1125, %v3649
        %v3651 = vand.u32 %v3650, 4294901760
        %3652 = vmatpush1.xpose.msra.mxu0 %v3651
        %v3653 = vand.u32 %v1130, 4294901760
        %v3654 = vsub.f32 %v1130, %v3653
        %v3655 = vand.u32 %v3654, 4294901760
        %3656 = vmatprep.subr.mxu0 %v3655
        %v3657 = vand.u32 %v1129, 4294901760
        %v3658 = vsub.f32 %v1129, %v3657
        %v3659 = vand.u32 %v3658, 4294901760
        %3660 = vmatpush1.xpose.msra.mxu0 %v3659
        %v3661 = vand.u32 %v1134, 4294901760
        %v3662 = vsub.f32 %v1134, %v3661
        %v3663 = vand.u32 %v3662, 4294901760
        %3664 = vmatprep.subr.mxu0 %v3663
        %v3665 = vand.u32 %v1133, 4294901760
        %v3666 = vsub.f32 %v1133, %v3665
        %v3667 = vand.u32 %v3666, 4294901760
        %3668 = vmatpush1.xpose.msra.mxu0 %v3667
        %v3669 = vand.u32 %v1138, 4294901760
        %v3670 = vsub.f32 %v1138, %v3669
        %v3671 = vand.u32 %v3670, 4294901760
        %3672 = vmatprep.subr.mxu0 %v3671
        %v3673 = vand.u32 %v1137, 4294901760
        %v3674 = vsub.f32 %v1137, %v3673
        %v3675 = vand.u32 %v3674, 4294901760
        %3676 = vmatpush1.xpose.msra.mxu0 %v3675
        %v3677 = vand.u32 %v1142, 4294901760
        %v3678 = vsub.f32 %v1142, %v3677
        %v3679 = vand.u32 %v3678, 4294901760
        %3680 = vmatprep.subr.mxu0 %v3679
        %v3681 = vand.u32 %v1141, 4294901760
        %v3682 = vsub.f32 %v1141, %v3681
        %v3683 = vand.u32 %v3682, 4294901760
        %3684 = vmatpush1.xpose.msra.mxu0 %v3683
        %v3685 = vand.u32 %v1146, 4294901760
        %v3686 = vsub.f32 %v1146, %v3685
        %v3687 = vand.u32 %v3686, 4294901760
        %3688 = vmatprep.subr.mxu0 %v3687
        %v3689 = vand.u32 %v1145, 4294901760
        %v3690 = vsub.f32 %v1145, %v3689
        %v3691 = vand.u32 %v3690, 4294901760
        %3692 = vmatpush1.xpose.msra.mxu0 %v3691
        %v3693 = vand.u32 %v1150, 4294901760
        %v3694 = vsub.f32 %v1150, %v3693
        %v3695 = vand.u32 %v3694, 4294901760
        %3696 = vmatprep.subr.mxu0 %v3695
        %v3697 = vand.u32 %v1149, 4294901760
        %v3698 = vsub.f32 %v1149, %v3697
        %v3699 = vand.u32 %v3698, 4294901760
        %3700 = vmatpush1.xpose.msra.mxu0 %v3699
        %v3701 = vand.u32 %v1154, 4294901760
        %v3702 = vsub.f32 %v1154, %v3701
        %v3703 = vand.u32 %v3702, 4294901760
        %3704 = vmatprep.subr.mxu0 %v3703
        %v3705 = vand.u32 %v1153, 4294901760
        %v3706 = vsub.f32 %v1153, %v3705
        %v3707 = vand.u32 %v3706, 4294901760
        %3708 = vmatpush1.xpose.msra.mxu0 %v3707
        %v3709 = vand.u32 %v1158, 4294901760
        %v3710 = vsub.f32 %v1158, %v3709
        %v3711 = vand.u32 %v3710, 4294901760
        %3712 = vmatprep.subr.mxu0 %v3711
        %v3713 = vand.u32 %v1157, 4294901760
        %v3714 = vsub.f32 %v1157, %v3713
        %v3715 = vand.u32 %v3714, 4294901760
        %3716 = vmatpush1.xpose.msra.mxu0 %v3715
        %v3717 = vand.u32 %v1162, 4294901760
        %v3718 = vsub.f32 %v1162, %v3717
        %v3719 = vand.u32 %v3718, 4294901760
        %3720 = vmatprep.subr.mxu0 %v3719
        %v3721 = vand.u32 %v1161, 4294901760
        %v3722 = vsub.f32 %v1161, %v3721
        %v3723 = vand.u32 %v3722, 4294901760
        %3724 = vmatpush1.xpose.msra.mxu0 %v3723
        %v3725 = vand.u32 %v1166, 4294901760
        %v3726 = vsub.f32 %v1166, %v3725
        %v3727 = vand.u32 %v3726, 4294901760
        %3728 = vmatprep.subr.mxu0 %v3727
        %v3729 = vand.u32 %v1165, 4294901760
        %v3730 = vsub.f32 %v1165, %v3729
        %v3731 = vand.u32 %v3730, 4294901760
        %3732 = vmatpush1.xpose.msra.mxu0 %v3731
        %v3733 = vand.u32 %v850, 4294901760
        %3734 = vmatprep.mubr.f32.mxu0 %v3733
        %v3735 = vand.u32 %v849, 4294901760
        %3736 = vmatmul.mubr.f32.gmra.mrb[0].mxu0 %v3735
        %v3737 = vpop.f32.mrb[0].mxu0
        %v3738 = vadd.f32 %v3101, %v3737
        %v3739 = vpop.f32.mrb[0].mxu0
        %v3740 = vadd.f32 %v3103, %v3739
        %v3741 = vand.u32 %v854, 4294901760
        %3742 = vmatprep.mubr.f32.mxu0 %v3741
        %v3743 = vand.u32 %v853, 4294901760
        %3744 = vmatmul.mubr.f32.gmra.mrb[0].mxu0 %v3743
        %v3745 = vpop.f32.mrb[0].mxu0
        %v3746 = vadd.f32 %v3113, %v3745
        %v3747 = vpop.f32.mrb[0].mxu0
        %v3748 = vadd.f32 %v3115, %v3747
        %v3749 = vand.u32 %v858, 4294901760
        %3750 = vmatprep.mubr.f32.mxu0 %v3749
        %v3751 = vand.u32 %v857, 4294901760
        %3752 = vmatmul.mubr.f32.gmra.mrb[0].mxu0 %v3751
        %v3753 = vpop.f32.mrb[0].mxu0
        %v3754 = vadd.f32 %v3125, %v3753
        %v3755 = vpop.f32.mrb[0].mxu0
        %v3756 = vadd.f32 %v3127, %v3755
        %v3757 = vand.u32 %v862, 4294901760
        %3758 = vmatprep.mubr.f32.mxu0 %v3757
        %v3759 = vand.u32 %v861, 4294901760
        %3760 = vmatmul.mubr.f32.gmra.mrb[0].mxu0 %v3759
        %v3761 = vpop.f32.mrb[0].mxu0
        %v3762 = vadd.f32 %v3137, %v3761
        %v3763 = vpop.f32.mrb[0].mxu0
        %v3764 = vadd.f32 %v3139, %v3763
        %v3765 = vand.u32 %v866, 4294901760
        %3766 = vmatprep.mubr.f32.mxu0 %v3765
        %v3767 = vand.u32 %v865, 4294901760
        %3768 = vmatmul.mubr.f32.gmra.mrb[0].mxu0 %v3767
        %v3769 = vpop.f32.mrb[0].mxu0
        %v3770 = vadd.f32 %v3149, %v3769
        %v3771 = vpop.f32.mrb[0].mxu0
        %v3772 = vadd.f32 %v3151, %v3771
        %v3773 = vand.u32 %v870, 4294901760
        %3774 = vmatprep.mubr.f32.mxu0 %v3773
        %v3775 = vand.u32 %v869, 4294901760
        %3776 = vmatmul.mubr.f32.gmra.mrb[0].mxu0 %v3775
        %v3777 = vpop.f32.mrb[0].mxu0
        %v3778 = vadd.f32 %v3161, %v3777
        %v3779 = vpop.f32.mrb[0].mxu0
        %v3780 = vadd.f32 %v3163, %v3779
        %v3781 = vand.u32 %v874, 4294901760
        %3782 = vmatprep.mubr.f32.mxu0 %v3781
        %v3783 = vand.u32 %v873, 4294901760
        %3784 = vmatmul.mubr.f32.gmra.mrb[0].mxu0 %v3783
        %v3785 = vpop.f32.mrb[0].mxu0
        %v3786 = vadd.f32 %v3173, %v3785
        %v3787 = vpop.f32.mrb[0].mxu0
        %v3788 = vadd.f32 %v3175, %v3787
        %v3789 = vand.u32 %v878, 4294901760
        %3790 = vmatprep.mubr.f32.mxu0 %v3789
        %v3791 = vand.u32 %v877, 4294901760
        %3792 = vmatmul.mubr.f32.gmra.mrb[0].mxu0 %v3791
        %v3793 = vpop.f32.mrb[0].mxu0
        %v3794 = vadd.f32 %v3185, %v3793
        %v3795 = vpop.f32.mrb[0].mxu0
        %v3796 = vadd.f32 %v3187, %v3795
        %v3797 = vand.u32 %v882, 4294901760
        %3798 = vmatprep.mubr.f32.mxu0 %v3797
        %v3799 = vand.u32 %v881, 4294901760
        %3800 = vmatmul.mubr.f32.gmra.mrb[0].mxu0 %v3799
        %v3801 = vpop.f32.mrb[0].mxu0
        %v3802 = vadd.f32 %v3197, %v3801
        %v3803 = vpop.f32.mrb[0].mxu0
        %v3804 = vadd.f32 %v3199, %v3803
        %v3805 = vand.u32 %v886, 4294901760
        %3806 = vmatprep.mubr.f32.mxu0 %v3805
        %v3807 = vand.u32 %v885, 4294901760
        %3808 = vmatmul.mubr.f32.gmra.mrb[0].mxu0 %v3807
        %v3809 = vpop.f32.mrb[0].mxu0
        %v3810 = vadd.f32 %v3209, %v3809
        %v3811 = vpop.f32.mrb[0].mxu0
        %v3812 = vadd.f32 %v3211, %v3811
        %v3813 = vand.u32 %v890, 4294901760
        %3814 = vmatprep.mubr.f32.mxu0 %v3813
        %v3815 = vand.u32 %v889, 4294901760
        %3816 = vmatmul.mubr.f32.gmra.mrb[0].mxu0 %v3815
        %v3817 = vpop.f32.mrb[0].mxu0
        %v3818 = vadd.f32 %v3221, %v3817
        %v3819 = vpop.f32.mrb[0].mxu0
        %v3820 = vadd.f32 %v3223, %v3819
        %v3821 = vand.u32 %v894, 4294901760
        %3822 = vmatprep.mubr.f32.mxu0 %v3821
        %v3823 = vand.u32 %v893, 4294901760
        %3824 = vmatmul.mubr.f32.gmra.mrb[0].mxu0 %v3823
        %v3825 = vpop.f32.mrb[0].mxu0
        %v3826 = vadd.f32 %v3233, %v3825
        %v3827 = vpop.f32.mrb[0].mxu0
        %v3828 = vadd.f32 %v3235, %v3827
        %v3829 = vand.u32 %v898, 4294901760
        %3830 = vmatprep.mubr.f32.mxu0 %v3829
        %v3831 = vand.u32 %v897, 4294901760
        %3832 = vmatmul.mubr.f32.gmra.mrb[0].mxu0 %v3831
        %v3833 = vpop.f32.mrb[0].mxu0
        %v3834 = vadd.f32 %v3245, %v3833
        %v3835 = vpop.f32.mrb[0].mxu0
        %v3836 = vadd.f32 %v3247, %v3835
        %v3837 = vand.u32 %v902, 4294901760
        %3838 = vmatprep.mubr.f32.mxu0 %v3837
        %v3839 = vand.u32 %v901, 4294901760
        %3840 = vmatmul.mubr.f32.gmra.mrb[0].mxu0 %v3839
        %v3841 = vpop.f32.mrb[0].mxu0
        %v3842 = vadd.f32 %v3257, %v3841
        %v3843 = vpop.f32.mrb[0].mxu0
        %v3844 = vadd.f32 %v3259, %v3843
        %v3845 = vand.u32 %v906, 4294901760
        %3846 = vmatprep.mubr.f32.mxu0 %v3845
        %v3847 = vand.u32 %v905, 4294901760
        %3848 = vmatmul.mubr.f32.gmra.mrb[0].mxu0 %v3847
        %v3849 = vpop.f32.mrb[0].mxu0
        %v3850 = vadd.f32 %v3269, %v3849
        %v3851 = vpop.f32.mrb[0].mxu0
        %v3852 = vadd.f32 %v3271, %v3851
        %v3853 = vand.u32 %v910, 4294901760
        %3854 = vmatprep.mubr.f32.mxu0 %v3853
        %v3855 = vand.u32 %v909, 4294901760
        %3856 = vmatmul.mubr.f32.gmra.mrb[0].mxu0 %v3855
        %v3857 = vpop.f32.mrb[0].mxu0
        %v3858 = vadd.f32 %v3281, %v3857
        %v3859 = vpop.f32.mrb[0].mxu0
        %v3860 = vadd.f32 %v3283, %v3859
        %v3861 = vand.u32 %v914, 4294901760
        %3862 = vmatprep.mubr.f32.mxu0 %v3861
        %v3863 = vand.u32 %v913, 4294901760
        %3864 = vmatmul.mubr.f32.gmra.mrb[0].mxu0 %v3863
        %v3865 = vpop.f32.mrb[0].mxu0
        %v3866 = vadd.f32 %v3293, %v3865
        %v3867 = vpop.f32.mrb[0].mxu0
        %v3868 = vadd.f32 %v3295, %v3867
        %v3869 = vand.u32 %v918, 4294901760
        %3870 = vmatprep.mubr.f32.mxu0 %v3869
        %v3871 = vand.u32 %v917, 4294901760
        %3872 = vmatmul.mubr.f32.gmra.mrb[0].mxu0 %v3871
        %v3873 = vpop.f32.mrb[0].mxu0
        %v3874 = vadd.f32 %v3305, %v3873
        %v3875 = vpop.f32.mrb[0].mxu0
        %v3876 = vadd.f32 %v3307, %v3875
        %v3877 = vand.u32 %v922, 4294901760
        %3878 = vmatprep.mubr.f32.mxu0 %v3877
        %v3879 = vand.u32 %v921, 4294901760
        %3880 = vmatmul.mubr.f32.gmra.mrb[0].mxu0 %v3879
        %v3881 = vpop.f32.mrb[0].mxu0
        %v3882 = vadd.f32 %v3317, %v3881
        %v3883 = vpop.f32.mrb[0].mxu0
        %v3884 = vadd.f32 %v3319, %v3883
        %v3885 = vand.u32 %v926, 4294901760
        %3886 = vmatprep.mubr.f32.mxu0 %v3885
        %v3887 = vand.u32 %v925, 4294901760
        %3888 = vmatmul.mubr.f32.gmra.mrb[0].mxu0 %v3887
        %v3889 = vpop.f32.mrb[0].mxu0
        %v3890 = vadd.f32 %v3329, %v3889
        %v3891 = vpop.f32.mrb[0].mxu0
        %v3892 = vadd.f32 %v3331, %v3891
        %v3893 = vand.u32 %v930, 4294901760
        %3894 = vmatprep.mubr.f32.mxu0 %v3893
        %v3895 = vand.u32 %v929, 4294901760
        %3896 = vmatmul.mubr.f32.gmra.mrb[0].mxu0 %v3895
        %v3897 = vpop.f32.mrb[0].mxu0
        %v3898 = vadd.f32 %v3341, %v3897
        %v3899 = vpop.f32.mrb[0].mxu0
        %v3900 = vadd.f32 %v3343, %v3899
        %v3901 = vand.u32 %v934, 4294901760
        %3902 = vmatprep.mubr.f32.mxu0 %v3901
        %v3903 = vand.u32 %v933, 4294901760
        %3904 = vmatmul.mubr.f32.gmra.mrb[0].mxu0 %v3903
        %v3905 = vpop.f32.mrb[0].mxu0
        %v3906 = vadd.f32 %v3353, %v3905
        %v3907 = vpop.f32.mrb[0].mxu0
        %v3908 = vadd.f32 %v3355, %v3907
        %v3909 = vand.u32 %v938, 4294901760
        %3910 = vmatprep.mubr.f32.mxu0 %v3909
        %v3911 = vand.u32 %v937, 4294901760
        %3912 = vmatmul.mubr.f32.gmra.mrb[0].mxu0 %v3911
        %v3913 = vpop.f32.mrb[0].mxu0
        %v3914 = vadd.f32 %v3365, %v3913
        %v3915 = vpop.f32.mrb[0].mxu0
        %v3916 = vadd.f32 %v3367, %v3915
        %v3917 = vand.u32 %v942, 4294901760
        %3918 = vmatprep.mubr.f32.mxu0 %v3917
        %v3919 = vand.u32 %v941, 4294901760
        %3920 = vmatmul.mubr.f32.gmra.mrb[0].mxu0 %v3919
        %v3921 = vpop.f32.mrb[0].mxu0
        %v3922 = vadd.f32 %v3377, %v3921
        %v3923 = vpop.f32.mrb[0].mxu0
        %v3924 = vadd.f32 %v3379, %v3923
        %v3925 = vand.u32 %v946, 4294901760
        %3926 = vmatprep.mubr.f32.mxu0 %v3925
        %v3927 = vand.u32 %v945, 4294901760
        %3928 = vmatmul.mubr.f32.gmra.mrb[0].mxu0 %v3927
        %v3929 = vpop.f32.mrb[0].mxu0
        %v3930 = vadd.f32 %v3389, %v3929
        %v3931 = vpop.f32.mrb[0].mxu0
        %v3932 = vadd.f32 %v3391, %v3931
        %v3933 = vand.u32 %v950, 4294901760
        %3934 = vmatprep.mubr.f32.mxu0 %v3933
        %v3935 = vand.u32 %v949, 4294901760
        %3936 = vmatmul.mubr.f32.gmra.mrb[0].mxu0 %v3935
        %v3937 = vpop.f32.mrb[0].mxu0
        %v3938 = vadd.f32 %v3401, %v3937
        %v3939 = vpop.f32.mrb[0].mxu0
        %v3940 = vadd.f32 %v3403, %v3939
        %v3941 = vand.u32 %v954, 4294901760
        %3942 = vmatprep.mubr.f32.mxu0 %v3941
        %v3943 = vand.u32 %v953, 4294901760
        %3944 = vmatmul.mubr.f32.gmra.mrb[0].mxu0 %v3943
        %v3945 = vpop.f32.mrb[0].mxu0
        %v3946 = vadd.f32 %v3413, %v3945
        %v3947 = vpop.f32.mrb[0].mxu0
        %v3948 = vadd.f32 %v3415, %v3947
        %v3949 = vand.u32 %v958, 4294901760
        %3950 = vmatprep.mubr.f32.mxu0 %v3949
        %v3951 = vand.u32 %v957, 4294901760
        %3952 = vmatmul.mubr.f32.gmra.mrb[0].mxu0 %v3951
        %v3953 = vpop.f32.mrb[0].mxu0
        %v3954 = vadd.f32 %v3425, %v3953
        %v3955 = vpop.f32.mrb[0].mxu0
        %v3956 = vadd.f32 %v3427, %v3955
        %v3957 = vand.u32 %v962, 4294901760
        %3958 = vmatprep.mubr.f32.mxu0 %v3957
        %v3959 = vand.u32 %v961, 4294901760
        %3960 = vmatmul.mubr.f32.gmra.mrb[0].mxu0 %v3959
        %v3961 = vpop.f32.mrb[0].mxu0
        %v3962 = vadd.f32 %v3437, %v3961
        %v3963 = vpop.f32.mrb[0].mxu0
        %v3964 = vadd.f32 %v3439, %v3963
        %v3965 = vand.u32 %v966, 4294901760
        %3966 = vmatprep.mubr.f32.mxu0 %v3965
        %v3967 = vand.u32 %v965, 4294901760
        %3968 = vmatmul.mubr.f32.gmra.mrb[0].mxu0 %v3967
        %v3969 = vpop.f32.mrb[0].mxu0
        %v3970 = vadd.f32 %v3449, %v3969
        %v3971 = vpop.f32.mrb[0].mxu0
        %v3972 = vadd.f32 %v3451, %v3971
        %v3973 = vand.u32 %v970, 4294901760
        %3974 = vmatprep.mubr.f32.mxu0 %v3973
        %v3975 = vand.u32 %v969, 4294901760
        %3976 = vmatmul.mubr.f32.gmra.mrb[0].mxu0 %v3975
        %v3977 = vpop.f32.mrb[0].mxu0
        %v3978 = vadd.f32 %v3461, %v3977
        %v3979 = vpop.f32.mrb[0].mxu0
        %v3980 = vadd.f32 %v3463, %v3979
        %v3981 = vand.u32 %v974, 4294901760
        %3982 = vmatprep.mubr.f32.mxu0 %v3981
        %v3983 = vand.u32 %v973, 4294901760
        %3984 = vmatmul.mubr.f32.gmra.mrb[0].mxu0 %v3983
        %v3985 = vpop.f32.mrb[0].mxu0
        %v3986 = vadd.f32 %v3473, %v3985
        %v3987 = vpop.f32.mrb[0].mxu0
        %v3988 = vadd.f32 %v3475, %v3987
        %3989 = vdwg.mxu0
        %v3990 = vand.u32 %v1042, 4294901760
        %3991 = vmatprep.subr.mxu0 %v3990
        %v3992 = vand.u32 %v1041, 4294901760
        %3993 = vmatpush1.xpose.msra.mxu0 %v3992
        %v3994 = vand.u32 %v1046, 4294901760
        %3995 = vmatprep.subr.mxu0 %v3994
        %v3996 = vand.u32 %v1045, 4294901760
        %3997 = vmatpush1.xpose.msra.mxu0 %v3996
        %v3998 = vand.u32 %v1050, 4294901760
        %3999 = vmatprep.subr.mxu0 %v3998
        %v4000 = vand.u32 %v1049, 4294901760
        %4001 = vmatpush1.xpose.msra.mxu0 %v4000
        %v4002 = vand.u32 %v1054, 4294901760
        %4003 = vmatprep.subr.mxu0 %v4002
        %v4004 = vand.u32 %v1053, 4294901760
        %4005 = vmatpush1.xpose.msra.mxu0 %v4004
        %v4006 = vand.u32 %v1058, 4294901760
        %4007 = vmatprep.subr.mxu0 %v4006
        %v4008 = vand.u32 %v1057, 4294901760
        %4009 = vmatpush1.xpose.msra.mxu0 %v4008
        %v4010 = vand.u32 %v1062, 4294901760
        %4011 = vmatprep.subr.mxu0 %v4010
        %v4012 = vand.u32 %v1061, 4294901760
        %4013 = vmatpush1.xpose.msra.mxu0 %v4012
        %v4014 = vand.u32 %v1066, 4294901760
        %4015 = vmatprep.subr.mxu0 %v4014
        %v4016 = vand.u32 %v1065, 4294901760
        %4017 = vmatpush1.xpose.msra.mxu0 %v4016
        %v4018 = vand.u32 %v1070, 4294901760
        %4019 = vmatprep.subr.mxu0 %v4018
        %v4020 = vand.u32 %v1069, 4294901760
        %4021 = vmatpush1.xpose.msra.mxu0 %v4020
        %v4022 = vand.u32 %v1074, 4294901760
        %4023 = vmatprep.subr.mxu0 %v4022
        %v4024 = vand.u32 %v1073, 4294901760
        %4025 = vmatpush1.xpose.msra.mxu0 %v4024
        %v4026 = vand.u32 %v1078, 4294901760
        %4027 = vmatprep.subr.mxu0 %v4026
        %v4028 = vand.u32 %v1077, 4294901760
        %4029 = vmatpush1.xpose.msra.mxu0 %v4028
        %v4030 = vand.u32 %v1082, 4294901760
        %4031 = vmatprep.subr.mxu0 %v4030
        %v4032 = vand.u32 %v1081, 4294901760
        %4033 = vmatpush1.xpose.msra.mxu0 %v4032
        %v4034 = vand.u32 %v1086, 4294901760
        %4035 = vmatprep.subr.mxu0 %v4034
        %v4036 = vand.u32 %v1085, 4294901760
        %4037 = vmatpush1.xpose.msra.mxu0 %v4036
        %v4038 = vand.u32 %v1090, 4294901760
        %4039 = vmatprep.subr.mxu0 %v4038
        %v4040 = vand.u32 %v1089, 4294901760
        %4041 = vmatpush1.xpose.msra.mxu0 %v4040
        %v4042 = vand.u32 %v1094, 4294901760
        %4043 = vmatprep.subr.mxu0 %v4042
        %v4044 = vand.u32 %v1093, 4294901760
        %4045 = vmatpush1.xpose.msra.mxu0 %v4044
        %v4046 = vand.u32 %v1098, 4294901760
        %4047 = vmatprep.subr.mxu0 %v4046
        %v4048 = vand.u32 %v1097, 4294901760
        %4049 = vmatpush1.xpose.msra.mxu0 %v4048
        %v4050 = vand.u32 %v1102, 4294901760
        %4051 = vmatprep.subr.mxu0 %v4050
        %v4052 = vand.u32 %v1101, 4294901760
        %4053 = vmatpush1.xpose.msra.mxu0 %v4052
        %v4054 = vand.u32 %v1106, 4294901760
        %4055 = vmatprep.subr.mxu0 %v4054
        %v4056 = vand.u32 %v1105, 4294901760
        %4057 = vmatpush1.xpose.msra.mxu0 %v4056
        %v4058 = vand.u32 %v1110, 4294901760
        %4059 = vmatprep.subr.mxu0 %v4058
        %v4060 = vand.u32 %v1109, 4294901760
        %4061 = vmatpush1.xpose.msra.mxu0 %v4060
        %v4062 = vand.u32 %v1114, 4294901760
        %4063 = vmatprep.subr.mxu0 %v4062
        %v4064 = vand.u32 %v1113, 4294901760
        %4065 = vmatpush1.xpose.msra.mxu0 %v4064
        %v4066 = vand.u32 %v1118, 4294901760
        %4067 = vmatprep.subr.mxu0 %v4066
        %v4068 = vand.u32 %v1117, 4294901760
        %4069 = vmatpush1.xpose.msra.mxu0 %v4068
        %v4070 = vand.u32 %v1122, 4294901760
        %4071 = vmatprep.subr.mxu0 %v4070
        %v4072 = vand.u32 %v1121, 4294901760
        %4073 = vmatpush1.xpose.msra.mxu0 %v4072
        %v4074 = vand.u32 %v1126, 4294901760
        %4075 = vmatprep.subr.mxu0 %v4074
        %v4076 = vand.u32 %v1125, 4294901760
        %4077 = vmatpush1.xpose.msra.mxu0 %v4076
        %v4078 = vand.u32 %v1130, 4294901760
        %4079 = vmatprep.subr.mxu0 %v4078
        %v4080 = vand.u32 %v1129, 4294901760
        %4081 = vmatpush1.xpose.msra.mxu0 %v4080
        %v4082 = vand.u32 %v1134, 4294901760
        %4083 = vmatprep.subr.mxu0 %v4082
        %v4084 = vand.u32 %v1133, 4294901760
        %4085 = vmatpush1.xpose.msra.mxu0 %v4084
        %v4086 = vand.u32 %v1138, 4294901760
        %4087 = vmatprep.subr.mxu0 %v4086
        %v4088 = vand.u32 %v1137, 4294901760
        %4089 = vmatpush1.xpose.msra.mxu0 %v4088
        %v4090 = vand.u32 %v1142, 4294901760
        %4091 = vmatprep.subr.mxu0 %v4090
        %v4092 = vand.u32 %v1141, 4294901760
        %4093 = vmatpush1.xpose.msra.mxu0 %v4092
        %v4094 = vand.u32 %v1146, 4294901760
        %4095 = vmatprep.subr.mxu0 %v4094
        %v4096 = vand.u32 %v1145, 4294901760
        %4097 = vmatpush1.xpose.msra.mxu0 %v4096
        %v4098 = vand.u32 %v1150, 4294901760
        %4099 = vmatprep.subr.mxu0 %v4098
        %v4100 = vand.u32 %v1149, 4294901760
        %4101 = vmatpush1.xpose.msra.mxu0 %v4100
        %v4102 = vand.u32 %v1154, 4294901760
        %4103 = vmatprep.subr.mxu0 %v4102
        %v4104 = vand.u32 %v1153, 4294901760
        %4105 = vmatpush1.xpose.msra.mxu0 %v4104
        %v4106 = vand.u32 %v1158, 4294901760
        %4107 = vmatprep.subr.mxu0 %v4106
        %v4108 = vand.u32 %v1157, 4294901760
        %4109 = vmatpush1.xpose.msra.mxu0 %v4108
        %v4110 = vand.u32 %v1162, 4294901760
        %4111 = vmatprep.subr.mxu0 %v4110
        %v4112 = vand.u32 %v1161, 4294901760
        %4113 = vmatpush1.xpose.msra.mxu0 %v4112
        %v4114 = vand.u32 %v1166, 4294901760
        %4115 = vmatprep.subr.mxu0 %v4114
        %v4116 = vand.u32 %v1165, 4294901760
        %4117 = vmatpush1.xpose.msra.mxu0 %v4116
        %v4118 = vand.u32 %v850, 4294901760
        %4119 = vmatprep.mubr.f32.mxu0 %v4118
        %v4120 = vand.u32 %v849, 4294901760
        %4121 = vmatmul.mubr.f32.gmra.mrb[0].mxu0 %v4120
        %v4122 = vpop.f32.mrb[0].mxu0
        %v4123 = vadd.f32 %v3738, %v4122
        %v4124 = vpop.f32.mrb[0].mxu0
        %v4125 = vadd.f32 %v3740, %v4124
        %v4126 = vand.u32 %v854, 4294901760
        %4127 = vmatprep.mubr.f32.mxu0 %v4126
        %v4128 = vand.u32 %v853, 4294901760
        %4129 = vmatmul.mubr.f32.gmra.mrb[0].mxu0 %v4128
        %v4130 = vpop.f32.mrb[0].mxu0
        %v4131 = vadd.f32 %v3746, %v4130
        %v4132 = vpop.f32.mrb[0].mxu0
        %v4133 = vadd.f32 %v3748, %v4132
        %v4134 = vand.u32 %v858, 4294901760
        %4135 = vmatprep.mubr.f32.mxu0 %v4134
        %v4136 = vand.u32 %v857, 4294901760
        %4137 = vmatmul.mubr.f32.gmra.mrb[0].mxu0 %v4136
        %v4138 = vpop.f32.mrb[0].mxu0
        %v4139 = vadd.f32 %v3754, %v4138
        %v4140 = vpop.f32.mrb[0].mxu0
        %v4141 = vadd.f32 %v3756, %v4140
        %v4142 = vand.u32 %v862, 4294901760
        %4143 = vmatprep.mubr.f32.mxu0 %v4142
        %v4144 = vand.u32 %v861, 4294901760
        %4145 = vmatmul.mubr.f32.gmra.mrb[0].mxu0 %v4144
        %v4146 = vpop.f32.mrb[0].mxu0
        %v4147 = vadd.f32 %v3762, %v4146
        %v4148 = vpop.f32.mrb[0].mxu0
        %v4149 = vadd.f32 %v3764, %v4148
        %v4150 = vand.u32 %v866, 4294901760
        %4151 = vmatprep.mubr.f32.mxu0 %v4150
        %v4152 = vand.u32 %v865, 4294901760
        %4153 = vmatmul.mubr.f32.gmra.mrb[0].mxu0 %v4152
        %v4154 = vpop.f32.mrb[0].mxu0
        %v4155 = vadd.f32 %v3770, %v4154
        %v4156 = vpop.f32.mrb[0].mxu0
        %v4157 = vadd.f32 %v3772, %v4156
        %v4158 = vand.u32 %v870, 4294901760
        %4159 = vmatprep.mubr.f32.mxu0 %v4158
        %v4160 = vand.u32 %v869, 4294901760
        %4161 = vmatmul.mubr.f32.gmra.mrb[0].mxu0 %v4160
        %v4162 = vpop.f32.mrb[0].mxu0
        %v4163 = vadd.f32 %v3778, %v4162
        %v4164 = vpop.f32.mrb[0].mxu0
        %v4165 = vadd.f32 %v3780, %v4164
        %v4166 = vand.u32 %v874, 4294901760
        %4167 = vmatprep.mubr.f32.mxu0 %v4166
        %v4168 = vand.u32 %v873, 4294901760
        %4169 = vmatmul.mubr.f32.gmra.mrb[0].mxu0 %v4168
        %v4170 = vpop.f32.mrb[0].mxu0
        %v4171 = vadd.f32 %v3786, %v4170
        %v4172 = vpop.f32.mrb[0].mxu0
        %v4173 = vadd.f32 %v3788, %v4172
        %v4174 = vand.u32 %v878, 4294901760
        %4175 = vmatprep.mubr.f32.mxu0 %v4174
        %v4176 = vand.u32 %v877, 4294901760
        %4177 = vmatmul.mubr.f32.gmra.mrb[0].mxu0 %v4176
        %v4178 = vpop.f32.mrb[0].mxu0
        %v4179 = vadd.f32 %v3794, %v4178
        %v4180 = vpop.f32.mrb[0].mxu0
        %v4181 = vadd.f32 %v3796, %v4180
        %v4182 = vand.u32 %v882, 4294901760
        %4183 = vmatprep.mubr.f32.mxu0 %v4182
        %v4184 = vand.u32 %v881, 4294901760
        %4185 = vmatmul.mubr.f32.gmra.mrb[0].mxu0 %v4184
        %v4186 = vpop.f32.mrb[0].mxu0
        %v4187 = vadd.f32 %v3802, %v4186
        %v4188 = vpop.f32.mrb[0].mxu0
        %v4189 = vadd.f32 %v3804, %v4188
        %v4190 = vand.u32 %v886, 4294901760
        %4191 = vmatprep.mubr.f32.mxu0 %v4190
        %v4192 = vand.u32 %v885, 4294901760
        %4193 = vmatmul.mubr.f32.gmra.mrb[0].mxu0 %v4192
        %v4194 = vpop.f32.mrb[0].mxu0
        %v4195 = vadd.f32 %v3810, %v4194
        %v4196 = vpop.f32.mrb[0].mxu0
        %v4197 = vadd.f32 %v3812, %v4196
        %v4198 = vand.u32 %v890, 4294901760
        %4199 = vmatprep.mubr.f32.mxu0 %v4198
        %v4200 = vand.u32 %v889, 4294901760
        %4201 = vmatmul.mubr.f32.gmra.mrb[0].mxu0 %v4200
        %v4202 = vpop.f32.mrb[0].mxu0
        %v4203 = vadd.f32 %v3818, %v4202
        %v4204 = vpop.f32.mrb[0].mxu0
        %v4205 = vadd.f32 %v3820, %v4204
        %v4206 = vand.u32 %v894, 4294901760
        %4207 = vmatprep.mubr.f32.mxu0 %v4206
        %v4208 = vand.u32 %v893, 4294901760
        %4209 = vmatmul.mubr.f32.gmra.mrb[0].mxu0 %v4208
        %v4210 = vpop.f32.mrb[0].mxu0
        %v4211 = vadd.f32 %v3826, %v4210
        %v4212 = vpop.f32.mrb[0].mxu0
        %v4213 = vadd.f32 %v3828, %v4212
        %v4214 = vand.u32 %v898, 4294901760
        %4215 = vmatprep.mubr.f32.mxu0 %v4214
        %v4216 = vand.u32 %v897, 4294901760
        %4217 = vmatmul.mubr.f32.gmra.mrb[0].mxu0 %v4216
        %v4218 = vpop.f32.mrb[0].mxu0
        %v4219 = vadd.f32 %v3834, %v4218
        %v4220 = vpop.f32.mrb[0].mxu0
        %v4221 = vadd.f32 %v3836, %v4220
        %v4222 = vand.u32 %v902, 4294901760
        %4223 = vmatprep.mubr.f32.mxu0 %v4222
        %v4224 = vand.u32 %v901, 4294901760
        %4225 = vmatmul.mubr.f32.gmra.mrb[0].mxu0 %v4224
        %v4226 = vpop.f32.mrb[0].mxu0
        %v4227 = vadd.f32 %v3842, %v4226
        %v4228 = vpop.f32.mrb[0].mxu0
        %v4229 = vadd.f32 %v3844, %v4228
        %v4230 = vand.u32 %v906, 4294901760
        %4231 = vmatprep.mubr.f32.mxu0 %v4230
        %v4232 = vand.u32 %v905, 4294901760
        %4233 = vmatmul.mubr.f32.gmra.mrb[0].mxu0 %v4232
        %v4234 = vpop.f32.mrb[0].mxu0
        %v4235 = vadd.f32 %v3850, %v4234
        %v4236 = vpop.f32.mrb[0].mxu0
        %v4237 = vadd.f32 %v3852, %v4236
        %v4238 = vand.u32 %v910, 4294901760
        %4239 = vmatprep.mubr.f32.mxu0 %v4238
        %v4240 = vand.u32 %v909, 4294901760
        %4241 = vmatmul.mubr.f32.gmra.mrb[0].mxu0 %v4240
        %v4242 = vpop.f32.mrb[0].mxu0
        %v4243 = vadd.f32 %v3858, %v4242
        %v4244 = vpop.f32.mrb[0].mxu0
        %v4245 = vadd.f32 %v3860, %v4244
        %v4246 = vand.u32 %v914, 4294901760
        %4247 = vmatprep.mubr.f32.mxu0 %v4246
        %v4248 = vand.u32 %v913, 4294901760
        %4249 = vmatmul.mubr.f32.gmra.mrb[0].mxu0 %v4248
        %v4250 = vpop.f32.mrb[0].mxu0
        %v4251 = vadd.f32 %v3866, %v4250
        %v4252 = vpop.f32.mrb[0].mxu0
        %v4253 = vadd.f32 %v3868, %v4252
        %v4254 = vand.u32 %v918, 4294901760
        %4255 = vmatprep.mubr.f32.mxu0 %v4254
        %v4256 = vand.u32 %v917, 4294901760
        %4257 = vmatmul.mubr.f32.gmra.mrb[0].mxu0 %v4256
        %v4258 = vpop.f32.mrb[0].mxu0
        %v4259 = vadd.f32 %v3874, %v4258
        %v4260 = vpop.f32.mrb[0].mxu0
        %v4261 = vadd.f32 %v3876, %v4260
        %v4262 = vand.u32 %v922, 4294901760
        %4263 = vmatprep.mubr.f32.mxu0 %v4262
        %v4264 = vand.u32 %v921, 4294901760
        %4265 = vmatmul.mubr.f32.gmra.mrb[0].mxu0 %v4264
        %v4266 = vpop.f32.mrb[0].mxu0
        %v4267 = vadd.f32 %v3882, %v4266
        %v4268 = vpop.f32.mrb[0].mxu0
        %v4269 = vadd.f32 %v3884, %v4268
        %v4270 = vand.u32 %v926, 4294901760
        %4271 = vmatprep.mubr.f32.mxu0 %v4270
        %v4272 = vand.u32 %v925, 4294901760
        %4273 = vmatmul.mubr.f32.gmra.mrb[0].mxu0 %v4272
        %v4274 = vpop.f32.mrb[0].mxu0
        %v4275 = vadd.f32 %v3890, %v4274
        %v4276 = vpop.f32.mrb[0].mxu0
        %v4277 = vadd.f32 %v3892, %v4276
        %v4278 = vand.u32 %v930, 4294901760
        %4279 = vmatprep.mubr.f32.mxu0 %v4278
        %v4280 = vand.u32 %v929, 4294901760
        %4281 = vmatmul.mubr.f32.gmra.mrb[0].mxu0 %v4280
        %v4282 = vpop.f32.mrb[0].mxu0
        %v4283 = vadd.f32 %v3898, %v4282
        %v4284 = vpop.f32.mrb[0].mxu0
        %v4285 = vadd.f32 %v3900, %v4284
        %v4286 = vand.u32 %v934, 4294901760
        %4287 = vmatprep.mubr.f32.mxu0 %v4286
        %v4288 = vand.u32 %v933, 4294901760
        %4289 = vmatmul.mubr.f32.gmra.mrb[0].mxu0 %v4288
        %v4290 = vpop.f32.mrb[0].mxu0
        %v4291 = vadd.f32 %v3906, %v4290
        %v4292 = vpop.f32.mrb[0].mxu0
        %v4293 = vadd.f32 %v3908, %v4292
        %v4294 = vand.u32 %v938, 4294901760
        %4295 = vmatprep.mubr.f32.mxu0 %v4294
        %v4296 = vand.u32 %v937, 4294901760
        %4297 = vmatmul.mubr.f32.gmra.mrb[0].mxu0 %v4296
        %v4298 = vpop.f32.mrb[0].mxu0
        %v4299 = vadd.f32 %v3914, %v4298
        %v4300 = vpop.f32.mrb[0].mxu0
        %v4301 = vadd.f32 %v3916, %v4300
        %v4302 = vand.u32 %v942, 4294901760
        %4303 = vmatprep.mubr.f32.mxu0 %v4302
        %v4304 = vand.u32 %v941, 4294901760
        %4305 = vmatmul.mubr.f32.gmra.mrb[0].mxu0 %v4304
        %v4306 = vpop.f32.mrb[0].mxu0
        %v4307 = vadd.f32 %v3922, %v4306
        %v4308 = vpop.f32.mrb[0].mxu0
        %v4309 = vadd.f32 %v3924, %v4308
        %v4310 = vand.u32 %v946, 4294901760
        %4311 = vmatprep.mubr.f32.mxu0 %v4310
        %v4312 = vand.u32 %v945, 4294901760
        %4313 = vmatmul.mubr.f32.gmra.mrb[0].mxu0 %v4312
        %v4314 = vpop.f32.mrb[0].mxu0
        %v4315 = vadd.f32 %v3930, %v4314
        %v4316 = vpop.f32.mrb[0].mxu0
        %v4317 = vadd.f32 %v3932, %v4316
        %v4318 = vand.u32 %v950, 4294901760
        %4319 = vmatprep.mubr.f32.mxu0 %v4318
        %v4320 = vand.u32 %v949, 4294901760
        %4321 = vmatmul.mubr.f32.gmra.mrb[0].mxu0 %v4320
        %v4322 = vpop.f32.mrb[0].mxu0
        %v4323 = vadd.f32 %v3938, %v4322
        %v4324 = vpop.f32.mrb[0].mxu0
        %v4325 = vadd.f32 %v3940, %v4324
        %v4326 = vand.u32 %v954, 4294901760
        %4327 = vmatprep.mubr.f32.mxu0 %v4326
        %v4328 = vand.u32 %v953, 4294901760
        %4329 = vmatmul.mubr.f32.gmra.mrb[0].mxu0 %v4328
        %v4330 = vpop.f32.mrb[0].mxu0
        %v4331 = vadd.f32 %v3946, %v4330
        %v4332 = vpop.f32.mrb[0].mxu0
        %v4333 = vadd.f32 %v3948, %v4332
        %v4334 = vand.u32 %v958, 4294901760
        %4335 = vmatprep.mubr.f32.mxu0 %v4334
        %v4336 = vand.u32 %v957, 4294901760
        %4337 = vmatmul.mubr.f32.gmra.mrb[0].mxu0 %v4336
        %v4338 = vpop.f32.mrb[0].mxu0
        %v4339 = vadd.f32 %v3954, %v4338
        %v4340 = vpop.f32.mrb[0].mxu0
        %v4341 = vadd.f32 %v3956, %v4340
        %v4342 = vand.u32 %v962, 4294901760
        %4343 = vmatprep.mubr.f32.mxu0 %v4342
        %v4344 = vand.u32 %v961, 4294901760
        %4345 = vmatmul.mubr.f32.gmra.mrb[0].mxu0 %v4344
        %v4346 = vpop.f32.mrb[0].mxu0
        %v4347 = vadd.f32 %v3962, %v4346
        %v4348 = vpop.f32.mrb[0].mxu0
        %v4349 = vadd.f32 %v3964, %v4348
        %v4350 = vand.u32 %v966, 4294901760
        %4351 = vmatprep.mubr.f32.mxu0 %v4350
        %v4352 = vand.u32 %v965, 4294901760
        %4353 = vmatmul.mubr.f32.gmra.mrb[0].mxu0 %v4352
        %v4354 = vpop.f32.mrb[0].mxu0
        %v4355 = vadd.f32 %v3970, %v4354
        %v4356 = vpop.f32.mrb[0].mxu0
        %v4357 = vadd.f32 %v3972, %v4356
        %v4358 = vand.u32 %v970, 4294901760
        %4359 = vmatprep.mubr.f32.mxu0 %v4358
        %v4360 = vand.u32 %v969, 4294901760
        %4361 = vmatmul.mubr.f32.gmra.mrb[0].mxu0 %v4360
        %v4362 = vpop.f32.mrb[0].mxu0
        %v4363 = vadd.f32 %v3978, %v4362
        %v4364 = vpop.f32.mrb[0].mxu0
        %v4365 = vadd.f32 %v3980, %v4364
        %v4366 = vand.u32 %v974, 4294901760
        %4367 = vmatprep.mubr.f32.mxu0 %v4366
        %v4368 = vand.u32 %v973, 4294901760
        %4369 = vmatmul.mubr.f32.gmra.mrb[0].mxu0 %v4368
        %v4370 = vpop.f32.mrb[0].mxu0
        %v4371 = vadd.f32 %v3986, %v4370
        %v4372 = vpop.f32.mrb[0].mxu0
        %v4373 = vadd.f32 %v3988, %v4372
        %4374 = vdwg.mxu0
        %v4375 = vand.u32 %v1044, 4294901760
        %4376 = vmatprep.subr.mxu0 %v4375
        %v4377 = vand.u32 %v1043, 4294901760
        %4378 = vmatpush1.xpose.msra.mxu0 %v4377
        %v4379 = vand.u32 %v1048, 4294901760
        %4380 = vmatprep.subr.mxu0 %v4379
        %v4381 = vand.u32 %v1047, 4294901760
        %4382 = vmatpush1.xpose.msra.mxu0 %v4381
        %v4383 = vand.u32 %v1052, 4294901760
        %4384 = vmatprep.subr.mxu0 %v4383
        %v4385 = vand.u32 %v1051, 4294901760
        %4386 = vmatpush1.xpose.msra.mxu0 %v4385
        %v4387 = vand.u32 %v1056, 4294901760
        %4388 = vmatprep.subr.mxu0 %v4387
        %v4389 = vand.u32 %v1055, 4294901760
        %4390 = vmatpush1.xpose.msra.mxu0 %v4389
        %v4391 = vand.u32 %v1060, 4294901760
        %4392 = vmatprep.subr.mxu0 %v4391
        %v4393 = vand.u32 %v1059, 4294901760
        %4394 = vmatpush1.xpose.msra.mxu0 %v4393
        %v4395 = vand.u32 %v1064, 4294901760
        %4396 = vmatprep.subr.mxu0 %v4395
        %v4397 = vand.u32 %v1063, 4294901760
        %4398 = vmatpush1.xpose.msra.mxu0 %v4397
        %v4399 = vand.u32 %v1068, 4294901760
        %4400 = vmatprep.subr.mxu0 %v4399
        %v4401 = vand.u32 %v1067, 4294901760
        %4402 = vmatpush1.xpose.msra.mxu0 %v4401
        %v4403 = vand.u32 %v1072, 4294901760
        %4404 = vmatprep.subr.mxu0 %v4403
        %v4405 = vand.u32 %v1071, 4294901760
        %4406 = vmatpush1.xpose.msra.mxu0 %v4405
        %v4407 = vand.u32 %v1076, 4294901760
        %4408 = vmatprep.subr.mxu0 %v4407
        %v4409 = vand.u32 %v1075, 4294901760
        %4410 = vmatpush1.xpose.msra.mxu0 %v4409
        %v4411 = vand.u32 %v1080, 4294901760
        %4412 = vmatprep.subr.mxu0 %v4411
        %v4413 = vand.u32 %v1079, 4294901760
        %4414 = vmatpush1.xpose.msra.mxu0 %v4413
        %v4415 = vand.u32 %v1084, 4294901760
        %4416 = vmatprep.subr.mxu0 %v4415
        %v4417 = vand.u32 %v1083, 4294901760
        %4418 = vmatpush1.xpose.msra.mxu0 %v4417
        %v4419 = vand.u32 %v1088, 4294901760
        %4420 = vmatprep.subr.mxu0 %v4419
        %v4421 = vand.u32 %v1087, 4294901760
        %4422 = vmatpush1.xpose.msra.mxu0 %v4421
        %v4423 = vand.u32 %v1092, 4294901760
        %4424 = vmatprep.subr.mxu0 %v4423
        %v4425 = vand.u32 %v1091, 4294901760
        %4426 = vmatpush1.xpose.msra.mxu0 %v4425
        %v4427 = vand.u32 %v1096, 4294901760
        %4428 = vmatprep.subr.mxu0 %v4427
        %v4429 = vand.u32 %v1095, 4294901760
        %4430 = vmatpush1.xpose.msra.mxu0 %v4429
        %v4431 = vand.u32 %v1100, 4294901760
        %4432 = vmatprep.subr.mxu0 %v4431
        %v4433 = vand.u32 %v1099, 4294901760
        %4434 = vmatpush1.xpose.msra.mxu0 %v4433
        %v4435 = vand.u32 %v1104, 4294901760
        %4436 = vmatprep.subr.mxu0 %v4435
        %v4437 = vand.u32 %v1103, 4294901760
        %4438 = vmatpush1.xpose.msra.mxu0 %v4437
        %v4439 = vand.u32 %v1108, 4294901760
        %4440 = vmatprep.subr.mxu0 %v4439
        %v4441 = vand.u32 %v1107, 4294901760
        %4442 = vmatpush1.xpose.msra.mxu0 %v4441
        %v4443 = vand.u32 %v1112, 4294901760
        %4444 = vmatprep.subr.mxu0 %v4443
        %v4445 = vand.u32 %v1111, 4294901760
        %4446 = vmatpush1.xpose.msra.mxu0 %v4445
        %v4447 = vand.u32 %v1116, 4294901760
        %4448 = vmatprep.subr.mxu0 %v4447
        %v4449 = vand.u32 %v1115, 4294901760
        %4450 = vmatpush1.xpose.msra.mxu0 %v4449
        %v4451 = vand.u32 %v1120, 4294901760
        %4452 = vmatprep.subr.mxu0 %v4451
        %v4453 = vand.u32 %v1119, 4294901760
        %4454 = vmatpush1.xpose.msra.mxu0 %v4453
        %v4455 = vand.u32 %v1124, 4294901760
        %4456 = vmatprep.subr.mxu0 %v4455
        %v4457 = vand.u32 %v1123, 4294901760
        %4458 = vmatpush1.xpose.msra.mxu0 %v4457
        %v4459 = vand.u32 %v1128, 4294901760
        %4460 = vmatprep.subr.mxu0 %v4459
        %v4461 = vand.u32 %v1127, 4294901760
        %4462 = vmatpush1.xpose.msra.mxu0 %v4461
        %v4463 = vand.u32 %v1132, 4294901760
        %4464 = vmatprep.subr.mxu0 %v4463
        %v4465 = vand.u32 %v1131, 4294901760
        %4466 = vmatpush1.xpose.msra.mxu0 %v4465
        %v4467 = vand.u32 %v1136, 4294901760
        %4468 = vmatprep.subr.mxu0 %v4467
        %v4469 = vand.u32 %v1135, 4294901760
        %4470 = vmatpush1.xpose.msra.mxu0 %v4469
        %v4471 = vand.u32 %v1140, 4294901760
        %4472 = vmatprep.subr.mxu0 %v4471
        %v4473 = vand.u32 %v1139, 4294901760
        %4474 = vmatpush1.xpose.msra.mxu0 %v4473
        %v4475 = vand.u32 %v1144, 4294901760
        %4476 = vmatprep.subr.mxu0 %v4475
        %v4477 = vand.u32 %v1143, 4294901760
        %4478 = vmatpush1.xpose.msra.mxu0 %v4477
        %v4479 = vand.u32 %v1148, 4294901760
        %4480 = vmatprep.subr.mxu0 %v4479
        %v4481 = vand.u32 %v1147, 4294901760
        %4482 = vmatpush1.xpose.msra.mxu0 %v4481
        %v4483 = vand.u32 %v1152, 4294901760
        %4484 = vmatprep.subr.mxu0 %v4483
        %v4485 = vand.u32 %v1151, 4294901760
        %4486 = vmatpush1.xpose.msra.mxu0 %v4485
        %v4487 = vand.u32 %v1156, 4294901760
        %4488 = vmatprep.subr.mxu0 %v4487
        %v4489 = vand.u32 %v1155, 4294901760
        %4490 = vmatpush1.xpose.msra.mxu0 %v4489
        %v4491 = vand.u32 %v1160, 4294901760
        %4492 = vmatprep.subr.mxu0 %v4491
        %v4493 = vand.u32 %v1159, 4294901760
        %4494 = vmatpush1.xpose.msra.mxu0 %v4493
        %v4495 = vand.u32 %v1164, 4294901760
        %4496 = vmatprep.subr.mxu0 %v4495
        %v4497 = vand.u32 %v1163, 4294901760
        %4498 = vmatpush1.xpose.msra.mxu0 %v4497
        %v4499 = vand.u32 %v1168, 4294901760
        %4500 = vmatprep.subr.mxu0 %v4499
        %v4501 = vand.u32 %v1167, 4294901760
        %4502 = vmatpush1.xpose.msra.mxu0 %v4501
        %v4503 = vand.u32 %v852, 4294901760
        %v4504 = vsub.f32 %v852, %v4503
        %v4505 = vand.u32 %v4504, 4294901760
        %v4506 = vsub.f32 %v4504, %v4505
        %v4507 = vand.u32 %v4506, 4294901760
        %4508 = vmatprep.mubr.f32.mxu0 %v4507
        %v4509 = vand.u32 %v851, 4294901760
        %v4510 = vsub.f32 %v851, %v4509
        %v4511 = vand.u32 %v4510, 4294901760
        %v4512 = vsub.f32 %v4510, %v4511
        %v4513 = vand.u32 %v4512, 4294901760
        %4514 = vmatmul.mubr.f32.gmra.mrb[0].mxu0 %v4513
        %v4515 = vpop.f32.mrb[0].mxu0
        %v4516 = vadd.f32 %v4123, %v4515
        %v4517 = vpop.f32.mrb[0].mxu0
        %v4518 = vadd.f32 %v4125, %v4517
        %v4519 = vand.u32 %v856, 4294901760
        %v4520 = vsub.f32 %v856, %v4519
        %v4521 = vand.u32 %v4520, 4294901760
        %v4522 = vsub.f32 %v4520, %v4521
        %v4523 = vand.u32 %v4522, 4294901760
        %4524 = vmatprep.mubr.f32.mxu0 %v4523
        %v4525 = vand.u32 %v855, 4294901760
        %v4526 = vsub.f32 %v855, %v4525
        %v4527 = vand.u32 %v4526, 4294901760
        %v4528 = vsub.f32 %v4526, %v4527
        %v4529 = vand.u32 %v4528, 4294901760
        %4530 = vmatmul.mubr.f32.gmra.mrb[0].mxu0 %v4529
        %v4531 = vpop.f32.mrb[0].mxu0
        %v4532 = vadd.f32 %v4131, %v4531
        %v4533 = vpop.f32.mrb[0].mxu0
        %v4534 = vadd.f32 %v4133, %v4533
        %v4535 = vand.u32 %v860, 4294901760
        %v4536 = vsub.f32 %v860, %v4535
        %v4537 = vand.u32 %v4536, 4294901760
        %v4538 = vsub.f32 %v4536, %v4537
        %v4539 = vand.u32 %v4538, 4294901760
        %4540 = vmatprep.mubr.f32.mxu0 %v4539
        %v4541 = vand.u32 %v859, 4294901760
        %v4542 = vsub.f32 %v859, %v4541
        %v4543 = vand.u32 %v4542, 4294901760
        %v4544 = vsub.f32 %v4542, %v4543
        %v4545 = vand.u32 %v4544, 4294901760
        %4546 = vmatmul.mubr.f32.gmra.mrb[0].mxu0 %v4545
        %v4547 = vpop.f32.mrb[0].mxu0
        %v4548 = vadd.f32 %v4139, %v4547
        %v4549 = vpop.f32.mrb[0].mxu0
        %v4550 = vadd.f32 %v4141, %v4549
        %v4551 = vand.u32 %v864, 4294901760
        %v4552 = vsub.f32 %v864, %v4551
        %v4553 = vand.u32 %v4552, 4294901760
        %v4554 = vsub.f32 %v4552, %v4553
        %v4555 = vand.u32 %v4554, 4294901760
        %4556 = vmatprep.mubr.f32.mxu0 %v4555
        %v4557 = vand.u32 %v863, 4294901760
        %v4558 = vsub.f32 %v863, %v4557
        %v4559 = vand.u32 %v4558, 4294901760
        %v4560 = vsub.f32 %v4558, %v4559
        %v4561 = vand.u32 %v4560, 4294901760
        %4562 = vmatmul.mubr.f32.gmra.mrb[0].mxu0 %v4561
        %v4563 = vpop.f32.mrb[0].mxu0
        %v4564 = vadd.f32 %v4147, %v4563
        %v4565 = vpop.f32.mrb[0].mxu0
        %v4566 = vadd.f32 %v4149, %v4565
        %v4567 = vand.u32 %v868, 4294901760
        %v4568 = vsub.f32 %v868, %v4567
        %v4569 = vand.u32 %v4568, 4294901760
        %v4570 = vsub.f32 %v4568, %v4569
        %v4571 = vand.u32 %v4570, 4294901760
        %4572 = vmatprep.mubr.f32.mxu0 %v4571
        %v4573 = vand.u32 %v867, 4294901760
        %v4574 = vsub.f32 %v867, %v4573
        %v4575 = vand.u32 %v4574, 4294901760
        %v4576 = vsub.f32 %v4574, %v4575
        %v4577 = vand.u32 %v4576, 4294901760
        %4578 = vmatmul.mubr.f32.gmra.mrb[0].mxu0 %v4577
        %v4579 = vpop.f32.mrb[0].mxu0
        %v4580 = vadd.f32 %v4155, %v4579
        %v4581 = vpop.f32.mrb[0].mxu0
        %v4582 = vadd.f32 %v4157, %v4581
        %v4583 = vand.u32 %v872, 4294901760
        %v4584 = vsub.f32 %v872, %v4583
        %v4585 = vand.u32 %v4584, 4294901760
        %v4586 = vsub.f32 %v4584, %v4585
        %v4587 = vand.u32 %v4586, 4294901760
        %4588 = vmatprep.mubr.f32.mxu0 %v4587
        %v4589 = vand.u32 %v871, 4294901760
        %v4590 = vsub.f32 %v871, %v4589
        %v4591 = vand.u32 %v4590, 4294901760
        %v4592 = vsub.f32 %v4590, %v4591
        %v4593 = vand.u32 %v4592, 4294901760
        %4594 = vmatmul.mubr.f32.gmra.mrb[0].mxu0 %v4593
        %v4595 = vpop.f32.mrb[0].mxu0
        %v4596 = vadd.f32 %v4163, %v4595
        %v4597 = vpop.f32.mrb[0].mxu0
        %v4598 = vadd.f32 %v4165, %v4597
        %v4599 = vand.u32 %v876, 4294901760
        %v4600 = vsub.f32 %v876, %v4599
        %v4601 = vand.u32 %v4600, 4294901760
        %v4602 = vsub.f32 %v4600, %v4601
        %v4603 = vand.u32 %v4602, 4294901760
        %4604 = vmatprep.mubr.f32.mxu0 %v4603
        %v4605 = vand.u32 %v875, 4294901760
        %v4606 = vsub.f32 %v875, %v4605
        %v4607 = vand.u32 %v4606, 4294901760
        %v4608 = vsub.f32 %v4606, %v4607
        %v4609 = vand.u32 %v4608, 4294901760
        %4610 = vmatmul.mubr.f32.gmra.mrb[0].mxu0 %v4609
        %v4611 = vpop.f32.mrb[0].mxu0
        %v4612 = vadd.f32 %v4171, %v4611
        %v4613 = vpop.f32.mrb[0].mxu0
        %v4614 = vadd.f32 %v4173, %v4613
        %v4615 = vand.u32 %v880, 4294901760
        %v4616 = vsub.f32 %v880, %v4615
        %v4617 = vand.u32 %v4616, 4294901760
        %v4618 = vsub.f32 %v4616, %v4617
        %v4619 = vand.u32 %v4618, 4294901760
        %4620 = vmatprep.mubr.f32.mxu0 %v4619
        %v4621 = vand.u32 %v879, 4294901760
        %v4622 = vsub.f32 %v879, %v4621
        %v4623 = vand.u32 %v4622, 4294901760
        %v4624 = vsub.f32 %v4622, %v4623
        %v4625 = vand.u32 %v4624, 4294901760
        %4626 = vmatmul.mubr.f32.gmra.mrb[0].mxu0 %v4625
        %v4627 = vpop.f32.mrb[0].mxu0
        %v4628 = vadd.f32 %v4179, %v4627
        %v4629 = vpop.f32.mrb[0].mxu0
        %v4630 = vadd.f32 %v4181, %v4629
        %v4631 = vand.u32 %v884, 4294901760
        %v4632 = vsub.f32 %v884, %v4631
        %v4633 = vand.u32 %v4632, 4294901760
        %v4634 = vsub.f32 %v4632, %v4633
        %v4635 = vand.u32 %v4634, 4294901760
        %4636 = vmatprep.mubr.f32.mxu0 %v4635
        %v4637 = vand.u32 %v883, 4294901760
        %v4638 = vsub.f32 %v883, %v4637
        %v4639 = vand.u32 %v4638, 4294901760
        %v4640 = vsub.f32 %v4638, %v4639
        %v4641 = vand.u32 %v4640, 4294901760
        %4642 = vmatmul.mubr.f32.gmra.mrb[0].mxu0 %v4641
        %v4643 = vpop.f32.mrb[0].mxu0
        %v4644 = vadd.f32 %v4187, %v4643
        %v4645 = vpop.f32.mrb[0].mxu0
        %v4646 = vadd.f32 %v4189, %v4645
        %v4647 = vand.u32 %v888, 4294901760
        %v4648 = vsub.f32 %v888, %v4647
        %v4649 = vand.u32 %v4648, 4294901760
        %v4650 = vsub.f32 %v4648, %v4649
        %v4651 = vand.u32 %v4650, 4294901760
        %4652 = vmatprep.mubr.f32.mxu0 %v4651
        %v4653 = vand.u32 %v887, 4294901760
        %v4654 = vsub.f32 %v887, %v4653
        %v4655 = vand.u32 %v4654, 4294901760
        %v4656 = vsub.f32 %v4654, %v4655
        %v4657 = vand.u32 %v4656, 4294901760
        %4658 = vmatmul.mubr.f32.gmra.mrb[0].mxu0 %v4657
        %v4659 = vpop.f32.mrb[0].mxu0
        %v4660 = vadd.f32 %v4195, %v4659
        %v4661 = vpop.f32.mrb[0].mxu0
        %v4662 = vadd.f32 %v4197, %v4661
        %v4663 = vand.u32 %v892, 4294901760
        %v4664 = vsub.f32 %v892, %v4663
        %v4665 = vand.u32 %v4664, 4294901760
        %v4666 = vsub.f32 %v4664, %v4665
        %v4667 = vand.u32 %v4666, 4294901760
        %4668 = vmatprep.mubr.f32.mxu0 %v4667
        %v4669 = vand.u32 %v891, 4294901760
        %v4670 = vsub.f32 %v891, %v4669
        %v4671 = vand.u32 %v4670, 4294901760
        %v4672 = vsub.f32 %v4670, %v4671
        %v4673 = vand.u32 %v4672, 4294901760
        %4674 = vmatmul.mubr.f32.gmra.mrb[0].mxu0 %v4673
        %v4675 = vpop.f32.mrb[0].mxu0
        %v4676 = vadd.f32 %v4203, %v4675
        %v4677 = vpop.f32.mrb[0].mxu0
        %v4678 = vadd.f32 %v4205, %v4677
        %v4679 = vand.u32 %v896, 4294901760
        %v4680 = vsub.f32 %v896, %v4679
        %v4681 = vand.u32 %v4680, 4294901760
        %v4682 = vsub.f32 %v4680, %v4681
        %v4683 = vand.u32 %v4682, 4294901760
        %4684 = vmatprep.mubr.f32.mxu0 %v4683
        %v4685 = vand.u32 %v895, 4294901760
        %v4686 = vsub.f32 %v895, %v4685
        %v4687 = vand.u32 %v4686, 4294901760
        %v4688 = vsub.f32 %v4686, %v4687
        %v4689 = vand.u32 %v4688, 4294901760
        %4690 = vmatmul.mubr.f32.gmra.mrb[0].mxu0 %v4689
        %v4691 = vpop.f32.mrb[0].mxu0
        %v4692 = vadd.f32 %v4211, %v4691
        %v4693 = vpop.f32.mrb[0].mxu0
        %v4694 = vadd.f32 %v4213, %v4693
        %v4695 = vand.u32 %v900, 4294901760
        %v4696 = vsub.f32 %v900, %v4695
        %v4697 = vand.u32 %v4696, 4294901760
        %v4698 = vsub.f32 %v4696, %v4697
        %v4699 = vand.u32 %v4698, 4294901760
        %4700 = vmatprep.mubr.f32.mxu0 %v4699
        %v4701 = vand.u32 %v899, 4294901760
        %v4702 = vsub.f32 %v899, %v4701
        %v4703 = vand.u32 %v4702, 4294901760
        %v4704 = vsub.f32 %v4702, %v4703
        %v4705 = vand.u32 %v4704, 4294901760
        %4706 = vmatmul.mubr.f32.gmra.mrb[0].mxu0 %v4705
        %v4707 = vpop.f32.mrb[0].mxu0
        %v4708 = vadd.f32 %v4219, %v4707
        %v4709 = vpop.f32.mrb[0].mxu0
        %v4710 = vadd.f32 %v4221, %v4709
        %v4711 = vand.u32 %v904, 4294901760
        %v4712 = vsub.f32 %v904, %v4711
        %v4713 = vand.u32 %v4712, 4294901760
        %v4714 = vsub.f32 %v4712, %v4713
        %v4715 = vand.u32 %v4714, 4294901760
        %4716 = vmatprep.mubr.f32.mxu0 %v4715
        %v4717 = vand.u32 %v903, 4294901760
        %v4718 = vsub.f32 %v903, %v4717
        %v4719 = vand.u32 %v4718, 4294901760
        %v4720 = vsub.f32 %v4718, %v4719
        %v4721 = vand.u32 %v4720, 4294901760
        %4722 = vmatmul.mubr.f32.gmra.mrb[0].mxu0 %v4721
        %v4723 = vpop.f32.mrb[0].mxu0
        %v4724 = vadd.f32 %v4227, %v4723
        %v4725 = vpop.f32.mrb[0].mxu0
        %v4726 = vadd.f32 %v4229, %v4725
        %v4727 = vand.u32 %v908, 4294901760
        %v4728 = vsub.f32 %v908, %v4727
        %v4729 = vand.u32 %v4728, 4294901760
        %v4730 = vsub.f32 %v4728, %v4729
        %v4731 = vand.u32 %v4730, 4294901760
        %4732 = vmatprep.mubr.f32.mxu0 %v4731
        %v4733 = vand.u32 %v907, 4294901760
        %v4734 = vsub.f32 %v907, %v4733
        %v4735 = vand.u32 %v4734, 4294901760
        %v4736 = vsub.f32 %v4734, %v4735
        %v4737 = vand.u32 %v4736, 4294901760
        %4738 = vmatmul.mubr.f32.gmra.mrb[0].mxu0 %v4737
        %v4739 = vpop.f32.mrb[0].mxu0
        %v4740 = vadd.f32 %v4235, %v4739
        %v4741 = vpop.f32.mrb[0].mxu0
        %v4742 = vadd.f32 %v4237, %v4741
        %v4743 = vand.u32 %v912, 4294901760
        %v4744 = vsub.f32 %v912, %v4743
        %v4745 = vand.u32 %v4744, 4294901760
        %v4746 = vsub.f32 %v4744, %v4745
        %v4747 = vand.u32 %v4746, 4294901760
        %4748 = vmatprep.mubr.f32.mxu0 %v4747
        %v4749 = vand.u32 %v911, 4294901760
        %v4750 = vsub.f32 %v911, %v4749
        %v4751 = vand.u32 %v4750, 4294901760
        %v4752 = vsub.f32 %v4750, %v4751
        %v4753 = vand.u32 %v4752, 4294901760
        %4754 = vmatmul.mubr.f32.gmra.mrb[0].mxu0 %v4753
        %v4755 = vpop.f32.mrb[0].mxu0
        %v4756 = vadd.f32 %v4243, %v4755
        %v4757 = vpop.f32.mrb[0].mxu0
        %v4758 = vadd.f32 %v4245, %v4757
        %v4759 = vand.u32 %v916, 4294901760
        %v4760 = vsub.f32 %v916, %v4759
        %v4761 = vand.u32 %v4760, 4294901760
        %v4762 = vsub.f32 %v4760, %v4761
        %v4763 = vand.u32 %v4762, 4294901760
        %4764 = vmatprep.mubr.f32.mxu0 %v4763
        %v4765 = vand.u32 %v915, 4294901760
        %v4766 = vsub.f32 %v915, %v4765
        %v4767 = vand.u32 %v4766, 4294901760
        %v4768 = vsub.f32 %v4766, %v4767
        %v4769 = vand.u32 %v4768, 4294901760
        %4770 = vmatmul.mubr.f32.gmra.mrb[0].mxu0 %v4769
        %v4771 = vpop.f32.mrb[0].mxu0
        %v4772 = vadd.f32 %v4251, %v4771
        %v4773 = vpop.f32.mrb[0].mxu0
        %v4774 = vadd.f32 %v4253, %v4773
        %v4775 = vand.u32 %v920, 4294901760
        %v4776 = vsub.f32 %v920, %v4775
        %v4777 = vand.u32 %v4776, 4294901760
        %v4778 = vsub.f32 %v4776, %v4777
        %v4779 = vand.u32 %v4778, 4294901760
        %4780 = vmatprep.mubr.f32.mxu0 %v4779
        %v4781 = vand.u32 %v919, 4294901760
        %v4782 = vsub.f32 %v919, %v4781
        %v4783 = vand.u32 %v4782, 4294901760
        %v4784 = vsub.f32 %v4782, %v4783
        %v4785 = vand.u32 %v4784, 4294901760
        %4786 = vmatmul.mubr.f32.gmra.mrb[0].mxu0 %v4785
        %v4787 = vpop.f32.mrb[0].mxu0
        %v4788 = vadd.f32 %v4259, %v4787
        %v4789 = vpop.f32.mrb[0].mxu0
        %v4790 = vadd.f32 %v4261, %v4789
        %v4791 = vand.u32 %v924, 4294901760
        %v4792 = vsub.f32 %v924, %v4791
        %v4793 = vand.u32 %v4792, 4294901760
        %v4794 = vsub.f32 %v4792, %v4793
        %v4795 = vand.u32 %v4794, 4294901760
        %4796 = vmatprep.mubr.f32.mxu0 %v4795
        %v4797 = vand.u32 %v923, 4294901760
        %v4798 = vsub.f32 %v923, %v4797
        %v4799 = vand.u32 %v4798, 4294901760
        %v4800 = vsub.f32 %v4798, %v4799
        %v4801 = vand.u32 %v4800, 4294901760
        %4802 = vmatmul.mubr.f32.gmra.mrb[0].mxu0 %v4801
        %v4803 = vpop.f32.mrb[0].mxu0
        %v4804 = vadd.f32 %v4267, %v4803
        %v4805 = vpop.f32.mrb[0].mxu0
        %v4806 = vadd.f32 %v4269, %v4805
        %v4807 = vand.u32 %v928, 4294901760
        %v4808 = vsub.f32 %v928, %v4807
        %v4809 = vand.u32 %v4808, 4294901760
        %v4810 = vsub.f32 %v4808, %v4809
        %v4811 = vand.u32 %v4810, 4294901760
        %4812 = vmatprep.mubr.f32.mxu0 %v4811
        %v4813 = vand.u32 %v927, 4294901760
        %v4814 = vsub.f32 %v927, %v4813
        %v4815 = vand.u32 %v4814, 4294901760
        %v4816 = vsub.f32 %v4814, %v4815
        %v4817 = vand.u32 %v4816, 4294901760
        %4818 = vmatmul.mubr.f32.gmra.mrb[0].mxu0 %v4817
        %v4819 = vpop.f32.mrb[0].mxu0
        %v4820 = vadd.f32 %v4275, %v4819
        %v4821 = vpop.f32.mrb[0].mxu0
        %v4822 = vadd.f32 %v4277, %v4821
        %v4823 = vand.u32 %v932, 4294901760
        %v4824 = vsub.f32 %v932, %v4823
        %v4825 = vand.u32 %v4824, 4294901760
        %v4826 = vsub.f32 %v4824, %v4825
        %v4827 = vand.u32 %v4826, 4294901760
        %4828 = vmatprep.mubr.f32.mxu0 %v4827
        %v4829 = vand.u32 %v931, 4294901760
        %v4830 = vsub.f32 %v931, %v4829
        %v4831 = vand.u32 %v4830, 4294901760
        %v4832 = vsub.f32 %v4830, %v4831
        %v4833 = vand.u32 %v4832, 4294901760
        %4834 = vmatmul.mubr.f32.gmra.mrb[0].mxu0 %v4833
        %v4835 = vpop.f32.mrb[0].mxu0
        %v4836 = vadd.f32 %v4283, %v4835
        %v4837 = vpop.f32.mrb[0].mxu0
        %v4838 = vadd.f32 %v4285, %v4837
        %v4839 = vand.u32 %v936, 4294901760
        %v4840 = vsub.f32 %v936, %v4839
        %v4841 = vand.u32 %v4840, 4294901760
        %v4842 = vsub.f32 %v4840, %v4841
        %v4843 = vand.u32 %v4842, 4294901760
        %4844 = vmatprep.mubr.f32.mxu0 %v4843
        %v4845 = vand.u32 %v935, 4294901760
        %v4846 = vsub.f32 %v935, %v4845
        %v4847 = vand.u32 %v4846, 4294901760
        %v4848 = vsub.f32 %v4846, %v4847
        %v4849 = vand.u32 %v4848, 4294901760
        %4850 = vmatmul.mubr.f32.gmra.mrb[0].mxu0 %v4849
        %v4851 = vpop.f32.mrb[0].mxu0
        %v4852 = vadd.f32 %v4291, %v4851
        %v4853 = vpop.f32.mrb[0].mxu0
        %v4854 = vadd.f32 %v4293, %v4853
        %v4855 = vand.u32 %v940, 4294901760
        %v4856 = vsub.f32 %v940, %v4855
        %v4857 = vand.u32 %v4856, 4294901760
        %v4858 = vsub.f32 %v4856, %v4857
        %v4859 = vand.u32 %v4858, 4294901760
        %4860 = vmatprep.mubr.f32.mxu0 %v4859
        %v4861 = vand.u32 %v939, 4294901760
        %v4862 = vsub.f32 %v939, %v4861
        %v4863 = vand.u32 %v4862, 4294901760
        %v4864 = vsub.f32 %v4862, %v4863
        %v4865 = vand.u32 %v4864, 4294901760
        %4866 = vmatmul.mubr.f32.gmra.mrb[0].mxu0 %v4865
        %v4867 = vpop.f32.mrb[0].mxu0
        %v4868 = vadd.f32 %v4299, %v4867
        %v4869 = vpop.f32.mrb[0].mxu0
        %v4870 = vadd.f32 %v4301, %v4869
        %v4871 = vand.u32 %v944, 4294901760
        %v4872 = vsub.f32 %v944, %v4871
        %v4873 = vand.u32 %v4872, 4294901760
        %v4874 = vsub.f32 %v4872, %v4873
        %v4875 = vand.u32 %v4874, 4294901760
        %4876 = vmatprep.mubr.f32.mxu0 %v4875
        %v4877 = vand.u32 %v943, 4294901760
        %v4878 = vsub.f32 %v943, %v4877
        %v4879 = vand.u32 %v4878, 4294901760
        %v4880 = vsub.f32 %v4878, %v4879
        %v4881 = vand.u32 %v4880, 4294901760
        %4882 = vmatmul.mubr.f32.gmra.mrb[0].mxu0 %v4881
        %v4883 = vpop.f32.mrb[0].mxu0
        %v4884 = vadd.f32 %v4307, %v4883
        %v4885 = vpop.f32.mrb[0].mxu0
        %v4886 = vadd.f32 %v4309, %v4885
        %v4887 = vand.u32 %v948, 4294901760
        %v4888 = vsub.f32 %v948, %v4887
        %v4889 = vand.u32 %v4888, 4294901760
        %v4890 = vsub.f32 %v4888, %v4889
        %v4891 = vand.u32 %v4890, 4294901760
        %4892 = vmatprep.mubr.f32.mxu0 %v4891
        %v4893 = vand.u32 %v947, 4294901760
        %v4894 = vsub.f32 %v947, %v4893
        %v4895 = vand.u32 %v4894, 4294901760
        %v4896 = vsub.f32 %v4894, %v4895
        %v4897 = vand.u32 %v4896, 4294901760
        %4898 = vmatmul.mubr.f32.gmra.mrb[0].mxu0 %v4897
        %v4899 = vpop.f32.mrb[0].mxu0
        %v4900 = vadd.f32 %v4315, %v4899
        %v4901 = vpop.f32.mrb[0].mxu0
        %v4902 = vadd.f32 %v4317, %v4901
        %v4903 = vand.u32 %v952, 4294901760
        %v4904 = vsub.f32 %v952, %v4903
        %v4905 = vand.u32 %v4904, 4294901760
        %v4906 = vsub.f32 %v4904, %v4905
        %v4907 = vand.u32 %v4906, 4294901760
        %4908 = vmatprep.mubr.f32.mxu0 %v4907
        %v4909 = vand.u32 %v951, 4294901760
        %v4910 = vsub.f32 %v951, %v4909
        %v4911 = vand.u32 %v4910, 4294901760
        %v4912 = vsub.f32 %v4910, %v4911
        %v4913 = vand.u32 %v4912, 4294901760
        %4914 = vmatmul.mubr.f32.gmra.mrb[0].mxu0 %v4913
        %v4915 = vpop.f32.mrb[0].mxu0
        %v4916 = vadd.f32 %v4323, %v4915
        %v4917 = vpop.f32.mrb[0].mxu0
        %v4918 = vadd.f32 %v4325, %v4917
        %v4919 = vand.u32 %v956, 4294901760
        %v4920 = vsub.f32 %v956, %v4919
        %v4921 = vand.u32 %v4920, 4294901760
        %v4922 = vsub.f32 %v4920, %v4921
        %v4923 = vand.u32 %v4922, 4294901760
        %4924 = vmatprep.mubr.f32.mxu0 %v4923
        %v4925 = vand.u32 %v955, 4294901760
        %v4926 = vsub.f32 %v955, %v4925
        %v4927 = vand.u32 %v4926, 4294901760
        %v4928 = vsub.f32 %v4926, %v4927
        %v4929 = vand.u32 %v4928, 4294901760
        %4930 = vmatmul.mubr.f32.gmra.mrb[0].mxu0 %v4929
        %v4931 = vpop.f32.mrb[0].mxu0
        %v4932 = vadd.f32 %v4331, %v4931
        %v4933 = vpop.f32.mrb[0].mxu0
        %v4934 = vadd.f32 %v4333, %v4933
        %v4935 = vand.u32 %v960, 4294901760
        %v4936 = vsub.f32 %v960, %v4935
        %v4937 = vand.u32 %v4936, 4294901760
        %v4938 = vsub.f32 %v4936, %v4937
        %v4939 = vand.u32 %v4938, 4294901760
        %4940 = vmatprep.mubr.f32.mxu0 %v4939
        %v4941 = vand.u32 %v959, 4294901760
        %v4942 = vsub.f32 %v959, %v4941
        %v4943 = vand.u32 %v4942, 4294901760
        %v4944 = vsub.f32 %v4942, %v4943
        %v4945 = vand.u32 %v4944, 4294901760
        %4946 = vmatmul.mubr.f32.gmra.mrb[0].mxu0 %v4945
        %v4947 = vpop.f32.mrb[0].mxu0
        %v4948 = vadd.f32 %v4339, %v4947
        %v4949 = vpop.f32.mrb[0].mxu0
        %v4950 = vadd.f32 %v4341, %v4949
        %v4951 = vand.u32 %v964, 4294901760
        %v4952 = vsub.f32 %v964, %v4951
        %v4953 = vand.u32 %v4952, 4294901760
        %v4954 = vsub.f32 %v4952, %v4953
        %v4955 = vand.u32 %v4954, 4294901760
        %4956 = vmatprep.mubr.f32.mxu0 %v4955
        %v4957 = vand.u32 %v963, 4294901760
        %v4958 = vsub.f32 %v963, %v4957
        %v4959 = vand.u32 %v4958, 4294901760
        %v4960 = vsub.f32 %v4958, %v4959
        %v4961 = vand.u32 %v4960, 4294901760
        %4962 = vmatmul.mubr.f32.gmra.mrb[0].mxu0 %v4961
        %v4963 = vpop.f32.mrb[0].mxu0
        %v4964 = vadd.f32 %v4347, %v4963
        %v4965 = vpop.f32.mrb[0].mxu0
        %v4966 = vadd.f32 %v4349, %v4965
        %v4967 = vand.u32 %v968, 4294901760
        %v4968 = vsub.f32 %v968, %v4967
        %v4969 = vand.u32 %v4968, 4294901760
        %v4970 = vsub.f32 %v4968, %v4969
        %v4971 = vand.u32 %v4970, 4294901760
        %4972 = vmatprep.mubr.f32.mxu0 %v4971
        %v4973 = vand.u32 %v967, 4294901760
        %v4974 = vsub.f32 %v967, %v4973
        %v4975 = vand.u32 %v4974, 4294901760
        %v4976 = vsub.f32 %v4974, %v4975
        %v4977 = vand.u32 %v4976, 4294901760
        %4978 = vmatmul.mubr.f32.gmra.mrb[0].mxu0 %v4977
        %v4979 = vpop.f32.mrb[0].mxu0
        %v4980 = vadd.f32 %v4355, %v4979
        %v4981 = vpop.f32.mrb[0].mxu0
        %v4982 = vadd.f32 %v4357, %v4981
        %v4983 = vand.u32 %v972, 4294901760
        %v4984 = vsub.f32 %v972, %v4983
        %v4985 = vand.u32 %v4984, 4294901760
        %v4986 = vsub.f32 %v4984, %v4985
        %v4987 = vand.u32 %v4986, 4294901760
        %4988 = vmatprep.mubr.f32.mxu0 %v4987
        %v4989 = vand.u32 %v971, 4294901760
        %v4990 = vsub.f32 %v971, %v4989
        %v4991 = vand.u32 %v4990, 4294901760
        %v4992 = vsub.f32 %v4990, %v4991
        %v4993 = vand.u32 %v4992, 4294901760
        %4994 = vmatmul.mubr.f32.gmra.mrb[0].mxu0 %v4993
        %v4995 = vpop.f32.mrb[0].mxu0
        %v4996 = vadd.f32 %v4363, %v4995
        %v4997 = vpop.f32.mrb[0].mxu0
        %v4998 = vadd.f32 %v4365, %v4997
        %v4999 = vand.u32 %v976, 4294901760
        %v5000 = vsub.f32 %v976, %v4999
        %v5001 = vand.u32 %v5000, 4294901760
        %v5002 = vsub.f32 %v5000, %v5001
        %v5003 = vand.u32 %v5002, 4294901760
        %5004 = vmatprep.mubr.f32.mxu0 %v5003
        %v5005 = vand.u32 %v975, 4294901760
        %v5006 = vsub.f32 %v975, %v5005
        %v5007 = vand.u32 %v5006, 4294901760
        %v5008 = vsub.f32 %v5006, %v5007
        %v5009 = vand.u32 %v5008, 4294901760
        %5010 = vmatmul.mubr.f32.gmra.mrb[0].mxu0 %v5009
        %v5011 = vpop.f32.mrb[0].mxu0
        %v5012 = vadd.f32 %v4371, %v5011
        %v5013 = vpop.f32.mrb[0].mxu0
        %v5014 = vadd.f32 %v4373, %v5013
        %5015 = vdwg.mxu0
        %v5016 = vand.u32 %v1044, 4294901760
        %v5017 = vsub.f32 %v1044, %v5016
        %v5018 = vand.u32 %v5017, 4294901760
        %v5019 = vsub.f32 %v5017, %v5018
        %v5020 = vand.u32 %v5019, 4294901760
        %5021 = vmatprep.subr.mxu0 %v5020
        %v5022 = vand.u32 %v1043, 4294901760
        %v5023 = vsub.f32 %v1043, %v5022
        %v5024 = vand.u32 %v5023, 4294901760
        %v5025 = vsub.f32 %v5023, %v5024
        %v5026 = vand.u32 %v5025, 4294901760
        %5027 = vmatpush1.xpose.msra.mxu0 %v5026
        %v5028 = vand.u32 %v1048, 4294901760
        %v5029 = vsub.f32 %v1048, %v5028
        %v5030 = vand.u32 %v5029, 4294901760
        %v5031 = vsub.f32 %v5029, %v5030
        %v5032 = vand.u32 %v5031, 4294901760
        %5033 = vmatprep.subr.mxu0 %v5032
        %v5034 = vand.u32 %v1047, 4294901760
        %v5035 = vsub.f32 %v1047, %v5034
        %v5036 = vand.u32 %v5035, 4294901760
        %v5037 = vsub.f32 %v5035, %v5036
        %v5038 = vand.u32 %v5037, 4294901760
        %5039 = vmatpush1.xpose.msra.mxu0 %v5038
        %v5040 = vand.u32 %v1052, 4294901760
        %v5041 = vsub.f32 %v1052, %v5040
        %v5042 = vand.u32 %v5041, 4294901760
        %v5043 = vsub.f32 %v5041, %v5042
        %v5044 = vand.u32 %v5043, 4294901760
        %5045 = vmatprep.subr.mxu0 %v5044
        %v5046 = vand.u32 %v1051, 4294901760
        %v5047 = vsub.f32 %v1051, %v5046
        %v5048 = vand.u32 %v5047, 4294901760
        %v5049 = vsub.f32 %v5047, %v5048
        %v5050 = vand.u32 %v5049, 4294901760
        %5051 = vmatpush1.xpose.msra.mxu0 %v5050
        %v5052 = vand.u32 %v1056, 4294901760
        %v5053 = vsub.f32 %v1056, %v5052
        %v5054 = vand.u32 %v5053, 4294901760
        %v5055 = vsub.f32 %v5053, %v5054
        %v5056 = vand.u32 %v5055, 4294901760
        %5057 = vmatprep.subr.mxu0 %v5056
        %v5058 = vand.u32 %v1055, 4294901760
        %v5059 = vsub.f32 %v1055, %v5058
        %v5060 = vand.u32 %v5059, 4294901760
        %v5061 = vsub.f32 %v5059, %v5060
        %v5062 = vand.u32 %v5061, 4294901760
        %5063 = vmatpush1.xpose.msra.mxu0 %v5062
        %v5064 = vand.u32 %v1060, 4294901760
        %v5065 = vsub.f32 %v1060, %v5064
        %v5066 = vand.u32 %v5065, 4294901760
        %v5067 = vsub.f32 %v5065, %v5066
        %v5068 = vand.u32 %v5067, 4294901760
        %5069 = vmatprep.subr.mxu0 %v5068
        %v5070 = vand.u32 %v1059, 4294901760
        %v5071 = vsub.f32 %v1059, %v5070
        %v5072 = vand.u32 %v5071, 4294901760
        %v5073 = vsub.f32 %v5071, %v5072
        %v5074 = vand.u32 %v5073, 4294901760
        %5075 = vmatpush1.xpose.msra.mxu0 %v5074
        %v5076 = vand.u32 %v1064, 4294901760
        %v5077 = vsub.f32 %v1064, %v5076
        %v5078 = vand.u32 %v5077, 4294901760
        %v5079 = vsub.f32 %v5077, %v5078
        %v5080 = vand.u32 %v5079, 4294901760
        %5081 = vmatprep.subr.mxu0 %v5080
        %v5082 = vand.u32 %v1063, 4294901760
        %v5083 = vsub.f32 %v1063, %v5082
        %v5084 = vand.u32 %v5083, 4294901760
        %v5085 = vsub.f32 %v5083, %v5084
        %v5086 = vand.u32 %v5085, 4294901760
        %5087 = vmatpush1.xpose.msra.mxu0 %v5086
        %v5088 = vand.u32 %v1068, 4294901760
        %v5089 = vsub.f32 %v1068, %v5088
        %v5090 = vand.u32 %v5089, 4294901760
        %v5091 = vsub.f32 %v5089, %v5090
        %v5092 = vand.u32 %v5091, 4294901760
        %5093 = vmatprep.subr.mxu0 %v5092
        %v5094 = vand.u32 %v1067, 4294901760
        %v5095 = vsub.f32 %v1067, %v5094
        %v5096 = vand.u32 %v5095, 4294901760
        %v5097 = vsub.f32 %v5095, %v5096
        %v5098 = vand.u32 %v5097, 4294901760
        %5099 = vmatpush1.xpose.msra.mxu0 %v5098
        %v5100 = vand.u32 %v1072, 4294901760
        %v5101 = vsub.f32 %v1072, %v5100
        %v5102 = vand.u32 %v5101, 4294901760
        %v5103 = vsub.f32 %v5101, %v5102
        %v5104 = vand.u32 %v5103, 4294901760
        %5105 = vmatprep.subr.mxu0 %v5104
        %v5106 = vand.u32 %v1071, 4294901760
        %v5107 = vsub.f32 %v1071, %v5106
        %v5108 = vand.u32 %v5107, 4294901760
        %v5109 = vsub.f32 %v5107, %v5108
        %v5110 = vand.u32 %v5109, 4294901760
        %5111 = vmatpush1.xpose.msra.mxu0 %v5110
        %v5112 = vand.u32 %v1076, 4294901760
        %v5113 = vsub.f32 %v1076, %v5112
        %v5114 = vand.u32 %v5113, 4294901760
        %v5115 = vsub.f32 %v5113, %v5114
        %v5116 = vand.u32 %v5115, 4294901760
        %5117 = vmatprep.subr.mxu0 %v5116
        %v5118 = vand.u32 %v1075, 4294901760
        %v5119 = vsub.f32 %v1075, %v5118
        %v5120 = vand.u32 %v5119, 4294901760
        %v5121 = vsub.f32 %v5119, %v5120
        %v5122 = vand.u32 %v5121, 4294901760
        %5123 = vmatpush1.xpose.msra.mxu0 %v5122
        %v5124 = vand.u32 %v1080, 4294901760
        %v5125 = vsub.f32 %v1080, %v5124
        %v5126 = vand.u32 %v5125, 4294901760
        %v5127 = vsub.f32 %v5125, %v5126
        %v5128 = vand.u32 %v5127, 4294901760
        %5129 = vmatprep.subr.mxu0 %v5128
        %v5130 = vand.u32 %v1079, 4294901760
        %v5131 = vsub.f32 %v1079, %v5130
        %v5132 = vand.u32 %v5131, 4294901760
        %v5133 = vsub.f32 %v5131, %v5132
        %v5134 = vand.u32 %v5133, 4294901760
        %5135 = vmatpush1.xpose.msra.mxu0 %v5134
        %v5136 = vand.u32 %v1084, 4294901760
        %v5137 = vsub.f32 %v1084, %v5136
        %v5138 = vand.u32 %v5137, 4294901760
        %v5139 = vsub.f32 %v5137, %v5138
        %v5140 = vand.u32 %v5139, 4294901760
        %5141 = vmatprep.subr.mxu0 %v5140
        %v5142 = vand.u32 %v1083, 4294901760
        %v5143 = vsub.f32 %v1083, %v5142
        %v5144 = vand.u32 %v5143, 4294901760
        %v5145 = vsub.f32 %v5143, %v5144
        %v5146 = vand.u32 %v5145, 4294901760
        %5147 = vmatpush1.xpose.msra.mxu0 %v5146
        %v5148 = vand.u32 %v1088, 4294901760
        %v5149 = vsub.f32 %v1088, %v5148
        %v5150 = vand.u32 %v5149, 4294901760
        %v5151 = vsub.f32 %v5149, %v5150
        %v5152 = vand.u32 %v5151, 4294901760
        %5153 = vmatprep.subr.mxu0 %v5152
        %v5154 = vand.u32 %v1087, 4294901760
        %v5155 = vsub.f32 %v1087, %v5154
        %v5156 = vand.u32 %v5155, 4294901760
        %v5157 = vsub.f32 %v5155, %v5156
        %v5158 = vand.u32 %v5157, 4294901760
        %5159 = vmatpush1.xpose.msra.mxu0 %v5158
        %v5160 = vand.u32 %v1092, 4294901760
        %v5161 = vsub.f32 %v1092, %v5160
        %v5162 = vand.u32 %v5161, 4294901760
        %v5163 = vsub.f32 %v5161, %v5162
        %v5164 = vand.u32 %v5163, 4294901760
        %5165 = vmatprep.subr.mxu0 %v5164
        %v5166 = vand.u32 %v1091, 4294901760
        %v5167 = vsub.f32 %v1091, %v5166
        %v5168 = vand.u32 %v5167, 4294901760
        %v5169 = vsub.f32 %v5167, %v5168
        %v5170 = vand.u32 %v5169, 4294901760
        %5171 = vmatpush1.xpose.msra.mxu0 %v5170
        %v5172 = vand.u32 %v1096, 4294901760
        %v5173 = vsub.f32 %v1096, %v5172
        %v5174 = vand.u32 %v5173, 4294901760
        %v5175 = vsub.f32 %v5173, %v5174
        %v5176 = vand.u32 %v5175, 4294901760
        %5177 = vmatprep.subr.mxu0 %v5176
        %v5178 = vand.u32 %v1095, 4294901760
        %v5179 = vsub.f32 %v1095, %v5178
        %v5180 = vand.u32 %v5179, 4294901760
        %v5181 = vsub.f32 %v5179, %v5180
        %v5182 = vand.u32 %v5181, 4294901760
        %5183 = vmatpush1.xpose.msra.mxu0 %v5182
        %v5184 = vand.u32 %v1100, 4294901760
        %v5185 = vsub.f32 %v1100, %v5184
        %v5186 = vand.u32 %v5185, 4294901760
        %v5187 = vsub.f32 %v5185, %v5186
        %v5188 = vand.u32 %v5187, 4294901760
        %5189 = vmatprep.subr.mxu0 %v5188
        %v5190 = vand.u32 %v1099, 4294901760
        %v5191 = vsub.f32 %v1099, %v5190
        %v5192 = vand.u32 %v5191, 4294901760
        %v5193 = vsub.f32 %v5191, %v5192
        %v5194 = vand.u32 %v5193, 4294901760
        %5195 = vmatpush1.xpose.msra.mxu0 %v5194
        %v5196 = vand.u32 %v1104, 4294901760
        %v5197 = vsub.f32 %v1104, %v5196
        %v5198 = vand.u32 %v5197, 4294901760
        %v5199 = vsub.f32 %v5197, %v5198
        %v5200 = vand.u32 %v5199, 4294901760
        %5201 = vmatprep.subr.mxu0 %v5200
        %v5202 = vand.u32 %v1103, 4294901760
        %v5203 = vsub.f32 %v1103, %v5202
        %v5204 = vand.u32 %v5203, 4294901760
        %v5205 = vsub.f32 %v5203, %v5204
        %v5206 = vand.u32 %v5205, 4294901760
        %5207 = vmatpush1.xpose.msra.mxu0 %v5206
        %v5208 = vand.u32 %v1108, 4294901760
        %v5209 = vsub.f32 %v1108, %v5208
        %v5210 = vand.u32 %v5209, 4294901760
        %v5211 = vsub.f32 %v5209, %v5210
        %v5212 = vand.u32 %v5211, 4294901760
        %5213 = vmatprep.subr.mxu0 %v5212
        %v5214 = vand.u32 %v1107, 4294901760
        %v5215 = vsub.f32 %v1107, %v5214
        %v5216 = vand.u32 %v5215, 4294901760
        %v5217 = vsub.f32 %v5215, %v5216
        %v5218 = vand.u32 %v5217, 4294901760
        %5219 = vmatpush1.xpose.msra.mxu0 %v5218
        %v5220 = vand.u32 %v1112, 4294901760
        %v5221 = vsub.f32 %v1112, %v5220
        %v5222 = vand.u32 %v5221, 4294901760
        %v5223 = vsub.f32 %v5221, %v5222
        %v5224 = vand.u32 %v5223, 4294901760
        %5225 = vmatprep.subr.mxu0 %v5224
        %v5226 = vand.u32 %v1111, 4294901760
        %v5227 = vsub.f32 %v1111, %v5226
        %v5228 = vand.u32 %v5227, 4294901760
        %v5229 = vsub.f32 %v5227, %v5228
        %v5230 = vand.u32 %v5229, 4294901760
        %5231 = vmatpush1.xpose.msra.mxu0 %v5230
        %v5232 = vand.u32 %v1116, 4294901760
        %v5233 = vsub.f32 %v1116, %v5232
        %v5234 = vand.u32 %v5233, 4294901760
        %v5235 = vsub.f32 %v5233, %v5234
        %v5236 = vand.u32 %v5235, 4294901760
        %5237 = vmatprep.subr.mxu0 %v5236
        %v5238 = vand.u32 %v1115, 4294901760
        %v5239 = vsub.f32 %v1115, %v5238
        %v5240 = vand.u32 %v5239, 4294901760
        %v5241 = vsub.f32 %v5239, %v5240
        %v5242 = vand.u32 %v5241, 4294901760
        %5243 = vmatpush1.xpose.msra.mxu0 %v5242
        %v5244 = vand.u32 %v1120, 4294901760
        %v5245 = vsub.f32 %v1120, %v5244
        %v5246 = vand.u32 %v5245, 4294901760
        %v5247 = vsub.f32 %v5245, %v5246
        %v5248 = vand.u32 %v5247, 4294901760
        %5249 = vmatprep.subr.mxu0 %v5248
        %v5250 = vand.u32 %v1119, 4294901760
        %v5251 = vsub.f32 %v1119, %v5250
        %v5252 = vand.u32 %v5251, 4294901760
        %v5253 = vsub.f32 %v5251, %v5252
        %v5254 = vand.u32 %v5253, 4294901760
        %5255 = vmatpush1.xpose.msra.mxu0 %v5254
        %v5256 = vand.u32 %v1124, 4294901760
        %v5257 = vsub.f32 %v1124, %v5256
        %v5258 = vand.u32 %v5257, 4294901760
        %v5259 = vsub.f32 %v5257, %v5258
        %v5260 = vand.u32 %v5259, 4294901760
        %5261 = vmatprep.subr.mxu0 %v5260
        %v5262 = vand.u32 %v1123, 4294901760
        %v5263 = vsub.f32 %v1123, %v5262
        %v5264 = vand.u32 %v5263, 4294901760
        %v5265 = vsub.f32 %v5263, %v5264
        %v5266 = vand.u32 %v5265, 4294901760
        %5267 = vmatpush1.xpose.msra.mxu0 %v5266
        %v5268 = vand.u32 %v1128, 4294901760
        %v5269 = vsub.f32 %v1128, %v5268
        %v5270 = vand.u32 %v5269, 4294901760
        %v5271 = vsub.f32 %v5269, %v5270
        %v5272 = vand.u32 %v5271, 4294901760
        %5273 = vmatprep.subr.mxu0 %v5272
        %v5274 = vand.u32 %v1127, 4294901760
        %v5275 = vsub.f32 %v1127, %v5274
        %v5276 = vand.u32 %v5275, 4294901760
        %v5277 = vsub.f32 %v5275, %v5276
        %v5278 = vand.u32 %v5277, 4294901760
        %5279 = vmatpush1.xpose.msra.mxu0 %v5278
        %v5280 = vand.u32 %v1132, 4294901760
        %v5281 = vsub.f32 %v1132, %v5280
        %v5282 = vand.u32 %v5281, 4294901760
        %v5283 = vsub.f32 %v5281, %v5282
        %v5284 = vand.u32 %v5283, 4294901760
        %5285 = vmatprep.subr.mxu0 %v5284
        %v5286 = vand.u32 %v1131, 4294901760
        %v5287 = vsub.f32 %v1131, %v5286
        %v5288 = vand.u32 %v5287, 4294901760
        %v5289 = vsub.f32 %v5287, %v5288
        %v5290 = vand.u32 %v5289, 4294901760
        %5291 = vmatpush1.xpose.msra.mxu0 %v5290
        %v5292 = vand.u32 %v1136, 4294901760
        %v5293 = vsub.f32 %v1136, %v5292
        %v5294 = vand.u32 %v5293, 4294901760
        %v5295 = vsub.f32 %v5293, %v5294
        %v5296 = vand.u32 %v5295, 4294901760
        %5297 = vmatprep.subr.mxu0 %v5296
        %v5298 = vand.u32 %v1135, 4294901760
        %v5299 = vsub.f32 %v1135, %v5298
        %v5300 = vand.u32 %v5299, 4294901760
        %v5301 = vsub.f32 %v5299, %v5300
        %v5302 = vand.u32 %v5301, 4294901760
        %5303 = vmatpush1.xpose.msra.mxu0 %v5302
        %v5304 = vand.u32 %v1140, 4294901760
        %v5305 = vsub.f32 %v1140, %v5304
        %v5306 = vand.u32 %v5305, 4294901760
        %v5307 = vsub.f32 %v5305, %v5306
        %v5308 = vand.u32 %v5307, 4294901760
        %5309 = vmatprep.subr.mxu0 %v5308
        %v5310 = vand.u32 %v1139, 4294901760
        %v5311 = vsub.f32 %v1139, %v5310
        %v5312 = vand.u32 %v5311, 4294901760
        %v5313 = vsub.f32 %v5311, %v5312
        %v5314 = vand.u32 %v5313, 4294901760
        %5315 = vmatpush1.xpose.msra.mxu0 %v5314
        %v5316 = vand.u32 %v1144, 4294901760
        %v5317 = vsub.f32 %v1144, %v5316
        %v5318 = vand.u32 %v5317, 4294901760
        %v5319 = vsub.f32 %v5317, %v5318
        %v5320 = vand.u32 %v5319, 4294901760
        %5321 = vmatprep.subr.mxu0 %v5320
        %v5322 = vand.u32 %v1143, 4294901760
        %v5323 = vsub.f32 %v1143, %v5322
        %v5324 = vand.u32 %v5323, 4294901760
        %v5325 = vsub.f32 %v5323, %v5324
        %v5326 = vand.u32 %v5325, 4294901760
        %5327 = vmatpush1.xpose.msra.mxu0 %v5326
        %v5328 = vand.u32 %v1148, 4294901760
        %v5329 = vsub.f32 %v1148, %v5328
        %v5330 = vand.u32 %v5329, 4294901760
        %v5331 = vsub.f32 %v5329, %v5330
        %v5332 = vand.u32 %v5331, 4294901760
        %5333 = vmatprep.subr.mxu0 %v5332
        %v5334 = vand.u32 %v1147, 4294901760
        %v5335 = vsub.f32 %v1147, %v5334
        %v5336 = vand.u32 %v5335, 4294901760
        %v5337 = vsub.f32 %v5335, %v5336
        %v5338 = vand.u32 %v5337, 4294901760
        %5339 = vmatpush1.xpose.msra.mxu0 %v5338
        %v5340 = vand.u32 %v1152, 4294901760
        %v5341 = vsub.f32 %v1152, %v5340
        %v5342 = vand.u32 %v5341, 4294901760
        %v5343 = vsub.f32 %v5341, %v5342
        %v5344 = vand.u32 %v5343, 4294901760
        %5345 = vmatprep.subr.mxu0 %v5344
        %v5346 = vand.u32 %v1151, 4294901760
        %v5347 = vsub.f32 %v1151, %v5346
        %v5348 = vand.u32 %v5347, 4294901760
        %v5349 = vsub.f32 %v5347, %v5348
        %v5350 = vand.u32 %v5349, 4294901760
        %5351 = vmatpush1.xpose.msra.mxu0 %v5350
        %v5352 = vand.u32 %v1156, 4294901760
        %v5353 = vsub.f32 %v1156, %v5352
        %v5354 = vand.u32 %v5353, 4294901760
        %v5355 = vsub.f32 %v5353, %v5354
        %v5356 = vand.u32 %v5355, 4294901760
        %5357 = vmatprep.subr.mxu0 %v5356
        %v5358 = vand.u32 %v1155, 4294901760
        %v5359 = vsub.f32 %v1155, %v5358
        %v5360 = vand.u32 %v5359, 4294901760
        %v5361 = vsub.f32 %v5359, %v5360
        %v5362 = vand.u32 %v5361, 4294901760
        %5363 = vmatpush1.xpose.msra.mxu0 %v5362
        %v5364 = vand.u32 %v1160, 4294901760
        %v5365 = vsub.f32 %v1160, %v5364
        %v5366 = vand.u32 %v5365, 4294901760
        %v5367 = vsub.f32 %v5365, %v5366
        %v5368 = vand.u32 %v5367, 4294901760
        %5369 = vmatprep.subr.mxu0 %v5368
        %v5370 = vand.u32 %v1159, 4294901760
        %v5371 = vsub.f32 %v1159, %v5370
        %v5372 = vand.u32 %v5371, 4294901760
        %v5373 = vsub.f32 %v5371, %v5372
        %v5374 = vand.u32 %v5373, 4294901760
        %5375 = vmatpush1.xpose.msra.mxu0 %v5374
        %v5376 = vand.u32 %v1164, 4294901760
        %v5377 = vsub.f32 %v1164, %v5376
        %v5378 = vand.u32 %v5377, 4294901760
        %v5379 = vsub.f32 %v5377, %v5378
        %v5380 = vand.u32 %v5379, 4294901760
        %5381 = vmatprep.subr.mxu0 %v5380
        %v5382 = vand.u32 %v1163, 4294901760
        %v5383 = vsub.f32 %v1163, %v5382
        %v5384 = vand.u32 %v5383, 4294901760
        %v5385 = vsub.f32 %v5383, %v5384
        %v5386 = vand.u32 %v5385, 4294901760
        %5387 = vmatpush1.xpose.msra.mxu0 %v5386
        %v5388 = vand.u32 %v1168, 4294901760
        %v5389 = vsub.f32 %v1168, %v5388
        %v5390 = vand.u32 %v5389, 4294901760
        %v5391 = vsub.f32 %v5389, %v5390
        %v5392 = vand.u32 %v5391, 4294901760
        %5393 = vmatprep.subr.mxu0 %v5392
        %v5394 = vand.u32 %v1167, 4294901760
        %v5395 = vsub.f32 %v1167, %v5394
        %v5396 = vand.u32 %v5395, 4294901760
        %v5397 = vsub.f32 %v5395, %v5396
        %v5398 = vand.u32 %v5397, 4294901760
        %5399 = vmatpush1.xpose.msra.mxu0 %v5398
        %v5400 = vand.u32 %v852, 4294901760
        %5401 = vmatprep.mubr.f32.mxu0 %v5400
        %v5402 = vand.u32 %v851, 4294901760
        %5403 = vmatmul.mubr.f32.gmra.mrb[0].mxu0 %v5402
        %v5404 = vpop.f32.mrb[0].mxu0
        %v5405 = vadd.f32 %v4516, %v5404
        %v5406 = vpop.f32.mrb[0].mxu0
        %v5407 = vadd.f32 %v4518, %v5406
        %v5408 = vand.u32 %v856, 4294901760
        %5409 = vmatprep.mubr.f32.mxu0 %v5408
        %v5410 = vand.u32 %v855, 4294901760
        %5411 = vmatmul.mubr.f32.gmra.mrb[0].mxu0 %v5410
        %v5412 = vpop.f32.mrb[0].mxu0
        %v5413 = vadd.f32 %v4532, %v5412
        %v5414 = vpop.f32.mrb[0].mxu0
        %v5415 = vadd.f32 %v4534, %v5414
        %v5416 = vand.u32 %v860, 4294901760
        %5417 = vmatprep.mubr.f32.mxu0 %v5416
        %v5418 = vand.u32 %v859, 4294901760
        %5419 = vmatmul.mubr.f32.gmra.mrb[0].mxu0 %v5418
        %v5420 = vpop.f32.mrb[0].mxu0
        %v5421 = vadd.f32 %v4548, %v5420
        %v5422 = vpop.f32.mrb[0].mxu0
        %v5423 = vadd.f32 %v4550, %v5422
        %v5424 = vand.u32 %v864, 4294901760
        %5425 = vmatprep.mubr.f32.mxu0 %v5424
        %v5426 = vand.u32 %v863, 4294901760
        %5427 = vmatmul.mubr.f32.gmra.mrb[0].mxu0 %v5426
        %v5428 = vpop.f32.mrb[0].mxu0
        %v5429 = vadd.f32 %v4564, %v5428
        %v5430 = vpop.f32.mrb[0].mxu0
        %v5431 = vadd.f32 %v4566, %v5430
        %v5432 = vand.u32 %v868, 4294901760
        %5433 = vmatprep.mubr.f32.mxu0 %v5432
        %v5434 = vand.u32 %v867, 4294901760
        %5435 = vmatmul.mubr.f32.gmra.mrb[0].mxu0 %v5434
        %v5436 = vpop.f32.mrb[0].mxu0
        %v5437 = vadd.f32 %v4580, %v5436
        %v5438 = vpop.f32.mrb[0].mxu0
        %v5439 = vadd.f32 %v4582, %v5438
        %v5440 = vand.u32 %v872, 4294901760
        %5441 = vmatprep.mubr.f32.mxu0 %v5440
        %v5442 = vand.u32 %v871, 4294901760
        %5443 = vmatmul.mubr.f32.gmra.mrb[0].mxu0 %v5442
        %v5444 = vpop.f32.mrb[0].mxu0
        %v5445 = vadd.f32 %v4596, %v5444
        %v5446 = vpop.f32.mrb[0].mxu0
        %v5447 = vadd.f32 %v4598, %v5446
        %v5448 = vand.u32 %v876, 4294901760
        %5449 = vmatprep.mubr.f32.mxu0 %v5448
        %v5450 = vand.u32 %v875, 4294901760
        %5451 = vmatmul.mubr.f32.gmra.mrb[0].mxu0 %v5450
        %v5452 = vpop.f32.mrb[0].mxu0
        %v5453 = vadd.f32 %v4612, %v5452
        %v5454 = vpop.f32.mrb[0].mxu0
        %v5455 = vadd.f32 %v4614, %v5454
        %v5456 = vand.u32 %v880, 4294901760
        %5457 = vmatprep.mubr.f32.mxu0 %v5456
        %v5458 = vand.u32 %v879, 4294901760
        %5459 = vmatmul.mubr.f32.gmra.mrb[0].mxu0 %v5458
        %v5460 = vpop.f32.mrb[0].mxu0
        %v5461 = vadd.f32 %v4628, %v5460
        %v5462 = vpop.f32.mrb[0].mxu0
        %v5463 = vadd.f32 %v4630, %v5462
        %v5464 = vand.u32 %v884, 4294901760
        %5465 = vmatprep.mubr.f32.mxu0 %v5464
        %v5466 = vand.u32 %v883, 4294901760
        %5467 = vmatmul.mubr.f32.gmra.mrb[0].mxu0 %v5466
        %v5468 = vpop.f32.mrb[0].mxu0
        %v5469 = vadd.f32 %v4644, %v5468
        %v5470 = vpop.f32.mrb[0].mxu0
        %v5471 = vadd.f32 %v4646, %v5470
        %v5472 = vand.u32 %v888, 4294901760
        %5473 = vmatprep.mubr.f32.mxu0 %v5472
        %v5474 = vand.u32 %v887, 4294901760
        %5475 = vmatmul.mubr.f32.gmra.mrb[0].mxu0 %v5474
        %v5476 = vpop.f32.mrb[0].mxu0
        %v5477 = vadd.f32 %v4660, %v5476
        %v5478 = vpop.f32.mrb[0].mxu0
        %v5479 = vadd.f32 %v4662, %v5478
        %v5480 = vand.u32 %v892, 4294901760
        %5481 = vmatprep.mubr.f32.mxu0 %v5480
        %v5482 = vand.u32 %v891, 4294901760
        %5483 = vmatmul.mubr.f32.gmra.mrb[0].mxu0 %v5482
        %v5484 = vpop.f32.mrb[0].mxu0
        %v5485 = vadd.f32 %v4676, %v5484
        %v5486 = vpop.f32.mrb[0].mxu0
        %v5487 = vadd.f32 %v4678, %v5486
        %v5488 = vand.u32 %v896, 4294901760
        %5489 = vmatprep.mubr.f32.mxu0 %v5488
        %v5490 = vand.u32 %v895, 4294901760
        %5491 = vmatmul.mubr.f32.gmra.mrb[0].mxu0 %v5490
        %v5492 = vpop.f32.mrb[0].mxu0
        %v5493 = vadd.f32 %v4692, %v5492
        %v5494 = vpop.f32.mrb[0].mxu0
        %v5495 = vadd.f32 %v4694, %v5494
        %v5496 = vand.u32 %v900, 4294901760
        %5497 = vmatprep.mubr.f32.mxu0 %v5496
        %v5498 = vand.u32 %v899, 4294901760
        %5499 = vmatmul.mubr.f32.gmra.mrb[0].mxu0 %v5498
        %v5500 = vpop.f32.mrb[0].mxu0
        %v5501 = vadd.f32 %v4708, %v5500
        %v5502 = vpop.f32.mrb[0].mxu0
        %v5503 = vadd.f32 %v4710, %v5502
        %v5504 = vand.u32 %v904, 4294901760
        %5505 = vmatprep.mubr.f32.mxu0 %v5504
        %v5506 = vand.u32 %v903, 4294901760
        %5507 = vmatmul.mubr.f32.gmra.mrb[0].mxu0 %v5506
        %v5508 = vpop.f32.mrb[0].mxu0
        %v5509 = vadd.f32 %v4724, %v5508
        %v5510 = vpop.f32.mrb[0].mxu0
        %v5511 = vadd.f32 %v4726, %v5510
        %v5512 = vand.u32 %v908, 4294901760
        %5513 = vmatprep.mubr.f32.mxu0 %v5512
        %v5514 = vand.u32 %v907, 4294901760
        %5515 = vmatmul.mubr.f32.gmra.mrb[0].mxu0 %v5514
        %v5516 = vpop.f32.mrb[0].mxu0
        %v5517 = vadd.f32 %v4740, %v5516
        %v5518 = vpop.f32.mrb[0].mxu0
        %v5519 = vadd.f32 %v4742, %v5518
        %v5520 = vand.u32 %v912, 4294901760
        %5521 = vmatprep.mubr.f32.mxu0 %v5520
        %v5522 = vand.u32 %v911, 4294901760
        %5523 = vmatmul.mubr.f32.gmra.mrb[0].mxu0 %v5522
        %v5524 = vpop.f32.mrb[0].mxu0
        %v5525 = vadd.f32 %v4756, %v5524
        %v5526 = vpop.f32.mrb[0].mxu0
        %v5527 = vadd.f32 %v4758, %v5526
        %v5528 = vand.u32 %v916, 4294901760
        %5529 = vmatprep.mubr.f32.mxu0 %v5528
        %v5530 = vand.u32 %v915, 4294901760
        %5531 = vmatmul.mubr.f32.gmra.mrb[0].mxu0 %v5530
        %v5532 = vpop.f32.mrb[0].mxu0
        %v5533 = vadd.f32 %v4772, %v5532
        %v5534 = vpop.f32.mrb[0].mxu0
        %v5535 = vadd.f32 %v4774, %v5534
        %v5536 = vand.u32 %v920, 4294901760
        %5537 = vmatprep.mubr.f32.mxu0 %v5536
        %v5538 = vand.u32 %v919, 4294901760
        %5539 = vmatmul.mubr.f32.gmra.mrb[0].mxu0 %v5538
        %v5540 = vpop.f32.mrb[0].mxu0
        %v5541 = vadd.f32 %v4788, %v5540
        %v5542 = vpop.f32.mrb[0].mxu0
        %v5543 = vadd.f32 %v4790, %v5542
        %v5544 = vand.u32 %v924, 4294901760
        %5545 = vmatprep.mubr.f32.mxu0 %v5544
        %v5546 = vand.u32 %v923, 4294901760
        %5547 = vmatmul.mubr.f32.gmra.mrb[0].mxu0 %v5546
        %v5548 = vpop.f32.mrb[0].mxu0
        %v5549 = vadd.f32 %v4804, %v5548
        %v5550 = vpop.f32.mrb[0].mxu0
        %v5551 = vadd.f32 %v4806, %v5550
        %v5552 = vand.u32 %v928, 4294901760
        %5553 = vmatprep.mubr.f32.mxu0 %v5552
        %v5554 = vand.u32 %v927, 4294901760
        %5555 = vmatmul.mubr.f32.gmra.mrb[0].mxu0 %v5554
        %v5556 = vpop.f32.mrb[0].mxu0
        %v5557 = vadd.f32 %v4820, %v5556
        %v5558 = vpop.f32.mrb[0].mxu0
        %v5559 = vadd.f32 %v4822, %v5558
        %v5560 = vand.u32 %v932, 4294901760
        %5561 = vmatprep.mubr.f32.mxu0 %v5560
        %v5562 = vand.u32 %v931, 4294901760
        %5563 = vmatmul.mubr.f32.gmra.mrb[0].mxu0 %v5562
        %v5564 = vpop.f32.mrb[0].mxu0
        %v5565 = vadd.f32 %v4836, %v5564
        %v5566 = vpop.f32.mrb[0].mxu0
        %v5567 = vadd.f32 %v4838, %v5566
        %v5568 = vand.u32 %v936, 4294901760
        %5569 = vmatprep.mubr.f32.mxu0 %v5568
        %v5570 = vand.u32 %v935, 4294901760
        %5571 = vmatmul.mubr.f32.gmra.mrb[0].mxu0 %v5570
        %v5572 = vpop.f32.mrb[0].mxu0
        %v5573 = vadd.f32 %v4852, %v5572
        %v5574 = vpop.f32.mrb[0].mxu0
        %v5575 = vadd.f32 %v4854, %v5574
        %v5576 = vand.u32 %v940, 4294901760
        %5577 = vmatprep.mubr.f32.mxu0 %v5576
        %v5578 = vand.u32 %v939, 4294901760
        %5579 = vmatmul.mubr.f32.gmra.mrb[0].mxu0 %v5578
        %v5580 = vpop.f32.mrb[0].mxu0
        %v5581 = vadd.f32 %v4868, %v5580
        %v5582 = vpop.f32.mrb[0].mxu0
        %v5583 = vadd.f32 %v4870, %v5582
        %v5584 = vand.u32 %v944, 4294901760
        %5585 = vmatprep.mubr.f32.mxu0 %v5584
        %v5586 = vand.u32 %v943, 4294901760
        %5587 = vmatmul.mubr.f32.gmra.mrb[0].mxu0 %v5586
        %v5588 = vpop.f32.mrb[0].mxu0
        %v5589 = vadd.f32 %v4884, %v5588
        %v5590 = vpop.f32.mrb[0].mxu0
        %v5591 = vadd.f32 %v4886, %v5590
        %v5592 = vand.u32 %v948, 4294901760
        %5593 = vmatprep.mubr.f32.mxu0 %v5592
        %v5594 = vand.u32 %v947, 4294901760
        %5595 = vmatmul.mubr.f32.gmra.mrb[0].mxu0 %v5594
        %v5596 = vpop.f32.mrb[0].mxu0
        %v5597 = vadd.f32 %v4900, %v5596
        %v5598 = vpop.f32.mrb[0].mxu0
        %v5599 = vadd.f32 %v4902, %v5598
        %v5600 = vand.u32 %v952, 4294901760
        %5601 = vmatprep.mubr.f32.mxu0 %v5600
        %v5602 = vand.u32 %v951, 4294901760
        %5603 = vmatmul.mubr.f32.gmra.mrb[0].mxu0 %v5602
        %v5604 = vpop.f32.mrb[0].mxu0
        %v5605 = vadd.f32 %v4916, %v5604
        %v5606 = vpop.f32.mrb[0].mxu0
        %v5607 = vadd.f32 %v4918, %v5606
        %v5608 = vand.u32 %v956, 4294901760
        %5609 = vmatprep.mubr.f32.mxu0 %v5608
        %v5610 = vand.u32 %v955, 4294901760
        %5611 = vmatmul.mubr.f32.gmra.mrb[0].mxu0 %v5610
        %v5612 = vpop.f32.mrb[0].mxu0
        %v5613 = vadd.f32 %v4932, %v5612
        %v5614 = vpop.f32.mrb[0].mxu0
        %v5615 = vadd.f32 %v4934, %v5614
        %v5616 = vand.u32 %v960, 4294901760
        %5617 = vmatprep.mubr.f32.mxu0 %v5616
        %v5618 = vand.u32 %v959, 4294901760
        %5619 = vmatmul.mubr.f32.gmra.mrb[0].mxu0 %v5618
        %v5620 = vpop.f32.mrb[0].mxu0
        %v5621 = vadd.f32 %v4948, %v5620
        %v5622 = vpop.f32.mrb[0].mxu0
        %v5623 = vadd.f32 %v4950, %v5622
        %v5624 = vand.u32 %v964, 4294901760
        %5625 = vmatprep.mubr.f32.mxu0 %v5624
        %v5626 = vand.u32 %v963, 4294901760
        %5627 = vmatmul.mubr.f32.gmra.mrb[0].mxu0 %v5626
        %v5628 = vpop.f32.mrb[0].mxu0
        %v5629 = vadd.f32 %v4964, %v5628
        %v5630 = vpop.f32.mrb[0].mxu0
        %v5631 = vadd.f32 %v4966, %v5630
        %v5632 = vand.u32 %v968, 4294901760
        %5633 = vmatprep.mubr.f32.mxu0 %v5632
        %v5634 = vand.u32 %v967, 4294901760
        %5635 = vmatmul.mubr.f32.gmra.mrb[0].mxu0 %v5634
        %v5636 = vpop.f32.mrb[0].mxu0
        %v5637 = vadd.f32 %v4980, %v5636
        %v5638 = vpop.f32.mrb[0].mxu0
        %v5639 = vadd.f32 %v4982, %v5638
        %v5640 = vand.u32 %v972, 4294901760
        %5641 = vmatprep.mubr.f32.mxu0 %v5640
        %v5642 = vand.u32 %v971, 4294901760
        %5643 = vmatmul.mubr.f32.gmra.mrb[0].mxu0 %v5642
        %v5644 = vpop.f32.mrb[0].mxu0
        %v5645 = vadd.f32 %v4996, %v5644
        %v5646 = vpop.f32.mrb[0].mxu0
        %v5647 = vadd.f32 %v4998, %v5646
        %v5648 = vand.u32 %v976, 4294901760
        %5649 = vmatprep.mubr.f32.mxu0 %v5648
        %v5650 = vand.u32 %v975, 4294901760
        %5651 = vmatmul.mubr.f32.gmra.mrb[0].mxu0 %v5650
        %v5652 = vpop.f32.mrb[0].mxu0
        %v5653 = vadd.f32 %v5012, %v5652
        %v5654 = vpop.f32.mrb[0].mxu0
        %v5655 = vadd.f32 %v5014, %v5654
        %5656 = vdwg.mxu0
        %v5657 = vand.u32 %v1044, 4294901760
        %v5658 = vsub.f32 %v1044, %v5657
        %5659 = vmatprep.subr.mxu0 %v5658
        %v5660 = vand.u32 %v1043, 4294901760
        %v5661 = vsub.f32 %v1043, %v5660
        %5662 = vmatpush1.xpose.msra.mxu0 %v5661
        %v5663 = vand.u32 %v1048, 4294901760
        %v5664 = vsub.f32 %v1048, %v5663
        %5665 = vmatprep.subr.mxu0 %v5664
        %v5666 = vand.u32 %v1047, 4294901760
        %v5667 = vsub.f32 %v1047, %v5666
        %5668 = vmatpush1.xpose.msra.mxu0 %v5667
        %v5669 = vand.u32 %v1052, 4294901760
        %v5670 = vsub.f32 %v1052, %v5669
        %5671 = vmatprep.subr.mxu0 %v5670
        %v5672 = vand.u32 %v1051, 4294901760
        %v5673 = vsub.f32 %v1051, %v5672
        %5674 = vmatpush1.xpose.msra.mxu0 %v5673
        %v5675 = vand.u32 %v1056, 4294901760
        %v5676 = vsub.f32 %v1056, %v5675
        %5677 = vmatprep.subr.mxu0 %v5676
        %v5678 = vand.u32 %v1055, 4294901760
        %v5679 = vsub.f32 %v1055, %v5678
        %5680 = vmatpush1.xpose.msra.mxu0 %v5679
        %v5681 = vand.u32 %v1060, 4294901760
        %v5682 = vsub.f32 %v1060, %v5681
        %5683 = vmatprep.subr.mxu0 %v5682
        %v5684 = vand.u32 %v1059, 4294901760
        %v5685 = vsub.f32 %v1059, %v5684
        %5686 = vmatpush1.xpose.msra.mxu0 %v5685
        %v5687 = vand.u32 %v1064, 4294901760
        %v5688 = vsub.f32 %v1064, %v5687
        %5689 = vmatprep.subr.mxu0 %v5688
        %v5690 = vand.u32 %v1063, 4294901760
        %v5691 = vsub.f32 %v1063, %v5690
        %5692 = vmatpush1.xpose.msra.mxu0 %v5691
        %v5693 = vand.u32 %v1068, 4294901760
        %v5694 = vsub.f32 %v1068, %v5693
        %5695 = vmatprep.subr.mxu0 %v5694
        %v5696 = vand.u32 %v1067, 4294901760
        %v5697 = vsub.f32 %v1067, %v5696
        %5698 = vmatpush1.xpose.msra.mxu0 %v5697
        %v5699 = vand.u32 %v1072, 4294901760
        %v5700 = vsub.f32 %v1072, %v5699
        %5701 = vmatprep.subr.mxu0 %v5700
        %v5702 = vand.u32 %v1071, 4294901760
        %v5703 = vsub.f32 %v1071, %v5702
        %5704 = vmatpush1.xpose.msra.mxu0 %v5703
        %v5705 = vand.u32 %v1076, 4294901760
        %v5706 = vsub.f32 %v1076, %v5705
        %5707 = vmatprep.subr.mxu0 %v5706
        %v5708 = vand.u32 %v1075, 4294901760
        %v5709 = vsub.f32 %v1075, %v5708
        %5710 = vmatpush1.xpose.msra.mxu0 %v5709
        %v5711 = vand.u32 %v1080, 4294901760
        %v5712 = vsub.f32 %v1080, %v5711
        %5713 = vmatprep.subr.mxu0 %v5712
        %v5714 = vand.u32 %v1079, 4294901760
        %v5715 = vsub.f32 %v1079, %v5714
        %5716 = vmatpush1.xpose.msra.mxu0 %v5715
        %v5717 = vand.u32 %v1084, 4294901760
        %v5718 = vsub.f32 %v1084, %v5717
        %5719 = vmatprep.subr.mxu0 %v5718
        %v5720 = vand.u32 %v1083, 4294901760
        %v5721 = vsub.f32 %v1083, %v5720
        %5722 = vmatpush1.xpose.msra.mxu0 %v5721
        %v5723 = vand.u32 %v1088, 4294901760
        %v5724 = vsub.f32 %v1088, %v5723
        %5725 = vmatprep.subr.mxu0 %v5724
        %v5726 = vand.u32 %v1087, 4294901760
        %v5727 = vsub.f32 %v1087, %v5726
        %5728 = vmatpush1.xpose.msra.mxu0 %v5727
        %v5729 = vand.u32 %v1092, 4294901760
        %v5730 = vsub.f32 %v1092, %v5729
        %5731 = vmatprep.subr.mxu0 %v5730
        %v5732 = vand.u32 %v1091, 4294901760
        %v5733 = vsub.f32 %v1091, %v5732
        %5734 = vmatpush1.xpose.msra.mxu0 %v5733
        %v5735 = vand.u32 %v1096, 4294901760
        %v5736 = vsub.f32 %v1096, %v5735
        %5737 = vmatprep.subr.mxu0 %v5736
        %v5738 = vand.u32 %v1095, 4294901760
        %v5739 = vsub.f32 %v1095, %v5738
        %5740 = vmatpush1.xpose.msra.mxu0 %v5739
        %v5741 = vand.u32 %v1100, 4294901760
        %v5742 = vsub.f32 %v1100, %v5741
        %5743 = vmatprep.subr.mxu0 %v5742
        %v5744 = vand.u32 %v1099, 4294901760
        %v5745 = vsub.f32 %v1099, %v5744
        %5746 = vmatpush1.xpose.msra.mxu0 %v5745
        %v5747 = vand.u32 %v1104, 4294901760
        %v5748 = vsub.f32 %v1104, %v5747
        %5749 = vmatprep.subr.mxu0 %v5748
        %v5750 = vand.u32 %v1103, 4294901760
        %v5751 = vsub.f32 %v1103, %v5750
        %5752 = vmatpush1.xpose.msra.mxu0 %v5751
        %v5753 = vand.u32 %v1108, 4294901760
        %v5754 = vsub.f32 %v1108, %v5753
        %5755 = vmatprep.subr.mxu0 %v5754
        %v5756 = vand.u32 %v1107, 4294901760
        %v5757 = vsub.f32 %v1107, %v5756
        %5758 = vmatpush1.xpose.msra.mxu0 %v5757
        %v5759 = vand.u32 %v1112, 4294901760
        %v5760 = vsub.f32 %v1112, %v5759
        %5761 = vmatprep.subr.mxu0 %v5760
        %v5762 = vand.u32 %v1111, 4294901760
        %v5763 = vsub.f32 %v1111, %v5762
        %5764 = vmatpush1.xpose.msra.mxu0 %v5763
        %v5765 = vand.u32 %v1116, 4294901760
        %v5766 = vsub.f32 %v1116, %v5765
        %5767 = vmatprep.subr.mxu0 %v5766
        %v5768 = vand.u32 %v1115, 4294901760
        %v5769 = vsub.f32 %v1115, %v5768
        %5770 = vmatpush1.xpose.msra.mxu0 %v5769
        %v5771 = vand.u32 %v1120, 4294901760
        %v5772 = vsub.f32 %v1120, %v5771
        %5773 = vmatprep.subr.mxu0 %v5772
        %v5774 = vand.u32 %v1119, 4294901760
        %v5775 = vsub.f32 %v1119, %v5774
        %5776 = vmatpush1.xpose.msra.mxu0 %v5775
        %v5777 = vand.u32 %v1124, 4294901760
        %v5778 = vsub.f32 %v1124, %v5777
        %5779 = vmatprep.subr.mxu0 %v5778
        %v5780 = vand.u32 %v1123, 4294901760
        %v5781 = vsub.f32 %v1123, %v5780
        %5782 = vmatpush1.xpose.msra.mxu0 %v5781
        %v5783 = vand.u32 %v1128, 4294901760
        %v5784 = vsub.f32 %v1128, %v5783
        %5785 = vmatprep.subr.mxu0 %v5784
        %v5786 = vand.u32 %v1127, 4294901760
        %v5787 = vsub.f32 %v1127, %v5786
        %5788 = vmatpush1.xpose.msra.mxu0 %v5787
        %v5789 = vand.u32 %v1132, 4294901760
        %v5790 = vsub.f32 %v1132, %v5789
        %5791 = vmatprep.subr.mxu0 %v5790
        %v5792 = vand.u32 %v1131, 4294901760
        %v5793 = vsub.f32 %v1131, %v5792
        %5794 = vmatpush1.xpose.msra.mxu0 %v5793
        %v5795 = vand.u32 %v1136, 4294901760
        %v5796 = vsub.f32 %v1136, %v5795
        %5797 = vmatprep.subr.mxu0 %v5796
        %v5798 = vand.u32 %v1135, 4294901760
        %v5799 = vsub.f32 %v1135, %v5798
        %5800 = vmatpush1.xpose.msra.mxu0 %v5799
        %v5801 = vand.u32 %v1140, 4294901760
        %v5802 = vsub.f32 %v1140, %v5801
        %5803 = vmatprep.subr.mxu0 %v5802
        %v5804 = vand.u32 %v1139, 4294901760
        %v5805 = vsub.f32 %v1139, %v5804
        %5806 = vmatpush1.xpose.msra.mxu0 %v5805
        %v5807 = vand.u32 %v1144, 4294901760
        %v5808 = vsub.f32 %v1144, %v5807
        %5809 = vmatprep.subr.mxu0 %v5808
        %v5810 = vand.u32 %v1143, 4294901760
        %v5811 = vsub.f32 %v1143, %v5810
        %5812 = vmatpush1.xpose.msra.mxu0 %v5811
        %v5813 = vand.u32 %v1148, 4294901760
        %v5814 = vsub.f32 %v1148, %v5813
        %5815 = vmatprep.subr.mxu0 %v5814
        %v5816 = vand.u32 %v1147, 4294901760
        %v5817 = vsub.f32 %v1147, %v5816
        %5818 = vmatpush1.xpose.msra.mxu0 %v5817
        %v5819 = vand.u32 %v1152, 4294901760
        %v5820 = vsub.f32 %v1152, %v5819
        %5821 = vmatprep.subr.mxu0 %v5820
        %v5822 = vand.u32 %v1151, 4294901760
        %v5823 = vsub.f32 %v1151, %v5822
        %5824 = vmatpush1.xpose.msra.mxu0 %v5823
        %v5825 = vand.u32 %v1156, 4294901760
        %v5826 = vsub.f32 %v1156, %v5825
        %5827 = vmatprep.subr.mxu0 %v5826
        %v5828 = vand.u32 %v1155, 4294901760
        %v5829 = vsub.f32 %v1155, %v5828
        %5830 = vmatpush1.xpose.msra.mxu0 %v5829
        %v5831 = vand.u32 %v1160, 4294901760
        %v5832 = vsub.f32 %v1160, %v5831
        %5833 = vmatprep.subr.mxu0 %v5832
        %v5834 = vand.u32 %v1159, 4294901760
        %v5835 = vsub.f32 %v1159, %v5834
        %5836 = vmatpush1.xpose.msra.mxu0 %v5835
        %v5837 = vand.u32 %v1164, 4294901760
        %v5838 = vsub.f32 %v1164, %v5837
        %5839 = vmatprep.subr.mxu0 %v5838
        %v5840 = vand.u32 %v1163, 4294901760
        %v5841 = vsub.f32 %v1163, %v5840
        %5842 = vmatpush1.xpose.msra.mxu0 %v5841
        %v5843 = vand.u32 %v1168, 4294901760
        %v5844 = vsub.f32 %v1168, %v5843
        %5845 = vmatprep.subr.mxu0 %v5844
        %v5846 = vand.u32 %v1167, 4294901760
        %v5847 = vsub.f32 %v1167, %v5846
        %5848 = vmatpush1.xpose.msra.mxu0 %v5847
        %v5849 = vand.u32 %v852, 4294901760
        %v5850 = vsub.f32 %v852, %v5849
        %5851 = vmatprep.mubr.f32.mxu0 %v5850
        %v5852 = vand.u32 %v851, 4294901760
        %v5853 = vsub.f32 %v851, %v5852
        %5854 = vmatmul.mubr.f32.gmra.mrb[0].mxu0 %v5853
        %v5855 = vpop.f32.mrb[0].mxu0
        %v5856 = vadd.f32 %v5405, %v5855
        %v5857 = vpop.f32.mrb[0].mxu0
        %v5858 = vadd.f32 %v5407, %v5857
        %v5859 = vand.u32 %v856, 4294901760
        %v5860 = vsub.f32 %v856, %v5859
        %5861 = vmatprep.mubr.f32.mxu0 %v5860
        %v5862 = vand.u32 %v855, 4294901760
        %v5863 = vsub.f32 %v855, %v5862
        %5864 = vmatmul.mubr.f32.gmra.mrb[0].mxu0 %v5863
        %v5865 = vpop.f32.mrb[0].mxu0
        %v5866 = vadd.f32 %v5413, %v5865
        %v5867 = vpop.f32.mrb[0].mxu0
        %v5868 = vadd.f32 %v5415, %v5867
        %v5869 = vand.u32 %v860, 4294901760
        %v5870 = vsub.f32 %v860, %v5869
        %5871 = vmatprep.mubr.f32.mxu0 %v5870
        %v5872 = vand.u32 %v859, 4294901760
        %v5873 = vsub.f32 %v859, %v5872
        %5874 = vmatmul.mubr.f32.gmra.mrb[0].mxu0 %v5873
        %v5875 = vpop.f32.mrb[0].mxu0
        %v5876 = vadd.f32 %v5421, %v5875
        %v5877 = vpop.f32.mrb[0].mxu0
        %v5878 = vadd.f32 %v5423, %v5877
        %v5879 = vand.u32 %v864, 4294901760
        %v5880 = vsub.f32 %v864, %v5879
        %5881 = vmatprep.mubr.f32.mxu0 %v5880
        %v5882 = vand.u32 %v863, 4294901760
        %v5883 = vsub.f32 %v863, %v5882
        %5884 = vmatmul.mubr.f32.gmra.mrb[0].mxu0 %v5883
        %v5885 = vpop.f32.mrb[0].mxu0
        %v5886 = vadd.f32 %v5429, %v5885
        %v5887 = vpop.f32.mrb[0].mxu0
        %v5888 = vadd.f32 %v5431, %v5887
        %v5889 = vand.u32 %v868, 4294901760
        %v5890 = vsub.f32 %v868, %v5889
        %5891 = vmatprep.mubr.f32.mxu0 %v5890
        %v5892 = vand.u32 %v867, 4294901760
        %v5893 = vsub.f32 %v867, %v5892
        %5894 = vmatmul.mubr.f32.gmra.mrb[0].mxu0 %v5893
        %v5895 = vpop.f32.mrb[0].mxu0
        %v5896 = vadd.f32 %v5437, %v5895
        %v5897 = vpop.f32.mrb[0].mxu0
        %v5898 = vadd.f32 %v5439, %v5897
        %v5899 = vand.u32 %v872, 4294901760
        %v5900 = vsub.f32 %v872, %v5899
        %5901 = vmatprep.mubr.f32.mxu0 %v5900
        %v5902 = vand.u32 %v871, 4294901760
        %v5903 = vsub.f32 %v871, %v5902
        %5904 = vmatmul.mubr.f32.gmra.mrb[0].mxu0 %v5903
        %v5905 = vpop.f32.mrb[0].mxu0
        %v5906 = vadd.f32 %v5445, %v5905
        %v5907 = vpop.f32.mrb[0].mxu0
        %v5908 = vadd.f32 %v5447, %v5907
        %v5909 = vand.u32 %v876, 4294901760
        %v5910 = vsub.f32 %v876, %v5909
        %5911 = vmatprep.mubr.f32.mxu0 %v5910
        %v5912 = vand.u32 %v875, 4294901760
        %v5913 = vsub.f32 %v875, %v5912
        %5914 = vmatmul.mubr.f32.gmra.mrb[0].mxu0 %v5913
        %v5915 = vpop.f32.mrb[0].mxu0
        %v5916 = vadd.f32 %v5453, %v5915
        %v5917 = vpop.f32.mrb[0].mxu0
        %v5918 = vadd.f32 %v5455, %v5917
        %v5919 = vand.u32 %v880, 4294901760
        %v5920 = vsub.f32 %v880, %v5919
        %5921 = vmatprep.mubr.f32.mxu0 %v5920
        %v5922 = vand.u32 %v879, 4294901760
        %v5923 = vsub.f32 %v879, %v5922
        %5924 = vmatmul.mubr.f32.gmra.mrb[0].mxu0 %v5923
        %v5925 = vpop.f32.mrb[0].mxu0
        %v5926 = vadd.f32 %v5461, %v5925
        %v5927 = vpop.f32.mrb[0].mxu0
        %v5928 = vadd.f32 %v5463, %v5927
        %v5929 = vand.u32 %v884, 4294901760
        %v5930 = vsub.f32 %v884, %v5929
        %5931 = vmatprep.mubr.f32.mxu0 %v5930
        %v5932 = vand.u32 %v883, 4294901760
        %v5933 = vsub.f32 %v883, %v5932
        %5934 = vmatmul.mubr.f32.gmra.mrb[0].mxu0 %v5933
        %v5935 = vpop.f32.mrb[0].mxu0
        %v5936 = vadd.f32 %v5469, %v5935
        %v5937 = vpop.f32.mrb[0].mxu0
        %v5938 = vadd.f32 %v5471, %v5937
        %v5939 = vand.u32 %v888, 4294901760
        %v5940 = vsub.f32 %v888, %v5939
        %5941 = vmatprep.mubr.f32.mxu0 %v5940
        %v5942 = vand.u32 %v887, 4294901760
        %v5943 = vsub.f32 %v887, %v5942
        %5944 = vmatmul.mubr.f32.gmra.mrb[0].mxu0 %v5943
        %v5945 = vpop.f32.mrb[0].mxu0
        %v5946 = vadd.f32 %v5477, %v5945
        %v5947 = vpop.f32.mrb[0].mxu0
        %v5948 = vadd.f32 %v5479, %v5947
        %v5949 = vand.u32 %v892, 4294901760
        %v5950 = vsub.f32 %v892, %v5949
        %5951 = vmatprep.mubr.f32.mxu0 %v5950
        %v5952 = vand.u32 %v891, 4294901760
        %v5953 = vsub.f32 %v891, %v5952
        %5954 = vmatmul.mubr.f32.gmra.mrb[0].mxu0 %v5953
        %v5955 = vpop.f32.mrb[0].mxu0
        %v5956 = vadd.f32 %v5485, %v5955
        %v5957 = vpop.f32.mrb[0].mxu0
        %v5958 = vadd.f32 %v5487, %v5957
        %v5959 = vand.u32 %v896, 4294901760
        %v5960 = vsub.f32 %v896, %v5959
        %5961 = vmatprep.mubr.f32.mxu0 %v5960
        %v5962 = vand.u32 %v895, 4294901760
        %v5963 = vsub.f32 %v895, %v5962
        %5964 = vmatmul.mubr.f32.gmra.mrb[0].mxu0 %v5963
        %v5965 = vpop.f32.mrb[0].mxu0
        %v5966 = vadd.f32 %v5493, %v5965
        %v5967 = vpop.f32.mrb[0].mxu0
        %v5968 = vadd.f32 %v5495, %v5967
        %v5969 = vand.u32 %v900, 4294901760
        %v5970 = vsub.f32 %v900, %v5969
        %5971 = vmatprep.mubr.f32.mxu0 %v5970
        %v5972 = vand.u32 %v899, 4294901760
        %v5973 = vsub.f32 %v899, %v5972
        %5974 = vmatmul.mubr.f32.gmra.mrb[0].mxu0 %v5973
        %v5975 = vpop.f32.mrb[0].mxu0
        %v5976 = vadd.f32 %v5501, %v5975
        %v5977 = vpop.f32.mrb[0].mxu0
        %v5978 = vadd.f32 %v5503, %v5977
        %v5979 = vand.u32 %v904, 4294901760
        %v5980 = vsub.f32 %v904, %v5979
        %5981 = vmatprep.mubr.f32.mxu0 %v5980
        %v5982 = vand.u32 %v903, 4294901760
        %v5983 = vsub.f32 %v903, %v5982
        %5984 = vmatmul.mubr.f32.gmra.mrb[0].mxu0 %v5983
        %v5985 = vpop.f32.mrb[0].mxu0
        %v5986 = vadd.f32 %v5509, %v5985
        %v5987 = vpop.f32.mrb[0].mxu0
        %v5988 = vadd.f32 %v5511, %v5987
        %v5989 = vand.u32 %v908, 4294901760
        %v5990 = vsub.f32 %v908, %v5989
        %5991 = vmatprep.mubr.f32.mxu0 %v5990
        %v5992 = vand.u32 %v907, 4294901760
        %v5993 = vsub.f32 %v907, %v5992
        %5994 = vmatmul.mubr.f32.gmra.mrb[0].mxu0 %v5993
        %v5995 = vpop.f32.mrb[0].mxu0
        %v5996 = vadd.f32 %v5517, %v5995
        %v5997 = vpop.f32.mrb[0].mxu0
        %v5998 = vadd.f32 %v5519, %v5997
        %v5999 = vand.u32 %v912, 4294901760
        %v6000 = vsub.f32 %v912, %v5999
        %6001 = vmatprep.mubr.f32.mxu0 %v6000
        %v6002 = vand.u32 %v911, 4294901760
        %v6003 = vsub.f32 %v911, %v6002
        %6004 = vmatmul.mubr.f32.gmra.mrb[0].mxu0 %v6003
        %v6005 = vpop.f32.mrb[0].mxu0
        %v6006 = vadd.f32 %v5525, %v6005
        %v6007 = vpop.f32.mrb[0].mxu0
        %v6008 = vadd.f32 %v5527, %v6007
        %v6009 = vand.u32 %v916, 4294901760
        %v6010 = vsub.f32 %v916, %v6009
        %6011 = vmatprep.mubr.f32.mxu0 %v6010
        %v6012 = vand.u32 %v915, 4294901760
        %v6013 = vsub.f32 %v915, %v6012
        %6014 = vmatmul.mubr.f32.gmra.mrb[0].mxu0 %v6013
        %v6015 = vpop.f32.mrb[0].mxu0
        %v6016 = vadd.f32 %v5533, %v6015
        %v6017 = vpop.f32.mrb[0].mxu0
        %v6018 = vadd.f32 %v5535, %v6017
        %v6019 = vand.u32 %v920, 4294901760
        %v6020 = vsub.f32 %v920, %v6019
        %6021 = vmatprep.mubr.f32.mxu0 %v6020
        %v6022 = vand.u32 %v919, 4294901760
        %v6023 = vsub.f32 %v919, %v6022
        %6024 = vmatmul.mubr.f32.gmra.mrb[0].mxu0 %v6023
        %v6025 = vpop.f32.mrb[0].mxu0
        %v6026 = vadd.f32 %v5541, %v6025
        %v6027 = vpop.f32.mrb[0].mxu0
        %v6028 = vadd.f32 %v5543, %v6027
        %v6029 = vand.u32 %v924, 4294901760
        %v6030 = vsub.f32 %v924, %v6029
        %6031 = vmatprep.mubr.f32.mxu0 %v6030
        %v6032 = vand.u32 %v923, 4294901760
        %v6033 = vsub.f32 %v923, %v6032
        %6034 = vmatmul.mubr.f32.gmra.mrb[0].mxu0 %v6033
        %v6035 = vpop.f32.mrb[0].mxu0
        %v6036 = vadd.f32 %v5549, %v6035
        %v6037 = vpop.f32.mrb[0].mxu0
        %v6038 = vadd.f32 %v5551, %v6037
        %v6039 = vand.u32 %v928, 4294901760
        %v6040 = vsub.f32 %v928, %v6039
        %6041 = vmatprep.mubr.f32.mxu0 %v6040
        %v6042 = vand.u32 %v927, 4294901760
        %v6043 = vsub.f32 %v927, %v6042
        %6044 = vmatmul.mubr.f32.gmra.mrb[0].mxu0 %v6043
        %v6045 = vpop.f32.mrb[0].mxu0
        %v6046 = vadd.f32 %v5557, %v6045
        %v6047 = vpop.f32.mrb[0].mxu0
        %v6048 = vadd.f32 %v5559, %v6047
        %v6049 = vand.u32 %v932, 4294901760
        %v6050 = vsub.f32 %v932, %v6049
        %6051 = vmatprep.mubr.f32.mxu0 %v6050
        %v6052 = vand.u32 %v931, 4294901760
        %v6053 = vsub.f32 %v931, %v6052
        %6054 = vmatmul.mubr.f32.gmra.mrb[0].mxu0 %v6053
        %v6055 = vpop.f32.mrb[0].mxu0
        %v6056 = vadd.f32 %v5565, %v6055
        %v6057 = vpop.f32.mrb[0].mxu0
        %v6058 = vadd.f32 %v5567, %v6057
        %v6059 = vand.u32 %v936, 4294901760
        %v6060 = vsub.f32 %v936, %v6059
        %6061 = vmatprep.mubr.f32.mxu0 %v6060
        %v6062 = vand.u32 %v935, 4294901760
        %v6063 = vsub.f32 %v935, %v6062
        %6064 = vmatmul.mubr.f32.gmra.mrb[0].mxu0 %v6063
        %v6065 = vpop.f32.mrb[0].mxu0
        %v6066 = vadd.f32 %v5573, %v6065
        %v6067 = vpop.f32.mrb[0].mxu0
        %v6068 = vadd.f32 %v5575, %v6067
        %v6069 = vand.u32 %v940, 4294901760
        %v6070 = vsub.f32 %v940, %v6069
        %6071 = vmatprep.mubr.f32.mxu0 %v6070
        %v6072 = vand.u32 %v939, 4294901760
        %v6073 = vsub.f32 %v939, %v6072
        %6074 = vmatmul.mubr.f32.gmra.mrb[0].mxu0 %v6073
        %v6075 = vpop.f32.mrb[0].mxu0
        %v6076 = vadd.f32 %v5581, %v6075
        %v6077 = vpop.f32.mrb[0].mxu0
        %v6078 = vadd.f32 %v5583, %v6077
        %v6079 = vand.u32 %v944, 4294901760
        %v6080 = vsub.f32 %v944, %v6079
        %6081 = vmatprep.mubr.f32.mxu0 %v6080
        %v6082 = vand.u32 %v943, 4294901760
        %v6083 = vsub.f32 %v943, %v6082
        %6084 = vmatmul.mubr.f32.gmra.mrb[0].mxu0 %v6083
        %v6085 = vpop.f32.mrb[0].mxu0
        %v6086 = vadd.f32 %v5589, %v6085
        %v6087 = vpop.f32.mrb[0].mxu0
        %v6088 = vadd.f32 %v5591, %v6087
        %v6089 = vand.u32 %v948, 4294901760
        %v6090 = vsub.f32 %v948, %v6089
        %6091 = vmatprep.mubr.f32.mxu0 %v6090
        %v6092 = vand.u32 %v947, 4294901760
        %v6093 = vsub.f32 %v947, %v6092
        %6094 = vmatmul.mubr.f32.gmra.mrb[0].mxu0 %v6093
        %v6095 = vpop.f32.mrb[0].mxu0
        %v6096 = vadd.f32 %v5597, %v6095
        %v6097 = vpop.f32.mrb[0].mxu0
        %v6098 = vadd.f32 %v5599, %v6097
        %v6099 = vand.u32 %v952, 4294901760
        %v6100 = vsub.f32 %v952, %v6099
        %6101 = vmatprep.mubr.f32.mxu0 %v6100
        %v6102 = vand.u32 %v951, 4294901760
        %v6103 = vsub.f32 %v951, %v6102
        %6104 = vmatmul.mubr.f32.gmra.mrb[0].mxu0 %v6103
        %v6105 = vpop.f32.mrb[0].mxu0
        %v6106 = vadd.f32 %v5605, %v6105
        %v6107 = vpop.f32.mrb[0].mxu0
        %v6108 = vadd.f32 %v5607, %v6107
        %v6109 = vand.u32 %v956, 4294901760
        %v6110 = vsub.f32 %v956, %v6109
        %6111 = vmatprep.mubr.f32.mxu0 %v6110
        %v6112 = vand.u32 %v955, 4294901760
        %v6113 = vsub.f32 %v955, %v6112
        %6114 = vmatmul.mubr.f32.gmra.mrb[0].mxu0 %v6113
        %v6115 = vpop.f32.mrb[0].mxu0
        %v6116 = vadd.f32 %v5613, %v6115
        %v6117 = vpop.f32.mrb[0].mxu0
        %v6118 = vadd.f32 %v5615, %v6117
        %v6119 = vand.u32 %v960, 4294901760
        %v6120 = vsub.f32 %v960, %v6119
        %6121 = vmatprep.mubr.f32.mxu0 %v6120
        %v6122 = vand.u32 %v959, 4294901760
        %v6123 = vsub.f32 %v959, %v6122
        %6124 = vmatmul.mubr.f32.gmra.mrb[0].mxu0 %v6123
        %v6125 = vpop.f32.mrb[0].mxu0
        %v6126 = vadd.f32 %v5621, %v6125
        %v6127 = vpop.f32.mrb[0].mxu0
        %v6128 = vadd.f32 %v5623, %v6127
        %v6129 = vand.u32 %v964, 4294901760
        %v6130 = vsub.f32 %v964, %v6129
        %6131 = vmatprep.mubr.f32.mxu0 %v6130
        %v6132 = vand.u32 %v963, 4294901760
        %v6133 = vsub.f32 %v963, %v6132
        %6134 = vmatmul.mubr.f32.gmra.mrb[0].mxu0 %v6133
        %v6135 = vpop.f32.mrb[0].mxu0
        %v6136 = vadd.f32 %v5629, %v6135
        %v6137 = vpop.f32.mrb[0].mxu0
        %v6138 = vadd.f32 %v5631, %v6137
        %v6139 = vand.u32 %v968, 4294901760
        %v6140 = vsub.f32 %v968, %v6139
        %6141 = vmatprep.mubr.f32.mxu0 %v6140
        %v6142 = vand.u32 %v967, 4294901760
        %v6143 = vsub.f32 %v967, %v6142
        %6144 = vmatmul.mubr.f32.gmra.mrb[0].mxu0 %v6143
        %v6145 = vpop.f32.mrb[0].mxu0
        %v6146 = vadd.f32 %v5637, %v6145
        %v6147 = vpop.f32.mrb[0].mxu0
        %v6148 = vadd.f32 %v5639, %v6147
        %v6149 = vand.u32 %v972, 4294901760
        %v6150 = vsub.f32 %v972, %v6149
        %6151 = vmatprep.mubr.f32.mxu0 %v6150
        %v6152 = vand.u32 %v971, 4294901760
        %v6153 = vsub.f32 %v971, %v6152
        %6154 = vmatmul.mubr.f32.gmra.mrb[0].mxu0 %v6153
        %v6155 = vpop.f32.mrb[0].mxu0
        %v6156 = vadd.f32 %v5645, %v6155
        %v6157 = vpop.f32.mrb[0].mxu0
        %v6158 = vadd.f32 %v5647, %v6157
        %v6159 = vand.u32 %v976, 4294901760
        %v6160 = vsub.f32 %v976, %v6159
        %6161 = vmatprep.mubr.f32.mxu0 %v6160
        %v6162 = vand.u32 %v975, 4294901760
        %v6163 = vsub.f32 %v975, %v6162
        %6164 = vmatmul.mubr.f32.gmra.mrb[0].mxu0 %v6163
        %v6165 = vpop.f32.mrb[0].mxu0
        %v6166 = vadd.f32 %v5653, %v6165
        %v6167 = vpop.f32.mrb[0].mxu0
        %v6168 = vadd.f32 %v5655, %v6167
        %6169 = vdwg.mxu0
        %v6170 = vand.u32 %v1044, 4294901760
        %6171 = vmatprep.subr.mxu0 %v6170
        %v6172 = vand.u32 %v1043, 4294901760
        %6173 = vmatpush1.xpose.msra.mxu0 %v6172
        %v6174 = vand.u32 %v1048, 4294901760
        %6175 = vmatprep.subr.mxu0 %v6174
        %v6176 = vand.u32 %v1047, 4294901760
        %6177 = vmatpush1.xpose.msra.mxu0 %v6176
        %v6178 = vand.u32 %v1052, 4294901760
        %6179 = vmatprep.subr.mxu0 %v6178
        %v6180 = vand.u32 %v1051, 4294901760
        %6181 = vmatpush1.xpose.msra.mxu0 %v6180
        %v6182 = vand.u32 %v1056, 4294901760
        %6183 = vmatprep.subr.mxu0 %v6182
        %v6184 = vand.u32 %v1055, 4294901760
        %6185 = vmatpush1.xpose.msra.mxu0 %v6184
        %v6186 = vand.u32 %v1060, 4294901760
        %6187 = vmatprep.subr.mxu0 %v6186
        %v6188 = vand.u32 %v1059, 4294901760
        %6189 = vmatpush1.xpose.msra.mxu0 %v6188
        %v6190 = vand.u32 %v1064, 4294901760
        %6191 = vmatprep.subr.mxu0 %v6190
        %v6192 = vand.u32 %v1063, 4294901760
        %6193 = vmatpush1.xpose.msra.mxu0 %v6192
        %v6194 = vand.u32 %v1068, 4294901760
        %6195 = vmatprep.subr.mxu0 %v6194
        %v6196 = vand.u32 %v1067, 4294901760
        %6197 = vmatpush1.xpose.msra.mxu0 %v6196
        %v6198 = vand.u32 %v1072, 4294901760
        %6199 = vmatprep.subr.mxu0 %v6198
        %v6200 = vand.u32 %v1071, 4294901760
        %6201 = vmatpush1.xpose.msra.mxu0 %v6200
        %v6202 = vand.u32 %v1076, 4294901760
        %6203 = vmatprep.subr.mxu0 %v6202
        %v6204 = vand.u32 %v1075, 4294901760
        %6205 = vmatpush1.xpose.msra.mxu0 %v6204
        %v6206 = vand.u32 %v1080, 4294901760
        %6207 = vmatprep.subr.mxu0 %v6206
        %v6208 = vand.u32 %v1079, 4294901760
        %6209 = vmatpush1.xpose.msra.mxu0 %v6208
        %v6210 = vand.u32 %v1084, 4294901760
        %6211 = vmatprep.subr.mxu0 %v6210
        %v6212 = vand.u32 %v1083, 4294901760
        %6213 = vmatpush1.xpose.msra.mxu0 %v6212
        %v6214 = vand.u32 %v1088, 4294901760
        %6215 = vmatprep.subr.mxu0 %v6214
        %v6216 = vand.u32 %v1087, 4294901760
        %6217 = vmatpush1.xpose.msra.mxu0 %v6216
        %v6218 = vand.u32 %v1092, 4294901760
        %6219 = vmatprep.subr.mxu0 %v6218
        %v6220 = vand.u32 %v1091, 4294901760
        %6221 = vmatpush1.xpose.msra.mxu0 %v6220
        %v6222 = vand.u32 %v1096, 4294901760
        %6223 = vmatprep.subr.mxu0 %v6222
        %v6224 = vand.u32 %v1095, 4294901760
        %6225 = vmatpush1.xpose.msra.mxu0 %v6224
        %v6226 = vand.u32 %v1100, 4294901760
        %6227 = vmatprep.subr.mxu0 %v6226
        %v6228 = vand.u32 %v1099, 4294901760
        %6229 = vmatpush1.xpose.msra.mxu0 %v6228
        %v6230 = vand.u32 %v1104, 4294901760
        %6231 = vmatprep.subr.mxu0 %v6230
        %v6232 = vand.u32 %v1103, 4294901760
        %6233 = vmatpush1.xpose.msra.mxu0 %v6232
        %v6234 = vand.u32 %v1108, 4294901760
        %6235 = vmatprep.subr.mxu0 %v6234
        %v6236 = vand.u32 %v1107, 4294901760
        %6237 = vmatpush1.xpose.msra.mxu0 %v6236
        %v6238 = vand.u32 %v1112, 4294901760
        %6239 = vmatprep.subr.mxu0 %v6238
        %v6240 = vand.u32 %v1111, 4294901760
        %6241 = vmatpush1.xpose.msra.mxu0 %v6240
        %v6242 = vand.u32 %v1116, 4294901760
        %6243 = vmatprep.subr.mxu0 %v6242
        %v6244 = vand.u32 %v1115, 4294901760
        %6245 = vmatpush1.xpose.msra.mxu0 %v6244
        %v6246 = vand.u32 %v1120, 4294901760
        %6247 = vmatprep.subr.mxu0 %v6246
        %v6248 = vand.u32 %v1119, 4294901760
        %6249 = vmatpush1.xpose.msra.mxu0 %v6248
        %v6250 = vand.u32 %v1124, 4294901760
        %6251 = vmatprep.subr.mxu0 %v6250
        %v6252 = vand.u32 %v1123, 4294901760
        %6253 = vmatpush1.xpose.msra.mxu0 %v6252
        %v6254 = vand.u32 %v1128, 4294901760
        %6255 = vmatprep.subr.mxu0 %v6254
        %v6256 = vand.u32 %v1127, 4294901760
        %6257 = vmatpush1.xpose.msra.mxu0 %v6256
        %v6258 = vand.u32 %v1132, 4294901760
        %6259 = vmatprep.subr.mxu0 %v6258
        %v6260 = vand.u32 %v1131, 4294901760
        %6261 = vmatpush1.xpose.msra.mxu0 %v6260
        %v6262 = vand.u32 %v1136, 4294901760
        %6263 = vmatprep.subr.mxu0 %v6262
        %v6264 = vand.u32 %v1135, 4294901760
        %6265 = vmatpush1.xpose.msra.mxu0 %v6264
        %v6266 = vand.u32 %v1140, 4294901760
        %6267 = vmatprep.subr.mxu0 %v6266
        %v6268 = vand.u32 %v1139, 4294901760
        %6269 = vmatpush1.xpose.msra.mxu0 %v6268
        %v6270 = vand.u32 %v1144, 4294901760
        %6271 = vmatprep.subr.mxu0 %v6270
        %v6272 = vand.u32 %v1143, 4294901760
        %6273 = vmatpush1.xpose.msra.mxu0 %v6272
        %v6274 = vand.u32 %v1148, 4294901760
        %6275 = vmatprep.subr.mxu0 %v6274
        %v6276 = vand.u32 %v1147, 4294901760
        %6277 = vmatpush1.xpose.msra.mxu0 %v6276
        %v6278 = vand.u32 %v1152, 4294901760
        %6279 = vmatprep.subr.mxu0 %v6278
        %v6280 = vand.u32 %v1151, 4294901760
        %6281 = vmatpush1.xpose.msra.mxu0 %v6280
        %v6282 = vand.u32 %v1156, 4294901760
        %6283 = vmatprep.subr.mxu0 %v6282
        %v6284 = vand.u32 %v1155, 4294901760
        %6285 = vmatpush1.xpose.msra.mxu0 %v6284
        %v6286 = vand.u32 %v1160, 4294901760
        %6287 = vmatprep.subr.mxu0 %v6286
        %v6288 = vand.u32 %v1159, 4294901760
        %6289 = vmatpush1.xpose.msra.mxu0 %v6288
        %v6290 = vand.u32 %v1164, 4294901760
        %6291 = vmatprep.subr.mxu0 %v6290
        %v6292 = vand.u32 %v1163, 4294901760
        %6293 = vmatpush1.xpose.msra.mxu0 %v6292
        %v6294 = vand.u32 %v1168, 4294901760
        %6295 = vmatprep.subr.mxu0 %v6294
        %v6296 = vand.u32 %v1167, 4294901760
        %6297 = vmatpush1.xpose.msra.mxu0 %v6296
        %v6298 = vand.u32 %v852, 4294901760
        %v6299 = vsub.f32 %v852, %v6298
        %v6300 = vand.u32 %v6299, 4294901760
        %6301 = vmatprep.mubr.f32.mxu0 %v6300
        %v6302 = vand.u32 %v851, 4294901760
        %v6303 = vsub.f32 %v851, %v6302
        %v6304 = vand.u32 %v6303, 4294901760
        %6305 = vmatmul.mubr.f32.gmra.mrb[0].mxu0 %v6304
        %v6306 = vpop.f32.mrb[0].mxu0
        %v6307 = vadd.f32 %v5856, %v6306
        %v6308 = vpop.f32.mrb[0].mxu0
        %v6309 = vadd.f32 %v5858, %v6308
        %v6310 = vand.u32 %v856, 4294901760
        %v6311 = vsub.f32 %v856, %v6310
        %v6312 = vand.u32 %v6311, 4294901760
        %6313 = vmatprep.mubr.f32.mxu0 %v6312
        %v6314 = vand.u32 %v855, 4294901760
        %v6315 = vsub.f32 %v855, %v6314
        %v6316 = vand.u32 %v6315, 4294901760
        %6317 = vmatmul.mubr.f32.gmra.mrb[0].mxu0 %v6316
        %v6318 = vpop.f32.mrb[0].mxu0
        %v6319 = vadd.f32 %v5866, %v6318
        %v6320 = vpop.f32.mrb[0].mxu0
        %v6321 = vadd.f32 %v5868, %v6320
        %v6322 = vand.u32 %v860, 4294901760
        %v6323 = vsub.f32 %v860, %v6322
        %v6324 = vand.u32 %v6323, 4294901760
        %6325 = vmatprep.mubr.f32.mxu0 %v6324
        %v6326 = vand.u32 %v859, 4294901760
        %v6327 = vsub.f32 %v859, %v6326
        %v6328 = vand.u32 %v6327, 4294901760
        %6329 = vmatmul.mubr.f32.gmra.mrb[0].mxu0 %v6328
        %v6330 = vpop.f32.mrb[0].mxu0
        %v6331 = vadd.f32 %v5876, %v6330
        %v6332 = vpop.f32.mrb[0].mxu0
        %v6333 = vadd.f32 %v5878, %v6332
        %v6334 = vand.u32 %v864, 4294901760
        %v6335 = vsub.f32 %v864, %v6334
        %v6336 = vand.u32 %v6335, 4294901760
        %6337 = vmatprep.mubr.f32.mxu0 %v6336
        %v6338 = vand.u32 %v863, 4294901760
        %v6339 = vsub.f32 %v863, %v6338
        %v6340 = vand.u32 %v6339, 4294901760
        %6341 = vmatmul.mubr.f32.gmra.mrb[0].mxu0 %v6340
        %v6342 = vpop.f32.mrb[0].mxu0
        %v6343 = vadd.f32 %v5886, %v6342
        %v6344 = vpop.f32.mrb[0].mxu0
        %v6345 = vadd.f32 %v5888, %v6344
        %v6346 = vand.u32 %v868, 4294901760
        %v6347 = vsub.f32 %v868, %v6346
        %v6348 = vand.u32 %v6347, 4294901760
        %6349 = vmatprep.mubr.f32.mxu0 %v6348
        %v6350 = vand.u32 %v867, 4294901760
        %v6351 = vsub.f32 %v867, %v6350
        %v6352 = vand.u32 %v6351, 4294901760
        %6353 = vmatmul.mubr.f32.gmra.mrb[0].mxu0 %v6352
        %v6354 = vpop.f32.mrb[0].mxu0
        %v6355 = vadd.f32 %v5896, %v6354
        %v6356 = vpop.f32.mrb[0].mxu0
        %v6357 = vadd.f32 %v5898, %v6356
        %v6358 = vand.u32 %v872, 4294901760
        %v6359 = vsub.f32 %v872, %v6358
        %v6360 = vand.u32 %v6359, 4294901760
        %6361 = vmatprep.mubr.f32.mxu0 %v6360
        %v6362 = vand.u32 %v871, 4294901760
        %v6363 = vsub.f32 %v871, %v6362
        %v6364 = vand.u32 %v6363, 4294901760
        %6365 = vmatmul.mubr.f32.gmra.mrb[0].mxu0 %v6364
        %v6366 = vpop.f32.mrb[0].mxu0
        %v6367 = vadd.f32 %v5906, %v6366
        %v6368 = vpop.f32.mrb[0].mxu0
        %v6369 = vadd.f32 %v5908, %v6368
        %v6370 = vand.u32 %v876, 4294901760
        %v6371 = vsub.f32 %v876, %v6370
        %v6372 = vand.u32 %v6371, 4294901760
        %6373 = vmatprep.mubr.f32.mxu0 %v6372
        %v6374 = vand.u32 %v875, 4294901760
        %v6375 = vsub.f32 %v875, %v6374
        %v6376 = vand.u32 %v6375, 4294901760
        %6377 = vmatmul.mubr.f32.gmra.mrb[0].mxu0 %v6376
        %v6378 = vpop.f32.mrb[0].mxu0
        %v6379 = vadd.f32 %v5916, %v6378
        %v6380 = vpop.f32.mrb[0].mxu0
        %v6381 = vadd.f32 %v5918, %v6380
        %v6382 = vand.u32 %v880, 4294901760
        %v6383 = vsub.f32 %v880, %v6382
        %v6384 = vand.u32 %v6383, 4294901760
        %6385 = vmatprep.mubr.f32.mxu0 %v6384
        %v6386 = vand.u32 %v879, 4294901760
        %v6387 = vsub.f32 %v879, %v6386
        %v6388 = vand.u32 %v6387, 4294901760
        %6389 = vmatmul.mubr.f32.gmra.mrb[0].mxu0 %v6388
        %v6390 = vpop.f32.mrb[0].mxu0
        %v6391 = vadd.f32 %v5926, %v6390
        %v6392 = vpop.f32.mrb[0].mxu0
        %v6393 = vadd.f32 %v5928, %v6392
        %v6394 = vand.u32 %v884, 4294901760
        %v6395 = vsub.f32 %v884, %v6394
        %v6396 = vand.u32 %v6395, 4294901760
        %6397 = vmatprep.mubr.f32.mxu0 %v6396
        %v6398 = vand.u32 %v883, 4294901760
        %v6399 = vsub.f32 %v883, %v6398
        %v6400 = vand.u32 %v6399, 4294901760
        %6401 = vmatmul.mubr.f32.gmra.mrb[0].mxu0 %v6400
        %v6402 = vpop.f32.mrb[0].mxu0
        %v6403 = vadd.f32 %v5936, %v6402
        %v6404 = vpop.f32.mrb[0].mxu0
        %v6405 = vadd.f32 %v5938, %v6404
        %v6406 = vand.u32 %v888, 4294901760
        %v6407 = vsub.f32 %v888, %v6406
        %v6408 = vand.u32 %v6407, 4294901760
        %6409 = vmatprep.mubr.f32.mxu0 %v6408
        %v6410 = vand.u32 %v887, 4294901760
        %v6411 = vsub.f32 %v887, %v6410
        %v6412 = vand.u32 %v6411, 4294901760
        %6413 = vmatmul.mubr.f32.gmra.mrb[0].mxu0 %v6412
        %v6414 = vpop.f32.mrb[0].mxu0
        %v6415 = vadd.f32 %v5946, %v6414
        %v6416 = vpop.f32.mrb[0].mxu0
        %v6417 = vadd.f32 %v5948, %v6416
        %v6418 = vand.u32 %v892, 4294901760
        %v6419 = vsub.f32 %v892, %v6418
        %v6420 = vand.u32 %v6419, 4294901760
        %6421 = vmatprep.mubr.f32.mxu0 %v6420
        %v6422 = vand.u32 %v891, 4294901760
        %v6423 = vsub.f32 %v891, %v6422
        %v6424 = vand.u32 %v6423, 4294901760
        %6425 = vmatmul.mubr.f32.gmra.mrb[0].mxu0 %v6424
        %v6426 = vpop.f32.mrb[0].mxu0
        %v6427 = vadd.f32 %v5956, %v6426
        %v6428 = vpop.f32.mrb[0].mxu0
        %v6429 = vadd.f32 %v5958, %v6428
        %v6430 = vand.u32 %v896, 4294901760
        %v6431 = vsub.f32 %v896, %v6430
        %v6432 = vand.u32 %v6431, 4294901760
        %6433 = vmatprep.mubr.f32.mxu0 %v6432
        %v6434 = vand.u32 %v895, 4294901760
        %v6435 = vsub.f32 %v895, %v6434
        %v6436 = vand.u32 %v6435, 4294901760
        %6437 = vmatmul.mubr.f32.gmra.mrb[0].mxu0 %v6436
        %v6438 = vpop.f32.mrb[0].mxu0
        %v6439 = vadd.f32 %v5966, %v6438
        %v6440 = vpop.f32.mrb[0].mxu0
        %v6441 = vadd.f32 %v5968, %v6440
        %v6442 = vand.u32 %v900, 4294901760
        %v6443 = vsub.f32 %v900, %v6442
        %v6444 = vand.u32 %v6443, 4294901760
        %6445 = vmatprep.mubr.f32.mxu0 %v6444
        %v6446 = vand.u32 %v899, 4294901760
        %v6447 = vsub.f32 %v899, %v6446
        %v6448 = vand.u32 %v6447, 4294901760
        %6449 = vmatmul.mubr.f32.gmra.mrb[0].mxu0 %v6448
        %v6450 = vpop.f32.mrb[0].mxu0
        %v6451 = vadd.f32 %v5976, %v6450
        %v6452 = vpop.f32.mrb[0].mxu0
        %v6453 = vadd.f32 %v5978, %v6452
        %v6454 = vand.u32 %v904, 4294901760
        %v6455 = vsub.f32 %v904, %v6454
        %v6456 = vand.u32 %v6455, 4294901760
        %6457 = vmatprep.mubr.f32.mxu0 %v6456
        %v6458 = vand.u32 %v903, 4294901760
        %v6459 = vsub.f32 %v903, %v6458
        %v6460 = vand.u32 %v6459, 4294901760
        %6461 = vmatmul.mubr.f32.gmra.mrb[0].mxu0 %v6460
        %v6462 = vpop.f32.mrb[0].mxu0
        %v6463 = vadd.f32 %v5986, %v6462
        %v6464 = vpop.f32.mrb[0].mxu0
        %v6465 = vadd.f32 %v5988, %v6464
        %v6466 = vand.u32 %v908, 4294901760
        %v6467 = vsub.f32 %v908, %v6466
        %v6468 = vand.u32 %v6467, 4294901760
        %6469 = vmatprep.mubr.f32.mxu0 %v6468
        %v6470 = vand.u32 %v907, 4294901760
        %v6471 = vsub.f32 %v907, %v6470
        %v6472 = vand.u32 %v6471, 4294901760
        %6473 = vmatmul.mubr.f32.gmra.mrb[0].mxu0 %v6472
        %v6474 = vpop.f32.mrb[0].mxu0
        %v6475 = vadd.f32 %v5996, %v6474
        %v6476 = vpop.f32.mrb[0].mxu0
        %v6477 = vadd.f32 %v5998, %v6476
        %v6478 = vand.u32 %v912, 4294901760
        %v6479 = vsub.f32 %v912, %v6478
        %v6480 = vand.u32 %v6479, 4294901760
        %6481 = vmatprep.mubr.f32.mxu0 %v6480
        %v6482 = vand.u32 %v911, 4294901760
        %v6483 = vsub.f32 %v911, %v6482
        %v6484 = vand.u32 %v6483, 4294901760
        %6485 = vmatmul.mubr.f32.gmra.mrb[0].mxu0 %v6484
        %v6486 = vpop.f32.mrb[0].mxu0
        %v6487 = vadd.f32 %v6006, %v6486
        %v6488 = vpop.f32.mrb[0].mxu0
        %v6489 = vadd.f32 %v6008, %v6488
        %v6490 = vand.u32 %v916, 4294901760
        %v6491 = vsub.f32 %v916, %v6490
        %v6492 = vand.u32 %v6491, 4294901760
        %6493 = vmatprep.mubr.f32.mxu0 %v6492
        %v6494 = vand.u32 %v915, 4294901760
        %v6495 = vsub.f32 %v915, %v6494
        %v6496 = vand.u32 %v6495, 4294901760
        %6497 = vmatmul.mubr.f32.gmra.mrb[0].mxu0 %v6496
        %v6498 = vpop.f32.mrb[0].mxu0
        %v6499 = vadd.f32 %v6016, %v6498
        %v6500 = vpop.f32.mrb[0].mxu0
        %v6501 = vadd.f32 %v6018, %v6500
        %v6502 = vand.u32 %v920, 4294901760
        %v6503 = vsub.f32 %v920, %v6502
        %v6504 = vand.u32 %v6503, 4294901760
        %6505 = vmatprep.mubr.f32.mxu0 %v6504
        %v6506 = vand.u32 %v919, 4294901760
        %v6507 = vsub.f32 %v919, %v6506
        %v6508 = vand.u32 %v6507, 4294901760
        %6509 = vmatmul.mubr.f32.gmra.mrb[0].mxu0 %v6508
        %v6510 = vpop.f32.mrb[0].mxu0
        %v6511 = vadd.f32 %v6026, %v6510
        %v6512 = vpop.f32.mrb[0].mxu0
        %v6513 = vadd.f32 %v6028, %v6512
        %v6514 = vand.u32 %v924, 4294901760
        %v6515 = vsub.f32 %v924, %v6514
        %v6516 = vand.u32 %v6515, 4294901760
        %6517 = vmatprep.mubr.f32.mxu0 %v6516
        %v6518 = vand.u32 %v923, 4294901760
        %v6519 = vsub.f32 %v923, %v6518
        %v6520 = vand.u32 %v6519, 4294901760
        %6521 = vmatmul.mubr.f32.gmra.mrb[0].mxu0 %v6520
        %v6522 = vpop.f32.mrb[0].mxu0
        %v6523 = vadd.f32 %v6036, %v6522
        %v6524 = vpop.f32.mrb[0].mxu0
        %v6525 = vadd.f32 %v6038, %v6524
        %v6526 = vand.u32 %v928, 4294901760
        %v6527 = vsub.f32 %v928, %v6526
        %v6528 = vand.u32 %v6527, 4294901760
        %6529 = vmatprep.mubr.f32.mxu0 %v6528
        %v6530 = vand.u32 %v927, 4294901760
        %v6531 = vsub.f32 %v927, %v6530
        %v6532 = vand.u32 %v6531, 4294901760
        %6533 = vmatmul.mubr.f32.gmra.mrb[0].mxu0 %v6532
        %v6534 = vpop.f32.mrb[0].mxu0
        %v6535 = vadd.f32 %v6046, %v6534
        %v6536 = vpop.f32.mrb[0].mxu0
        %v6537 = vadd.f32 %v6048, %v6536
        %v6538 = vand.u32 %v932, 4294901760
        %v6539 = vsub.f32 %v932, %v6538
        %v6540 = vand.u32 %v6539, 4294901760
        %6541 = vmatprep.mubr.f32.mxu0 %v6540
        %v6542 = vand.u32 %v931, 4294901760
        %v6543 = vsub.f32 %v931, %v6542
        %v6544 = vand.u32 %v6543, 4294901760
        %6545 = vmatmul.mubr.f32.gmra.mrb[0].mxu0 %v6544
        %v6546 = vpop.f32.mrb[0].mxu0
        %v6547 = vadd.f32 %v6056, %v6546
        %v6548 = vpop.f32.mrb[0].mxu0
        %v6549 = vadd.f32 %v6058, %v6548
        %v6550 = vand.u32 %v936, 4294901760
        %v6551 = vsub.f32 %v936, %v6550
        %v6552 = vand.u32 %v6551, 4294901760
        %6553 = vmatprep.mubr.f32.mxu0 %v6552
        %v6554 = vand.u32 %v935, 4294901760
        %v6555 = vsub.f32 %v935, %v6554
        %v6556 = vand.u32 %v6555, 4294901760
        %6557 = vmatmul.mubr.f32.gmra.mrb[0].mxu0 %v6556
        %v6558 = vpop.f32.mrb[0].mxu0
        %v6559 = vadd.f32 %v6066, %v6558
        %v6560 = vpop.f32.mrb[0].mxu0
        %v6561 = vadd.f32 %v6068, %v6560
        %v6562 = vand.u32 %v940, 4294901760
        %v6563 = vsub.f32 %v940, %v6562
        %v6564 = vand.u32 %v6563, 4294901760
        %6565 = vmatprep.mubr.f32.mxu0 %v6564
        %v6566 = vand.u32 %v939, 4294901760
        %v6567 = vsub.f32 %v939, %v6566
        %v6568 = vand.u32 %v6567, 4294901760
        %6569 = vmatmul.mubr.f32.gmra.mrb[0].mxu0 %v6568
        %v6570 = vpop.f32.mrb[0].mxu0
        %v6571 = vadd.f32 %v6076, %v6570
        %v6572 = vpop.f32.mrb[0].mxu0
        %v6573 = vadd.f32 %v6078, %v6572
        %v6574 = vand.u32 %v944, 4294901760
        %v6575 = vsub.f32 %v944, %v6574
        %v6576 = vand.u32 %v6575, 4294901760
        %6577 = vmatprep.mubr.f32.mxu0 %v6576
        %v6578 = vand.u32 %v943, 4294901760
        %v6579 = vsub.f32 %v943, %v6578
        %v6580 = vand.u32 %v6579, 4294901760
        %6581 = vmatmul.mubr.f32.gmra.mrb[0].mxu0 %v6580
        %v6582 = vpop.f32.mrb[0].mxu0
        %v6583 = vadd.f32 %v6086, %v6582
        %v6584 = vpop.f32.mrb[0].mxu0
        %v6585 = vadd.f32 %v6088, %v6584
        %v6586 = vand.u32 %v948, 4294901760
        %v6587 = vsub.f32 %v948, %v6586
        %v6588 = vand.u32 %v6587, 4294901760
        %6589 = vmatprep.mubr.f32.mxu0 %v6588
        %v6590 = vand.u32 %v947, 4294901760
        %v6591 = vsub.f32 %v947, %v6590
        %v6592 = vand.u32 %v6591, 4294901760
        %6593 = vmatmul.mubr.f32.gmra.mrb[0].mxu0 %v6592
        %v6594 = vpop.f32.mrb[0].mxu0
        %v6595 = vadd.f32 %v6096, %v6594
        %v6596 = vpop.f32.mrb[0].mxu0
        %v6597 = vadd.f32 %v6098, %v6596
        %v6598 = vand.u32 %v952, 4294901760
        %v6599 = vsub.f32 %v952, %v6598
        %v6600 = vand.u32 %v6599, 4294901760
        %6601 = vmatprep.mubr.f32.mxu0 %v6600
        %v6602 = vand.u32 %v951, 4294901760
        %v6603 = vsub.f32 %v951, %v6602
        %v6604 = vand.u32 %v6603, 4294901760
        %6605 = vmatmul.mubr.f32.gmra.mrb[0].mxu0 %v6604
        %v6606 = vpop.f32.mrb[0].mxu0
        %v6607 = vadd.f32 %v6106, %v6606
        %v6608 = vpop.f32.mrb[0].mxu0
        %v6609 = vadd.f32 %v6108, %v6608
        %v6610 = vand.u32 %v956, 4294901760
        %v6611 = vsub.f32 %v956, %v6610
        %v6612 = vand.u32 %v6611, 4294901760
        %6613 = vmatprep.mubr.f32.mxu0 %v6612
        %v6614 = vand.u32 %v955, 4294901760
        %v6615 = vsub.f32 %v955, %v6614
        %v6616 = vand.u32 %v6615, 4294901760
        %6617 = vmatmul.mubr.f32.gmra.mrb[0].mxu0 %v6616
        %v6618 = vpop.f32.mrb[0].mxu0
        %v6619 = vadd.f32 %v6116, %v6618
        %v6620 = vpop.f32.mrb[0].mxu0
        %v6621 = vadd.f32 %v6118, %v6620
        %v6622 = vand.u32 %v960, 4294901760
        %v6623 = vsub.f32 %v960, %v6622
        %v6624 = vand.u32 %v6623, 4294901760
        %6625 = vmatprep.mubr.f32.mxu0 %v6624
        %v6626 = vand.u32 %v959, 4294901760
        %v6627 = vsub.f32 %v959, %v6626
        %v6628 = vand.u32 %v6627, 4294901760
        %6629 = vmatmul.mubr.f32.gmra.mrb[0].mxu0 %v6628
        %v6630 = vpop.f32.mrb[0].mxu0
        %v6631 = vadd.f32 %v6126, %v6630
        %v6632 = vpop.f32.mrb[0].mxu0
        %v6633 = vadd.f32 %v6128, %v6632
        %v6634 = vand.u32 %v964, 4294901760
        %v6635 = vsub.f32 %v964, %v6634
        %v6636 = vand.u32 %v6635, 4294901760
        %6637 = vmatprep.mubr.f32.mxu0 %v6636
        %v6638 = vand.u32 %v963, 4294901760
        %v6639 = vsub.f32 %v963, %v6638
        %v6640 = vand.u32 %v6639, 4294901760
        %6641 = vmatmul.mubr.f32.gmra.mrb[0].mxu0 %v6640
        %v6642 = vpop.f32.mrb[0].mxu0
        %v6643 = vadd.f32 %v6136, %v6642
        %v6644 = vpop.f32.mrb[0].mxu0
        %v6645 = vadd.f32 %v6138, %v6644
        %v6646 = vand.u32 %v968, 4294901760
        %v6647 = vsub.f32 %v968, %v6646
        %v6648 = vand.u32 %v6647, 4294901760
        %6649 = vmatprep.mubr.f32.mxu0 %v6648
        %v6650 = vand.u32 %v967, 4294901760
        %v6651 = vsub.f32 %v967, %v6650
        %v6652 = vand.u32 %v6651, 4294901760
        %6653 = vmatmul.mubr.f32.gmra.mrb[0].mxu0 %v6652
        %v6654 = vpop.f32.mrb[0].mxu0
        %v6655 = vadd.f32 %v6146, %v6654
        %v6656 = vpop.f32.mrb[0].mxu0
        %v6657 = vadd.f32 %v6148, %v6656
        %v6658 = vand.u32 %v972, 4294901760
        %v6659 = vsub.f32 %v972, %v6658
        %v6660 = vand.u32 %v6659, 4294901760
        %6661 = vmatprep.mubr.f32.mxu0 %v6660
        %v6662 = vand.u32 %v971, 4294901760
        %v6663 = vsub.f32 %v971, %v6662
        %v6664 = vand.u32 %v6663, 4294901760
        %6665 = vmatmul.mubr.f32.gmra.mrb[0].mxu0 %v6664
        %v6666 = vpop.f32.mrb[0].mxu0
        %v6667 = vadd.f32 %v6156, %v6666
        %v6668 = vpop.f32.mrb[0].mxu0
        %v6669 = vadd.f32 %v6158, %v6668
        %v6670 = vand.u32 %v976, 4294901760
        %v6671 = vsub.f32 %v976, %v6670
        %v6672 = vand.u32 %v6671, 4294901760
        %6673 = vmatprep.mubr.f32.mxu0 %v6672
        %v6674 = vand.u32 %v975, 4294901760
        %v6675 = vsub.f32 %v975, %v6674
        %v6676 = vand.u32 %v6675, 4294901760
        %6677 = vmatmul.mubr.f32.gmra.mrb[0].mxu0 %v6676
        %v6678 = vpop.f32.mrb[0].mxu0
        %v6679 = vadd.f32 %v6166, %v6678
        %v6680 = vpop.f32.mrb[0].mxu0
        %v6681 = vadd.f32 %v6168, %v6680
        %6682 = vdwg.mxu0
        %v6683 = vand.u32 %v1044, 4294901760
        %v6684 = vsub.f32 %v1044, %v6683
        %v6685 = vand.u32 %v6684, 4294901760
        %6686 = vmatprep.subr.mxu0 %v6685
        %v6687 = vand.u32 %v1043, 4294901760
        %v6688 = vsub.f32 %v1043, %v6687
        %v6689 = vand.u32 %v6688, 4294901760
        %6690 = vmatpush1.xpose.msra.mxu0 %v6689
        %v6691 = vand.u32 %v1048, 4294901760
        %v6692 = vsub.f32 %v1048, %v6691
        %v6693 = vand.u32 %v6692, 4294901760
        %6694 = vmatprep.subr.mxu0 %v6693
        %v6695 = vand.u32 %v1047, 4294901760
        %v6696 = vsub.f32 %v1047, %v6695
        %v6697 = vand.u32 %v6696, 4294901760
        %6698 = vmatpush1.xpose.msra.mxu0 %v6697
        %v6699 = vand.u32 %v1052, 4294901760
        %v6700 = vsub.f32 %v1052, %v6699
        %v6701 = vand.u32 %v6700, 4294901760
        %6702 = vmatprep.subr.mxu0 %v6701
        %v6703 = vand.u32 %v1051, 4294901760
        %v6704 = vsub.f32 %v1051, %v6703
        %v6705 = vand.u32 %v6704, 4294901760
        %6706 = vmatpush1.xpose.msra.mxu0 %v6705
        %v6707 = vand.u32 %v1056, 4294901760
        %v6708 = vsub.f32 %v1056, %v6707
        %v6709 = vand.u32 %v6708, 4294901760
        %6710 = vmatprep.subr.mxu0 %v6709
        %v6711 = vand.u32 %v1055, 4294901760
        %v6712 = vsub.f32 %v1055, %v6711
        %v6713 = vand.u32 %v6712, 4294901760
        %6714 = vmatpush1.xpose.msra.mxu0 %v6713
        %v6715 = vand.u32 %v1060, 4294901760
        %v6716 = vsub.f32 %v1060, %v6715
        %v6717 = vand.u32 %v6716, 4294901760
        %6718 = vmatprep.subr.mxu0 %v6717
        %v6719 = vand.u32 %v1059, 4294901760
        %v6720 = vsub.f32 %v1059, %v6719
        %v6721 = vand.u32 %v6720, 4294901760
        %6722 = vmatpush1.xpose.msra.mxu0 %v6721
        %v6723 = vand.u32 %v1064, 4294901760
        %v6724 = vsub.f32 %v1064, %v6723
        %v6725 = vand.u32 %v6724, 4294901760
        %6726 = vmatprep.subr.mxu0 %v6725
        %v6727 = vand.u32 %v1063, 4294901760
        %v6728 = vsub.f32 %v1063, %v6727
        %v6729 = vand.u32 %v6728, 4294901760
        %6730 = vmatpush1.xpose.msra.mxu0 %v6729
        %v6731 = vand.u32 %v1068, 4294901760
        %v6732 = vsub.f32 %v1068, %v6731
        %v6733 = vand.u32 %v6732, 4294901760
        %6734 = vmatprep.subr.mxu0 %v6733
        %v6735 = vand.u32 %v1067, 4294901760
        %v6736 = vsub.f32 %v1067, %v6735
        %v6737 = vand.u32 %v6736, 4294901760
        %6738 = vmatpush1.xpose.msra.mxu0 %v6737
        %v6739 = vand.u32 %v1072, 4294901760
        %v6740 = vsub.f32 %v1072, %v6739
        %v6741 = vand.u32 %v6740, 4294901760
        %6742 = vmatprep.subr.mxu0 %v6741
        %v6743 = vand.u32 %v1071, 4294901760
        %v6744 = vsub.f32 %v1071, %v6743
        %v6745 = vand.u32 %v6744, 4294901760
        %6746 = vmatpush1.xpose.msra.mxu0 %v6745
        %v6747 = vand.u32 %v1076, 4294901760
        %v6748 = vsub.f32 %v1076, %v6747
        %v6749 = vand.u32 %v6748, 4294901760
        %6750 = vmatprep.subr.mxu0 %v6749
        %v6751 = vand.u32 %v1075, 4294901760
        %v6752 = vsub.f32 %v1075, %v6751
        %v6753 = vand.u32 %v6752, 4294901760
        %6754 = vmatpush1.xpose.msra.mxu0 %v6753
        %v6755 = vand.u32 %v1080, 4294901760
        %v6756 = vsub.f32 %v1080, %v6755
        %v6757 = vand.u32 %v6756, 4294901760
        %6758 = vmatprep.subr.mxu0 %v6757
        %v6759 = vand.u32 %v1079, 4294901760
        %v6760 = vsub.f32 %v1079, %v6759
        %v6761 = vand.u32 %v6760, 4294901760
        %6762 = vmatpush1.xpose.msra.mxu0 %v6761
        %v6763 = vand.u32 %v1084, 4294901760
        %v6764 = vsub.f32 %v1084, %v6763
        %v6765 = vand.u32 %v6764, 4294901760
        %6766 = vmatprep.subr.mxu0 %v6765
        %v6767 = vand.u32 %v1083, 4294901760
        %v6768 = vsub.f32 %v1083, %v6767
        %v6769 = vand.u32 %v6768, 4294901760
        %6770 = vmatpush1.xpose.msra.mxu0 %v6769
        %v6771 = vand.u32 %v1088, 4294901760
        %v6772 = vsub.f32 %v1088, %v6771
        %v6773 = vand.u32 %v6772, 4294901760
        %6774 = vmatprep.subr.mxu0 %v6773
        %v6775 = vand.u32 %v1087, 4294901760
        %v6776 = vsub.f32 %v1087, %v6775
        %v6777 = vand.u32 %v6776, 4294901760
        %6778 = vmatpush1.xpose.msra.mxu0 %v6777
        %v6779 = vand.u32 %v1092, 4294901760
        %v6780 = vsub.f32 %v1092, %v6779
        %v6781 = vand.u32 %v6780, 4294901760
        %6782 = vmatprep.subr.mxu0 %v6781
        %v6783 = vand.u32 %v1091, 4294901760
        %v6784 = vsub.f32 %v1091, %v6783
        %v6785 = vand.u32 %v6784, 4294901760
        %6786 = vmatpush1.xpose.msra.mxu0 %v6785
        %v6787 = vand.u32 %v1096, 4294901760
        %v6788 = vsub.f32 %v1096, %v6787
        %v6789 = vand.u32 %v6788, 4294901760
        %6790 = vmatprep.subr.mxu0 %v6789
        %v6791 = vand.u32 %v1095, 4294901760
        %v6792 = vsub.f32 %v1095, %v6791
        %v6793 = vand.u32 %v6792, 4294901760
        %6794 = vmatpush1.xpose.msra.mxu0 %v6793
        %v6795 = vand.u32 %v1100, 4294901760
        %v6796 = vsub.f32 %v1100, %v6795
        %v6797 = vand.u32 %v6796, 4294901760
        %6798 = vmatprep.subr.mxu0 %v6797
        %v6799 = vand.u32 %v1099, 4294901760
        %v6800 = vsub.f32 %v1099, %v6799
        %v6801 = vand.u32 %v6800, 4294901760
        %6802 = vmatpush1.xpose.msra.mxu0 %v6801
        %v6803 = vand.u32 %v1104, 4294901760
        %v6804 = vsub.f32 %v1104, %v6803
        %v6805 = vand.u32 %v6804, 4294901760
        %6806 = vmatprep.subr.mxu0 %v6805
        %v6807 = vand.u32 %v1103, 4294901760
        %v6808 = vsub.f32 %v1103, %v6807
        %v6809 = vand.u32 %v6808, 4294901760
        %6810 = vmatpush1.xpose.msra.mxu0 %v6809
        %v6811 = vand.u32 %v1108, 4294901760
        %v6812 = vsub.f32 %v1108, %v6811
        %v6813 = vand.u32 %v6812, 4294901760
        %6814 = vmatprep.subr.mxu0 %v6813
        %v6815 = vand.u32 %v1107, 4294901760
        %v6816 = vsub.f32 %v1107, %v6815
        %v6817 = vand.u32 %v6816, 4294901760
        %6818 = vmatpush1.xpose.msra.mxu0 %v6817
        %v6819 = vand.u32 %v1112, 4294901760
        %v6820 = vsub.f32 %v1112, %v6819
        %v6821 = vand.u32 %v6820, 4294901760
        %6822 = vmatprep.subr.mxu0 %v6821
        %v6823 = vand.u32 %v1111, 4294901760
        %v6824 = vsub.f32 %v1111, %v6823
        %v6825 = vand.u32 %v6824, 4294901760
        %6826 = vmatpush1.xpose.msra.mxu0 %v6825
        %v6827 = vand.u32 %v1116, 4294901760
        %v6828 = vsub.f32 %v1116, %v6827
        %v6829 = vand.u32 %v6828, 4294901760
        %6830 = vmatprep.subr.mxu0 %v6829
        %v6831 = vand.u32 %v1115, 4294901760
        %v6832 = vsub.f32 %v1115, %v6831
        %v6833 = vand.u32 %v6832, 4294901760
        %6834 = vmatpush1.xpose.msra.mxu0 %v6833
        %v6835 = vand.u32 %v1120, 4294901760
        %v6836 = vsub.f32 %v1120, %v6835
        %v6837 = vand.u32 %v6836, 4294901760
        %6838 = vmatprep.subr.mxu0 %v6837
        %v6839 = vand.u32 %v1119, 4294901760
        %v6840 = vsub.f32 %v1119, %v6839
        %v6841 = vand.u32 %v6840, 4294901760
        %6842 = vmatpush1.xpose.msra.mxu0 %v6841
        %v6843 = vand.u32 %v1124, 4294901760
        %v6844 = vsub.f32 %v1124, %v6843
        %v6845 = vand.u32 %v6844, 4294901760
        %6846 = vmatprep.subr.mxu0 %v6845
        %v6847 = vand.u32 %v1123, 4294901760
        %v6848 = vsub.f32 %v1123, %v6847
        %v6849 = vand.u32 %v6848, 4294901760
        %6850 = vmatpush1.xpose.msra.mxu0 %v6849
        %v6851 = vand.u32 %v1128, 4294901760
        %v6852 = vsub.f32 %v1128, %v6851
        %v6853 = vand.u32 %v6852, 4294901760
        %6854 = vmatprep.subr.mxu0 %v6853
        %v6855 = vand.u32 %v1127, 4294901760
        %v6856 = vsub.f32 %v1127, %v6855
        %v6857 = vand.u32 %v6856, 4294901760
        %6858 = vmatpush1.xpose.msra.mxu0 %v6857
        %v6859 = vand.u32 %v1132, 4294901760
        %v6860 = vsub.f32 %v1132, %v6859
        %v6861 = vand.u32 %v6860, 4294901760
        %6862 = vmatprep.subr.mxu0 %v6861
        %v6863 = vand.u32 %v1131, 4294901760
        %v6864 = vsub.f32 %v1131, %v6863
        %v6865 = vand.u32 %v6864, 4294901760
        %6866 = vmatpush1.xpose.msra.mxu0 %v6865
        %v6867 = vand.u32 %v1136, 4294901760
        %v6868 = vsub.f32 %v1136, %v6867
        %v6869 = vand.u32 %v6868, 4294901760
        %6870 = vmatprep.subr.mxu0 %v6869
        %v6871 = vand.u32 %v1135, 4294901760
        %v6872 = vsub.f32 %v1135, %v6871
        %v6873 = vand.u32 %v6872, 4294901760
        %6874 = vmatpush1.xpose.msra.mxu0 %v6873
        %v6875 = vand.u32 %v1140, 4294901760
        %v6876 = vsub.f32 %v1140, %v6875
        %v6877 = vand.u32 %v6876, 4294901760
        %6878 = vmatprep.subr.mxu0 %v6877
        %v6879 = vand.u32 %v1139, 4294901760
        %v6880 = vsub.f32 %v1139, %v6879
        %v6881 = vand.u32 %v6880, 4294901760
        %6882 = vmatpush1.xpose.msra.mxu0 %v6881
        %v6883 = vand.u32 %v1144, 4294901760
        %v6884 = vsub.f32 %v1144, %v6883
        %v6885 = vand.u32 %v6884, 4294901760
        %6886 = vmatprep.subr.mxu0 %v6885
        %v6887 = vand.u32 %v1143, 4294901760
        %v6888 = vsub.f32 %v1143, %v6887
        %v6889 = vand.u32 %v6888, 4294901760
        %6890 = vmatpush1.xpose.msra.mxu0 %v6889
        %v6891 = vand.u32 %v1148, 4294901760
        %v6892 = vsub.f32 %v1148, %v6891
        %v6893 = vand.u32 %v6892, 4294901760
        %6894 = vmatprep.subr.mxu0 %v6893
        %v6895 = vand.u32 %v1147, 4294901760
        %v6896 = vsub.f32 %v1147, %v6895
        %v6897 = vand.u32 %v6896, 4294901760
        %6898 = vmatpush1.xpose.msra.mxu0 %v6897
        %v6899 = vand.u32 %v1152, 4294901760
        %v6900 = vsub.f32 %v1152, %v6899
        %v6901 = vand.u32 %v6900, 4294901760
        %6902 = vmatprep.subr.mxu0 %v6901
        %v6903 = vand.u32 %v1151, 4294901760
        %v6904 = vsub.f32 %v1151, %v6903
        %v6905 = vand.u32 %v6904, 4294901760
        %6906 = vmatpush1.xpose.msra.mxu0 %v6905
        %v6907 = vand.u32 %v1156, 4294901760
        %v6908 = vsub.f32 %v1156, %v6907
        %v6909 = vand.u32 %v6908, 4294901760
        %6910 = vmatprep.subr.mxu0 %v6909
        %v6911 = vand.u32 %v1155, 4294901760
        %v6912 = vsub.f32 %v1155, %v6911
        %v6913 = vand.u32 %v6912, 4294901760
        %6914 = vmatpush1.xpose.msra.mxu0 %v6913
        %v6915 = vand.u32 %v1160, 4294901760
        %v6916 = vsub.f32 %v1160, %v6915
        %v6917 = vand.u32 %v6916, 4294901760
        %6918 = vmatprep.subr.mxu0 %v6917
        %v6919 = vand.u32 %v1159, 4294901760
        %v6920 = vsub.f32 %v1159, %v6919
        %v6921 = vand.u32 %v6920, 4294901760
        %6922 = vmatpush1.xpose.msra.mxu0 %v6921
        %v6923 = vand.u32 %v1164, 4294901760
        %v6924 = vsub.f32 %v1164, %v6923
        %v6925 = vand.u32 %v6924, 4294901760
        %6926 = vmatprep.subr.mxu0 %v6925
        %v6927 = vand.u32 %v1163, 4294901760
        %v6928 = vsub.f32 %v1163, %v6927
        %v6929 = vand.u32 %v6928, 4294901760
        %6930 = vmatpush1.xpose.msra.mxu0 %v6929
        %v6931 = vand.u32 %v1168, 4294901760
        %v6932 = vsub.f32 %v1168, %v6931
        %v6933 = vand.u32 %v6932, 4294901760
        %6934 = vmatprep.subr.mxu0 %v6933
        %v6935 = vand.u32 %v1167, 4294901760
        %v6936 = vsub.f32 %v1167, %v6935
        %v6937 = vand.u32 %v6936, 4294901760
        %6938 = vmatpush1.xpose.msra.mxu0 %v6937
        %v6939 = vand.u32 %v852, 4294901760
        %6940 = vmatprep.mubr.f32.mxu0 %v6939
        %v6941 = vand.u32 %v851, 4294901760
        %6942 = vmatmul.mubr.f32.gmra.mrb[0].mxu0 %v6941
        %v6943 = vpop.f32.mrb[0].mxu0
        %v6944 = vadd.f32 %v6307, %v6943
        %v6945 = vpop.f32.mrb[0].mxu0
        %v6946 = vadd.f32 %v6309, %v6945
        %v6947 = vand.u32 %v856, 4294901760
        %6948 = vmatprep.mubr.f32.mxu0 %v6947
        %v6949 = vand.u32 %v855, 4294901760
        %6950 = vmatmul.mubr.f32.gmra.mrb[0].mxu0 %v6949
        %v6951 = vpop.f32.mrb[0].mxu0
        %v6952 = vadd.f32 %v6319, %v6951
        %v6953 = vpop.f32.mrb[0].mxu0
        %v6954 = vadd.f32 %v6321, %v6953
        %v6955 = vand.u32 %v860, 4294901760
        %6956 = vmatprep.mubr.f32.mxu0 %v6955
        %v6957 = vand.u32 %v859, 4294901760
        %6958 = vmatmul.mubr.f32.gmra.mrb[0].mxu0 %v6957
        %v6959 = vpop.f32.mrb[0].mxu0
        %v6960 = vadd.f32 %v6331, %v6959
        %v6961 = vpop.f32.mrb[0].mxu0
        %v6962 = vadd.f32 %v6333, %v6961
        %v6963 = vand.u32 %v864, 4294901760
        %6964 = vmatprep.mubr.f32.mxu0 %v6963
        %v6965 = vand.u32 %v863, 4294901760
        %6966 = vmatmul.mubr.f32.gmra.mrb[0].mxu0 %v6965
        %v6967 = vpop.f32.mrb[0].mxu0
        %v6968 = vadd.f32 %v6343, %v6967
        %v6969 = vpop.f32.mrb[0].mxu0
        %v6970 = vadd.f32 %v6345, %v6969
        %v6971 = vand.u32 %v868, 4294901760
        %6972 = vmatprep.mubr.f32.mxu0 %v6971
        %v6973 = vand.u32 %v867, 4294901760
        %6974 = vmatmul.mubr.f32.gmra.mrb[0].mxu0 %v6973
        %v6975 = vpop.f32.mrb[0].mxu0
        %v6976 = vadd.f32 %v6355, %v6975
        %v6977 = vpop.f32.mrb[0].mxu0
        %v6978 = vadd.f32 %v6357, %v6977
        %v6979 = vand.u32 %v872, 4294901760
        %6980 = vmatprep.mubr.f32.mxu0 %v6979
        %v6981 = vand.u32 %v871, 4294901760
        %6982 = vmatmul.mubr.f32.gmra.mrb[0].mxu0 %v6981
        %v6983 = vpop.f32.mrb[0].mxu0
        %v6984 = vadd.f32 %v6367, %v6983
        %v6985 = vpop.f32.mrb[0].mxu0
        %v6986 = vadd.f32 %v6369, %v6985
        %v6987 = vand.u32 %v876, 4294901760
        %6988 = vmatprep.mubr.f32.mxu0 %v6987
        %v6989 = vand.u32 %v875, 4294901760
        %6990 = vmatmul.mubr.f32.gmra.mrb[0].mxu0 %v6989
        %v6991 = vpop.f32.mrb[0].mxu0
        %v6992 = vadd.f32 %v6379, %v6991
        %v6993 = vpop.f32.mrb[0].mxu0
        %v6994 = vadd.f32 %v6381, %v6993
        %v6995 = vand.u32 %v880, 4294901760
        %6996 = vmatprep.mubr.f32.mxu0 %v6995
        %v6997 = vand.u32 %v879, 4294901760
        %6998 = vmatmul.mubr.f32.gmra.mrb[0].mxu0 %v6997
        %v6999 = vpop.f32.mrb[0].mxu0
        %v7000 = vadd.f32 %v6391, %v6999
        %v7001 = vpop.f32.mrb[0].mxu0
        %v7002 = vadd.f32 %v6393, %v7001
        %v7003 = vand.u32 %v884, 4294901760
        %7004 = vmatprep.mubr.f32.mxu0 %v7003
        %v7005 = vand.u32 %v883, 4294901760
        %7006 = vmatmul.mubr.f32.gmra.mrb[0].mxu0 %v7005
        %v7007 = vpop.f32.mrb[0].mxu0
        %v7008 = vadd.f32 %v6403, %v7007
        %v7009 = vpop.f32.mrb[0].mxu0
        %v7010 = vadd.f32 %v6405, %v7009
        %v7011 = vand.u32 %v888, 4294901760
        %7012 = vmatprep.mubr.f32.mxu0 %v7011
        %v7013 = vand.u32 %v887, 4294901760
        %7014 = vmatmul.mubr.f32.gmra.mrb[0].mxu0 %v7013
        %v7015 = vpop.f32.mrb[0].mxu0
        %v7016 = vadd.f32 %v6415, %v7015
        %v7017 = vpop.f32.mrb[0].mxu0
        %v7018 = vadd.f32 %v6417, %v7017
        %v7019 = vand.u32 %v892, 4294901760
        %7020 = vmatprep.mubr.f32.mxu0 %v7019
        %v7021 = vand.u32 %v891, 4294901760
        %7022 = vmatmul.mubr.f32.gmra.mrb[0].mxu0 %v7021
        %v7023 = vpop.f32.mrb[0].mxu0
        %v7024 = vadd.f32 %v6427, %v7023
        %v7025 = vpop.f32.mrb[0].mxu0
        %v7026 = vadd.f32 %v6429, %v7025
        %v7027 = vand.u32 %v896, 4294901760
        %7028 = vmatprep.mubr.f32.mxu0 %v7027
        %v7029 = vand.u32 %v895, 4294901760
        %7030 = vmatmul.mubr.f32.gmra.mrb[0].mxu0 %v7029
        %v7031 = vpop.f32.mrb[0].mxu0
        %v7032 = vadd.f32 %v6439, %v7031
        %v7033 = vpop.f32.mrb[0].mxu0
        %v7034 = vadd.f32 %v6441, %v7033
        %v7035 = vand.u32 %v900, 4294901760
        %7036 = vmatprep.mubr.f32.mxu0 %v7035
        %v7037 = vand.u32 %v899, 4294901760
        %7038 = vmatmul.mubr.f32.gmra.mrb[0].mxu0 %v7037
        %v7039 = vpop.f32.mrb[0].mxu0
        %v7040 = vadd.f32 %v6451, %v7039
        %v7041 = vpop.f32.mrb[0].mxu0
        %v7042 = vadd.f32 %v6453, %v7041
        %v7043 = vand.u32 %v904, 4294901760
        %7044 = vmatprep.mubr.f32.mxu0 %v7043
        %v7045 = vand.u32 %v903, 4294901760
        %7046 = vmatmul.mubr.f32.gmra.mrb[0].mxu0 %v7045
        %v7047 = vpop.f32.mrb[0].mxu0
        %v7048 = vadd.f32 %v6463, %v7047
        %v7049 = vpop.f32.mrb[0].mxu0
        %v7050 = vadd.f32 %v6465, %v7049
        %v7051 = vand.u32 %v908, 4294901760
        %7052 = vmatprep.mubr.f32.mxu0 %v7051
        %v7053 = vand.u32 %v907, 4294901760
        %7054 = vmatmul.mubr.f32.gmra.mrb[0].mxu0 %v7053
        %v7055 = vpop.f32.mrb[0].mxu0
        %v7056 = vadd.f32 %v6475, %v7055
        %v7057 = vpop.f32.mrb[0].mxu0
        %v7058 = vadd.f32 %v6477, %v7057
        %v7059 = vand.u32 %v912, 4294901760
        %7060 = vmatprep.mubr.f32.mxu0 %v7059
        %v7061 = vand.u32 %v911, 4294901760
        %7062 = vmatmul.mubr.f32.gmra.mrb[0].mxu0 %v7061
        %v7063 = vpop.f32.mrb[0].mxu0
        %v7064 = vadd.f32 %v6487, %v7063
        %v7065 = vpop.f32.mrb[0].mxu0
        %v7066 = vadd.f32 %v6489, %v7065
        %v7067 = vand.u32 %v916, 4294901760
        %7068 = vmatprep.mubr.f32.mxu0 %v7067
        %v7069 = vand.u32 %v915, 4294901760
        %7070 = vmatmul.mubr.f32.gmra.mrb[0].mxu0 %v7069
        %v7071 = vpop.f32.mrb[0].mxu0
        %v7072 = vadd.f32 %v6499, %v7071
        %v7073 = vpop.f32.mrb[0].mxu0
        %v7074 = vadd.f32 %v6501, %v7073
        %v7075 = vand.u32 %v920, 4294901760
        %7076 = vmatprep.mubr.f32.mxu0 %v7075
        %v7077 = vand.u32 %v919, 4294901760
        %7078 = vmatmul.mubr.f32.gmra.mrb[0].mxu0 %v7077
        %v7079 = vpop.f32.mrb[0].mxu0
        %v7080 = vadd.f32 %v6511, %v7079
        %v7081 = vpop.f32.mrb[0].mxu0
        %v7082 = vadd.f32 %v6513, %v7081
        %v7083 = vand.u32 %v924, 4294901760
        %7084 = vmatprep.mubr.f32.mxu0 %v7083
        %v7085 = vand.u32 %v923, 4294901760
        %7086 = vmatmul.mubr.f32.gmra.mrb[0].mxu0 %v7085
        %v7087 = vpop.f32.mrb[0].mxu0
        %v7088 = vadd.f32 %v6523, %v7087
        %v7089 = vpop.f32.mrb[0].mxu0
        %v7090 = vadd.f32 %v6525, %v7089
        %v7091 = vand.u32 %v928, 4294901760
        %7092 = vmatprep.mubr.f32.mxu0 %v7091
        %v7093 = vand.u32 %v927, 4294901760
        %7094 = vmatmul.mubr.f32.gmra.mrb[0].mxu0 %v7093
        %v7095 = vpop.f32.mrb[0].mxu0
        %v7096 = vadd.f32 %v6535, %v7095
        %v7097 = vpop.f32.mrb[0].mxu0
        %v7098 = vadd.f32 %v6537, %v7097
        %v7099 = vand.u32 %v932, 4294901760
        %7100 = vmatprep.mubr.f32.mxu0 %v7099
        %v7101 = vand.u32 %v931, 4294901760
        %7102 = vmatmul.mubr.f32.gmra.mrb[0].mxu0 %v7101
        %v7103 = vpop.f32.mrb[0].mxu0
        %v7104 = vadd.f32 %v6547, %v7103
        %v7105 = vpop.f32.mrb[0].mxu0
        %v7106 = vadd.f32 %v6549, %v7105
        %v7107 = vand.u32 %v936, 4294901760
        %7108 = vmatprep.mubr.f32.mxu0 %v7107
        %v7109 = vand.u32 %v935, 4294901760
        %7110 = vmatmul.mubr.f32.gmra.mrb[0].mxu0 %v7109
        %v7111 = vpop.f32.mrb[0].mxu0
        %v7112 = vadd.f32 %v6559, %v7111
        %v7113 = vpop.f32.mrb[0].mxu0
        %v7114 = vadd.f32 %v6561, %v7113
        %v7115 = vand.u32 %v940, 4294901760
        %7116 = vmatprep.mubr.f32.mxu0 %v7115
        %v7117 = vand.u32 %v939, 4294901760
        %7118 = vmatmul.mubr.f32.gmra.mrb[0].mxu0 %v7117
        %v7119 = vpop.f32.mrb[0].mxu0
        %v7120 = vadd.f32 %v6571, %v7119
        %v7121 = vpop.f32.mrb[0].mxu0
        %v7122 = vadd.f32 %v6573, %v7121
        %v7123 = vand.u32 %v944, 4294901760
        %7124 = vmatprep.mubr.f32.mxu0 %v7123
        %v7125 = vand.u32 %v943, 4294901760
        %7126 = vmatmul.mubr.f32.gmra.mrb[0].mxu0 %v7125
        %v7127 = vpop.f32.mrb[0].mxu0
        %v7128 = vadd.f32 %v6583, %v7127
        %v7129 = vpop.f32.mrb[0].mxu0
        %v7130 = vadd.f32 %v6585, %v7129
        %v7131 = vand.u32 %v948, 4294901760
        %7132 = vmatprep.mubr.f32.mxu0 %v7131
        %v7133 = vand.u32 %v947, 4294901760
        %7134 = vmatmul.mubr.f32.gmra.mrb[0].mxu0 %v7133
        %v7135 = vpop.f32.mrb[0].mxu0
        %v7136 = vadd.f32 %v6595, %v7135
        %v7137 = vpop.f32.mrb[0].mxu0
        %v7138 = vadd.f32 %v6597, %v7137
        %v7139 = vand.u32 %v952, 4294901760
        %7140 = vmatprep.mubr.f32.mxu0 %v7139
        %v7141 = vand.u32 %v951, 4294901760
        %7142 = vmatmul.mubr.f32.gmra.mrb[0].mxu0 %v7141
        %v7143 = vpop.f32.mrb[0].mxu0
        %v7144 = vadd.f32 %v6607, %v7143
        %v7145 = vpop.f32.mrb[0].mxu0
        %v7146 = vadd.f32 %v6609, %v7145
        %v7147 = vand.u32 %v956, 4294901760
        %7148 = vmatprep.mubr.f32.mxu0 %v7147
        %v7149 = vand.u32 %v955, 4294901760
        %7150 = vmatmul.mubr.f32.gmra.mrb[0].mxu0 %v7149
        %v7151 = vpop.f32.mrb[0].mxu0
        %v7152 = vadd.f32 %v6619, %v7151
        %v7153 = vpop.f32.mrb[0].mxu0
        %v7154 = vadd.f32 %v6621, %v7153
        %v7155 = vand.u32 %v960, 4294901760
        %7156 = vmatprep.mubr.f32.mxu0 %v7155
        %v7157 = vand.u32 %v959, 4294901760
        %7158 = vmatmul.mubr.f32.gmra.mrb[0].mxu0 %v7157
        %v7159 = vpop.f32.mrb[0].mxu0
        %v7160 = vadd.f32 %v6631, %v7159
        %v7161 = vpop.f32.mrb[0].mxu0
        %v7162 = vadd.f32 %v6633, %v7161
        %v7163 = vand.u32 %v964, 4294901760
        %7164 = vmatprep.mubr.f32.mxu0 %v7163
        %v7165 = vand.u32 %v963, 4294901760
        %7166 = vmatmul.mubr.f32.gmra.mrb[0].mxu0 %v7165
        %v7167 = vpop.f32.mrb[0].mxu0
        %v7168 = vadd.f32 %v6643, %v7167
        %v7169 = vpop.f32.mrb[0].mxu0
        %v7170 = vadd.f32 %v6645, %v7169
        %v7171 = vand.u32 %v968, 4294901760
        %7172 = vmatprep.mubr.f32.mxu0 %v7171
        %v7173 = vand.u32 %v967, 4294901760
        %7174 = vmatmul.mubr.f32.gmra.mrb[0].mxu0 %v7173
        %v7175 = vpop.f32.mrb[0].mxu0
        %v7176 = vadd.f32 %v6655, %v7175
        %v7177 = vpop.f32.mrb[0].mxu0
        %v7178 = vadd.f32 %v6657, %v7177
        %v7179 = vand.u32 %v972, 4294901760
        %7180 = vmatprep.mubr.f32.mxu0 %v7179
        %v7181 = vand.u32 %v971, 4294901760
        %7182 = vmatmul.mubr.f32.gmra.mrb[0].mxu0 %v7181
        %v7183 = vpop.f32.mrb[0].mxu0
        %v7184 = vadd.f32 %v6667, %v7183
        %v7185 = vpop.f32.mrb[0].mxu0
        %v7186 = vadd.f32 %v6669, %v7185
        %v7187 = vand.u32 %v976, 4294901760
        %7188 = vmatprep.mubr.f32.mxu0 %v7187
        %v7189 = vand.u32 %v975, 4294901760
        %7190 = vmatmul.mubr.f32.gmra.mrb[0].mxu0 %v7189
        %v7191 = vpop.f32.mrb[0].mxu0
        %v7192 = vadd.f32 %v6679, %v7191
        %v7193 = vpop.f32.mrb[0].mxu0
        %v7194 = vadd.f32 %v6681, %v7193
        %7195 = vdwg.mxu0
        %v7196 = vand.u32 %v1044, 4294901760
        %7197 = vmatprep.subr.mxu0 %v7196
        %v7198 = vand.u32 %v1043, 4294901760
        %7199 = vmatpush1.xpose.msra.mxu0 %v7198
        %v7200 = vand.u32 %v1048, 4294901760
        %7201 = vmatprep.subr.mxu0 %v7200
        %v7202 = vand.u32 %v1047, 4294901760
        %7203 = vmatpush1.xpose.msra.mxu0 %v7202
        %v7204 = vand.u32 %v1052, 4294901760
        %7205 = vmatprep.subr.mxu0 %v7204
        %v7206 = vand.u32 %v1051, 4294901760
        %7207 = vmatpush1.xpose.msra.mxu0 %v7206
        %v7208 = vand.u32 %v1056, 4294901760
        %7209 = vmatprep.subr.mxu0 %v7208
        %v7210 = vand.u32 %v1055, 4294901760
        %7211 = vmatpush1.xpose.msra.mxu0 %v7210
        %v7212 = vand.u32 %v1060, 4294901760
        %7213 = vmatprep.subr.mxu0 %v7212
        %v7214 = vand.u32 %v1059, 4294901760
        %7215 = vmatpush1.xpose.msra.mxu0 %v7214
        %v7216 = vand.u32 %v1064, 4294901760
        %7217 = vmatprep.subr.mxu0 %v7216
        %v7218 = vand.u32 %v1063, 4294901760
        %7219 = vmatpush1.xpose.msra.mxu0 %v7218
        %v7220 = vand.u32 %v1068, 4294901760
        %7221 = vmatprep.subr.mxu0 %v7220
        %v7222 = vand.u32 %v1067, 4294901760
        %7223 = vmatpush1.xpose.msra.mxu0 %v7222
        %v7224 = vand.u32 %v1072, 4294901760
        %7225 = vmatprep.subr.mxu0 %v7224
        %v7226 = vand.u32 %v1071, 4294901760
        %7227 = vmatpush1.xpose.msra.mxu0 %v7226
        %v7228 = vand.u32 %v1076, 4294901760
        %7229 = vmatprep.subr.mxu0 %v7228
        %v7230 = vand.u32 %v1075, 4294901760
        %7231 = vmatpush1.xpose.msra.mxu0 %v7230
        %v7232 = vand.u32 %v1080, 4294901760
        %7233 = vmatprep.subr.mxu0 %v7232
        %v7234 = vand.u32 %v1079, 4294901760
        %7235 = vmatpush1.xpose.msra.mxu0 %v7234
        %v7236 = vand.u32 %v1084, 4294901760
        %7237 = vmatprep.subr.mxu0 %v7236
        %v7238 = vand.u32 %v1083, 4294901760
        %7239 = vmatpush1.xpose.msra.mxu0 %v7238
        %v7240 = vand.u32 %v1088, 4294901760
        %7241 = vmatprep.subr.mxu0 %v7240
        %v7242 = vand.u32 %v1087, 4294901760
        %7243 = vmatpush1.xpose.msra.mxu0 %v7242
        %v7244 = vand.u32 %v1092, 4294901760
        %7245 = vmatprep.subr.mxu0 %v7244
        %v7246 = vand.u32 %v1091, 4294901760
        %7247 = vmatpush1.xpose.msra.mxu0 %v7246
        %v7248 = vand.u32 %v1096, 4294901760
        %7249 = vmatprep.subr.mxu0 %v7248
        %v7250 = vand.u32 %v1095, 4294901760
        %7251 = vmatpush1.xpose.msra.mxu0 %v7250
        %v7252 = vand.u32 %v1100, 4294901760
        %7253 = vmatprep.subr.mxu0 %v7252
        %v7254 = vand.u32 %v1099, 4294901760
        %7255 = vmatpush1.xpose.msra.mxu0 %v7254
        %v7256 = vand.u32 %v1104, 4294901760
        %7257 = vmatprep.subr.mxu0 %v7256
        %v7258 = vand.u32 %v1103, 4294901760
        %7259 = vmatpush1.xpose.msra.mxu0 %v7258
        %v7260 = vand.u32 %v1108, 4294901760
        %7261 = vmatprep.subr.mxu0 %v7260
        %v7262 = vand.u32 %v1107, 4294901760
        %7263 = vmatpush1.xpose.msra.mxu0 %v7262
        %v7264 = vand.u32 %v1112, 4294901760
        %7265 = vmatprep.subr.mxu0 %v7264
        %v7266 = vand.u32 %v1111, 4294901760
        %7267 = vmatpush1.xpose.msra.mxu0 %v7266
        %v7268 = vand.u32 %v1116, 4294901760
        %7269 = vmatprep.subr.mxu0 %v7268
        %v7270 = vand.u32 %v1115, 4294901760
        %7271 = vmatpush1.xpose.msra.mxu0 %v7270
        %v7272 = vand.u32 %v1120, 4294901760
        %7273 = vmatprep.subr.mxu0 %v7272
        %v7274 = vand.u32 %v1119, 4294901760
        %7275 = vmatpush1.xpose.msra.mxu0 %v7274
        %v7276 = vand.u32 %v1124, 4294901760
        %7277 = vmatprep.subr.mxu0 %v7276
        %v7278 = vand.u32 %v1123, 4294901760
        %7279 = vmatpush1.xpose.msra.mxu0 %v7278
        %v7280 = vand.u32 %v1128, 4294901760
        %7281 = vmatprep.subr.mxu0 %v7280
        %v7282 = vand.u32 %v1127, 4294901760
        %7283 = vmatpush1.xpose.msra.mxu0 %v7282
        %v7284 = vand.u32 %v1132, 4294901760
        %7285 = vmatprep.subr.mxu0 %v7284
        %v7286 = vand.u32 %v1131, 4294901760
        %7287 = vmatpush1.xpose.msra.mxu0 %v7286
        %v7288 = vand.u32 %v1136, 4294901760
        %7289 = vmatprep.subr.mxu0 %v7288
        %v7290 = vand.u32 %v1135, 4294901760
        %7291 = vmatpush1.xpose.msra.mxu0 %v7290
        %v7292 = vand.u32 %v1140, 4294901760
        %7293 = vmatprep.subr.mxu0 %v7292
        %v7294 = vand.u32 %v1139, 4294901760
        %7295 = vmatpush1.xpose.msra.mxu0 %v7294
        %v7296 = vand.u32 %v1144, 4294901760
        %7297 = vmatprep.subr.mxu0 %v7296
        %v7298 = vand.u32 %v1143, 4294901760
        %7299 = vmatpush1.xpose.msra.mxu0 %v7298
        %v7300 = vand.u32 %v1148, 4294901760
        %7301 = vmatprep.subr.mxu0 %v7300
        %v7302 = vand.u32 %v1147, 4294901760
        %7303 = vmatpush1.xpose.msra.mxu0 %v7302
        %v7304 = vand.u32 %v1152, 4294901760
        %7305 = vmatprep.subr.mxu0 %v7304
        %v7306 = vand.u32 %v1151, 4294901760
        %7307 = vmatpush1.xpose.msra.mxu0 %v7306
        %v7308 = vand.u32 %v1156, 4294901760
        %7309 = vmatprep.subr.mxu0 %v7308
        %v7310 = vand.u32 %v1155, 4294901760
        %7311 = vmatpush1.xpose.msra.mxu0 %v7310
        %v7312 = vand.u32 %v1160, 4294901760
        %7313 = vmatprep.subr.mxu0 %v7312
        %v7314 = vand.u32 %v1159, 4294901760
        %7315 = vmatpush1.xpose.msra.mxu0 %v7314
        %v7316 = vand.u32 %v1164, 4294901760
        %7317 = vmatprep.subr.mxu0 %v7316
        %v7318 = vand.u32 %v1163, 4294901760
        %7319 = vmatpush1.xpose.msra.mxu0 %v7318
        %v7320 = vand.u32 %v1168, 4294901760
        %7321 = vmatprep.subr.mxu0 %v7320
        %v7322 = vand.u32 %v1167, 4294901760
        %7323 = vmatpush1.xpose.msra.mxu0 %v7322
        %v7324 = vand.u32 %v852, 4294901760
        %7325 = vmatprep.mubr.f32.mxu0 %v7324
        %v7326 = vand.u32 %v851, 4294901760
        %7327 = vmatmul.mubr.f32.gmra.mrb[0].mxu0 %v7326
        %v7328 = vpop.f32.mrb[0].mxu0
        %v7329 = vadd.f32 %v6944, %v7328
        %v7330 = vpop.f32.mrb[0].mxu0
        %v7331 = vadd.f32 %v6946, %v7330
        %v7332 = vand.u32 %v856, 4294901760
        %7333 = vmatprep.mubr.f32.mxu0 %v7332
        %v7334 = vand.u32 %v855, 4294901760
        %7335 = vmatmul.mubr.f32.gmra.mrb[0].mxu0 %v7334
        %v7336 = vpop.f32.mrb[0].mxu0
        %v7337 = vadd.f32 %v6952, %v7336
        %v7338 = vpop.f32.mrb[0].mxu0
        %v7339 = vadd.f32 %v6954, %v7338
        %v7340 = vand.u32 %v860, 4294901760
        %7341 = vmatprep.mubr.f32.mxu0 %v7340
        %v7342 = vand.u32 %v859, 4294901760
        %7343 = vmatmul.mubr.f32.gmra.mrb[0].mxu0 %v7342
        %v7344 = vpop.f32.mrb[0].mxu0
        %v7345 = vadd.f32 %v6960, %v7344
        %v7346 = vpop.f32.mrb[0].mxu0
        %v7347 = vadd.f32 %v6962, %v7346
        %v7348 = vand.u32 %v864, 4294901760
        %7349 = vmatprep.mubr.f32.mxu0 %v7348
        %v7350 = vand.u32 %v863, 4294901760
        %7351 = vmatmul.mubr.f32.gmra.mrb[0].mxu0 %v7350
        %v7352 = vpop.f32.mrb[0].mxu0
        %v7353 = vadd.f32 %v6968, %v7352
        %v7354 = vpop.f32.mrb[0].mxu0
        %v7355 = vadd.f32 %v6970, %v7354
        %v7356 = vand.u32 %v868, 4294901760
        %7357 = vmatprep.mubr.f32.mxu0 %v7356
        %v7358 = vand.u32 %v867, 4294901760
        %7359 = vmatmul.mubr.f32.gmra.mrb[0].mxu0 %v7358
        %v7360 = vpop.f32.mrb[0].mxu0
        %v7361 = vadd.f32 %v6976, %v7360
        %v7362 = vpop.f32.mrb[0].mxu0
        %v7363 = vadd.f32 %v6978, %v7362
        %v7364 = vand.u32 %v872, 4294901760
        %7365 = vmatprep.mubr.f32.mxu0 %v7364
        %v7366 = vand.u32 %v871, 4294901760
        %7367 = vmatmul.mubr.f32.gmra.mrb[0].mxu0 %v7366
        %v7368 = vpop.f32.mrb[0].mxu0
        %v7369 = vadd.f32 %v6984, %v7368
        %v7370 = vpop.f32.mrb[0].mxu0
        %v7371 = vadd.f32 %v6986, %v7370
        %v7372 = vand.u32 %v876, 4294901760
        %7373 = vmatprep.mubr.f32.mxu0 %v7372
        %v7374 = vand.u32 %v875, 4294901760
        %7375 = vmatmul.mubr.f32.gmra.mrb[0].mxu0 %v7374
        %v7376 = vpop.f32.mrb[0].mxu0
        %v7377 = vadd.f32 %v6992, %v7376
        %v7378 = vpop.f32.mrb[0].mxu0
        %v7379 = vadd.f32 %v6994, %v7378
        %v7380 = vand.u32 %v880, 4294901760
        %7381 = vmatprep.mubr.f32.mxu0 %v7380
        %v7382 = vand.u32 %v879, 4294901760
        %7383 = vmatmul.mubr.f32.gmra.mrb[0].mxu0 %v7382
        %v7384 = vpop.f32.mrb[0].mxu0
        %v7385 = vadd.f32 %v7000, %v7384
        %v7386 = vpop.f32.mrb[0].mxu0
        %v7387 = vadd.f32 %v7002, %v7386
        %v7388 = vand.u32 %v884, 4294901760
        %7389 = vmatprep.mubr.f32.mxu0 %v7388
        %v7390 = vand.u32 %v883, 4294901760
        %7391 = vmatmul.mubr.f32.gmra.mrb[0].mxu0 %v7390
        %v7392 = vpop.f32.mrb[0].mxu0
        %v7393 = vadd.f32 %v7008, %v7392
        %v7394 = vpop.f32.mrb[0].mxu0
        %v7395 = vadd.f32 %v7010, %v7394
        %v7396 = vand.u32 %v888, 4294901760
        %7397 = vmatprep.mubr.f32.mxu0 %v7396
        %v7398 = vand.u32 %v887, 4294901760
        %7399 = vmatmul.mubr.f32.gmra.mrb[0].mxu0 %v7398
        %v7400 = vpop.f32.mrb[0].mxu0
        %v7401 = vadd.f32 %v7016, %v7400
        %v7402 = vpop.f32.mrb[0].mxu0
        %v7403 = vadd.f32 %v7018, %v7402
        %v7404 = vand.u32 %v892, 4294901760
        %7405 = vmatprep.mubr.f32.mxu0 %v7404
        %v7406 = vand.u32 %v891, 4294901760
        %7407 = vmatmul.mubr.f32.gmra.mrb[0].mxu0 %v7406
        %v7408 = vpop.f32.mrb[0].mxu0
        %v7409 = vadd.f32 %v7024, %v7408
        %v7410 = vpop.f32.mrb[0].mxu0
        %v7411 = vadd.f32 %v7026, %v7410
        %v7412 = vand.u32 %v896, 4294901760
        %7413 = vmatprep.mubr.f32.mxu0 %v7412
        %v7414 = vand.u32 %v895, 4294901760
        %7415 = vmatmul.mubr.f32.gmra.mrb[0].mxu0 %v7414
        %v7416 = vpop.f32.mrb[0].mxu0
        %v7417 = vadd.f32 %v7032, %v7416
        %v7418 = vpop.f32.mrb[0].mxu0
        %v7419 = vadd.f32 %v7034, %v7418
        %v7420 = vand.u32 %v900, 4294901760
        %7421 = vmatprep.mubr.f32.mxu0 %v7420
        %v7422 = vand.u32 %v899, 4294901760
        %7423 = vmatmul.mubr.f32.gmra.mrb[0].mxu0 %v7422
        %v7424 = vpop.f32.mrb[0].mxu0
        %v7425 = vadd.f32 %v7040, %v7424
        %v7426 = vpop.f32.mrb[0].mxu0
        %v7427 = vadd.f32 %v7042, %v7426
        %v7428 = vand.u32 %v904, 4294901760
        %7429 = vmatprep.mubr.f32.mxu0 %v7428
        %v7430 = vand.u32 %v903, 4294901760
        %7431 = vmatmul.mubr.f32.gmra.mrb[0].mxu0 %v7430
        %v7432 = vpop.f32.mrb[0].mxu0
        %v7433 = vadd.f32 %v7048, %v7432
        %v7434 = vpop.f32.mrb[0].mxu0
        %v7435 = vadd.f32 %v7050, %v7434
        %v7436 = vand.u32 %v908, 4294901760
        %7437 = vmatprep.mubr.f32.mxu0 %v7436
        %v7438 = vand.u32 %v907, 4294901760
        %7439 = vmatmul.mubr.f32.gmra.mrb[0].mxu0 %v7438
        %v7440 = vpop.f32.mrb[0].mxu0
        %v7441 = vadd.f32 %v7056, %v7440
        %v7442 = vpop.f32.mrb[0].mxu0
        %v7443 = vadd.f32 %v7058, %v7442
        %v7444 = vand.u32 %v912, 4294901760
        %7445 = vmatprep.mubr.f32.mxu0 %v7444
        %v7446 = vand.u32 %v911, 4294901760
        %7447 = vmatmul.mubr.f32.gmra.mrb[0].mxu0 %v7446
        %v7448 = vpop.f32.mrb[0].mxu0
        %v7449 = vadd.f32 %v7064, %v7448
        %v7450 = vpop.f32.mrb[0].mxu0
        %v7451 = vadd.f32 %v7066, %v7450
        %v7452 = vand.u32 %v916, 4294901760
        %7453 = vmatprep.mubr.f32.mxu0 %v7452
        %v7454 = vand.u32 %v915, 4294901760
        %7455 = vmatmul.mubr.f32.gmra.mrb[0].mxu0 %v7454
        %v7456 = vpop.f32.mrb[0].mxu0
        %v7457 = vadd.f32 %v7072, %v7456
        %v7458 = vpop.f32.mrb[0].mxu0
        %v7459 = vadd.f32 %v7074, %v7458
        %v7460 = vand.u32 %v920, 4294901760
        %7461 = vmatprep.mubr.f32.mxu0 %v7460
        %v7462 = vand.u32 %v919, 4294901760
        %7463 = vmatmul.mubr.f32.gmra.mrb[0].mxu0 %v7462
        %v7464 = vpop.f32.mrb[0].mxu0
        %v7465 = vadd.f32 %v7080, %v7464
        %v7466 = vpop.f32.mrb[0].mxu0
        %v7467 = vadd.f32 %v7082, %v7466
        %v7468 = vand.u32 %v924, 4294901760
        %7469 = vmatprep.mubr.f32.mxu0 %v7468
        %v7470 = vand.u32 %v923, 4294901760
        %7471 = vmatmul.mubr.f32.gmra.mrb[0].mxu0 %v7470
        %v7472 = vpop.f32.mrb[0].mxu0
        %v7473 = vadd.f32 %v7088, %v7472
        %v7474 = vpop.f32.mrb[0].mxu0
        %v7475 = vadd.f32 %v7090, %v7474
        %v7476 = vand.u32 %v928, 4294901760
        %7477 = vmatprep.mubr.f32.mxu0 %v7476
        %v7478 = vand.u32 %v927, 4294901760
        %7479 = vmatmul.mubr.f32.gmra.mrb[0].mxu0 %v7478
        %v7480 = vpop.f32.mrb[0].mxu0
        %v7481 = vadd.f32 %v7096, %v7480
        %v7482 = vpop.f32.mrb[0].mxu0
        %v7483 = vadd.f32 %v7098, %v7482
        %v7484 = vand.u32 %v932, 4294901760
        %7485 = vmatprep.mubr.f32.mxu0 %v7484
        %v7486 = vand.u32 %v931, 4294901760
        %7487 = vmatmul.mubr.f32.gmra.mrb[0].mxu0 %v7486
        %v7488 = vpop.f32.mrb[0].mxu0
        %v7489 = vadd.f32 %v7104, %v7488
        %v7490 = vpop.f32.mrb[0].mxu0
        %v7491 = vadd.f32 %v7106, %v7490
        %v7492 = vand.u32 %v936, 4294901760
        %7493 = vmatprep.mubr.f32.mxu0 %v7492
        %v7494 = vand.u32 %v935, 4294901760
        %7495 = vmatmul.mubr.f32.gmra.mrb[0].mxu0 %v7494
        %v7496 = vpop.f32.mrb[0].mxu0
        %v7497 = vadd.f32 %v7112, %v7496
        %v7498 = vpop.f32.mrb[0].mxu0
        %v7499 = vadd.f32 %v7114, %v7498
        %v7500 = vand.u32 %v940, 4294901760
        %7501 = vmatprep.mubr.f32.mxu0 %v7500
        %v7502 = vand.u32 %v939, 4294901760
        %7503 = vmatmul.mubr.f32.gmra.mrb[0].mxu0 %v7502
        %v7504 = vpop.f32.mrb[0].mxu0
        %v7505 = vadd.f32 %v7120, %v7504
        %v7506 = vpop.f32.mrb[0].mxu0
        %v7507 = vadd.f32 %v7122, %v7506
        %v7508 = vand.u32 %v944, 4294901760
        %7509 = vmatprep.mubr.f32.mxu0 %v7508
        %v7510 = vand.u32 %v943, 4294901760
        %7511 = vmatmul.mubr.f32.gmra.mrb[0].mxu0 %v7510
        %v7512 = vpop.f32.mrb[0].mxu0
        %v7513 = vadd.f32 %v7128, %v7512
        %v7514 = vpop.f32.mrb[0].mxu0
        %v7515 = vadd.f32 %v7130, %v7514
        %v7516 = vand.u32 %v948, 4294901760
        %7517 = vmatprep.mubr.f32.mxu0 %v7516
        %v7518 = vand.u32 %v947, 4294901760
        %7519 = vmatmul.mubr.f32.gmra.mrb[0].mxu0 %v7518
        %v7520 = vpop.f32.mrb[0].mxu0
        %v7521 = vadd.f32 %v7136, %v7520
        %v7522 = vpop.f32.mrb[0].mxu0
        %v7523 = vadd.f32 %v7138, %v7522
        %v7524 = vand.u32 %v952, 4294901760
        %7525 = vmatprep.mubr.f32.mxu0 %v7524
        %v7526 = vand.u32 %v951, 4294901760
        %7527 = vmatmul.mubr.f32.gmra.mrb[0].mxu0 %v7526
        %v7528 = vpop.f32.mrb[0].mxu0
        %v7529 = vadd.f32 %v7144, %v7528
        %v7530 = vpop.f32.mrb[0].mxu0
        %v7531 = vadd.f32 %v7146, %v7530
        %v7532 = vand.u32 %v956, 4294901760
        %7533 = vmatprep.mubr.f32.mxu0 %v7532
        %v7534 = vand.u32 %v955, 4294901760
        %7535 = vmatmul.mubr.f32.gmra.mrb[0].mxu0 %v7534
        %v7536 = vpop.f32.mrb[0].mxu0
        %v7537 = vadd.f32 %v7152, %v7536
        %v7538 = vpop.f32.mrb[0].mxu0
        %v7539 = vadd.f32 %v7154, %v7538
        %v7540 = vand.u32 %v960, 4294901760
        %7541 = vmatprep.mubr.f32.mxu0 %v7540
        %v7542 = vand.u32 %v959, 4294901760
        %7543 = vmatmul.mubr.f32.gmra.mrb[0].mxu0 %v7542
        %v7544 = vpop.f32.mrb[0].mxu0
        %v7545 = vadd.f32 %v7160, %v7544
        %v7546 = vpop.f32.mrb[0].mxu0
        %v7547 = vadd.f32 %v7162, %v7546
        %v7548 = vand.u32 %v964, 4294901760
        %7549 = vmatprep.mubr.f32.mxu0 %v7548
        %v7550 = vand.u32 %v963, 4294901760
        %7551 = vmatmul.mubr.f32.gmra.mrb[0].mxu0 %v7550
        %v7552 = vpop.f32.mrb[0].mxu0
        %v7553 = vadd.f32 %v7168, %v7552
        %v7554 = vpop.f32.mrb[0].mxu0
        %v7555 = vadd.f32 %v7170, %v7554
        %v7556 = vand.u32 %v968, 4294901760
        %7557 = vmatprep.mubr.f32.mxu0 %v7556
        %v7558 = vand.u32 %v967, 4294901760
        %7559 = vmatmul.mubr.f32.gmra.mrb[0].mxu0 %v7558
        %v7560 = vpop.f32.mrb[0].mxu0
        %v7561 = vadd.f32 %v7176, %v7560
        %v7562 = vpop.f32.mrb[0].mxu0
        %v7563 = vadd.f32 %v7178, %v7562
        %v7564 = vand.u32 %v972, 4294901760
        %7565 = vmatprep.mubr.f32.mxu0 %v7564
        %v7566 = vand.u32 %v971, 4294901760
        %7567 = vmatmul.mubr.f32.gmra.mrb[0].mxu0 %v7566
        %v7568 = vpop.f32.mrb[0].mxu0
        %v7569 = vadd.f32 %v7184, %v7568
        %v7570 = vpop.f32.mrb[0].mxu0
        %v7571 = vadd.f32 %v7186, %v7570
        %v7572 = vand.u32 %v976, 4294901760
        %7573 = vmatprep.mubr.f32.mxu0 %v7572
        %v7574 = vand.u32 %v975, 4294901760
        %7575 = vmatmul.mubr.f32.gmra.mrb[0].mxu0 %v7574
        %v7576 = vpop.f32.mrb[0].mxu0
        %v7577 = vadd.f32 %v7192, %v7576
        %v7578 = vpop.f32.mrb[0].mxu0
        %v7579 = vadd.f32 %v7194, %v7578
        %7580 = vdwg.mxu0
        %v7581 = vadd.f32 %v977, %v7329
        %v7582 = vadd.f32 %v978, %v7331
        %v7583 = vadd.f32 %v979, %v7337
        %v7584 = vadd.f32 %v980, %v7339
        %v7585 = vadd.f32 %v981, %v7345
        %v7586 = vadd.f32 %v982, %v7347
        %v7587 = vadd.f32 %v983, %v7353
        %v7588 = vadd.f32 %v984, %v7355
        %v7589 = vadd.f32 %v985, %v7361
        %v7590 = vadd.f32 %v986, %v7363
        %v7591 = vadd.f32 %v987, %v7369
        %v7592 = vadd.f32 %v988, %v7371
        %v7593 = vadd.f32 %v989, %v7377
        %v7594 = vadd.f32 %v990, %v7379
        %v7595 = vadd.f32 %v991, %v7385
        %v7596 = vadd.f32 %v992, %v7387
        %v7597 = vadd.f32 %v993, %v7393
        %v7598 = vadd.f32 %v994, %v7395
        %v7599 = vadd.f32 %v995, %v7401
        %v7600 = vadd.f32 %v996, %v7403
        %v7601 = vadd.f32 %v997, %v7409
        %v7602 = vadd.f32 %v998, %v7411
        %v7603 = vadd.f32 %v999, %v7417
        %v7604 = vadd.f32 %v1000, %v7419
        %v7605 = vadd.f32 %v1001, %v7425
        %v7606 = vadd.f32 %v1002, %v7427
        %v7607 = vadd.f32 %v1003, %v7433
        %v7608 = vadd.f32 %v1004, %v7435
        %v7609 = vadd.f32 %v1005, %v7441
        %v7610 = vadd.f32 %v1006, %v7443
        %v7611 = vadd.f32 %v1007, %v7449
        %v7612 = vadd.f32 %v1008, %v7451
        %v7613 = vadd.f32 %v1009, %v7457
        %v7614 = vadd.f32 %v1010, %v7459
        %v7615 = vadd.f32 %v1011, %v7465
        %v7616 = vadd.f32 %v1012, %v7467
        %v7617 = vadd.f32 %v1013, %v7473
        %v7618 = vadd.f32 %v1014, %v7475
        %v7619 = vadd.f32 %v1015, %v7481
        %v7620 = vadd.f32 %v1016, %v7483
        %v7621 = vadd.f32 %v1017, %v7489
        %v7622 = vadd.f32 %v1018, %v7491
        %v7623 = vadd.f32 %v1019, %v7497
        %v7624 = vadd.f32 %v1020, %v7499
        %v7625 = vadd.f32 %v1021, %v7505
        %v7626 = vadd.f32 %v1022, %v7507
        %v7627 = vadd.f32 %v1023, %v7513
        %v7628 = vadd.f32 %v1024, %v7515
        %v7629 = vadd.f32 %v1025, %v7521
        %v7630 = vadd.f32 %v1026, %v7523
        %v7631 = vadd.f32 %v1027, %v7529
        %v7632 = vadd.f32 %v1028, %v7531
        %v7633 = vadd.f32 %v1029, %v7537
        %v7634 = vadd.f32 %v1030, %v7539
        %v7635 = vadd.f32 %v1031, %v7545
        %v7636 = vadd.f32 %v1032, %v7547
        %v7637 = vadd.f32 %v1033, %v7553
        %v7638 = vadd.f32 %v1034, %v7555
        %v7639 = vadd.f32 %v1035, %v7561
        %v7640 = vadd.f32 %v1036, %v7563
        %v7641 = vadd.f32 %v1037, %v7569
        %v7642 = vadd.f32 %v1038, %v7571
        %v7643 = vadd.f32 %v1039, %v7577
        %v7644 = vadd.f32 %v1040, %v7579
        %7645 = vst [vmem:[#allocation2] sm:$0xff] %v7581
        %7646 = vst [vmem:[#allocation2 + $0x8] sm:$0xff] %v7582
        %7647 = vst [vmem:[#allocation2 + $0x10] sm:$0xff] %v7583
        %7648 = vst [vmem:[#allocation2 + $0x18] sm:$0xff] %v7584
        %7649 = vst [vmem:[#allocation2 + $0x20] sm:$0xff] %v7585
        %7650 = vst [vmem:[#allocation2 + $0x28] sm:$0xff] %v7586
        %7651 = vst [vmem:[#allocation2 + $0x30] sm:$0xff] %v7587
        %7652 = vst [vmem:[#allocation2 + $0x38] sm:$0xff] %v7588
        %7653 = vst [vmem:[#allocation2 + $0x40] sm:$0xff] %v7589
        %7654 = vst [vmem:[#allocation2 + $0x48] sm:$0xff] %v7590
        %7655 = vst [vmem:[#allocation2 + $0x50] sm:$0xff] %v7591
        %7656 = vst [vmem:[#allocation2 + $0x58] sm:$0xff] %v7592
        %7657 = vst [vmem:[#allocation2 + $0x60] sm:$0xff] %v7593
        %7658 = vst [vmem:[#allocation2 + $0x68] sm:$0xff] %v7594
        %7659 = vst [vmem:[#allocation2 + $0x70] sm:$0xff] %v7595
        %7660 = vst [vmem:[#allocation2 + $0x78] sm:$0xff] %v7596
        %7661 = vst [vmem:[#allocation2 + $0x80] sm:$0xff] %v7597
        %7662 = vst [vmem:[#allocation2 + $0x88] sm:$0xff] %v7598
        %7663 = vst [vmem:[#allocation2 + $0x90] sm:$0xff] %v7599
        %7664 = vst [vmem:[#allocation2 + $0x98] sm:$0xff] %v7600
        %7665 = vst [vmem:[#allocation2 + $0xa0] sm:$0xff] %v7601
        %7666 = vst [vmem:[#allocation2 + $0xa8] sm:$0xff] %v7602
        %7667 = vst [vmem:[#allocation2 + $0xb0] sm:$0xff] %v7603
        %7668 = vst [vmem:[#allocation2 + $0xb8] sm:$0xff] %v7604
        %7669 = vst [vmem:[#allocation2 + $0xc0] sm:$0xff] %v7605
        %7670 = vst [vmem:[#allocation2 + $0xc8] sm:$0xff] %v7606
        %7671 = vst [vmem:[#allocation2 + $0xd0] sm:$0xff] %v7607
        %7672 = vst [vmem:[#allocation2 + $0xd8] sm:$0xff] %v7608
        %7673 = vst [vmem:[#allocation2 + $0xe0] sm:$0xff] %v7609
        %7674 = vst [vmem:[#allocation2 + $0xe8] sm:$0xff] %v7610
        %7675 = vst [vmem:[#allocation2 + $0xf0] sm:$0xff] %v7611
        %7676 = vst [vmem:[#allocation2 + $0xf8] sm:$0xff] %v7612
        %7677 = vst [vmem:[#allocation2 + $0x100] sm:$0xff] %v7613
        %7678 = vst [vmem:[#allocation2 + $0x108] sm:$0xff] %v7614
        %7679 = vst [vmem:[#allocation2 + $0x110] sm:$0xff] %v7615
        %7680 = vst [vmem:[#allocation2 + $0x118] sm:$0xff] %v7616
        %7681 = vst [vmem:[#allocation2 + $0x120] sm:$0xff] %v7617
        %7682 = vst [vmem:[#allocation2 + $0x128] sm:$0xff] %v7618
        %7683 = vst [vmem:[#allocation2 + $0x130] sm:$0xff] %v7619
        %7684 = vst [vmem:[#allocation2 + $0x138] sm:$0xff] %v7620
        %7685 = vst [vmem:[#allocation2 + $0x140] sm:$0xff] %v7621
        %7686 = vst [vmem:[#allocation2 + $0x148] sm:$0xff] %v7622
        %7687 = vst [vmem:[#allocation2 + $0x150] sm:$0xff] %v7623
        %7688 = vst [vmem:[#allocation2 + $0x158] sm:$0xff] %v7624
        %7689 = vst [vmem:[#allocation2 + $0x160] sm:$0xff] %v7625
        %7690 = vst [vmem:[#allocation2 + $0x168] sm:$0xff] %v7626
        %7691 = vst [vmem:[#allocation2 + $0x170] sm:$0xff] %v7627
        %7692 = vst [vmem:[#allocation2 + $0x178] sm:$0xff] %v7628
        %7693 = vst [vmem:[#allocation2 + $0x180] sm:$0xff] %v7629
        %7694 = vst [vmem:[#allocation2 + $0x188] sm:$0xff] %v7630
        %7695 = vst [vmem:[#allocation2 + $0x190] sm:$0xff] %v7631
        %7696 = vst [vmem:[#allocation2 + $0x198] sm:$0xff] %v7632
        %7697 = vst [vmem:[#allocation2 + $0x1a0] sm:$0xff] %v7633
        %7698 = vst [vmem:[#allocation2 + $0x1a8] sm:$0xff] %v7634
        %7699 = vst [vmem:[#allocation2 + $0x1b0] sm:$0xff] %v7635
        %7700 = vst [vmem:[#allocation2 + $0x1b8] sm:$0xff] %v7636
        %7701 = vst [vmem:[#allocation2 + $0x1c0] sm:$0xff] %v7637
        %7702 = vst [vmem:[#allocation2 + $0x1c8] sm:$0xff] %v7638
        %7703 = vst [vmem:[#allocation2 + $0x1d0] sm:$0xff] %v7639
        %7704 = vst [vmem:[#allocation2 + $0x1d8] sm:$0xff] %v7640
        %7705 = vst [vmem:[#allocation2 + $0x1e0] sm:$0xff] %v7641
        %7706 = vst [vmem:[#allocation2 + $0x1e8] sm:$0xff] %v7642
        %7707 = vst [vmem:[#allocation2 + $0x1f0] sm:$0xff] %v7643
        %7708 = vst [vmem:[#allocation2 + $0x1f8] sm:$0xff] %v7644
        // Predicated region
        $region83: #{l2norm_linear.1} parent=65 // pred_check
          %p7709 = pneg %p811
        $region84: #{l2norm_linear.1} parent=65 // pred_check_branch
          %7711 = sbr.rel (%p7709) target = $region86
        $region85: #{l2norm_linear.1} parent=65 // pred_region
          %v7712 = vld [vmem:[#allocation3] sm:$0xff]
          %v7713 = vld [vmem:[#allocation3 + $0x8] sm:$0xff]
          %v7714 = vld [vmem:[#allocation3 + $0x10] sm:$0xff]
          %v7715 = vld [vmem:[#allocation3 + $0x18] sm:$0xff]
          %v7716 = vld [vmem:[#allocation3 + $0x20] sm:$0xff]
          %v7717 = vld [vmem:[#allocation3 + $0x28] sm:$0xff]
          %v7718 = vld [vmem:[#allocation3 + $0x30] sm:$0xff]
          %v7719 = vld [vmem:[#allocation3 + $0x38] sm:$0xff]
          %v7720 = vld [vmem:[#allocation3 + $0x40] sm:$0xff]
          %v7721 = vld [vmem:[#allocation3 + $0x48] sm:$0xff]
          %v7722 = vld [vmem:[#allocation3 + $0x50] sm:$0xff]
          %v7723 = vld [vmem:[#allocation3 + $0x58] sm:$0xff]
          %v7724 = vld [vmem:[#allocation3 + $0x60] sm:$0xff]
          %v7725 = vld [vmem:[#allocation3 + $0x68] sm:$0xff]
          %v7726 = vld [vmem:[#allocation3 + $0x70] sm:$0xff]
          %v7727 = vld [vmem:[#allocation3 + $0x78] sm:$0xff]
          %v7728 = vld [vmem:[#allocation3 + $0x80] sm:$0xff]
          %v7729 = vld [vmem:[#allocation3 + $0x88] sm:$0xff]
          %v7730 = vld [vmem:[#allocation3 + $0x90] sm:$0xff]
          %v7731 = vld [vmem:[#allocation3 + $0x98] sm:$0xff]
          %v7732 = vld [vmem:[#allocation3 + $0xa0] sm:$0xff]
          %v7733 = vld [vmem:[#allocation3 + $0xa8] sm:$0xff]
          %v7734 = vld [vmem:[#allocation3 + $0xb0] sm:$0xff]
          %v7735 = vld [vmem:[#allocation3 + $0xb8] sm:$0xff]
          %v7736 = vld [vmem:[#allocation3 + $0xc0] sm:$0xff]
          %v7737 = vld [vmem:[#allocation3 + $0xc8] sm:$0xff]
          %v7738 = vld [vmem:[#allocation3 + $0xd0] sm:$0xff]
          %v7739 = vld [vmem:[#allocation3 + $0xd8] sm:$0xff]
          %v7740 = vld [vmem:[#allocation3 + $0xe0] sm:$0xff]
          %v7741 = vld [vmem:[#allocation3 + $0xe8] sm:$0xff]
          %v7742 = vld [vmem:[#allocation3 + $0xf0] sm:$0xff]
          %v7743 = vld [vmem:[#allocation3 + $0xf8] sm:$0xff]
          %v7744 = vmul.f32 %v849, %v849
          %v7745 = vmul.f32 %v850, %v850
          %v7746 = vmul.f32 %v851, %v851
          %v7747 = vmul.f32 %v852, %v852
          %v7748 = vmul.f32 %v853, %v853
          %v7749 = vmul.f32 %v854, %v854
          %v7750 = vmul.f32 %v855, %v855
          %v7751 = vmul.f32 %v856, %v856
          %v7752 = vmul.f32 %v857, %v857
          %v7753 = vmul.f32 %v858, %v858
          %v7754 = vmul.f32 %v859, %v859
          %v7755 = vmul.f32 %v860, %v860
          %v7756 = vmul.f32 %v861, %v861
          %v7757 = vmul.f32 %v862, %v862
          %v7758 = vmul.f32 %v863, %v863
          %v7759 = vmul.f32 %v864, %v864
          %v7760 = vmul.f32 %v865, %v865
          %v7761 = vmul.f32 %v866, %v866
          %v7762 = vmul.f32 %v867, %v867
          %v7763 = vmul.f32 %v868, %v868
          %v7764 = vmul.f32 %v869, %v869
          %v7765 = vmul.f32 %v870, %v870
          %v7766 = vmul.f32 %v871, %v871
          %v7767 = vmul.f32 %v872, %v872
          %v7768 = vmul.f32 %v873, %v873
          %v7769 = vmul.f32 %v874, %v874
          %v7770 = vmul.f32 %v875, %v875
          %v7771 = vmul.f32 %v876, %v876
          %v7772 = vmul.f32 %v877, %v877
          %v7773 = vmul.f32 %v878, %v878
          %v7774 = vmul.f32 %v879, %v879
          %v7775 = vmul.f32 %v880, %v880
          %v7776 = vmul.f32 %v881, %v881
          %v7777 = vmul.f32 %v882, %v882
          %v7778 = vmul.f32 %v883, %v883
          %v7779 = vmul.f32 %v884, %v884
          %v7780 = vmul.f32 %v885, %v885
          %v7781 = vmul.f32 %v886, %v886
          %v7782 = vmul.f32 %v887, %v887
          %v7783 = vmul.f32 %v888, %v888
          %v7784 = vmul.f32 %v889, %v889
          %v7785 = vmul.f32 %v890, %v890
          %v7786 = vmul.f32 %v891, %v891
          %v7787 = vmul.f32 %v892, %v892
          %v7788 = vmul.f32 %v893, %v893
          %v7789 = vmul.f32 %v894, %v894
          %v7790 = vmul.f32 %v895, %v895
          %v7791 = vmul.f32 %v896, %v896
          %v7792 = vmul.f32 %v897, %v897
          %v7793 = vmul.f32 %v898, %v898
          %v7794 = vmul.f32 %v899, %v899
          %v7795 = vmul.f32 %v900, %v900
          %v7796 = vmul.f32 %v901, %v901
          %v7797 = vmul.f32 %v902, %v902
          %v7798 = vmul.f32 %v903, %v903
          %v7799 = vmul.f32 %v904, %v904
          %v7800 = vmul.f32 %v905, %v905
          %v7801 = vmul.f32 %v906, %v906
          %v7802 = vmul.f32 %v907, %v907
          %v7803 = vmul.f32 %v908, %v908
          %v7804 = vmul.f32 %v909, %v909
          %v7805 = vmul.f32 %v910, %v910
          %v7806 = vmul.f32 %v911, %v911
          %v7807 = vmul.f32 %v912, %v912
          %v7808 = vmul.f32 %v913, %v913
          %v7809 = vmul.f32 %v914, %v914
          %v7810 = vmul.f32 %v915, %v915
          %v7811 = vmul.f32 %v916, %v916
          %v7812 = vmul.f32 %v917, %v917
          %v7813 = vmul.f32 %v918, %v918
          %v7814 = vmul.f32 %v919, %v919
          %v7815 = vmul.f32 %v920, %v920
          %v7816 = vmul.f32 %v921, %v921
          %v7817 = vmul.f32 %v922, %v922
          %v7818 = vmul.f32 %v923, %v923
          %v7819 = vmul.f32 %v924, %v924
          %v7820 = vmul.f32 %v925, %v925
          %v7821 = vmul.f32 %v926, %v926
          %v7822 = vmul.f32 %v927, %v927
          %v7823 = vmul.f32 %v928, %v928
          %v7824 = vmul.f32 %v929, %v929
          %v7825 = vmul.f32 %v930, %v930
          %v7826 = vmul.f32 %v931, %v931
          %v7827 = vmul.f32 %v932, %v932
          %v7828 = vmul.f32 %v933, %v933
          %v7829 = vmul.f32 %v934, %v934
          %v7830 = vmul.f32 %v935, %v935
          %v7831 = vmul.f32 %v936, %v936
          %v7832 = vmul.f32 %v937, %v937
          %v7833 = vmul.f32 %v938, %v938
          %v7834 = vmul.f32 %v939, %v939
          %v7835 = vmul.f32 %v940, %v940
          %v7836 = vmul.f32 %v941, %v941
          %v7837 = vmul.f32 %v942, %v942
          %v7838 = vmul.f32 %v943, %v943
          %v7839 = vmul.f32 %v944, %v944
          %v7840 = vmul.f32 %v945, %v945
          %v7841 = vmul.f32 %v946, %v946
          %v7842 = vmul.f32 %v947, %v947
          %v7843 = vmul.f32 %v948, %v948
          %v7844 = vmul.f32 %v949, %v949
          %v7845 = vmul.f32 %v950, %v950
          %v7846 = vmul.f32 %v951, %v951
          %v7847 = vmul.f32 %v952, %v952
          %v7848 = vmul.f32 %v953, %v953
          %v7849 = vmul.f32 %v954, %v954
          %v7850 = vmul.f32 %v955, %v955
          %v7851 = vmul.f32 %v956, %v956
          %v7852 = vmul.f32 %v957, %v957
          %v7853 = vmul.f32 %v958, %v958
          %v7854 = vmul.f32 %v959, %v959
          %v7855 = vmul.f32 %v960, %v960
          %v7856 = vmul.f32 %v961, %v961
          %v7857 = vmul.f32 %v962, %v962
          %v7858 = vmul.f32 %v963, %v963
          %v7859 = vmul.f32 %v964, %v964
          %v7860 = vmul.f32 %v965, %v965
          %v7861 = vmul.f32 %v966, %v966
          %v7862 = vmul.f32 %v967, %v967
          %v7863 = vmul.f32 %v968, %v968
          %v7864 = vmul.f32 %v969, %v969
          %v7865 = vmul.f32 %v970, %v970
          %v7866 = vmul.f32 %v971, %v971
          %v7867 = vmul.f32 %v972, %v972
          %v7868 = vmul.f32 %v973, %v973
          %v7869 = vmul.f32 %v974, %v974
          %v7870 = vmul.f32 %v975, %v975
          %v7871 = vmul.f32 %v976, %v976
          %v7872 = vadd.f32 %v7744, %v7745
          %v7873 = vadd.f32 %v7872, %v7746
          %v7874 = vadd.f32 %v7873, %v7747
          %7875 = vadd.xlane.f32.xlu0 %v7874
          %v7876 = vpop.xlane.xlu0 %7875
          %v7877 = vadd.f32 %v7748, %v7749
          %v7878 = vadd.f32 %v7877, %v7750
          %v7879 = vadd.f32 %v7878, %v7751
          %7880 = vadd.xlane.f32.xlu0 %v7879
          %v7881 = vpop.xlane.xlu0 %7880
          %v7882 = vadd.f32 %v7752, %v7753
          %v7883 = vadd.f32 %v7882, %v7754
          %v7884 = vadd.f32 %v7883, %v7755
          %7885 = vadd.xlane.f32.xlu0 %v7884
          %v7886 = vpop.xlane.xlu0 %7885
          %v7887 = vadd.f32 %v7756, %v7757
          %v7888 = vadd.f32 %v7887, %v7758
          %v7889 = vadd.f32 %v7888, %v7759
          %7890 = vadd.xlane.f32.xlu0 %v7889
          %v7891 = vpop.xlane.xlu0 %7890
          %v7892 = vadd.f32 %v7760, %v7761
          %v7893 = vadd.f32 %v7892, %v7762
          %v7894 = vadd.f32 %v7893, %v7763
          %7895 = vadd.xlane.f32.xlu0 %v7894
          %v7896 = vpop.xlane.xlu0 %7895
          %v7897 = vadd.f32 %v7764, %v7765
          %v7898 = vadd.f32 %v7897, %v7766
          %v7899 = vadd.f32 %v7898, %v7767
          %7900 = vadd.xlane.f32.xlu0 %v7899
          %v7901 = vpop.xlane.xlu0 %7900
          %v7902 = vadd.f32 %v7768, %v7769
          %v7903 = vadd.f32 %v7902, %v7770
          %v7904 = vadd.f32 %v7903, %v7771
          %7905 = vadd.xlane.f32.xlu0 %v7904
          %v7906 = vpop.xlane.xlu0 %7905
          %v7907 = vadd.f32 %v7772, %v7773
          %v7908 = vadd.f32 %v7907, %v7774
          %v7909 = vadd.f32 %v7908, %v7775
          %7910 = vadd.xlane.f32.xlu0 %v7909
          %v7911 = vpop.xlane.xlu0 %7910
          %v7912 = vadd.f32 %v7776, %v7777
          %v7913 = vadd.f32 %v7912, %v7778
          %v7914 = vadd.f32 %v7913, %v7779
          %7915 = vadd.xlane.f32.xlu0 %v7914
          %v7916 = vpop.xlane.xlu0 %7915
          %v7917 = vadd.f32 %v7780, %v7781
          %v7918 = vadd.f32 %v7917, %v7782
          %v7919 = vadd.f32 %v7918, %v7783
          %7920 = vadd.xlane.f32.xlu0 %v7919
          %v7921 = vpop.xlane.xlu0 %7920
          %v7922 = vadd.f32 %v7784, %v7785
          %v7923 = vadd.f32 %v7922, %v7786
          %v7924 = vadd.f32 %v7923, %v7787
          %7925 = vadd.xlane.f32.xlu0 %v7924
          %v7926 = vpop.xlane.xlu0 %7925
          %v7927 = vadd.f32 %v7788, %v7789
          %v7928 = vadd.f32 %v7927, %v7790
          %v7929 = vadd.f32 %v7928, %v7791
          %7930 = vadd.xlane.f32.xlu0 %v7929
          %v7931 = vpop.xlane.xlu0 %7930
          %v7932 = vadd.f32 %v7792, %v7793
          %v7933 = vadd.f32 %v7932, %v7794
          %v7934 = vadd.f32 %v7933, %v7795
          %7935 = vadd.xlane.f32.xlu0 %v7934
          %v7936 = vpop.xlane.xlu0 %7935
          %v7937 = vadd.f32 %v7796, %v7797
          %v7938 = vadd.f32 %v7937, %v7798
          %v7939 = vadd.f32 %v7938, %v7799
          %7940 = vadd.xlane.f32.xlu0 %v7939
          %v7941 = vpop.xlane.xlu0 %7940
          %v7942 = vadd.f32 %v7800, %v7801
          %v7943 = vadd.f32 %v7942, %v7802
          %v7944 = vadd.f32 %v7943, %v7803
          %7945 = vadd.xlane.f32.xlu0 %v7944
          %v7946 = vpop.xlane.xlu0 %7945
          %v7947 = vadd.f32 %v7804, %v7805
          %v7948 = vadd.f32 %v7947, %v7806
          %v7949 = vadd.f32 %v7948, %v7807
          %7950 = vadd.xlane.f32.xlu0 %v7949
          %v7951 = vpop.xlane.xlu0 %7950
          %v7952 = vadd.f32 %v7808, %v7809
          %v7953 = vadd.f32 %v7952, %v7810
          %v7954 = vadd.f32 %v7953, %v7811
          %7955 = vadd.xlane.f32.xlu0 %v7954
          %v7956 = vpop.xlane.xlu0 %7955
          %v7957 = vadd.f32 %v7812, %v7813
          %v7958 = vadd.f32 %v7957, %v7814
          %v7959 = vadd.f32 %v7958, %v7815
          %7960 = vadd.xlane.f32.xlu0 %v7959
          %v7961 = vpop.xlane.xlu0 %7960
          %v7962 = vadd.f32 %v7816, %v7817
          %v7963 = vadd.f32 %v7962, %v7818
          %v7964 = vadd.f32 %v7963, %v7819
          %7965 = vadd.xlane.f32.xlu0 %v7964
          %v7966 = vpop.xlane.xlu0 %7965
          %v7967 = vadd.f32 %v7820, %v7821
          %v7968 = vadd.f32 %v7967, %v7822
          %v7969 = vadd.f32 %v7968, %v7823
          %7970 = vadd.xlane.f32.xlu0 %v7969
          %v7971 = vpop.xlane.xlu0 %7970
          %v7972 = vadd.f32 %v7824, %v7825
          %v7973 = vadd.f32 %v7972, %v7826
          %v7974 = vadd.f32 %v7973, %v7827
          %7975 = vadd.xlane.f32.xlu0 %v7974
          %v7976 = vpop.xlane.xlu0 %7975
          %v7977 = vadd.f32 %v7828, %v7829
          %v7978 = vadd.f32 %v7977, %v7830
          %v7979 = vadd.f32 %v7978, %v7831
          %7980 = vadd.xlane.f32.xlu0 %v7979
          %v7981 = vpop.xlane.xlu0 %7980
          %v7982 = vadd.f32 %v7832, %v7833
          %v7983 = vadd.f32 %v7982, %v7834
          %v7984 = vadd.f32 %v7983, %v7835
          %7985 = vadd.xlane.f32.xlu0 %v7984
          %v7986 = vpop.xlane.xlu0 %7985
          %v7987 = vadd.f32 %v7836, %v7837
          %v7988 = vadd.f32 %v7987, %v7838
          %v7989 = vadd.f32 %v7988, %v7839
          %7990 = vadd.xlane.f32.xlu0 %v7989
          %v7991 = vpop.xlane.xlu0 %7990
          %v7992 = vadd.f32 %v7840, %v7841
          %v7993 = vadd.f32 %v7992, %v7842
          %v7994 = vadd.f32 %v7993, %v7843
          %7995 = vadd.xlane.f32.xlu0 %v7994
          %v7996 = vpop.xlane.xlu0 %7995
          %v7997 = vadd.f32 %v7844, %v7845
          %v7998 = vadd.f32 %v7997, %v7846
          %v7999 = vadd.f32 %v7998, %v7847
          %8000 = vadd.xlane.f32.xlu0 %v7999
          %v8001 = vpop.xlane.xlu0 %8000
          %v8002 = vadd.f32 %v7848, %v7849
          %v8003 = vadd.f32 %v8002, %v7850
          %v8004 = vadd.f32 %v8003, %v7851
          %8005 = vadd.xlane.f32.xlu0 %v8004
          %v8006 = vpop.xlane.xlu0 %8005
          %v8007 = vadd.f32 %v7852, %v7853
          %v8008 = vadd.f32 %v8007, %v7854
          %v8009 = vadd.f32 %v8008, %v7855
          %8010 = vadd.xlane.f32.xlu0 %v8009
          %v8011 = vpop.xlane.xlu0 %8010
          %v8012 = vadd.f32 %v7856, %v7857
          %v8013 = vadd.f32 %v8012, %v7858
          %v8014 = vadd.f32 %v8013, %v7859
          %8015 = vadd.xlane.f32.xlu0 %v8014
          %v8016 = vpop.xlane.xlu0 %8015
          %v8017 = vadd.f32 %v7860, %v7861
          %v8018 = vadd.f32 %v8017, %v7862
          %v8019 = vadd.f32 %v8018, %v7863
          %8020 = vadd.xlane.f32.xlu0 %v8019
          %v8021 = vpop.xlane.xlu0 %8020
          %v8022 = vadd.f32 %v7864, %v7865
          %v8023 = vadd.f32 %v8022, %v7866
          %v8024 = vadd.f32 %v8023, %v7867
          %8025 = vadd.xlane.f32.xlu0 %v8024
          %v8026 = vpop.xlane.xlu0 %8025
          %v8027 = vadd.f32 %v7868, %v7869
          %v8028 = vadd.f32 %v8027, %v7870
          %v8029 = vadd.f32 %v8028, %v7871
          %8030 = vadd.xlane.f32.xlu0 %v8029
          %v8031 = vpop.xlane.xlu0 %8030
          %v8032 = vadd.f32 %v7712, %v7876
          %v8033 = vadd.f32 %v7713, %v7881
          %v8034 = vadd.f32 %v7714, %v7886
          %v8035 = vadd.f32 %v7715, %v7891
          %v8036 = vadd.f32 %v7716, %v7896
          %v8037 = vadd.f32 %v7717, %v7901
          %v8038 = vadd.f32 %v7718, %v7906
          %v8039 = vadd.f32 %v7719, %v7911
          %v8040 = vadd.f32 %v7720, %v7916
          %v8041 = vadd.f32 %v7721, %v7921
          %v8042 = vadd.f32 %v7722, %v7926
          %v8043 = vadd.f32 %v7723, %v7931
          %v8044 = vadd.f32 %v7724, %v7936
          %v8045 = vadd.f32 %v7725, %v7941
          %v8046 = vadd.f32 %v7726, %v7946
          %v8047 = vadd.f32 %v7727, %v7951
          %v8048 = vadd.f32 %v7728, %v7956
          %v8049 = vadd.f32 %v7729, %v7961
          %v8050 = vadd.f32 %v7730, %v7966
          %v8051 = vadd.f32 %v7731, %v7971
          %v8052 = vadd.f32 %v7732, %v7976
          %v8053 = vadd.f32 %v7733, %v7981
          %v8054 = vadd.f32 %v7734, %v7986
          %v8055 = vadd.f32 %v7735, %v7991
          %v8056 = vadd.f32 %v7736, %v7996
          %v8057 = vadd.f32 %v7737, %v8001
          %v8058 = vadd.f32 %v7738, %v8006
          %v8059 = vadd.f32 %v7739, %v8011
          %v8060 = vadd.f32 %v7740, %v8016
          %v8061 = vadd.f32 %v7741, %v8021
          %v8062 = vadd.f32 %v7742, %v8026
          %v8063 = vadd.f32 %v7743, %v8031
          %vm8064 = vcmask 7168
          %8065 = vst.msk [vmem:[#allocation3] sm:$0xff] %vm8064, %v8032
          %8066 = vst.msk [vmem:[#allocation3 + $0x8] sm:$0xff] %vm8064, %v8033
          %8067 = vst.msk [vmem:[#allocation3 + $0x10] sm:$0xff] %vm8064, %v8034
          %8068 = vst.msk [vmem:[#allocation3 + $0x18] sm:$0xff] %vm8064, %v8035
          %8069 = vst.msk [vmem:[#allocation3 + $0x20] sm:$0xff] %vm8064, %v8036
          %8070 = vst.msk [vmem:[#allocation3 + $0x28] sm:$0xff] %vm8064, %v8037
          %8071 = vst.msk [vmem:[#allocation3 + $0x30] sm:$0xff] %vm8064, %v8038
          %8072 = vst.msk [vmem:[#allocation3 + $0x38] sm:$0xff] %vm8064, %v8039
          %8073 = vst.msk [vmem:[#allocation3 + $0x40] sm:$0xff] %vm8064, %v8040
          %8074 = vst.msk [vmem:[#allocation3 + $0x48] sm:$0xff] %vm8064, %v8041
          %8075 = vst.msk [vmem:[#allocation3 + $0x50] sm:$0xff] %vm8064, %v8042
          %8076 = vst.msk [vmem:[#allocation3 + $0x58] sm:$0xff] %vm8064, %v8043
          %8077 = vst.msk [vmem:[#allocation3 + $0x60] sm:$0xff] %vm8064, %v8044
          %8078 = vst.msk [vmem:[#allocation3 + $0x68] sm:$0xff] %vm8064, %v8045
          %8079 = vst.msk [vmem:[#allocation3 + $0x70] sm:$0xff] %vm8064, %v8046
          %8080 = vst.msk [vmem:[#allocation3 + $0x78] sm:$0xff] %vm8064, %v8047
          %8081 = vst.msk [vmem:[#allocation3 + $0x80] sm:$0xff] %vm8064, %v8048
          %8082 = vst.msk [vmem:[#allocation3 + $0x88] sm:$0xff] %vm8064, %v8049
          %8083 = vst.msk [vmem:[#allocation3 + $0x90] sm:$0xff] %vm8064, %v8050
          %8084 = vst.msk [vmem:[#allocation3 + $0x98] sm:$0xff] %vm8064, %v8051
          %8085 = vst.msk [vmem:[#allocation3 + $0xa0] sm:$0xff] %vm8064, %v8052
          %8086 = vst.msk [vmem:[#allocation3 + $0xa8] sm:$0xff] %vm8064, %v8053
          %8087 = vst.msk [vmem:[#allocation3 + $0xb0] sm:$0xff] %vm8064, %v8054
          %8088 = vst.msk [vmem:[#allocation3 + $0xb8] sm:$0xff] %vm8064, %v8055
          %8089 = vst.msk [vmem:[#allocation3 + $0xc0] sm:$0xff] %vm8064, %v8056
          %8090 = vst.msk [vmem:[#allocation3 + $0xc8] sm:$0xff] %vm8064, %v8057
          %8091 = vst.msk [vmem:[#allocation3 + $0xd0] sm:$0xff] %vm8064, %v8058
          %8092 = vst.msk [vmem:[#allocation3 + $0xd8] sm:$0xff] %vm8064, %v8059
          %8093 = vst.msk [vmem:[#allocation3 + $0xe0] sm:$0xff] %vm8064, %v8060
          %8094 = vst.msk [vmem:[#allocation3 + $0xe8] sm:$0xff] %vm8064, %v8061
          %8095 = vst.msk [vmem:[#allocation3 + $0xf0] sm:$0xff] %vm8064, %v8062
          %8096 = vst.msk [vmem:[#allocation3 + $0xf8] sm:$0xff] %vm8064, %v8063
        $region86: #{l2norm_linear.1} parent=65 // pred_fallthru
          _
        %p8097 = scmp.eq.s32.totalorder %s20, 1
        %p8098 = pnand %p811, %p8097
        %p8099 = pneg %p8098
        // Predicated region
        $region87: #{l2norm_linear.1} parent=65 // pred_check
          _
        $region88: #{l2norm_linear.1} parent=65 // pred_check_branch
          %8101 = sbr.rel (%p8098) target = $region90
        $region89: #{l2norm_linear.1} parent=65 // pred_region
          %v8102 = vld [vmem:[#allocation3] sm:$0xff]
          %v8103 = vld [vmem:[#allocation3 + $0x8] sm:$0xff]
          %v8104 = vld [vmem:[#allocation3 + $0x10] sm:$0xff]
          %v8105 = vld [vmem:[#allocation3 + $0x18] sm:$0xff]
          %v8106 = vld [vmem:[#allocation3 + $0x20] sm:$0xff]
          %v8107 = vld [vmem:[#allocation3 + $0x28] sm:$0xff]
          %v8108 = vld [vmem:[#allocation3 + $0x30] sm:$0xff]
          %v8109 = vld [vmem:[#allocation3 + $0x38] sm:$0xff]
          %v8110 = vld [vmem:[#allocation3 + $0x40] sm:$0xff]
          %v8111 = vld [vmem:[#allocation3 + $0x48] sm:$0xff]
          %v8112 = vld [vmem:[#allocation3 + $0x50] sm:$0xff]
          %v8113 = vld [vmem:[#allocation3 + $0x58] sm:$0xff]
          %v8114 = vld [vmem:[#allocation3 + $0x60] sm:$0xff]
          %v8115 = vld [vmem:[#allocation3 + $0x68] sm:$0xff]
          %v8116 = vld [vmem:[#allocation3 + $0x70] sm:$0xff]
          %v8117 = vld [vmem:[#allocation3 + $0x78] sm:$0xff]
          %v8118 = vld [vmem:[#allocation3 + $0x80] sm:$0xff]
          %v8119 = vld [vmem:[#allocation3 + $0x88] sm:$0xff]
          %v8120 = vld [vmem:[#allocation3 + $0x90] sm:$0xff]
          %v8121 = vld [vmem:[#allocation3 + $0x98] sm:$0xff]
          %v8122 = vld [vmem:[#allocation3 + $0xa0] sm:$0xff]
          %v8123 = vld [vmem:[#allocation3 + $0xa8] sm:$0xff]
          %v8124 = vld [vmem:[#allocation3 + $0xb0] sm:$0xff]
          %v8125 = vld [vmem:[#allocation3 + $0xb8] sm:$0xff]
          %v8126 = vld [vmem:[#allocation3 + $0xc0] sm:$0xff]
          %v8127 = vld [vmem:[#allocation3 + $0xc8] sm:$0xff]
          %v8128 = vld [vmem:[#allocation3 + $0xd0] sm:$0xff]
          %v8129 = vld [vmem:[#allocation3 + $0xd8] sm:$0xff]
          %v8130 = vld [vmem:[#allocation3 + $0xe0] sm:$0xff]
          %v8131 = vld [vmem:[#allocation3 + $0xe8] sm:$0xff]
          %v8132 = vld [vmem:[#allocation3 + $0xf0] sm:$0xff]
          %v8133 = vld [vmem:[#allocation3 + $0xf8] sm:$0xff]
          %v8134 = vmax.f32 %v8102, 1e-24
          %v8135 = vmax.f32 %v8103, 1e-24
          %v8136 = vmax.f32 %v8104, 1e-24
          %v8137 = vmax.f32 %v8105, 1e-24
          %v8138 = vmax.f32 %v8106, 1e-24
          %v8139 = vmax.f32 %v8107, 1e-24
          %v8140 = vmax.f32 %v8108, 1e-24
          %v8141 = vmax.f32 %v8109, 1e-24
          %v8142 = vmax.f32 %v8110, 1e-24
          %v8143 = vmax.f32 %v8111, 1e-24
          %v8144 = vmax.f32 %v8112, 1e-24
          %v8145 = vmax.f32 %v8113, 1e-24
          %v8146 = vmax.f32 %v8114, 1e-24
          %v8147 = vmax.f32 %v8115, 1e-24
          %v8148 = vmax.f32 %v8116, 1e-24
          %v8149 = vmax.f32 %v8117, 1e-24
          %v8150 = vmax.f32 %v8118, 1e-24
          %v8151 = vmax.f32 %v8119, 1e-24
          %v8152 = vmax.f32 %v8120, 1e-24
          %v8153 = vmax.f32 %v8121, 1e-24
          %v8154 = vmax.f32 %v8122, 1e-24
          %v8155 = vmax.f32 %v8123, 1e-24
          %v8156 = vmax.f32 %v8124, 1e-24
          %v8157 = vmax.f32 %v8125, 1e-24
          %v8158 = vmax.f32 %v8126, 1e-24
          %v8159 = vmax.f32 %v8127, 1e-24
          %v8160 = vmax.f32 %v8128, 1e-24
          %v8161 = vmax.f32 %v8129, 1e-24
          %v8162 = vmax.f32 %v8130, 1e-24
          %v8163 = vmax.f32 %v8131, 1e-24
          %v8164 = vmax.f32 %v8132, 1e-24
          %v8165 = vmax.f32 %v8133, 1e-24
          %v8166 = vrsqrt.pop %v8134
          %v8167 = vrsqrt.pop %v8135
          %v8168 = vrsqrt.pop %v8136
          %v8169 = vrsqrt.pop %v8137
          %v8170 = vrsqrt.pop %v8138
          %v8171 = vrsqrt.pop %v8139
          %v8172 = vrsqrt.pop %v8140
          %v8173 = vrsqrt.pop %v8141
          %v8174 = vrsqrt.pop %v8142
          %v8175 = vrsqrt.pop %v8143
          %v8176 = vrsqrt.pop %v8144
          %v8177 = vrsqrt.pop %v8145
          %v8178 = vrsqrt.pop %v8146
          %v8179 = vrsqrt.pop %v8147
          %v8180 = vrsqrt.pop %v8148
          %v8181 = vrsqrt.pop %v8149
          %v8182 = vrsqrt.pop %v8150
          %v8183 = vrsqrt.pop %v8151
          %v8184 = vrsqrt.pop %v8152
          %v8185 = vrsqrt.pop %v8153
          %v8186 = vrsqrt.pop %v8154
          %v8187 = vrsqrt.pop %v8155
          %v8188 = vrsqrt.pop %v8156
          %v8189 = vrsqrt.pop %v8157
          %v8190 = vrsqrt.pop %v8158
          %v8191 = vrsqrt.pop %v8159
          %v8192 = vrsqrt.pop %v8160
          %v8193 = vrsqrt.pop %v8161
          %v8194 = vrsqrt.pop %v8162
          %v8195 = vrsqrt.pop %v8163
          %v8196 = vrsqrt.pop %v8164
          %v8197 = vrsqrt.pop %v8165
          %vm8198 = vcmask 7168
          %8199 = vst.msk [vmem:[#allocation4] sm:$0xff] %vm8198, %v8166
          %8200 = vst.msk [vmem:[#allocation4 + $0x8] sm:$0xff] %vm8198, %v8167
          %8201 = vst.msk [vmem:[#allocation4 + $0x10] sm:$0xff] %vm8198, %v8168
          %8202 = vst.msk [vmem:[#allocation4 + $0x18] sm:$0xff] %vm8198, %v8169
          %8203 = vst.msk [vmem:[#allocation4 + $0x20] sm:$0xff] %vm8198, %v8170
          %8204 = vst.msk [vmem:[#allocation4 + $0x28] sm:$0xff] %vm8198, %v8171
          %8205 = vst.msk [vmem:[#allocation4 + $0x30] sm:$0xff] %vm8198, %v8172
          %8206 = vst.msk [vmem:[#allocation4 + $0x38] sm:$0xff] %vm8198, %v8173
          %8207 = vst.msk [vmem:[#allocation4 + $0x40] sm:$0xff] %vm8198, %v8174
          %8208 = vst.msk [vmem:[#allocation4 + $0x48] sm:$0xff] %vm8198, %v8175
          %8209 = vst.msk [vmem:[#allocation4 + $0x50] sm:$0xff] %vm8198, %v8176
          %8210 = vst.msk [vmem:[#allocation4 + $0x58] sm:$0xff] %vm8198, %v8177
          %8211 = vst.msk [vmem:[#allocation4 + $0x60] sm:$0xff] %vm8198, %v8178
          %8212 = vst.msk [vmem:[#allocation4 + $0x68] sm:$0xff] %vm8198, %v8179
          %8213 = vst.msk [vmem:[#allocation4 + $0x70] sm:$0xff] %vm8198, %v8180
          %8214 = vst.msk [vmem:[#allocation4 + $0x78] sm:$0xff] %vm8198, %v8181
          %8215 = vst.msk [vmem:[#allocation4 + $0x80] sm:$0xff] %vm8198, %v8182
          %8216 = vst.msk [vmem:[#allocation4 + $0x88] sm:$0xff] %vm8198, %v8183
          %8217 = vst.msk [vmem:[#allocation4 + $0x90] sm:$0xff] %vm8198, %v8184
          %8218 = vst.msk [vmem:[#allocation4 + $0x98] sm:$0xff] %vm8198, %v8185
          %8219 = vst.msk [vmem:[#allocation4 + $0xa0] sm:$0xff] %vm8198, %v8186
          %8220 = vst.msk [vmem:[#allocation4 + $0xa8] sm:$0xff] %vm8198, %v8187
          %8221 = vst.msk [vmem:[#allocation4 + $0xb0] sm:$0xff] %vm8198, %v8188
          %8222 = vst.msk [vmem:[#allocation4 + $0xb8] sm:$0xff] %vm8198, %v8189
          %8223 = vst.msk [vmem:[#allocation4 + $0xc0] sm:$0xff] %vm8198, %v8190
          %8224 = vst.msk [vmem:[#allocation4 + $0xc8] sm:$0xff] %vm8198, %v8191
          %8225 = vst.msk [vmem:[#allocation4 + $0xd0] sm:$0xff] %vm8198, %v8192
          %8226 = vst.msk [vmem:[#allocation4 + $0xd8] sm:$0xff] %vm8198, %v8193
          %8227 = vst.msk [vmem:[#allocation4 + $0xe0] sm:$0xff] %vm8198, %v8194
          %8228 = vst.msk [vmem:[#allocation4 + $0xe8] sm:$0xff] %vm8198, %v8195
          %8229 = vst.msk [vmem:[#allocation4 + $0xf0] sm:$0xff] %vm8198, %v8196
          %8230 = vst.msk [vmem:[#allocation4 + $0xf8] sm:$0xff] %vm8198, %v8197
        $region90: #{l2norm_linear.1} parent=65 // pred_fallthru
          _
        // Predicated region
        $region91: #{l2norm_linear.1} parent=65 // pred_check
          %p8231 = pneg %p8097
        $region92: #{l2norm_linear.1} parent=65 // pred_check_branch
          %8233 = sbr.rel (%p8231) target = $region94
        $region93: #{l2norm_linear.1} parent=65 // pred_region
          %v8234 = vld [vmem:[#allocation2] sm:$0xff]
          %v8235 = vld [vmem:[#allocation2 + $0x8] sm:$0xff]
          %v8236 = vld [vmem:[#allocation2 + $0x10] sm:$0xff]
          %v8237 = vld [vmem:[#allocation2 + $0x18] sm:$0xff]
          %v8238 = vld [vmem:[#allocation2 + $0x20] sm:$0xff]
          %v8239 = vld [vmem:[#allocation2 + $0x28] sm:$0xff]
          %v8240 = vld [vmem:[#allocation2 + $0x30] sm:$0xff]
          %v8241 = vld [vmem:[#allocation2 + $0x38] sm:$0xff]
          %v8242 = vld [vmem:[#allocation2 + $0x40] sm:$0xff]
          %v8243 = vld [vmem:[#allocation2 + $0x48] sm:$0xff]
          %v8244 = vld [vmem:[#allocation2 + $0x50] sm:$0xff]
          %v8245 = vld [vmem:[#allocation2 + $0x58] sm:$0xff]
          %v8246 = vld [vmem:[#allocation2 + $0x60] sm:$0xff]
          %v8247 = vld [vmem:[#allocation2 + $0x68] sm:$0xff]
          %v8248 = vld [vmem:[#allocation2 + $0x70] sm:$0xff]
          %v8249 = vld [vmem:[#allocation2 + $0x78] sm:$0xff]
          %v8250 = vld [vmem:[#allocation2 + $0x80] sm:$0xff]
          %v8251 = vld [vmem:[#allocation2 + $0x88] sm:$0xff]
          %v8252 = vld [vmem:[#allocation2 + $0x90] sm:$0xff]
          %v8253 = vld [vmem:[#allocation2 + $0x98] sm:$0xff]
          %v8254 = vld [vmem:[#allocation2 + $0xa0] sm:$0xff]
          %v8255 = vld [vmem:[#allocation2 + $0xa8] sm:$0xff]
          %v8256 = vld [vmem:[#allocation2 + $0xb0] sm:$0xff]
          %v8257 = vld [vmem:[#allocation2 + $0xb8] sm:$0xff]
          %v8258 = vld [vmem:[#allocation2 + $0xc0] sm:$0xff]
          %v8259 = vld [vmem:[#allocation2 + $0xc8] sm:$0xff]
          %v8260 = vld [vmem:[#allocation2 + $0xd0] sm:$0xff]
          %v8261 = vld [vmem:[#allocation2 + $0xd8] sm:$0xff]
          %v8262 = vld [vmem:[#allocation2 + $0xe0] sm:$0xff]
          %v8263 = vld [vmem:[#allocation2 + $0xe8] sm:$0xff]
          %v8264 = vld [vmem:[#allocation2 + $0xf0] sm:$0xff]
          %v8265 = vld [vmem:[#allocation2 + $0xf8] sm:$0xff]
          %v8266 = vld [vmem:[#allocation2 + $0x100] sm:$0xff]
          %v8267 = vld [vmem:[#allocation2 + $0x108] sm:$0xff]
          %v8268 = vld [vmem:[#allocation2 + $0x110] sm:$0xff]
          %v8269 = vld [vmem:[#allocation2 + $0x118] sm:$0xff]
          %v8270 = vld [vmem:[#allocation2 + $0x120] sm:$0xff]
          %v8271 = vld [vmem:[#allocation2 + $0x128] sm:$0xff]
          %v8272 = vld [vmem:[#allocation2 + $0x130] sm:$0xff]
          %v8273 = vld [vmem:[#allocation2 + $0x138] sm:$0xff]
          %v8274 = vld [vmem:[#allocation2 + $0x140] sm:$0xff]
          %v8275 = vld [vmem:[#allocation2 + $0x148] sm:$0xff]
          %v8276 = vld [vmem:[#allocation2 + $0x150] sm:$0xff]
          %v8277 = vld [vmem:[#allocation2 + $0x158] sm:$0xff]
          %v8278 = vld [vmem:[#allocation2 + $0x160] sm:$0xff]
          %v8279 = vld [vmem:[#allocation2 + $0x168] sm:$0xff]
          %v8280 = vld [vmem:[#allocation2 + $0x170] sm:$0xff]
          %v8281 = vld [vmem:[#allocation2 + $0x178] sm:$0xff]
          %v8282 = vld [vmem:[#allocation2 + $0x180] sm:$0xff]
          %v8283 = vld [vmem:[#allocation2 + $0x188] sm:$0xff]
          %v8284 = vld [vmem:[#allocation2 + $0x190] sm:$0xff]
          %v8285 = vld [vmem:[#allocation2 + $0x198] sm:$0xff]
          %v8286 = vld [vmem:[#allocation2 + $0x1a0] sm:$0xff]
          %v8287 = vld [vmem:[#allocation2 + $0x1a8] sm:$0xff]
          %v8288 = vld [vmem:[#allocation2 + $0x1b0] sm:$0xff]
          %v8289 = vld [vmem:[#allocation2 + $0x1b8] sm:$0xff]
          %v8290 = vld [vmem:[#allocation2 + $0x1c0] sm:$0xff]
          %v8291 = vld [vmem:[#allocation2 + $0x1c8] sm:$0xff]
          %v8292 = vld [vmem:[#allocation2 + $0x1d0] sm:$0xff]
          %v8293 = vld [vmem:[#allocation2 + $0x1d8] sm:$0xff]
          %v8294 = vld [vmem:[#allocation2 + $0x1e0] sm:$0xff]
          %v8295 = vld [vmem:[#allocation2 + $0x1e8] sm:$0xff]
          %v8296 = vld [vmem:[#allocation2 + $0x1f0] sm:$0xff]
          %v8297 = vld [vmem:[#allocation2 + $0x1f8] sm:$0xff]
          %v8298 = vld [vmem:[#allocation4] sm:$0xff]
          %v8299 = vld [vmem:[#allocation4 + $0x8] sm:$0xff]
          %v8300 = vld [vmem:[#allocation4 + $0x10] sm:$0xff]
          %v8301 = vld [vmem:[#allocation4 + $0x18] sm:$0xff]
          %v8302 = vld [vmem:[#allocation4 + $0x20] sm:$0xff]
          %v8303 = vld [vmem:[#allocation4 + $0x28] sm:$0xff]
          %v8304 = vld [vmem:[#allocation4 + $0x30] sm:$0xff]
          %v8305 = vld [vmem:[#allocation4 + $0x38] sm:$0xff]
          %v8306 = vld [vmem:[#allocation4 + $0x40] sm:$0xff]
          %v8307 = vld [vmem:[#allocation4 + $0x48] sm:$0xff]
          %v8308 = vld [vmem:[#allocation4 + $0x50] sm:$0xff]
          %v8309 = vld [vmem:[#allocation4 + $0x58] sm:$0xff]
          %v8310 = vld [vmem:[#allocation4 + $0x60] sm:$0xff]
          %v8311 = vld [vmem:[#allocation4 + $0x68] sm:$0xff]
          %v8312 = vld [vmem:[#allocation4 + $0x70] sm:$0xff]
          %v8313 = vld [vmem:[#allocation4 + $0x78] sm:$0xff]
          %v8314 = vld [vmem:[#allocation4 + $0x80] sm:$0xff]
          %v8315 = vld [vmem:[#allocation4 + $0x88] sm:$0xff]
          %v8316 = vld [vmem:[#allocation4 + $0x90] sm:$0xff]
          %v8317 = vld [vmem:[#allocation4 + $0x98] sm:$0xff]
          %v8318 = vld [vmem:[#allocation4 + $0xa0] sm:$0xff]
          %v8319 = vld [vmem:[#allocation4 + $0xa8] sm:$0xff]
          %v8320 = vld [vmem:[#allocation4 + $0xb0] sm:$0xff]
          %v8321 = vld [vmem:[#allocation4 + $0xb8] sm:$0xff]
          %v8322 = vld [vmem:[#allocation4 + $0xc0] sm:$0xff]
          %v8323 = vld [vmem:[#allocation4 + $0xc8] sm:$0xff]
          %v8324 = vld [vmem:[#allocation4 + $0xd0] sm:$0xff]
          %v8325 = vld [vmem:[#allocation4 + $0xd8] sm:$0xff]
          %v8326 = vld [vmem:[#allocation4 + $0xe0] sm:$0xff]
          %v8327 = vld [vmem:[#allocation4 + $0xe8] sm:$0xff]
          %v8328 = vld [vmem:[#allocation4 + $0xf0] sm:$0xff]
          %v8329 = vld [vmem:[#allocation4 + $0xf8] sm:$0xff]
          %8331 = vset.pattern.permute.xlu0 0
          %8332 = vperm.xlu0 %8331, %v8298
          %v8333 = vpop.permute.xlu0 %8332
          %8336 = vset.pattern.permute.xlu0 0
          %8337 = vperm.xlu0 %8336, %v8299
          %v8338 = vpop.permute.xlu0 %8337
          %8341 = vset.pattern.permute.xlu0 0
          %8342 = vperm.xlu0 %8341, %v8300
          %v8343 = vpop.permute.xlu0 %8342
          %8346 = vset.pattern.permute.xlu0 0
          %8347 = vperm.xlu0 %8346, %v8301
          %v8348 = vpop.permute.xlu0 %8347
          %8351 = vset.pattern.permute.xlu0 0
          %8352 = vperm.xlu0 %8351, %v8302
          %v8353 = vpop.permute.xlu0 %8352
          %8356 = vset.pattern.permute.xlu0 0
          %8357 = vperm.xlu0 %8356, %v8303
          %v8358 = vpop.permute.xlu0 %8357
          %8361 = vset.pattern.permute.xlu0 0
          %8362 = vperm.xlu0 %8361, %v8304
          %v8363 = vpop.permute.xlu0 %8362
          %8366 = vset.pattern.permute.xlu0 0
          %8367 = vperm.xlu0 %8366, %v8305
          %v8368 = vpop.permute.xlu0 %8367
          %8371 = vset.pattern.permute.xlu0 0
          %8372 = vperm.xlu0 %8371, %v8306
          %v8373 = vpop.permute.xlu0 %8372
          %8376 = vset.pattern.permute.xlu0 0
          %8377 = vperm.xlu0 %8376, %v8307
          %v8378 = vpop.permute.xlu0 %8377
          %8381 = vset.pattern.permute.xlu0 0
          %8382 = vperm.xlu0 %8381, %v8308
          %v8383 = vpop.permute.xlu0 %8382
          %8386 = vset.pattern.permute.xlu0 0
          %8387 = vperm.xlu0 %8386, %v8309
          %v8388 = vpop.permute.xlu0 %8387
          %8391 = vset.pattern.permute.xlu0 0
          %8392 = vperm.xlu0 %8391, %v8310
          %v8393 = vpop.permute.xlu0 %8392
          %8396 = vset.pattern.permute.xlu0 0
          %8397 = vperm.xlu0 %8396, %v8311
          %v8398 = vpop.permute.xlu0 %8397
          %8401 = vset.pattern.permute.xlu0 0
          %8402 = vperm.xlu0 %8401, %v8312
          %v8403 = vpop.permute.xlu0 %8402
          %8406 = vset.pattern.permute.xlu0 0
          %8407 = vperm.xlu0 %8406, %v8313
          %v8408 = vpop.permute.xlu0 %8407
          %8411 = vset.pattern.permute.xlu0 0
          %8412 = vperm.xlu0 %8411, %v8314
          %v8413 = vpop.permute.xlu0 %8412
          %8416 = vset.pattern.permute.xlu0 0
          %8417 = vperm.xlu0 %8416, %v8315
          %v8418 = vpop.permute.xlu0 %8417
          %8421 = vset.pattern.permute.xlu0 0
          %8422 = vperm.xlu0 %8421, %v8316
          %v8423 = vpop.permute.xlu0 %8422
          %8426 = vset.pattern.permute.xlu0 0
          %8427 = vperm.xlu0 %8426, %v8317
          %v8428 = vpop.permute.xlu0 %8427
          %8431 = vset.pattern.permute.xlu0 0
          %8432 = vperm.xlu0 %8431, %v8318
          %v8433 = vpop.permute.xlu0 %8432
          %8436 = vset.pattern.permute.xlu0 0
          %8437 = vperm.xlu0 %8436, %v8319
          %v8438 = vpop.permute.xlu0 %8437
          %8441 = vset.pattern.permute.xlu0 0
          %8442 = vperm.xlu0 %8441, %v8320
          %v8443 = vpop.permute.xlu0 %8442
          %8446 = vset.pattern.permute.xlu0 0
          %8447 = vperm.xlu0 %8446, %v8321
          %v8448 = vpop.permute.xlu0 %8447
          %8451 = vset.pattern.permute.xlu0 0
          %8452 = vperm.xlu0 %8451, %v8322
          %v8453 = vpop.permute.xlu0 %8452
          %8456 = vset.pattern.permute.xlu0 0
          %8457 = vperm.xlu0 %8456, %v8323
          %v8458 = vpop.permute.xlu0 %8457
          %8461 = vset.pattern.permute.xlu0 0
          %8462 = vperm.xlu0 %8461, %v8324
          %v8463 = vpop.permute.xlu0 %8462
          %8466 = vset.pattern.permute.xlu0 0
          %8467 = vperm.xlu0 %8466, %v8325
          %v8468 = vpop.permute.xlu0 %8467
          %8471 = vset.pattern.permute.xlu0 0
          %8472 = vperm.xlu0 %8471, %v8326
          %v8473 = vpop.permute.xlu0 %8472
          %8476 = vset.pattern.permute.xlu0 0
          %8477 = vperm.xlu0 %8476, %v8327
          %v8478 = vpop.permute.xlu0 %8477
          %8481 = vset.pattern.permute.xlu0 0
          %8482 = vperm.xlu0 %8481, %v8328
          %v8483 = vpop.permute.xlu0 %8482
          %8486 = vset.pattern.permute.xlu0 0
          %8487 = vperm.xlu0 %8486, %v8329
          %v8488 = vpop.permute.xlu0 %8487
          %v8490 = vmul.f32 %v8234, %v8333
          %v8491 = vmul.f32 %v8235, %v8333
          %v8492 = vmul.f32 %v8236, %v8338
          %v8493 = vmul.f32 %v8237, %v8338
          %v8494 = vmul.f32 %v8238, %v8343
          %v8495 = vmul.f32 %v8239, %v8343
          %v8496 = vmul.f32 %v8240, %v8348
          %v8497 = vmul.f32 %v8241, %v8348
          %v8498 = vmul.f32 %v8242, %v8353
          %v8499 = vmul.f32 %v8243, %v8353
          %v8500 = vmul.f32 %v8244, %v8358
          %v8501 = vmul.f32 %v8245, %v8358
          %v8502 = vmul.f32 %v8246, %v8363
          %v8503 = vmul.f32 %v8247, %v8363
          %v8504 = vmul.f32 %v8248, %v8368
          %v8505 = vmul.f32 %v8249, %v8368
          %v8506 = vmul.f32 %v8250, %v8373
          %v8507 = vmul.f32 %v8251, %v8373
          %v8508 = vmul.f32 %v8252, %v8378
          %v8509 = vmul.f32 %v8253, %v8378
          %v8510 = vmul.f32 %v8254, %v8383
          %v8511 = vmul.f32 %v8255, %v8383
          %v8512 = vmul.f32 %v8256, %v8388
          %v8513 = vmul.f32 %v8257, %v8388
          %v8514 = vmul.f32 %v8258, %v8393
          %v8515 = vmul.f32 %v8259, %v8393
          %v8516 = vmul.f32 %v8260, %v8398
          %v8517 = vmul.f32 %v8261, %v8398
          %v8518 = vmul.f32 %v8262, %v8403
          %v8519 = vmul.f32 %v8263, %v8403
          %v8520 = vmul.f32 %v8264, %v8408
          %v8521 = vmul.f32 %v8265, %v8408
          %v8522 = vmul.f32 %v8266, %v8413
          %v8523 = vmul.f32 %v8267, %v8413
          %v8524 = vmul.f32 %v8268, %v8418
          %v8525 = vmul.f32 %v8269, %v8418
          %v8526 = vmul.f32 %v8270, %v8423
          %v8527 = vmul.f32 %v8271, %v8423
          %v8528 = vmul.f32 %v8272, %v8428
          %v8529 = vmul.f32 %v8273, %v8428
          %v8530 = vmul.f32 %v8274, %v8433
          %v8531 = vmul.f32 %v8275, %v8433
          %v8532 = vmul.f32 %v8276, %v8438
          %v8533 = vmul.f32 %v8277, %v8438
          %v8534 = vmul.f32 %v8278, %v8443
          %v8535 = vmul.f32 %v8279, %v8443
          %v8536 = vmul.f32 %v8280, %v8448
          %v8537 = vmul.f32 %v8281, %v8448
          %v8538 = vmul.f32 %v8282, %v8453
          %v8539 = vmul.f32 %v8283, %v8453
          %v8540 = vmul.f32 %v8284, %v8458
          %v8541 = vmul.f32 %v8285, %v8458
          %v8542 = vmul.f32 %v8286, %v8463
          %v8543 = vmul.f32 %v8287, %v8463
          %v8544 = vmul.f32 %v8288, %v8468
          %v8545 = vmul.f32 %v8289, %v8468
          %v8546 = vmul.f32 %v8290, %v8473
          %v8547 = vmul.f32 %v8291, %v8473
          %v8548 = vmul.f32 %v8292, %v8478
          %v8549 = vmul.f32 %v8293, %v8478
          %v8550 = vmul.f32 %v8294, %v8483
          %v8551 = vmul.f32 %v8295, %v8483
          %v8552 = vmul.f32 %v8296, %v8488
          %v8553 = vmul.f32 %v8297, %v8488
          %8554 = vst [vmem:[%s736] sm:$0xff] %v8490
          %8555 = vst [vmem:[%s736 + $0x8] sm:$0xff] %v8491
          %8556 = vst [vmem:[%s736 + $0x10] sm:$0xff] %v8492
          %8557 = vst [vmem:[%s736 + $0x18] sm:$0xff] %v8493
          %8558 = vst [vmem:[%s736 + $0x20] sm:$0xff] %v8494
          %8559 = vst [vmem:[%s736 + $0x28] sm:$0xff] %v8495
          %8560 = vst [vmem:[%s736 + $0x30] sm:$0xff] %v8496
          %8561 = vst [vmem:[%s736 + $0x38] sm:$0xff] %v8497
          %8562 = vst [vmem:[%s736 + $0x40] sm:$0xff] %v8498
          %8563 = vst [vmem:[%s736 + $0x48] sm:$0xff] %v8499
          %8564 = vst [vmem:[%s736 + $0x50] sm:$0xff] %v8500
          %8565 = vst [vmem:[%s736 + $0x58] sm:$0xff] %v8501
          %8566 = vst [vmem:[%s736 + $0x60] sm:$0xff] %v8502
          %8567 = vst [vmem:[%s736 + $0x68] sm:$0xff] %v8503
          %8568 = vst [vmem:[%s736 + $0x70] sm:$0xff] %v8504
          %8569 = vst [vmem:[%s736 + $0x78] sm:$0xff] %v8505
          %8570 = vst [vmem:[%s736 + $0x80] sm:$0xff] %v8506
          %8571 = vst [vmem:[%s736 + $0x88] sm:$0xff] %v8507
          %8572 = vst [vmem:[%s736 + $0x90] sm:$0xff] %v8508
          %8573 = vst [vmem:[%s736 + $0x98] sm:$0xff] %v8509
          %8574 = vst [vmem:[%s736 + $0xa0] sm:$0xff] %v8510
          %8575 = vst [vmem:[%s736 + $0xa8] sm:$0xff] %v8511
          %8576 = vst [vmem:[%s736 + $0xb0] sm:$0xff] %v8512
          %8577 = vst [vmem:[%s736 + $0xb8] sm:$0xff] %v8513
          %8578 = vst [vmem:[%s736 + $0xc0] sm:$0xff] %v8514
          %8579 = vst [vmem:[%s736 + $0xc8] sm:$0xff] %v8515
          %8580 = vst [vmem:[%s736 + $0xd0] sm:$0xff] %v8516
          %8581 = vst [vmem:[%s736 + $0xd8] sm:$0xff] %v8517
          %8582 = vst [vmem:[%s736 + $0xe0] sm:$0xff] %v8518
          %8583 = vst [vmem:[%s736 + $0xe8] sm:$0xff] %v8519
          %8584 = vst [vmem:[%s736 + $0xf0] sm:$0xff] %v8520
          %8585 = vst [vmem:[%s736 + $0xf8] sm:$0xff] %v8521
          %8586 = vst [vmem:[%s736 + $0x100] sm:$0xff] %v8522
          %8587 = vst [vmem:[%s736 + $0x108] sm:$0xff] %v8523
          %8588 = vst [vmem:[%s736 + $0x110] sm:$0xff] %v8524
          %8589 = vst [vmem:[%s736 + $0x118] sm:$0xff] %v8525
          %8590 = vst [vmem:[%s736 + $0x120] sm:$0xff] %v8526
          %8591 = vst [vmem:[%s736 + $0x128] sm:$0xff] %v8527
          %8592 = vst [vmem:[%s736 + $0x130] sm:$0xff] %v8528
          %8593 = vst [vmem:[%s736 + $0x138] sm:$0xff] %v8529
          %8594 = vst [vmem:[%s736 + $0x140] sm:$0xff] %v8530
          %8595 = vst [vmem:[%s736 + $0x148] sm:$0xff] %v8531
          %8596 = vst [vmem:[%s736 + $0x150] sm:$0xff] %v8532
          %8597 = vst [vmem:[%s736 + $0x158] sm:$0xff] %v8533
          %8598 = vst [vmem:[%s736 + $0x160] sm:$0xff] %v8534
          %8599 = vst [vmem:[%s736 + $0x168] sm:$0xff] %v8535
          %8600 = vst [vmem:[%s736 + $0x170] sm:$0xff] %v8536
          %8601 = vst [vmem:[%s736 + $0x178] sm:$0xff] %v8537
          %8602 = vst [vmem:[%s736 + $0x180] sm:$0xff] %v8538
          %8603 = vst [vmem:[%s736 + $0x188] sm:$0xff] %v8539
          %8604 = vst [vmem:[%s736 + $0x190] sm:$0xff] %v8540
          %8605 = vst [vmem:[%s736 + $0x198] sm:$0xff] %v8541
          %8606 = vst [vmem:[%s736 + $0x1a0] sm:$0xff] %v8542
          %8607 = vst [vmem:[%s736 + $0x1a8] sm:$0xff] %v8543
          %8608 = vst [vmem:[%s736 + $0x1b0] sm:$0xff] %v8544
          %8609 = vst [vmem:[%s736 + $0x1b8] sm:$0xff] %v8545
          %8610 = vst [vmem:[%s736 + $0x1c0] sm:$0xff] %v8546
          %8611 = vst [vmem:[%s736 + $0x1c8] sm:$0xff] %v8547
          %8612 = vst [vmem:[%s736 + $0x1d0] sm:$0xff] %v8548
          %8613 = vst [vmem:[%s736 + $0x1d8] sm:$0xff] %v8549
          %8614 = vst [vmem:[%s736 + $0x1e0] sm:$0xff] %v8550
          %8615 = vst [vmem:[%s736 + $0x1e8] sm:$0xff] %v8551
          %8616 = vst [vmem:[%s736 + $0x1f0] sm:$0xff] %v8552
          %8617 = vst [vmem:[%s736 + $0x1f8] sm:$0xff] %v8553
        $region94: #{l2norm_linear.1} parent=65 // pred_fallthru
          _
        %s8618 = sand.u32 %s98, 1
        %s8619 = sand.u32 %s98, 1
        %s8620 = smul.addr %s8619, 512
        %s8621 = scalar_lea.vmem [#allocation7], %s8620
        // Predicated region
        $region95: #{l2norm_linear.1} parent=65 // pred_check
          %p8622 = pneg %p108
        $region96: #{l2norm_linear.1} parent=65 // pred_check_branch
          %8624 = sbr.rel (%p8622) target = $region98
        $region97: #{l2norm_linear.1} parent=65 // pred_region
          %s8625 = smul.u32 32, %s18
          %s8626 = smul.u32 2, %s19
          %s8627 = smul.addr %s8625, 4
          %s8628 = sadd.s32 %s8626, %s8627
          %s8629 = smul.addr %s8628, 8
          %s8630 = scalar_lea.vmem %s2, %s8629
          // Predicated region
          $region99: #{l2norm_linear.1} parent=97 // pred_check
            _
          $region100: #{l2norm_linear.1} parent=97 // pred_check_branch
            %8632 = sbr.rel (0) target = $region102
          $region101: #{l2norm_linear.1} parent=97 // pred_region
            // Predicated region
            $region103: #{l2norm_linear.1} parent=101 // pred_check
              _
            $region104: #{l2norm_linear.1} parent=101 // pred_check_branch
              %8634 = sbr.rel (0) target = $region106
            $region105: #{l2norm_linear.1} parent=101 // pred_region
              loop: start=0, step=1, limit=1
              $region107: #{l2norm_linear.1} parent=105 // loop_pre_header
                _
              $region108: #{l2norm_linear.1} parent=105 // loop_header
                %s8636 = sphi 0, %s8640
                %p8637 = scmp.ge.s32.totalorder %s8636, 1
                %s8641 = sphi %s8621, %s8621
                %s8642 = sphi %s8630, %s8630
              $region109: #{l2norm_linear.1} parent=105 // loop_header_branch
                %8639 = sbr.rel (%p8637) target = $region113
              $region110: #{l2norm_linear.1} parent=105 // loop_body
                %v8643 = vld [vmem:[%s8641] sm:$0xff]
                %8644 = vst [vmem:[%s8642] sm:$0xff] %v8643
                %v8645 = vld [vmem:[%s8641 + $0x8] sm:$0xff]
                %8646 = vst [vmem:[%s8642 + $0x8] sm:$0xff] %v8645
                %v8647 = vld [vmem:[%s8641 + $0x10] sm:$0xff]
                %8648 = vst [vmem:[%s8642 + $0x20] sm:$0xff] %v8647
                %v8649 = vld [vmem:[%s8641 + $0x18] sm:$0xff]
                %8650 = vst [vmem:[%s8642 + $0x28] sm:$0xff] %v8649
                %v8651 = vld [vmem:[%s8641 + $0x20] sm:$0xff]
                %8652 = vst [vmem:[%s8642 + $0x40] sm:$0xff] %v8651
                %v8653 = vld [vmem:[%s8641 + $0x28] sm:$0xff]
                %8654 = vst [vmem:[%s8642 + $0x48] sm:$0xff] %v8653
                %v8655 = vld [vmem:[%s8641 + $0x30] sm:$0xff]
                %8656 = vst [vmem:[%s8642 + $0x60] sm:$0xff] %v8655
                %v8657 = vld [vmem:[%s8641 + $0x38] sm:$0xff]
                %8658 = vst [vmem:[%s8642 + $0x68] sm:$0xff] %v8657
                %v8659 = vld [vmem:[%s8641 + $0x40] sm:$0xff]
                %8660 = vst [vmem:[%s8642 + $0x80] sm:$0xff] %v8659
                %v8661 = vld [vmem:[%s8641 + $0x48] sm:$0xff]
                %8662 = vst [vmem:[%s8642 + $0x88] sm:$0xff] %v8661
                %v8663 = vld [vmem:[%s8641 + $0x50] sm:$0xff]
                %8664 = vst [vmem:[%s8642 + $0xa0] sm:$0xff] %v8663
                %v8665 = vld [vmem:[%s8641 + $0x58] sm:$0xff]
                %8666 = vst [vmem:[%s8642 + $0xa8] sm:$0xff] %v8665
                %v8667 = vld [vmem:[%s8641 + $0x60] sm:$0xff]
                %8668 = vst [vmem:[%s8642 + $0xc0] sm:$0xff] %v8667
                %v8669 = vld [vmem:[%s8641 + $0x68] sm:$0xff]
                %8670 = vst [vmem:[%s8642 + $0xc8] sm:$0xff] %v8669
                %v8671 = vld [vmem:[%s8641 + $0x70] sm:$0xff]
                %8672 = vst [vmem:[%s8642 + $0xe0] sm:$0xff] %v8671
                %v8673 = vld [vmem:[%s8641 + $0x78] sm:$0xff]
                %8674 = vst [vmem:[%s8642 + $0xe8] sm:$0xff] %v8673
                %v8675 = vld [vmem:[%s8641 + $0x80] sm:$0xff]
                %8676 = vst [vmem:[%s8642 + $0x100] sm:$0xff] %v8675
                %v8677 = vld [vmem:[%s8641 + $0x88] sm:$0xff]
                %8678 = vst [vmem:[%s8642 + $0x108] sm:$0xff] %v8677
                %v8679 = vld [vmem:[%s8641 + $0x90] sm:$0xff]
                %8680 = vst [vmem:[%s8642 + $0x120] sm:$0xff] %v8679
                %v8681 = vld [vmem:[%s8641 + $0x98] sm:$0xff]
                %8682 = vst [vmem:[%s8642 + $0x128] sm:$0xff] %v8681
                %v8683 = vld [vmem:[%s8641 + $0xa0] sm:$0xff]
                %8684 = vst [vmem:[%s8642 + $0x140] sm:$0xff] %v8683
                %v8685 = vld [vmem:[%s8641 + $0xa8] sm:$0xff]
                %8686 = vst [vmem:[%s8642 + $0x148] sm:$0xff] %v8685
                %v8687 = vld [vmem:[%s8641 + $0xb0] sm:$0xff]
                %8688 = vst [vmem:[%s8642 + $0x160] sm:$0xff] %v8687
                %v8689 = vld [vmem:[%s8641 + $0xb8] sm:$0xff]
                %8690 = vst [vmem:[%s8642 + $0x168] sm:$0xff] %v8689
                %v8691 = vld [vmem:[%s8641 + $0xc0] sm:$0xff]
                %8692 = vst [vmem:[%s8642 + $0x180] sm:$0xff] %v8691
                %v8693 = vld [vmem:[%s8641 + $0xc8] sm:$0xff]
                %8694 = vst [vmem:[%s8642 + $0x188] sm:$0xff] %v8693
                %v8695 = vld [vmem:[%s8641 + $0xd0] sm:$0xff]
                %8696 = vst [vmem:[%s8642 + $0x1a0] sm:$0xff] %v8695
                %v8697 = vld [vmem:[%s8641 + $0xd8] sm:$0xff]
                %8698 = vst [vmem:[%s8642 + $0x1a8] sm:$0xff] %v8697
                %v8699 = vld [vmem:[%s8641 + $0xe0] sm:$0xff]
                %8700 = vst [vmem:[%s8642 + $0x1c0] sm:$0xff] %v8699
                %v8701 = vld [vmem:[%s8641 + $0xe8] sm:$0xff]
                %8702 = vst [vmem:[%s8642 + $0x1c8] sm:$0xff] %v8701
                %v8703 = vld [vmem:[%s8641 + $0xf0] sm:$0xff]
                %8704 = vst [vmem:[%s8642 + $0x1e0] sm:$0xff] %v8703
                %v8705 = vld [vmem:[%s8641 + $0xf8] sm:$0xff]
                %8706 = vst [vmem:[%s8642 + $0x1e8] sm:$0xff] %v8705
                %v8707 = vld [vmem:[%s8641 + $0x100] sm:$0xff]
                %8708 = vst [vmem:[%s8642 + $0x200] sm:$0xff] %v8707
                %v8709 = vld [vmem:[%s8641 + $0x108] sm:$0xff]
                %8710 = vst [vmem:[%s8642 + $0x208] sm:$0xff] %v8709
                %v8711 = vld [vmem:[%s8641 + $0x110] sm:$0xff]
                %8712 = vst [vmem:[%s8642 + $0x220] sm:$0xff] %v8711
                %v8713 = vld [vmem:[%s8641 + $0x118] sm:$0xff]
                %8714 = vst [vmem:[%s8642 + $0x228] sm:$0xff] %v8713
                %v8715 = vld [vmem:[%s8641 + $0x120] sm:$0xff]
                %8716 = vst [vmem:[%s8642 + $0x240] sm:$0xff] %v8715
                %v8717 = vld [vmem:[%s8641 + $0x128] sm:$0xff]
                %8718 = vst [vmem:[%s8642 + $0x248] sm:$0xff] %v8717
                %v8719 = vld [vmem:[%s8641 + $0x130] sm:$0xff]
                %8720 = vst [vmem:[%s8642 + $0x260] sm:$0xff] %v8719
                %v8721 = vld [vmem:[%s8641 + $0x138] sm:$0xff]
                %8722 = vst [vmem:[%s8642 + $0x268] sm:$0xff] %v8721
                %v8723 = vld [vmem:[%s8641 + $0x140] sm:$0xff]
                %8724 = vst [vmem:[%s8642 + $0x280] sm:$0xff] %v8723
                %v8725 = vld [vmem:[%s8641 + $0x148] sm:$0xff]
                %8726 = vst [vmem:[%s8642 + $0x288] sm:$0xff] %v8725
                %v8727 = vld [vmem:[%s8641 + $0x150] sm:$0xff]
                %8728 = vst [vmem:[%s8642 + $0x2a0] sm:$0xff] %v8727
                %v8729 = vld [vmem:[%s8641 + $0x158] sm:$0xff]
                %8730 = vst [vmem:[%s8642 + $0x2a8] sm:$0xff] %v8729
                %v8731 = vld [vmem:[%s8641 + $0x160] sm:$0xff]
                %8732 = vst [vmem:[%s8642 + $0x2c0] sm:$0xff] %v8731
                %v8733 = vld [vmem:[%s8641 + $0x168] sm:$0xff]
                %8734 = vst [vmem:[%s8642 + $0x2c8] sm:$0xff] %v8733
                %v8735 = vld [vmem:[%s8641 + $0x170] sm:$0xff]
                %8736 = vst [vmem:[%s8642 + $0x2e0] sm:$0xff] %v8735
                %v8737 = vld [vmem:[%s8641 + $0x178] sm:$0xff]
                %8738 = vst [vmem:[%s8642 + $0x2e8] sm:$0xff] %v8737
                %v8739 = vld [vmem:[%s8641 + $0x180] sm:$0xff]
                %8740 = vst [vmem:[%s8642 + $0x300] sm:$0xff] %v8739
                %v8741 = vld [vmem:[%s8641 + $0x188] sm:$0xff]
                %8742 = vst [vmem:[%s8642 + $0x308] sm:$0xff] %v8741
                %v8743 = vld [vmem:[%s8641 + $0x190] sm:$0xff]
                %8744 = vst [vmem:[%s8642 + $0x320] sm:$0xff] %v8743
                %v8745 = vld [vmem:[%s8641 + $0x198] sm:$0xff]
                %8746 = vst [vmem:[%s8642 + $0x328] sm:$0xff] %v8745
                %v8747 = vld [vmem:[%s8641 + $0x1a0] sm:$0xff]
                %8748 = vst [vmem:[%s8642 + $0x340] sm:$0xff] %v8747
                %v8749 = vld [vmem:[%s8641 + $0x1a8] sm:$0xff]
                %8750 = vst [vmem:[%s8642 + $0x348] sm:$0xff] %v8749
                %v8751 = vld [vmem:[%s8641 + $0x1b0] sm:$0xff]
                %8752 = vst [vmem:[%s8642 + $0x360] sm:$0xff] %v8751
                %v8753 = vld [vmem:[%s8641 + $0x1b8] sm:$0xff]
                %8754 = vst [vmem:[%s8642 + $0x368] sm:$0xff] %v8753
                %v8755 = vld [vmem:[%s8641 + $0x1c0] sm:$0xff]
                %8756 = vst [vmem:[%s8642 + $0x380] sm:$0xff] %v8755
                %v8757 = vld [vmem:[%s8641 + $0x1c8] sm:$0xff]
                %8758 = vst [vmem:[%s8642 + $0x388] sm:$0xff] %v8757
                %v8759 = vld [vmem:[%s8641 + $0x1d0] sm:$0xff]
                %8760 = vst [vmem:[%s8642 + $0x3a0] sm:$0xff] %v8759
                %v8761 = vld [vmem:[%s8641 + $0x1d8] sm:$0xff]
                %8762 = vst [vmem:[%s8642 + $0x3a8] sm:$0xff] %v8761
                %v8763 = vld [vmem:[%s8641 + $0x1e0] sm:$0xff]
                %8764 = vst [vmem:[%s8642 + $0x3c0] sm:$0xff] %v8763
                %v8765 = vld [vmem:[%s8641 + $0x1e8] sm:$0xff]
                %8766 = vst [vmem:[%s8642 + $0x3c8] sm:$0xff] %v8765
                %v8767 = vld [vmem:[%s8641 + $0x1f0] sm:$0xff]
                %8768 = vst [vmem:[%s8642 + $0x3e0] sm:$0xff] %v8767
                %v8769 = vld [vmem:[%s8641 + $0x1f8] sm:$0xff]
                %8770 = vst [vmem:[%s8642 + $0x3e8] sm:$0xff] %v8769
              $region111: #{l2norm_linear.1} parent=105 // loop_footer
                %s8640 = sadd.s32 1, %s8636
              $region112: #{l2norm_linear.1} parent=105 // loop_footer_branch
                %8635 = sbr.rel target = $region108
              $region113: #{l2norm_linear.1} parent=105 // loop_exit
                _
            $region106: #{l2norm_linear.1} parent=101 // pred_fallthru
              _
            // Predicated region
            $region114: #{l2norm_linear.1} parent=101 // pred_check
              _
            $region115: #{l2norm_linear.1} parent=101 // pred_check_branch
              %8772 = sbr.rel target = $region117
            $region116: #{l2norm_linear.1} parent=101 // pred_region
              _
            $region117: #{l2norm_linear.1} parent=101 // pred_fallthru
              _
          $region102: #{l2norm_linear.1} parent=97 // pred_fallthru
            _
          %8773 = vnop
        $region98: #{l2norm_linear.1} parent=65 // pred_fallthru
          _
      $region66: #{l2norm_linear.1} parent=5 // pred_fallthru
        _
      %p8774 = scmp.le.s32.totalorder 2, %s8
      // Predicated region
      $region118: #{l2norm_linear.1} parent=5 // pred_check
        %p8775 = pneg %p8774
      $region119: #{l2norm_linear.1} parent=5 // pred_check_branch
        %8777 = sbr.rel (%p8775) target = $region121
      $region120: #{l2norm_linear.1} parent=5 // pred_region
        %s8778 = ssub.s32 %s8, 2
        // Predicated region
        $region122: #{l2norm_linear.1} parent=120 // pred_check
          %p8779 = pneg %p114
        $region123: #{l2norm_linear.1} parent=120 // pred_check_branch
          %8781 = sbr.rel (%p8779) target = $region125
        $region124: #{l2norm_linear.1} parent=120 // pred_region
          %s8782 = sand.u32 %s99, 1
          %s8783 = sand.u32 %s99, 1
          %s8784 = smul.addr %s8783, 512
          %s8785 = scalar_lea.vmem [#allocation7], %s8784
        $region125: #{l2norm_linear.1} parent=120 // pred_fallthru
          _
      $region121: #{l2norm_linear.1} parent=5 // pred_fallthru
        _
    $region6: #{l2norm_linear.1} parent=1 // loop_footer
      %s12 = sadd.s32 1, %s8
    $region7: #{l2norm_linear.1} parent=1 // loop_footer_branch
      %7 = sbr.rel target = $region3
    $region8: #{l2norm_linear.1} parent=1 // loop_exit
      _

</llo_original>
